<compile_context>
chip_gen: v6e
topology: v6e:2x2x1
jax: 0.10.0
libtpu: 0.0.40
codegen_flags: <defaults>
</compile_context>

<pallas_src>
import math

import jax
import jax.numpy as jnp
from jax.experimental import pallas as pl
from jax.experimental.pallas import tpu as pltpu

HIDDEN = 750        # hard-coded in the PyTorch module
HIDDEN_PAD = 768    # zero-padded hidden width (3x256 MXU / 6x128 lanes)

PARAM_ORDER = (
    "w_e1", "b_e1",
    "w_e2", "b_e2",
    "w_ms", "b_ms",
    "w_d1_s", "w_d1_z", "b_d1",
    "w_d2", "b_d2",
    "w_d3", "b_d3",
)


def build_vae_kernel(latent_dim: int, action_dim: int, out_width: int,
                     max_action: float):
    """Whole forward pass (encoder, reparameterization, decoder) for one batch
    tile, fully inside one kernel invocation."""

    L, A = latent_dim, action_dim

    def kernel(sa_ref, state_ref, eps_ref,
               w_e1_ref, b_e1_ref,
               w_e2_ref, b_e2_ref,
               w_ms_ref, b_ms_ref,
               w_d1_s_ref, w_d1_z_ref, b_d1_ref,
               w_d2_ref, b_d2_ref,
               w_d3_ref, b_d3_ref,
               out_ref):
        f32 = jnp.float32
        bf16 = jnp.bfloat16

        sa = sa_ref[...].astype(bf16)        # [TB, S+A]  (host-concatenated)
        state = state_ref[...].astype(bf16)  # [TB, S]
        eps = eps_ref[...].astype(f32)       # [TB, L]

        # ---------------- encoder ----------------
        h = jnp.dot(sa, w_e1_ref[...], preferred_element_type=f32) + b_e1_ref[...]
        h = jnp.maximum(h, 0.0)                                   # relu (f32)
        h = (jnp.dot(h.astype(bf16), w_e2_ref[...], preferred_element_type=f32)
             + b_e2_ref[...])
        h = jnp.maximum(h, 0.0)                                   # relu (f32)

        # mean & log_std heads fused into one matmul: (TB, 768) @ (768, 2L)
        ms = (jnp.dot(h.astype(bf16), w_ms_ref[...], preferred_element_type=f32)
              + b_ms_ref[...])
        mean = ms[:, :L]
        log_std = jnp.clip(ms[:, L:], -4.0, 15.0)
        std = jnp.exp(log_std)

        # reparameterization: z = mean + std * eps  (eps ~ N(0,1) from host RNG)
        z = mean + std * eps

        # ---------------- decoder ----------------
        # d1(cat[state, z]) == state @ W_s + z @ W_z + b  (no in-kernel concat)
        a = (jnp.dot(state, w_d1_s_ref[...], preferred_element_type=f32)
             + jnp.dot(z.astype(bf16), w_d1_z_ref[...], preferred_element_type=f32)
             + b_d1_ref[...])
        a = jnp.maximum(a, 0.0)                                   # relu (f32)
        a = (jnp.dot(a.astype(bf16), w_d2_ref[...], preferred_element_type=f32)
             + b_d2_ref[...])
        a = jnp.maximum(a, 0.0)                                   # relu (f32)
        u = max_action * jnp.tanh(
            jnp.dot(a.astype(bf16), w_d3_ref[...], preferred_element_type=f32)
            + b_d3_ref[...])

        # Single lane-dense output slab: [u | mean | std | zero pad] -> 128 lanes.
        tb = u.shape[0]
        pad = jnp.zeros((tb, out_width - (A + 2 * L)), f32)
        out_ref[...] = jnp.concatenate([u, mean, std, pad], axis=1).astype(out_ref.dtype)

    return kernel


def init_params(key, state_dim, action_dim, latent_dim, hidden=HIDDEN):
    """PyTorch nn.Linear default init (U(-1/sqrt(fan_in), 1/sqrt(fan_in))),
    weights stored transposed as (in, out), biases as (1, out). Unpadded f32
    "torch-like" parameters — used directly by the pure-JAX reference."""

    def linear(k, fan_in, fan_out):
        kw, kb = jax.random.split(k)
        bound = 1.0 / math.sqrt(fan_in)
        w = jax.random.uniform(kw, (fan_in, fan_out), jnp.float32, -bound, bound)
        b = jax.random.uniform(kb, (1, fan_out), jnp.float32, -bound, bound)
        return w, b

    keys = jax.random.split(key, 7)
    w_e1, b_e1 = linear(keys[0], state_dim + action_dim, hidden)
    w_e2, b_e2 = linear(keys[1], hidden, hidden)
    w_mean, b_mean = linear(keys[2], hidden, latent_dim)
    w_lstd, b_lstd = linear(keys[3], hidden, latent_dim)
    w_d1, b_d1 = linear(keys[4], state_dim + latent_dim, hidden)
    w_d2, b_d2 = linear(keys[5], hidden, hidden)
    w_d3, b_d3 = linear(keys[6], hidden, action_dim)

    return dict(w_e1=w_e1, b_e1=b_e1, w_e2=w_e2, b_e2=b_e2,
                w_mean=w_mean, b_mean=b_mean, w_lstd=w_lstd, b_lstd=b_lstd,
                w_d1=w_d1, b_d1=b_d1, w_d2=w_d2, b_d2=b_d2,
                w_d3=w_d3, b_d3=b_d3)


def pack_params(p, state_dim, action_dim, latent_dim,
                hidden=HIDDEN, hidden_pad=HIDDEN_PAD):
    """Kernel-side parameter layout: hidden padded 750->768 with zeros (exact),
    big weights cast to bfloat16, biases kept f32, mean/log_std heads packed,
    d1 split into (state, latent) halves."""
    ph = hidden_pad - hidden
    bf16 = jnp.bfloat16

    def pad_out(w):   # pad last (hidden-out) dim
        return jnp.pad(w, ((0, 0), (0, ph)))

    def pad_in(w):    # pad first (hidden-in) dim
        return jnp.pad(w, ((0, ph), (0, 0)))

    w_d1_padded = pad_out(p["w_d1"])
    return dict(
        w_e1=pad_out(p["w_e1"]).astype(bf16),
        b_e1=pad_out(p["b_e1"]),
        w_e2=jnp.pad(p["w_e2"], ((0, ph), (0, ph))).astype(bf16),
        b_e2=pad_out(p["b_e2"]),
        # mean & log_std heads packed: single (768, 2L) matmul inside the kernel
        w_ms=pad_in(jnp.concatenate([p["w_mean"], p["w_lstd"]], axis=1)).astype(bf16),
        b_ms=jnp.concatenate([p["b_mean"], p["b_lstd"]], axis=1),
        # d1 split into state/latent halves -> no in-kernel concat
        w_d1_s=w_d1_padded[:state_dim].astype(bf16),
        w_d1_z=w_d1_padded[state_dim:].astype(bf16),
        b_d1=pad_out(p["b_d1"]),
        w_d2=jnp.pad(p["w_d2"], ((0, ph), (0, ph))).astype(bf16),
        b_d2=pad_out(p["b_d2"]),
        w_d3=pad_in(p["w_d3"]).astype(bf16),
        b_d3=p["b_d3"],
    )


def vae_forward(state, action, eps, packed_params, max_action, batch_tile=None):
    B, S = state.shape
    A = action.shape[1]
    L = eps.shape[1]

    if batch_tile is None:
        # One fat grid step unless the batch is huge (weights stay resident,
        # no per-step pipeline overhead). For huge batches use 512-row tiles.
        batch_tile = B if B <= 1024 else 512
    assert B % batch_tile == 0, "batch must be divisible by batch_tile"
    if batch_tile != B:
        assert batch_tile % 8 == 0, "partial batch tiles must be sublane-aligned"

    out_cols = A + 2 * L
    out_width = ((out_cols + 127) // 128) * 128   # lane-dense, unmasked stores

    kernel = build_vae_kernel(L, A, out_width, float(max_action))
    param_list = [packed_params[name] for name in PARAM_ORDER]

    # Host-side concat: e1 becomes a single (B, S+A) @ (S+A, 768) matmul.
    sa = jnp.concatenate([state, action], axis=1)

    def batch_spec(d):
        return pl.BlockSpec((batch_tile, d), lambda i: (i, 0))

    # Whole-array blocks with a constant index map: fetched once, resident.
    param_specs = [pl.BlockSpec(p.shape, lambda i: (0, 0)) for p in param_list]

    out = pl.pallas_call(
        kernel,
        out_shape=jax.ShapeDtypeStruct((B, out_width), jnp.float32),
        grid=(B // batch_tile,),
        in_specs=[batch_spec(S + A), batch_spec(S), batch_spec(L)] + param_specs,
        out_specs=pl.BlockSpec((batch_tile, out_width), lambda i: (i, 0)),
        compiler_params=pltpu.CompilerParams(
            dimension_semantics=("parallel",),
            vmem_limit_bytes=32 * 1024 * 1024,  # ~2.5 MB bf16 weights (x2 buf) + activations
        ),
    )(sa, state, eps, *param_list)

    u = out[:, :A]
    mean = out[:, A:A + L]
    std = out[:, A + L:A + 2 * L]
    return u, mean, std


def reference_forward(state, action, eps, p, max_action):
    """Pure-JAX f32 mirror of the PyTorch forward, for a numeric sanity check."""
    h = jnp.maximum(
        jnp.concatenate([state, action], axis=1) @ p["w_e1"] + p["b_e1"], 0.0)
    h = jnp.maximum(h @ p["w_e2"] + p["b_e2"], 0.0)
    mean = h @ p["w_mean"] + p["b_mean"]
    log_std = jnp.clip(h @ p["w_lstd"] + p["b_lstd"], -4.0, 15.0)
    std = jnp.exp(log_std)
    z = mean + std * eps
    a = jnp.maximum(
        jnp.concatenate([state, z], axis=1) @ p["w_d1"] + p["b_d1"], 0.0)
    a = jnp.maximum(a @ p["w_d2"] + p["b_d2"], 0.0)
    u = max_action * jnp.tanh(a @ p["w_d3"] + p["b_d3"])
    return u, mean, std


if __name__ == "__main__":
    # Small, module-consistent configuration (hidden width 750 is fixed by the module).
    B = 64
    STATE_DIM = 17
    ACTION_DIM = 6
    LATENT_DIM = 12          # BCQ uses 2 * action_dim
    MAX_ACTION = 1.0
    # TODO(synk): decode(state, z=None) sampling branch (clamp(randn, -0.5, 0.5))
    #             is not reached by forward() and is not implemented here.

    key = jax.random.PRNGKey(0)
    k_s, k_a, k_e, k_p = jax.random.split(key, 4)
    state = jax.random.normal(k_s, (B, STATE_DIM), jnp.float32)
    action = jax.random.normal(k_a, (B, ACTION_DIM), jnp.float32)
    # torch.randn_like(std): reparameterization noise sampled on the host
    eps = jax.random.normal(k_e, (B, LATENT_DIM), jnp.float32)

    raw_params = init_params(k_p, STATE_DIM, ACTION_DIM, LATENT_DIM)
    packed_params = pack_params(raw_params, STATE_DIM, ACTION_DIM, LATENT_DIM)

    u, mean, std = vae_forward(state, action, eps, packed_params, MAX_ACTION)
    u, mean, std = jax.block_until_ready((u, mean, std))

    u_ref, mean_ref, std_ref = reference_forward(state, action, eps, raw_params, MAX_ACTION)

    assert u.shape == (B, ACTION_DIM), u.shape
    assert mean.shape == (B, LATENT_DIM), mean.shape
    assert std.shape == (B, LATENT_DIM), std.shape
    # bf16 matmul inputs (f32 accumulation) vs. pure-f32 reference -> allow ~1e-2.
    assert jnp.allclose(u, u_ref, atol=2e-2, rtol=2e-2)
    assert jnp.allclose(mean, mean_ref, atol=2e-2, rtol=2e-2)
    assert jnp.allclose(std, std_ref, atol=2e-2, rtol=2e-2)

    print("KERNEL_OK")
</pallas_src>

<mosaic_0001>
module attributes {stable_mosaic.version = 11 : i64} {
  func.func @kernel(%arg0: i32, %arg1: memref<64x23xf32, #tpu.memory_space<vmem>>, %arg2: memref<64x17xf32, #tpu.memory_space<vmem>>, %arg3: memref<64x12xf32, #tpu.memory_space<vmem>>, %arg4: memref<23x768xbf16, #tpu.memory_space<vmem>>, %arg5: memref<1x768xf32, #tpu.memory_space<vmem>>, %arg6: memref<768x768xbf16, #tpu.memory_space<vmem>>, %arg7: memref<1x768xf32, #tpu.memory_space<vmem>>, %arg8: memref<768x24xbf16, #tpu.memory_space<vmem>>, %arg9: memref<1x24xf32, #tpu.memory_space<vmem>>, %arg10: memref<17x768xbf16, #tpu.memory_space<vmem>>, %arg11: memref<12x768xbf16, #tpu.memory_space<vmem>>, %arg12: memref<1x768xf32, #tpu.memory_space<vmem>>, %arg13: memref<768x768xbf16, #tpu.memory_space<vmem>>, %arg14: memref<1x768xf32, #tpu.memory_space<vmem>>, %arg15: memref<768x6xbf16, #tpu.memory_space<vmem>>, %arg16: memref<1x6xf32, #tpu.memory_space<vmem>>, %arg17: memref<64x128xf32, #tpu.memory_space<vmem>>) attributes {dimension_semantics = [#tpu.dimension_semantics<parallel>], iteration_bounds = array<i64: 1>, scalar_prefetch = 0 : i64, scratch_operands = 0 : i64, tpu.core_type = #tpu.core_type<tc>, window_params = [{transform_indices = @transform_0, window_bounds = array<i64: 64, 23>}, {transform_indices = @transform_1, window_bounds = array<i64: 64, 17>}, {transform_indices = @transform_2, window_bounds = array<i64: 64, 12>}, {pipeline_mode = #tpu.pipeline_mode<synchronous>, transform_indices = @transform_3, window_bounds = array<i64: 23, 768>}, {pipeline_mode = #tpu.pipeline_mode<synchronous>, transform_indices = @transform_4, window_bounds = array<i64: 1, 768>}, {pipeline_mode = #tpu.pipeline_mode<synchronous>, transform_indices = @transform_5, window_bounds = array<i64: 768, 768>}, {pipeline_mode = #tpu.pipeline_mode<synchronous>, transform_indices = @transform_6, window_bounds = array<i64: 1, 768>}, {pipeline_mode = #tpu.pipeline_mode<synchronous>, transform_indices = @transform_7, window_bounds = array<i64: 768, 24>}, {pipeline_mode = #tpu.pipeline_mode<synchronous>, transform_indices = @transform_8, window_bounds = array<i64: 1, 24>}, {pipeline_mode = #tpu.pipeline_mode<synchronous>, transform_indices = @transform_9, window_bounds = array<i64: 17, 768>}, {pipeline_mode = #tpu.pipeline_mode<synchronous>, transform_indices = @transform_10, window_bounds = array<i64: 12, 768>}, {pipeline_mode = #tpu.pipeline_mode<synchronous>, transform_indices = @transform_11, window_bounds = array<i64: 1, 768>}, {pipeline_mode = #tpu.pipeline_mode<synchronous>, transform_indices = @transform_12, window_bounds = array<i64: 768, 768>}, {pipeline_mode = #tpu.pipeline_mode<synchronous>, transform_indices = @transform_13, window_bounds = array<i64: 1, 768>}, {pipeline_mode = #tpu.pipeline_mode<synchronous>, transform_indices = @transform_14, window_bounds = array<i64: 768, 6>}, {pipeline_mode = #tpu.pipeline_mode<synchronous>, transform_indices = @transform_15, window_bounds = array<i64: 1, 6>}, {transform_indices = @transform_16, window_bounds = array<i64: 64, 128>}]} {
    %c0 = arith.constant 0 : index
    %c0_0 = arith.constant 0 : index
    %0 = vector.load %arg1[%c0, %c0_0] : memref<64x23xf32, #tpu.memory_space<vmem>>, vector<64x23xf32>
    %1 = arith.truncf %0 : vector<64x23xf32> to vector<64x23xbf16>
    %c0_1 = arith.constant 0 : index
    %c0_2 = arith.constant 0 : index
    %2 = vector.load %arg2[%c0_1, %c0_2] : memref<64x17xf32, #tpu.memory_space<vmem>>, vector<64x17xf32>
    %3 = arith.truncf %2 : vector<64x17xf32> to vector<64x17xbf16>
    %c0_3 = arith.constant 0 : index
    %c0_4 = arith.constant 0 : index
    %4 = vector.load %arg3[%c0_3, %c0_4] : memref<64x12xf32, #tpu.memory_space<vmem>>, vector<64x12xf32>
    %c0_5 = arith.constant 0 : index
    %c0_6 = arith.constant 0 : index
    %5 = vector.load %arg4[%c0_5, %c0_6] : memref<23x768xbf16, #tpu.memory_space<vmem>>, vector<23x768xbf16>
    %cst = arith.constant dense<0.000000e+00> : vector<64x768xf32>
    %6 = tpu.matmul %1, %5, %cst {dimension_numbers = #tpu.dot_dimension_numbers<[1], [0], [0], [1], [0, 0, 1, 1], [], []>} : vector<64x23xbf16>, vector<23x768xbf16>, vector<64x768xf32> -> vector<64x768xf32>
    %c0_7 = arith.constant 0 : index
    %c0_8 = arith.constant 0 : index
    %7 = vector.load %arg5[%c0_7, %c0_8] : memref<1x768xf32, #tpu.memory_space<vmem>>, vector<1x768xf32>
    %8 = vector.broadcast %7 : vector<1x768xf32> to vector<64x768xf32>
    %9 = arith.addf %6, %8 : vector<64x768xf32>
    %cst_9 = arith.constant 0.000000e+00 : f32
    %10 = vector.broadcast %cst_9 : f32 to vector<64x768xf32>
    %11 = arith.maximumf %9, %10 : vector<64x768xf32>
    %12 = arith.truncf %11 : vector<64x768xf32> to vector<64x768xbf16>
    %c0_10 = arith.constant 0 : index
    %c0_11 = arith.constant 0 : index
    %13 = vector.load %arg6[%c0_10, %c0_11] : memref<768x768xbf16, #tpu.memory_space<vmem>>, vector<768x768xbf16>
    %cst_12 = arith.constant dense<0.000000e+00> : vector<64x768xf32>
    %14 = tpu.matmul %12, %13, %cst_12 {dimension_numbers = #tpu.dot_dimension_numbers<[1], [0], [0], [1], [0, 0, 1, 1], [], []>} : vector<64x768xbf16>, vector<768x768xbf16>, vector<64x768xf32> -> vector<64x768xf32>
    %c0_13 = arith.constant 0 : index
    %c0_14 = arith.constant 0 : index
    %15 = vector.load %arg7[%c0_13, %c0_14] : memref<1x768xf32, #tpu.memory_space<vmem>>, vector<1x768xf32>
    %16 = vector.broadcast %15 : vector<1x768xf32> to vector<64x768xf32>
    %17 = arith.addf %14, %16 : vector<64x768xf32>
    %cst_15 = arith.constant 0.000000e+00 : f32
    %18 = vector.broadcast %cst_15 : f32 to vector<64x768xf32>
    %19 = arith.maximumf %17, %18 : vector<64x768xf32>
    %20 = arith.truncf %19 : vector<64x768xf32> to vector<64x768xbf16>
    %c0_16 = arith.constant 0 : index
    %c0_17 = arith.constant 0 : index
    %21 = vector.load %arg8[%c0_16, %c0_17] : memref<768x24xbf16, #tpu.memory_space<vmem>>, vector<768x24xbf16>
    %cst_18 = arith.constant dense<0.000000e+00> : vector<64x24xf32>
    %22 = tpu.matmul %20, %21, %cst_18 {dimension_numbers = #tpu.dot_dimension_numbers<[1], [0], [0], [1], [0, 0, 1, 1], [], []>} : vector<64x768xbf16>, vector<768x24xbf16>, vector<64x24xf32> -> vector<64x24xf32>
    %c0_19 = arith.constant 0 : index
    %c0_20 = arith.constant 0 : index
    %23 = vector.load %arg9[%c0_19, %c0_20] : memref<1x24xf32, #tpu.memory_space<vmem>>, vector<1x24xf32>
    %24 = vector.broadcast %23 : vector<1x24xf32> to vector<64x24xf32>
    %25 = arith.addf %22, %24 : vector<64x24xf32>
    %26 = vector.extract_strided_slice %25 {offsets = [0, 0], sizes = [64, 12], strides = [1, 1]} : vector<64x24xf32> to vector<64x12xf32>
    %27 = vector.extract_strided_slice %25 {offsets = [0, 12], sizes = [64, 12], strides = [1, 1]} : vector<64x24xf32> to vector<64x12xf32>
    %cst_21 = arith.constant -4.000000e+00 : f32
    %cst_22 = arith.constant 1.500000e+01 : f32
    %28 = vector.broadcast %cst_21 : f32 to vector<64x12xf32>
    %29 = arith.maximumf %28, %27 : vector<64x12xf32>
    %30 = vector.broadcast %cst_22 : f32 to vector<64x12xf32>
    %31 = arith.minimumf %30, %29 : vector<64x12xf32>
    %32 = math.exp %31 : vector<64x12xf32>
    %33 = arith.mulf %32, %4 : vector<64x12xf32>
    %34 = arith.addf %26, %33 : vector<64x12xf32>
    %c0_23 = arith.constant 0 : index
    %c0_24 = arith.constant 0 : index
    %35 = vector.load %arg10[%c0_23, %c0_24] : memref<17x768xbf16, #tpu.memory_space<vmem>>, vector<17x768xbf16>
    %cst_25 = arith.constant dense<0.000000e+00> : vector<64x768xf32>
    %36 = tpu.matmul %3, %35, %cst_25 {dimension_numbers = #tpu.dot_dimension_numbers<[1], [0], [0], [1], [0, 0, 1, 1], [], []>} : vector<64x17xbf16>, vector<17x768xbf16>, vector<64x768xf32> -> vector<64x768xf32>
    %37 = arith.truncf %34 : vector<64x12xf32> to vector<64x12xbf16>
    %c0_26 = arith.constant 0 : index
    %c0_27 = arith.constant 0 : index
    %38 = vector.load %arg11[%c0_26, %c0_27] : memref<12x768xbf16, #tpu.memory_space<vmem>>, vector<12x768xbf16>
    %cst_28 = arith.constant dense<0.000000e+00> : vector<64x768xf32>
    %39 = tpu.matmul %37, %38, %cst_28 {dimension_numbers = #tpu.dot_dimension_numbers<[1], [0], [0], [1], [0, 0, 1, 1], [], []>} : vector<64x12xbf16>, vector<12x768xbf16>, vector<64x768xf32> -> vector<64x768xf32>
    %40 = arith.addf %36, %39 : vector<64x768xf32>
    %c0_29 = arith.constant 0 : index
    %c0_30 = arith.constant 0 : index
    %41 = vector.load %arg12[%c0_29, %c0_30] : memref<1x768xf32, #tpu.memory_space<vmem>>, vector<1x768xf32>
    %42 = vector.broadcast %41 : vector<1x768xf32> to vector<64x768xf32>
    %43 = arith.addf %40, %42 : vector<64x768xf32>
    %cst_31 = arith.constant 0.000000e+00 : f32
    %44 = vector.broadcast %cst_31 : f32 to vector<64x768xf32>
    %45 = arith.maximumf %43, %44 : vector<64x768xf32>
    %46 = arith.truncf %45 : vector<64x768xf32> to vector<64x768xbf16>
    %c0_32 = arith.constant 0 : index
    %c0_33 = arith.constant 0 : index
    %47 = vector.load %arg13[%c0_32, %c0_33] : memref<768x768xbf16, #tpu.memory_space<vmem>>, vector<768x768xbf16>
    %cst_34 = arith.constant dense<0.000000e+00> : vector<64x768xf32>
    %48 = tpu.matmul %46, %47, %cst_34 {dimension_numbers = #tpu.dot_dimension_numbers<[1], [0], [0], [1], [0, 0, 1, 1], [], []>} : vector<64x768xbf16>, vector<768x768xbf16>, vector<64x768xf32> -> vector<64x768xf32>
    %c0_35 = arith.constant 0 : index
    %c0_36 = arith.constant 0 : index
    %49 = vector.load %arg14[%c0_35, %c0_36] : memref<1x768xf32, #tpu.memory_space<vmem>>, vector<1x768xf32>
    %50 = vector.broadcast %49 : vector<1x768xf32> to vector<64x768xf32>
    %51 = arith.addf %48, %50 : vector<64x768xf32>
    %cst_37 = arith.constant 0.000000e+00 : f32
    %52 = vector.broadcast %cst_37 : f32 to vector<64x768xf32>
    %53 = arith.maximumf %51, %52 : vector<64x768xf32>
    %54 = arith.truncf %53 : vector<64x768xf32> to vector<64x768xbf16>
    %c0_38 = arith.constant 0 : index
    %c0_39 = arith.constant 0 : index
    %55 = vector.load %arg15[%c0_38, %c0_39] : memref<768x6xbf16, #tpu.memory_space<vmem>>, vector<768x6xbf16>
    %cst_40 = arith.constant dense<0.000000e+00> : vector<64x6xf32>
    %56 = tpu.matmul %54, %55, %cst_40 {dimension_numbers = #tpu.dot_dimension_numbers<[1], [0], [0], [1], [0, 0, 1, 1], [], []>} : vector<64x768xbf16>, vector<768x6xbf16>, vector<64x6xf32> -> vector<64x6xf32>
    %c0_41 = arith.constant 0 : index
    %c0_42 = arith.constant 0 : index
    %57 = vector.load %arg16[%c0_41, %c0_42] : memref<1x6xf32, #tpu.memory_space<vmem>>, vector<1x6xf32>
    %58 = vector.broadcast %57 : vector<1x6xf32> to vector<64x6xf32>
    %59 = arith.addf %56, %58 : vector<64x6xf32>
    %60 = math.tanh %59 : vector<64x6xf32>
    %cst_43 = arith.constant 1.000000e+00 : f32
    %61 = vector.broadcast %cst_43 : f32 to vector<64x6xf32>
    %62 = arith.mulf %61, %60 : vector<64x6xf32>
    %cst_44 = arith.constant 0.000000e+00 : f32
    %63 = vector.broadcast %cst_44 : f32 to vector<64x98xf32>
    %64 = tpu.concatenate %62, %26, %32, %63 in 1 : vector<64x6xf32>, vector<64x12xf32>, vector<64x12xf32>, vector<64x98xf32> -> vector<64x128xf32>
    %c0_45 = arith.constant 0 : index
    %c0_46 = arith.constant 0 : index
    %65 = vector.load %arg17[%c0_45, %c0_46] : memref<64x128xf32, #tpu.memory_space<vmem>>, vector<64x128xf32>
    tpu.vector_store %arg17[%c0_45, %c0_46], %64 {strides = array<i32>} : memref<64x128xf32, #tpu.memory_space<vmem>>, vector<64x128xf32>,
    return
  }
  func.func @transform_0(%arg0: i32) -> (i32, i32) {
    %c0_i32 = arith.constant 0 : i32
    %c0_i32_0 = arith.constant 0 : i32
    return %arg0, %c0_i32 : i32, i32
  }
  func.func @transform_1(%arg0: i32) -> (i32, i32) {
    %c0_i32 = arith.constant 0 : i32
    %c0_i32_0 = arith.constant 0 : i32
    return %arg0, %c0_i32 : i32, i32
  }
  func.func @transform_2(%arg0: i32) -> (i32, i32) {
    %c0_i32 = arith.constant 0 : i32
    %c0_i32_0 = arith.constant 0 : i32
    return %arg0, %c0_i32 : i32, i32
  }
  func.func @transform_3(%arg0: i32) -> (i32, i32) {
    %c0_i32 = arith.constant 0 : i32
    %c0_i32_0 = arith.constant 0 : i32
    %c0_i32_1 = arith.constant 0 : i32
    return %c0_i32, %c0_i32_0 : i32, i32
  }
  func.func @transform_4(%arg0: i32) -> (i32, i32) {
    %c0_i32 = arith.constant 0 : i32
    %c0_i32_0 = arith.constant 0 : i32
    %c0_i32_1 = arith.constant 0 : i32
    return %c0_i32, %c0_i32_0 : i32, i32
  }
  func.func @transform_5(%arg0: i32) -> (i32, i32) {
    %c0_i32 = arith.constant 0 : i32
    %c0_i32_0 = arith.constant 0 : i32
    %c0_i32_1 = arith.constant 0 : i32
    return %c0_i32, %c0_i32_0 : i32, i32
  }
  func.func @transform_6(%arg0: i32) -> (i32, i32) {
    %c0_i32 = arith.constant 0 : i32
    %c0_i32_0 = arith.constant 0 : i32
    %c0_i32_1 = arith.constant 0 : i32
    return %c0_i32, %c0_i32_0 : i32, i32
  }
  func.func @transform_7(%arg0: i32) -> (i32, i32) {
    %c0_i32 = arith.constant 0 : i32
    %c0_i32_0 = arith.constant 0 : i32
    %c0_i32_1 = arith.constant 0 : i32
    return %c0_i32, %c0_i32_0 : i32, i32
  }
  func.func @transform_8(%arg0: i32) -> (i32, i32) {
    %c0_i32 = arith.constant 0 : i32
    %c0_i32_0 = arith.constant 0 : i32
    %c0_i32_1 = arith.constant 0 : i32
    return %c0_i32, %c0_i32_0 : i32, i32
  }
  func.func @transform_9(%arg0: i32) -> (i32, i32) {
    %c0_i32 = arith.constant 0 : i32
    %c0_i32_0 = arith.constant 0 : i32
    %c0_i32_1 = arith.constant 0 : i32
    return %c0_i32, %c0_i32_0 : i32, i32
  }
  func.func @transform_10(%arg0: i32) -> (i32, i32) {
    %c0_i32 = arith.constant 0 : i32
    %c0_i32_0 = arith.constant 0 : i32
    %c0_i32_1 = arith.constant 0 : i32
    return %c0_i32, %c0_i32_0 : i32, i32
  }
  func.func @transform_11(%arg0: i32) -> (i32, i32) {
    %c0_i32 = arith.constant 0 : i32
    %c0_i32_0 = arith.constant 0 : i32
    %c0_i32_1 = arith.constant 0 : i32
    return %c0_i32, %c0_i32_0 : i32, i32
  }
  func.func @transform_12(%arg0: i32) -> (i32, i32) {
    %c0_i32 = arith.constant 0 : i32
    %c0_i32_0 = arith.constant 0 : i32
    %c0_i32_1 = arith.constant 0 : i32
    return %c0_i32, %c0_i32_0 : i32, i32
  }
  func.func @transform_13(%arg0: i32) -> (i32, i32) {
    %c0_i32 = arith.constant 0 : i32
    %c0_i32_0 = arith.constant 0 : i32
    %c0_i32_1 = arith.constant 0 : i32
    return %c0_i32, %c0_i32_0 : i32, i32
  }
  func.func @transform_14(%arg0: i32) -> (i32, i32) {
    %c0_i32 = arith.constant 0 : i32
    %c0_i32_0 = arith.constant 0 : i32
    %c0_i32_1 = arith.constant 0 : i32
    return %c0_i32, %c0_i32_0 : i32, i32
  }
  func.func @transform_15(%arg0: i32) -> (i32, i32) {
    %c0_i32 = arith.constant 0 : i32
    %c0_i32_0 = arith.constant 0 : i32
    %c0_i32_1 = arith.constant 0 : i32
    return %c0_i32, %c0_i32_0 : i32, i32
  }
  func.func @transform_16(%arg0: i32) -> (i32, i32) {
    %c0_i32 = arith.constant 0 : i32
    %c0_i32_0 = arith.constant 0 : i32
    return %arg0, %c0_i32 : i32, i32
  }
}

</mosaic_0001>

<llo_original>
// kernel: tpu_custom_call.1
$region0: #{tpu_custom_call.1}
  #allocation0 [shape = 'u32[]', space=smem, size = 0x4, offset = 0x4, fixed_abs, tag = 'smem constant byte address 0x4 - core index']
  #allocation1 [shape = 'u32[144,128]{1,0:T(1,128)}', space=vmem, size = 0x12000, scoped, tag = 'internal scratch']
  %s0 = inlined_call_operand.vmem [shape: f32[64,23], index: 0, kind: input, shape index: {}]
  %s1 = inlined_call_operand.vmem [shape: f32[64,17], index: 1, kind: input, shape index: {}]
  %s2 = inlined_call_operand.vmem [shape: f32[64,12], index: 2, kind: input, shape index: {}]
  %s3 = inlined_call_operand.hbm [shape: bf16[23,768], index: 3, kind: input, shape index: {}]
  %s4 = inlined_call_operand.hbm [shape: f32[1,768], index: 4, kind: input, shape index: {}]
  %s5 = inlined_call_operand.hbm [shape: bf16[768,768], index: 5, kind: input, shape index: {}]
  %s6 = inlined_call_operand.hbm [shape: f32[1,768], index: 6, kind: input, shape index: {}]
  %s7 = inlined_call_operand.vmem [shape: bf16[768,24], index: 7, kind: input, shape index: {}]
  %s8 = inlined_call_operand.hbm [shape: f32[1,24], index: 8, kind: input, shape index: {}]
  %s9 = inlined_call_operand.hbm [shape: bf16[17,768], index: 9, kind: input, shape index: {}]
  %s10 = inlined_call_operand.hbm [shape: bf16[12,768], index: 10, kind: input, shape index: {}]
  %s11 = inlined_call_operand.hbm [shape: f32[1,768], index: 11, kind: input, shape index: {}]
  %s12 = inlined_call_operand.hbm [shape: bf16[768,768], index: 12, kind: input, shape index: {}]
  %s13 = inlined_call_operand.hbm [shape: f32[1,768], index: 13, kind: input, shape index: {}]
  %s14 = inlined_call_operand.vmem [shape: bf16[768,6], index: 14, kind: input, shape index: {}]
  %s15 = inlined_call_operand.hbm [shape: f32[1,6], index: 15, kind: input, shape index: {}]
  %s16 = inlined_call_operand.hbm [shape: f32[64,128], index: 16, kind: output, shape index: {}]
  %s17 = sld [smem:[#allocation0]]
  $region118: #{tpu_custom_call.1} parent=0
    _
  %s19 = ssub.s32 1, %s17
  %s20 = scalar_select 0, %s19, %s17
  $region1: #{tpu_custom_call.1} parent=0
    #allocation2 [shape = 'u8[36864]{0}', space=vmem, size = 0x9000, scoped, tag = 'input window, operand 3, single buffered']
    #allocation3 [shape = 's32[1]{0}', space=sflag, size = 0x4, scoped, tag = 'scoped memory for tpu_custom_call.1']
    #allocation4 [shape = 's32[1]{0}', space=sflag, size = 0x4, scoped, tag = 'scoped memory for tpu_custom_call.1']
    #allocation5 [shape = 'u8[3072]{0}', space=vmem, size = 0xc00, scoped, tag = 'input window, operand 4, single buffered']
    #allocation6 [shape = 's32[1]{0}', space=sflag, size = 0x4, scoped, tag = 'scoped memory for tpu_custom_call.1']
    #allocation7 [shape = 'u8[1179648]{0}', space=vmem, size = 0x120000, scoped, tag = 'input window, operand 5, single buffered']
    #allocation8 [shape = 'u8[3072]{0}', space=vmem, size = 0xc00, scoped, tag = 'input window, operand 6, single buffered']
    #allocation9 [shape = 's32[1]{0}', space=sflag, size = 0x4, scoped, tag = 'scoped memory for tpu_custom_call.1']
    #allocation10 [shape = 'u8[512]{0}', space=vmem, size = 0x400, scoped, tag = 'input window, operand 8, single buffered']
    #allocation11 [shape = 'u8[36864]{0}', space=vmem, size = 0x9000, scoped, tag = 'input window, operand 9, single buffered']
    #allocation12 [shape = 's32[1]{0}', space=sflag, size = 0x4, scoped, tag = 'scoped memory for tpu_custom_call.1']
    #allocation13 [shape = 'u8[24576]{0}', space=vmem, size = 0x6000, scoped, tag = 'input window, operand 10, single buffered']
    #allocation14 [shape = 'u8[3072]{0}', space=vmem, size = 0xc00, scoped, tag = 'input window, operand 11, single buffered']
    #allocation15 [shape = 's32[1]{0}', space=sflag, size = 0x4, scoped, tag = 'scoped memory for tpu_custom_call.1']
    #allocation16 [shape = 'u8[1179648]{0}', space=vmem, size = 0x120000, scoped, tag = 'input window, operand 12, single buffered']
    #allocation17 [shape = 'u8[3072]{0}', space=vmem, size = 0xc00, scoped, tag = 'input window, operand 13, single buffered']
    #allocation18 [shape = 's32[1]{0}', space=sflag, size = 0x4, scoped, tag = 'scoped memory for tpu_custom_call.1']
    #allocation19 [shape = 'u8[512]{0}', space=vmem, size = 0x400, scoped, tag = 'input window, operand 15, single buffered']
    #allocation20 [shape = 'u8[32768]{0}', space=vmem, size = 0x8000, scoped, tag = 'output window, operand 0, single buffered']
    %21 = vsyncpa [#allocation3], 0
    %22 = vsyncpa [#allocation6], 0
    %23 = vsyncpa [#allocation9], 0
    %24 = vsyncpa [#allocation12], 0
    %25 = vsyncpa [#allocation15], 0
    %26 = vsyncpa [#allocation18], 0
    %27 = vsyncpa [#allocation4], 0
    // Predicated region
    $region2: #{tpu_custom_call.1} parent=1 // pred_check
      _
    $region3: #{tpu_custom_call.1} parent=1 // pred_check_branch
      %29 = sbr.rel (0) target = $region5
    $region4: #{tpu_custom_call.1} parent=1 // pred_region
      _
    $region5: #{tpu_custom_call.1} parent=1 // pred_fallthru
      _
    // Predicated region
    $region6: #{tpu_custom_call.1} parent=1 // pred_check
      _
    $region7: #{tpu_custom_call.1} parent=1 // pred_check_branch
      %31 = sbr.rel (0) target = $region9
    $region8: #{tpu_custom_call.1} parent=1 // pred_region
      _
    $region9: #{tpu_custom_call.1} parent=1 // pred_fallthru
      _
    // Predicated region
    $region10: #{tpu_custom_call.1} parent=1 // pred_check
      _
    $region11: #{tpu_custom_call.1} parent=1 // pred_check_branch
      %33 = sbr.rel (0) target = $region13
    $region12: #{tpu_custom_call.1} parent=1 // pred_region
      _
    $region13: #{tpu_custom_call.1} parent=1 // pred_fallthru
      _
    // Predicated region
    $region14: #{tpu_custom_call.1} parent=1 // pred_check
      _
    $region15: #{tpu_custom_call.1} parent=1 // pred_check_branch
      %35 = sbr.rel (0) target = $region17
    $region16: #{tpu_custom_call.1} parent=1 // pred_region
      %s37 = ssub.s32 1152, 1152
      %38 = vsyncadd [#allocation3], %s37
      %s39 = sshll.u32 [#allocation2], 4
      %s40 = int_to_ptr.vmem [resolvable:$true] %s39
      %45 = dma.hbm_to_vmem [thread:$0]  %s3, 1152, %s40, [#allocation3], 384, 384, 24
    $region17: #{tpu_custom_call.1} parent=1 // pred_fallthru
      _
    // Predicated region
    $region18: #{tpu_custom_call.1} parent=1 // pred_check
      _
    $region19: #{tpu_custom_call.1} parent=1 // pred_check_branch
      %47 = sbr.rel (0) target = $region21
    $region20: #{tpu_custom_call.1} parent=1 // pred_region
      %s49 = ssub.s32 96, 96
      %50 = vsyncadd [#allocation6], %s49
      %s52 = sshll.u32 [#allocation5], 4
      %s53 = int_to_ptr.vmem [resolvable:$true] %s52
      %55 = dma.hbm_to_vmem [thread:$0]  %s4, 96, %s53, [#allocation6]
    $region21: #{tpu_custom_call.1} parent=1 // pred_fallthru
      _
    // Predicated region
    $region22: #{tpu_custom_call.1} parent=1 // pred_check
      _
    $region23: #{tpu_custom_call.1} parent=1 // pred_check_branch
      %57 = sbr.rel (0) target = $region25
    $region24: #{tpu_custom_call.1} parent=1 // pred_region
      %s59 = ssub.s32 36864, 36864
      %60 = vsyncadd [#allocation6], %s59
      %s61 = sshll.u32 [#allocation7], 4
      %s62 = int_to_ptr.vmem [resolvable:$true] %s61
      %67 = dma.hbm_to_vmem [thread:$0]  %s5, 36864, %s62, [#allocation6], 384, 384, 24
    $region25: #{tpu_custom_call.1} parent=1 // pred_fallthru
      _
    // Predicated region
    $region26: #{tpu_custom_call.1} parent=1 // pred_check
      _
    $region27: #{tpu_custom_call.1} parent=1 // pred_check_branch
      %69 = sbr.rel (0) target = $region29
    $region28: #{tpu_custom_call.1} parent=1 // pred_region
      %s71 = ssub.s32 96, 96
      %72 = vsyncadd [#allocation9], %s71
      %s74 = sshll.u32 [#allocation8], 4
      %s75 = int_to_ptr.vmem [resolvable:$true] %s74
      %77 = dma.hbm_to_vmem [thread:$0]  %s6, 96, %s75, [#allocation9]
    $region29: #{tpu_custom_call.1} parent=1 // pred_fallthru
      _
    // Predicated region
    $region30: #{tpu_custom_call.1} parent=1 // pred_check
      _
    $region31: #{tpu_custom_call.1} parent=1 // pred_check_branch
      %79 = sbr.rel (0) target = $region33
    $region32: #{tpu_custom_call.1} parent=1 // pred_region
      _
    $region33: #{tpu_custom_call.1} parent=1 // pred_fallthru
      _
    // Predicated region
    $region34: #{tpu_custom_call.1} parent=1 // pred_check
      _
    $region35: #{tpu_custom_call.1} parent=1 // pred_check_branch
      %81 = sbr.rel (0) target = $region37
    $region36: #{tpu_custom_call.1} parent=1 // pred_region
      %s83 = ssub.s32 16, 16
      %84 = vsyncadd [#allocation9], %s83
      %s86 = sshll.u32 [#allocation10], 4
      %s87 = int_to_ptr.vmem [resolvable:$true] %s86
      %89 = dma.hbm_to_vmem [thread:$0]  %s8, 16, %s87, [#allocation9]
    $region37: #{tpu_custom_call.1} parent=1 // pred_fallthru
      _
    // Predicated region
    $region38: #{tpu_custom_call.1} parent=1 // pred_check
      _
    $region39: #{tpu_custom_call.1} parent=1 // pred_check_branch
      %91 = sbr.rel (0) target = $region41
    $region40: #{tpu_custom_call.1} parent=1 // pred_region
      %s93 = ssub.s32 1152, 1152
      %94 = vsyncadd [#allocation12], %s93
      %s95 = sshll.u32 [#allocation11], 4
      %s96 = int_to_ptr.vmem [resolvable:$true] %s95
      %101 = dma.hbm_to_vmem [thread:$0]  %s9, 1152, %s96, [#allocation12], 384, 384, 24
    $region41: #{tpu_custom_call.1} parent=1 // pred_fallthru
      _
    // Predicated region
    $region42: #{tpu_custom_call.1} parent=1 // pred_check
      _
    $region43: #{tpu_custom_call.1} parent=1 // pred_check_branch
      %103 = sbr.rel (0) target = $region45
    $region44: #{tpu_custom_call.1} parent=1 // pred_region
      %s105 = ssub.s32 768, 768
      %106 = vsyncadd [#allocation12], %s105
      %s107 = sshll.u32 [#allocation13], 4
      %s108 = int_to_ptr.vmem [resolvable:$true] %s107
      %113 = dma.hbm_to_vmem [thread:$0]  %s10, 768, %s108, [#allocation12], 384, 384, 24
    $region45: #{tpu_custom_call.1} parent=1 // pred_fallthru
      _
    // Predicated region
    $region46: #{tpu_custom_call.1} parent=1 // pred_check
      _
    $region47: #{tpu_custom_call.1} parent=1 // pred_check_branch
      %115 = sbr.rel (0) target = $region49
    $region48: #{tpu_custom_call.1} parent=1 // pred_region
      %s117 = ssub.s32 96, 96
      %118 = vsyncadd [#allocation15], %s117
      %s120 = sshll.u32 [#allocation14], 4
      %s121 = int_to_ptr.vmem [resolvable:$true] %s120
      %123 = dma.hbm_to_vmem [thread:$0]  %s11, 96, %s121, [#allocation15]
    $region49: #{tpu_custom_call.1} parent=1 // pred_fallthru
      _
    // Predicated region
    $region50: #{tpu_custom_call.1} parent=1 // pred_check
      _
    $region51: #{tpu_custom_call.1} parent=1 // pred_check_branch
      %125 = sbr.rel (0) target = $region53
    $region52: #{tpu_custom_call.1} parent=1 // pred_region
      %s127 = ssub.s32 36864, 36864
      %128 = vsyncadd [#allocation15], %s127
      %s129 = sshll.u32 [#allocation16], 4
      %s130 = int_to_ptr.vmem [resolvable:$true] %s129
      %135 = dma.hbm_to_vmem [thread:$0]  %s12, 36864, %s130, [#allocation15], 384, 384, 24
    $region53: #{tpu_custom_call.1} parent=1 // pred_fallthru
      _
    // Predicated region
    $region54: #{tpu_custom_call.1} parent=1 // pred_check
      _
    $region55: #{tpu_custom_call.1} parent=1 // pred_check_branch
      %137 = sbr.rel (0) target = $region57
    $region56: #{tpu_custom_call.1} parent=1 // pred_region
      %s139 = ssub.s32 96, 96
      %140 = vsyncadd [#allocation18], %s139
      %s142 = sshll.u32 [#allocation17], 4
      %s143 = int_to_ptr.vmem [resolvable:$true] %s142
      %145 = dma.hbm_to_vmem [thread:$0]  %s13, 96, %s143, [#allocation18]
    $region57: #{tpu_custom_call.1} parent=1 // pred_fallthru
      _
    // Predicated region
    $region58: #{tpu_custom_call.1} parent=1 // pred_check
      _
    $region59: #{tpu_custom_call.1} parent=1 // pred_check_branch
      %147 = sbr.rel (0) target = $region61
    $region60: #{tpu_custom_call.1} parent=1 // pred_region
      _
    $region61: #{tpu_custom_call.1} parent=1 // pred_fallthru
      _
    // Predicated region
    $region62: #{tpu_custom_call.1} parent=1 // pred_check
      _
    $region63: #{tpu_custom_call.1} parent=1 // pred_check_branch
      %149 = sbr.rel (0) target = $region65
    $region64: #{tpu_custom_call.1} parent=1 // pred_region
      %s151 = ssub.s32 16, 16
      %152 = vsyncadd [#allocation18], %s151
      %s154 = sshll.u32 [#allocation19], 4
      %s155 = int_to_ptr.vmem [resolvable:$true] %s154
      %157 = dma.hbm_to_vmem [thread:$0]  %s15, 16, %s155, [#allocation18]
    $region65: #{tpu_custom_call.1} parent=1 // pred_fallthru
      _
    // Predicated region
    $region66: #{tpu_custom_call.1} parent=1 // pred_check
      _
    $region67: #{tpu_custom_call.1} parent=1 // pred_check_branch
      %159 = sbr.rel (0) target = $region69
    $region68: #{tpu_custom_call.1} parent=1 // pred_region
      %160 = dma.done [#allocation3], 1152
    $region69: #{tpu_custom_call.1} parent=1 // pred_fallthru
      _
    // Predicated region
    $region70: #{tpu_custom_call.1} parent=1 // pred_check
      _
    $region71: #{tpu_custom_call.1} parent=1 // pred_check_branch
      %162 = sbr.rel (0) target = $region73
    $region72: #{tpu_custom_call.1} parent=1 // pred_region
      %163 = dma.done [#allocation6], 96
    $region73: #{tpu_custom_call.1} parent=1 // pred_fallthru
      _
    // Predicated region
    $region74: #{tpu_custom_call.1} parent=1 // pred_check
      _
    $region75: #{tpu_custom_call.1} parent=1 // pred_check_branch
      %165 = sbr.rel (0) target = $region77
    $region76: #{tpu_custom_call.1} parent=1 // pred_region
      %166 = dma.done [#allocation6], 36864
    $region77: #{tpu_custom_call.1} parent=1 // pred_fallthru
      _
    // Predicated region
    $region78: #{tpu_custom_call.1} parent=1 // pred_check
      _
    $region79: #{tpu_custom_call.1} parent=1 // pred_check_branch
      %168 = sbr.rel (0) target = $region81
    $region80: #{tpu_custom_call.1} parent=1 // pred_region
      %169 = dma.done [#allocation9], 96
    $region81: #{tpu_custom_call.1} parent=1 // pred_fallthru
      _
    // Predicated region
    $region82: #{tpu_custom_call.1} parent=1 // pred_check
      _
    $region83: #{tpu_custom_call.1} parent=1 // pred_check_branch
      %171 = sbr.rel (0) target = $region85
    $region84: #{tpu_custom_call.1} parent=1 // pred_region
      %172 = dma.done [#allocation9], 16
    $region85: #{tpu_custom_call.1} parent=1 // pred_fallthru
      _
    // Predicated region
    $region86: #{tpu_custom_call.1} parent=1 // pred_check
      _
    $region87: #{tpu_custom_call.1} parent=1 // pred_check_branch
      %174 = sbr.rel (0) target = $region89
    $region88: #{tpu_custom_call.1} parent=1 // pred_region
      %175 = dma.done [#allocation12], 1152
    $region89: #{tpu_custom_call.1} parent=1 // pred_fallthru
      _
    // Predicated region
    $region90: #{tpu_custom_call.1} parent=1 // pred_check
      _
    $region91: #{tpu_custom_call.1} parent=1 // pred_check_branch
      %177 = sbr.rel (0) target = $region93
    $region92: #{tpu_custom_call.1} parent=1 // pred_region
      %178 = dma.done [#allocation12], 768
    $region93: #{tpu_custom_call.1} parent=1 // pred_fallthru
      _
    // Predicated region
    $region94: #{tpu_custom_call.1} parent=1 // pred_check
      _
    $region95: #{tpu_custom_call.1} parent=1 // pred_check_branch
      %180 = sbr.rel (0) target = $region97
    $region96: #{tpu_custom_call.1} parent=1 // pred_region
      %181 = dma.done [#allocation15], 96
    $region97: #{tpu_custom_call.1} parent=1 // pred_fallthru
      _
    // Predicated region
    $region98: #{tpu_custom_call.1} parent=1 // pred_check
      _
    $region99: #{tpu_custom_call.1} parent=1 // pred_check_branch
      %183 = sbr.rel (0) target = $region101
    $region100: #{tpu_custom_call.1} parent=1 // pred_region
      %184 = dma.done [#allocation15], 36864
    $region101: #{tpu_custom_call.1} parent=1 // pred_fallthru
      _
    // Predicated region
    $region102: #{tpu_custom_call.1} parent=1 // pred_check
      _
    $region103: #{tpu_custom_call.1} parent=1 // pred_check_branch
      %186 = sbr.rel (0) target = $region105
    $region104: #{tpu_custom_call.1} parent=1 // pred_region
      %187 = dma.done [#allocation18], 96
    $region105: #{tpu_custom_call.1} parent=1 // pred_fallthru
      _
    // Predicated region
    $region106: #{tpu_custom_call.1} parent=1 // pred_check
      _
    $region107: #{tpu_custom_call.1} parent=1 // pred_check_branch
      %189 = sbr.rel (0) target = $region109
    $region108: #{tpu_custom_call.1} parent=1 // pred_region
      %190 = dma.done [#allocation18], 16
    $region109: #{tpu_custom_call.1} parent=1 // pred_fallthru
      _
    %v192 = vld [vmem:[%s0] sm:$0xff]
    %v193 = vld [vmem:[%s0 + $0x8] sm:$0xff]
    %v194 = vld [vmem:[%s0 + $0x10] sm:$0xff]
    %v195 = vld [vmem:[%s0 + $0x18] sm:$0xff]
    %v196 = vld [vmem:[%s0 + $0x20] sm:$0xff]
    %v197 = vld [vmem:[%s0 + $0x28] sm:$0xff]
    %v198 = vld [vmem:[%s0 + $0x30] sm:$0xff]
    %v199 = vld [vmem:[%s0 + $0x38] sm:$0xff]
    %v200 = vpack.c.bf16 %v193, %v192
    %v201 = vpack.c.bf16 %v195, %v194
    %v202 = vpack.c.bf16 %v197, %v196
    %v203 = vpack.c.bf16 %v199, %v198
    %v204 = vld [vmem:[%s1] sm:$0xff]
    %v205 = vld [vmem:[%s1 + $0x8] sm:$0xff]
    %v206 = vld [vmem:[%s1 + $0x10] sm:$0xff]
    %v207 = vld [vmem:[%s1 + $0x18] sm:$0xff]
    %v208 = vld [vmem:[%s1 + $0x20] sm:$0xff]
    %v209 = vld [vmem:[%s1 + $0x28] sm:$0xff]
    %v210 = vld [vmem:[%s1 + $0x30] sm:$0xff]
    %v211 = vld [vmem:[%s1 + $0x38] sm:$0xff]
    %v212 = vpack.c.bf16 %v205, %v204
    %v213 = vpack.c.bf16 %v207, %v206
    %v214 = vpack.c.bf16 %v209, %v208
    %v215 = vpack.c.bf16 %v211, %v210
    %v216 = vld [vmem:[%s2] sm:$0xff]
    %v217 = vld [vmem:[%s2 + $0x8] sm:$0xff]
    %v218 = vld [vmem:[%s2 + $0x10] sm:$0xff]
    %v219 = vld [vmem:[%s2 + $0x18] sm:$0xff]
    %v220 = vld [vmem:[%s2 + $0x20] sm:$0xff]
    %v221 = vld [vmem:[%s2 + $0x28] sm:$0xff]
    %v222 = vld [vmem:[%s2 + $0x30] sm:$0xff]
    %v223 = vld [vmem:[%s2 + $0x38] sm:$0xff]
    %v224 = vld [vmem:[#allocation2] sm:$0xff]
    %v225 = vld [vmem:[#allocation2 + $0x8] sm:$0xff]
    %v226 = vld [vmem:[#allocation2 + $0x10] sm:$0xff]
    %v227 = vld [vmem:[#allocation2 + $0x18] sm:$0xff]
    %v228 = vld [vmem:[#allocation2 + $0x20] sm:$0xff]
    %v229 = vld [vmem:[#allocation2 + $0x28] sm:$0xff]
    %v230 = vld [vmem:[#allocation2 + $0x30] sm:$0xff]
    %v231 = vld [vmem:[#allocation2 + $0x38] sm:$0xff]
    %v232 = vld [vmem:[#allocation2 + $0x40] sm:$0xff]
    %v233 = vld [vmem:[#allocation5] sm:$0x3f]
    %v235 = vlaneseq
    %v236 = vshrl.u32 %v235, 7
    %v237 = vsub.s32 0, %v236
    %v238 = vrot.slane %v233, %v237
    %v239 = vlaneseq
    %v240 = vshrl.u32 %v239, 7
    %v241 = vsub.s32 1, %v240
    %v242 = vrot.slane %v233, %v241
    %v243 = vlaneseq
    %v244 = vshrl.u32 %v243, 7
    %v245 = vsub.s32 2, %v244
    %v246 = vrot.slane %v233, %v245
    %v247 = vlaneseq
    %v248 = vshrl.u32 %v247, 7
    %v249 = vsub.s32 3, %v248
    %v250 = vrot.slane %v233, %v249
    %v251 = vlaneseq
    %v252 = vshrl.u32 %v251, 7
    %v253 = vsub.s32 4, %v252
    %v254 = vrot.slane %v233, %v253
    %v255 = vlaneseq
    %v256 = vshrl.u32 %v255, 7
    %v257 = vsub.s32 5, %v256
    %v258 = vrot.slane %v233, %v257
    %v274 = vunpack.c.l.b16 %v224
    %v275 = vunpack.c.h.b16 %v224
    %v276 = vunpack.c.l.b16 %v225
    %v277 = vunpack.c.h.b16 %v225
    %v278 = vunpack.c.l.b16 %v226
    %v279 = vunpack.c.h.b16 %v226
    %v280 = vunpack.c.l.b16 %v227
    %v281 = vunpack.c.h.b16 %v227
    %v282 = vunpack.c.l.b16 %v228
    %v283 = vunpack.c.h.b16 %v228
    %v284 = vunpack.c.l.b16 %v229
    %v285 = vunpack.c.h.b16 %v229
    %v286 = vunpack.c.l.b16 %v230
    %v287 = vunpack.c.h.b16 %v230
    %v288 = vunpack.c.l.b16 %v231
    %v289 = vunpack.c.h.b16 %v231
    %v290 = vunpack.c.l.b16 %v232
    %v291 = vunpack.c.h.b16 %v232
    %v292 = vpack.c.b16 %v280, %v274
    %v293 = vpack.c.b16 %v281, %v275
    %v294 = vpack.c.b16 %v282, %v276
    %v295 = vpack.c.b16 %v283, %v277
    %v296 = vpack.c.b16 %v284, %v278
    %v297 = vpack.c.b16 %v285, %v279
    %v298 = vpack.c.b16 %v286, %v286
    %v299 = vpack.c.b16 %v287, %v287
    %v300 = vpack.c.b16 %v288, %v288
    %v301 = vpack.c.b16 %v289, %v289
    %v302 = vpack.c.b16 %v290, %v290
    %v303 = vpack.c.b16 %v291, %v291
    %vm310 = vcmask 187392
    %v312 = vsel %vm310, %v200, 0
    %v315 = vsel %vm310, %v201, 0
    %v318 = vsel %vm310, %v202, 0
    %v321 = vsel %vm310, %v203, 0
    %vm323 = vcmask 1042432
    %vm324 = vcmask 1043456
    %v325 = vsel %vm323, 4294967295, 65535
    %v326 = vsel %vm324, %v325, 0
    %v328 = vand.u32 %v298, %v326
    %v331 = vand.u32 %v299, %v326
    %v334 = vand.u32 %v300, %v326
    %v337 = vand.u32 %v301, %v326
    %v340 = vand.u32 %v302, %v326
    %v343 = vand.u32 %v303, %v326
    %345 = vmatprep.subr.bf16.mxu0 0
    %346 = vmatpush1.bf16.msra.mxu0 0
    %347 = vmatprep.subr.bf16.mxu0 0
    %348 = vmatpush1.bf16.msra.mxu0 0
    %349 = vmatprep.subr.bf16.mxu0 0
    %350 = vmatpush1.bf16.msra.mxu0 0
    %351 = vmatprep.subr.bf16.mxu0 0
    %352 = vmatpush1.bf16.msra.mxu0 0
    %353 = vmatprep.subr.bf16.mxu0 0
    %354 = vmatpush1.bf16.msra.mxu0 0
    %355 = vmatprep.subr.bf16.mxu0 0
    %356 = vmatpush1.bf16.msra.mxu0 0
    %357 = vmatprep.subr.bf16.mxu0 %v331
    %358 = vmatpush1.bf16.msra.mxu0 %v328
    %359 = vmatprep.subr.bf16.mxu0 %v293
    %360 = vmatpush1.bf16.msra.mxu0 %v292
    %361 = vmatprep.subr.bf16.mxu0 0
    %362 = vmatpush2.bf16.msra.mxu0 0
    %363 = vmatprep.subr.bf16.mxu0 0
    %364 = vmatpush2.bf16.msra.mxu0 0
    %365 = vmatprep.subr.bf16.mxu0 0
    %366 = vmatpush2.bf16.msra.mxu0 0
    %367 = vmatprep.subr.bf16.mxu0 0
    %368 = vmatpush2.bf16.msra.mxu0 0
    %369 = vmatprep.subr.bf16.mxu0 0
    %370 = vmatpush2.bf16.msra.mxu0 0
    %371 = vmatprep.subr.bf16.mxu0 0
    %372 = vmatpush2.bf16.msra.mxu0 0
    %373 = vmatprep.subr.bf16.mxu0 0
    %374 = vmatpush2.bf16.msra.mxu0 0
    %375 = vmatprep.subr.bf16.mxu0 0
    %376 = vmatpush2.bf16.msra.mxu0 0
    %377 = vmatprep.mubr.bf16.mxu0 0
    %378 = vmatmul.mubr.bf16.gmra.mxu0 %v312
    %v379 = vpop.f32.mrf.mxu0
    %v380 = vadd.f32 %v238, %v379
    %v381 = vpop.f32.mrf.mxu0
    %v382 = vadd.f32 %v242, %v381
    %v383 = vpop.f32.mrf.mxu0
    %v384 = vadd.f32 %v238, %v383
    %v385 = vpop.f32.mrf.mxu0
    %v386 = vadd.f32 %v242, %v385
    %387 = vmatprep.mubr.bf16.mxu0 0
    %388 = vmatmul.mubr.bf16.gmra.mxu0 %v315
    %v389 = vpop.f32.mrf.mxu0
    %v390 = vadd.f32 %v238, %v389
    %v391 = vpop.f32.mrf.mxu0
    %v392 = vadd.f32 %v242, %v391
    %v393 = vpop.f32.mrf.mxu0
    %v394 = vadd.f32 %v238, %v393
    %v395 = vpop.f32.mrf.mxu0
    %v396 = vadd.f32 %v242, %v395
    %397 = vmatprep.mubr.bf16.mxu0 0
    %398 = vmatmul.mubr.bf16.gmra.mxu0 %v318
    %v399 = vpop.f32.mrf.mxu0
    %v400 = vadd.f32 %v238, %v399
    %v401 = vpop.f32.mrf.mxu0
    %v402 = vadd.f32 %v242, %v401
    %v403 = vpop.f32.mrf.mxu0
    %v404 = vadd.f32 %v238, %v403
    %v405 = vpop.f32.mrf.mxu0
    %v406 = vadd.f32 %v242, %v405
    %407 = vmatprep.mubr.bf16.mxu0 0
    %408 = vmatmul.mubr.bf16.gmra.mxu0 %v321
    %v409 = vpop.f32.mrf.mxu0
    %v410 = vadd.f32 %v238, %v409
    %v411 = vpop.f32.mrf.mxu0
    %v412 = vadd.f32 %v242, %v411
    %v413 = vpop.f32.mrf.mxu0
    %v414 = vadd.f32 %v238, %v413
    %v415 = vpop.f32.mrf.mxu0
    %v416 = vadd.f32 %v242, %v415
    %417 = vdwg.mxu0
    %418 = vmatprep.subr.bf16.mxu0 0
    %419 = vmatpush1.bf16.msra.mxu0 0
    %420 = vmatprep.subr.bf16.mxu0 0
    %421 = vmatpush1.bf16.msra.mxu0 0
    %422 = vmatprep.subr.bf16.mxu0 0
    %423 = vmatpush1.bf16.msra.mxu0 0
    %424 = vmatprep.subr.bf16.mxu0 0
    %425 = vmatpush1.bf16.msra.mxu0 0
    %426 = vmatprep.subr.bf16.mxu0 0
    %427 = vmatpush1.bf16.msra.mxu0 0
    %428 = vmatprep.subr.bf16.mxu0 0
    %429 = vmatpush1.bf16.msra.mxu0 0
    %430 = vmatprep.subr.bf16.mxu0 %v337
    %431 = vmatpush1.bf16.msra.mxu0 %v334
    %432 = vmatprep.subr.bf16.mxu0 %v295
    %433 = vmatpush1.bf16.msra.mxu0 %v294
    %434 = vmatprep.subr.bf16.mxu0 0
    %435 = vmatpush2.bf16.msra.mxu0 0
    %436 = vmatprep.subr.bf16.mxu0 0
    %437 = vmatpush2.bf16.msra.mxu0 0
    %438 = vmatprep.subr.bf16.mxu0 0
    %439 = vmatpush2.bf16.msra.mxu0 0
    %440 = vmatprep.subr.bf16.mxu0 0
    %441 = vmatpush2.bf16.msra.mxu0 0
    %442 = vmatprep.subr.bf16.mxu0 0
    %443 = vmatpush2.bf16.msra.mxu0 0
    %444 = vmatprep.subr.bf16.mxu0 0
    %445 = vmatpush2.bf16.msra.mxu0 0
    %446 = vmatprep.subr.bf16.mxu0 0
    %447 = vmatpush2.bf16.msra.mxu0 0
    %448 = vmatprep.subr.bf16.mxu0 0
    %449 = vmatpush2.bf16.msra.mxu0 0
    %450 = vmatprep.mubr.bf16.mxu0 0
    %451 = vmatmul.mubr.bf16.gmra.mxu0 %v312
    %v452 = vpop.f32.mrf.mxu0
    %v453 = vadd.f32 %v246, %v452
    %v454 = vpop.f32.mrf.mxu0
    %v455 = vadd.f32 %v250, %v454
    %v456 = vpop.f32.mrf.mxu0
    %v457 = vadd.f32 %v246, %v456
    %v458 = vpop.f32.mrf.mxu0
    %v459 = vadd.f32 %v250, %v458
    %460 = vmatprep.mubr.bf16.mxu0 0
    %461 = vmatmul.mubr.bf16.gmra.mxu0 %v315
    %v462 = vpop.f32.mrf.mxu0
    %v463 = vadd.f32 %v246, %v462
    %v464 = vpop.f32.mrf.mxu0
    %v465 = vadd.f32 %v250, %v464
    %v466 = vpop.f32.mrf.mxu0
    %v467 = vadd.f32 %v246, %v466
    %v468 = vpop.f32.mrf.mxu0
    %v469 = vadd.f32 %v250, %v468
    %470 = vmatprep.mubr.bf16.mxu0 0
    %471 = vmatmul.mubr.bf16.gmra.mxu0 %v318
    %v472 = vpop.f32.mrf.mxu0
    %v473 = vadd.f32 %v246, %v472
    %v474 = vpop.f32.mrf.mxu0
    %v475 = vadd.f32 %v250, %v474
    %v476 = vpop.f32.mrf.mxu0
    %v477 = vadd.f32 %v246, %v476
    %v478 = vpop.f32.mrf.mxu0
    %v479 = vadd.f32 %v250, %v478
    %480 = vmatprep.mubr.bf16.mxu0 0
    %481 = vmatmul.mubr.bf16.gmra.mxu0 %v321
    %v482 = vpop.f32.mrf.mxu0
    %v483 = vadd.f32 %v246, %v482
    %v484 = vpop.f32.mrf.mxu0
    %v485 = vadd.f32 %v250, %v484
    %v486 = vpop.f32.mrf.mxu0
    %v487 = vadd.f32 %v246, %v486
    %v488 = vpop.f32.mrf.mxu0
    %v489 = vadd.f32 %v250, %v488
    %490 = vdwg.mxu0
    %491 = vmatprep.subr.bf16.mxu0 0
    %492 = vmatpush1.bf16.msra.mxu0 0
    %493 = vmatprep.subr.bf16.mxu0 0
    %494 = vmatpush1.bf16.msra.mxu0 0
    %495 = vmatprep.subr.bf16.mxu0 0
    %496 = vmatpush1.bf16.msra.mxu0 0
    %497 = vmatprep.subr.bf16.mxu0 0
    %498 = vmatpush1.bf16.msra.mxu0 0
    %499 = vmatprep.subr.bf16.mxu0 0
    %500 = vmatpush1.bf16.msra.mxu0 0
    %501 = vmatprep.subr.bf16.mxu0 0
    %502 = vmatpush1.bf16.msra.mxu0 0
    %503 = vmatprep.subr.bf16.mxu0 %v343
    %504 = vmatpush1.bf16.msra.mxu0 %v340
    %505 = vmatprep.subr.bf16.mxu0 %v297
    %506 = vmatpush1.bf16.msra.mxu0 %v296
    %507 = vmatprep.subr.bf16.mxu0 0
    %508 = vmatpush2.bf16.msra.mxu0 0
    %509 = vmatprep.subr.bf16.mxu0 0
    %510 = vmatpush2.bf16.msra.mxu0 0
    %511 = vmatprep.subr.bf16.mxu0 0
    %512 = vmatpush2.bf16.msra.mxu0 0
    %513 = vmatprep.subr.bf16.mxu0 0
    %514 = vmatpush2.bf16.msra.mxu0 0
    %515 = vmatprep.subr.bf16.mxu0 0
    %516 = vmatpush2.bf16.msra.mxu0 0
    %517 = vmatprep.subr.bf16.mxu0 0
    %518 = vmatpush2.bf16.msra.mxu0 0
    %519 = vmatprep.subr.bf16.mxu0 0
    %520 = vmatpush2.bf16.msra.mxu0 0
    %521 = vmatprep.subr.bf16.mxu0 0
    %522 = vmatpush2.bf16.msra.mxu0 0
    %523 = vmatprep.mubr.bf16.mxu0 0
    %524 = vmatmul.mubr.bf16.gmra.mxu0 %v312
    %v525 = vpop.f32.mrf.mxu0
    %v526 = vadd.f32 %v254, %v525
    %v527 = vpop.f32.mrf.mxu0
    %v528 = vadd.f32 %v258, %v527
    %v529 = vpop.f32.mrf.mxu0
    %v530 = vadd.f32 %v254, %v529
    %v531 = vpop.f32.mrf.mxu0
    %v532 = vadd.f32 %v258, %v531
    %533 = vmatprep.mubr.bf16.mxu0 0
    %534 = vmatmul.mubr.bf16.gmra.mxu0 %v315
    %v535 = vpop.f32.mrf.mxu0
    %v536 = vadd.f32 %v254, %v535
    %v537 = vpop.f32.mrf.mxu0
    %v538 = vadd.f32 %v258, %v537
    %v539 = vpop.f32.mrf.mxu0
    %v540 = vadd.f32 %v254, %v539
    %v541 = vpop.f32.mrf.mxu0
    %v542 = vadd.f32 %v258, %v541
    %543 = vmatprep.mubr.bf16.mxu0 0
    %544 = vmatmul.mubr.bf16.gmra.mxu0 %v318
    %v545 = vpop.f32.mrf.mxu0
    %v546 = vadd.f32 %v254, %v545
    %v547 = vpop.f32.mrf.mxu0
    %v548 = vadd.f32 %v258, %v547
    %v549 = vpop.f32.mrf.mxu0
    %v550 = vadd.f32 %v254, %v549
    %v551 = vpop.f32.mrf.mxu0
    %v552 = vadd.f32 %v258, %v551
    %553 = vmatprep.mubr.bf16.mxu0 0
    %554 = vmatmul.mubr.bf16.gmra.mxu0 %v321
    %v555 = vpop.f32.mrf.mxu0
    %v556 = vadd.f32 %v254, %v555
    %v557 = vpop.f32.mrf.mxu0
    %v558 = vadd.f32 %v258, %v557
    %v559 = vpop.f32.mrf.mxu0
    %v560 = vadd.f32 %v254, %v559
    %v561 = vpop.f32.mrf.mxu0
    %v562 = vadd.f32 %v258, %v561
    %563 = vdwg.mxu0
    %v564 = vmax.f32 %v380, 0.0
    %v565 = vmax.f32 %v382, 0.0
    %v566 = vmax.f32 %v453, 0.0
    %v567 = vmax.f32 %v455, 0.0
    %v568 = vmax.f32 %v526, 0.0
    %v569 = vmax.f32 %v528, 0.0
    %v570 = vmax.f32 %v384, 0.0
    %v571 = vmax.f32 %v386, 0.0
    %v572 = vmax.f32 %v457, 0.0
    %v573 = vmax.f32 %v459, 0.0
    %v574 = vmax.f32 %v530, 0.0
    %v575 = vmax.f32 %v532, 0.0
    %v576 = vmax.f32 %v390, 0.0
    %v577 = vmax.f32 %v392, 0.0
    %v578 = vmax.f32 %v463, 0.0
    %v579 = vmax.f32 %v465, 0.0
    %v580 = vmax.f32 %v536, 0.0
    %v581 = vmax.f32 %v538, 0.0
    %v582 = vmax.f32 %v394, 0.0
    %v583 = vmax.f32 %v396, 0.0
    %v584 = vmax.f32 %v467, 0.0
    %v585 = vmax.f32 %v469, 0.0
    %v586 = vmax.f32 %v540, 0.0
    %v587 = vmax.f32 %v542, 0.0
    %v588 = vmax.f32 %v400, 0.0
    %v589 = vmax.f32 %v402, 0.0
    %v590 = vmax.f32 %v473, 0.0
    %v591 = vmax.f32 %v475, 0.0
    %v592 = vmax.f32 %v546, 0.0
    %v593 = vmax.f32 %v548, 0.0
    %v594 = vmax.f32 %v404, 0.0
    %v595 = vmax.f32 %v406, 0.0
    %v596 = vmax.f32 %v477, 0.0
    %v597 = vmax.f32 %v479, 0.0
    %v598 = vmax.f32 %v550, 0.0
    %v599 = vmax.f32 %v552, 0.0
    %v600 = vmax.f32 %v410, 0.0
    %v601 = vmax.f32 %v412, 0.0
    %v602 = vmax.f32 %v483, 0.0
    %v603 = vmax.f32 %v485, 0.0
    %v604 = vmax.f32 %v556, 0.0
    %v605 = vmax.f32 %v558, 0.0
    %v606 = vmax.f32 %v414, 0.0
    %v607 = vmax.f32 %v416, 0.0
    %v608 = vmax.f32 %v487, 0.0
    %v609 = vmax.f32 %v489, 0.0
    %v610 = vmax.f32 %v560, 0.0
    %v611 = vmax.f32 %v562, 0.0
    %v612 = vpack.c.bf16 %v570, %v564
    %v613 = vpack.c.bf16 %v571, %v565
    %v614 = vpack.c.bf16 %v572, %v566
    %v615 = vpack.c.bf16 %v573, %v567
    %v616 = vpack.c.bf16 %v574, %v568
    %v617 = vpack.c.bf16 %v575, %v569
    %v618 = vpack.c.bf16 %v582, %v576
    %v619 = vpack.c.bf16 %v583, %v577
    %v620 = vpack.c.bf16 %v584, %v578
    %v621 = vpack.c.bf16 %v585, %v579
    %v622 = vpack.c.bf16 %v586, %v580
    %v623 = vpack.c.bf16 %v587, %v581
    %v624 = vpack.c.bf16 %v594, %v588
    %v625 = vpack.c.bf16 %v595, %v589
    %v626 = vpack.c.bf16 %v596, %v590
    %v627 = vpack.c.bf16 %v597, %v591
    %v628 = vpack.c.bf16 %v598, %v592
    %v629 = vpack.c.bf16 %v599, %v593
    %v630 = vpack.c.bf16 %v606, %v600
    %v631 = vpack.c.bf16 %v607, %v601
    %v632 = vpack.c.bf16 %v608, %v602
    %v633 = vpack.c.bf16 %v609, %v603
    %v634 = vpack.c.bf16 %v610, %v604
    %v635 = vpack.c.bf16 %v611, %v605
    %v636 = vld [vmem:[#allocation7] sm:$0xff]
    %v637 = vld [vmem:[#allocation7 + $0x8] sm:$0xff]
    %v638 = vld [vmem:[#allocation7 + $0x10] sm:$0xff]
    %v639 = vld [vmem:[#allocation7 + $0x18] sm:$0xff]
    %v640 = vld [vmem:[#allocation7 + $0x20] sm:$0xff]
    %v641 = vld [vmem:[#allocation7 + $0x28] sm:$0xff]
    %v642 = vld [vmem:[#allocation7 + $0x30] sm:$0xff]
    %v643 = vld [vmem:[#allocation7 + $0x38] sm:$0xff]
    %v644 = vld [vmem:[#allocation7 + $0x40] sm:$0xff]
    %v645 = vld [vmem:[#allocation7 + $0x48] sm:$0xff]
    %v646 = vld [vmem:[#allocation7 + $0x50] sm:$0xff]
    %v647 = vld [vmem:[#allocation7 + $0x58] sm:$0xff]
    %v648 = vld [vmem:[#allocation7 + $0x60] sm:$0xff]
    %v649 = vld [vmem:[#allocation7 + $0x68] sm:$0xff]
    %v650 = vld [vmem:[#allocation7 + $0x70] sm:$0xff]
    %v651 = vld [vmem:[#allocation7 + $0x78] sm:$0xff]
    %v652 = vld [vmem:[#allocation7 + $0x80] sm:$0xff]
    %v653 = vld [vmem:[#allocation7 + $0x88] sm:$0xff]
    %v654 = vld [vmem:[#allocation7 + $0x90] sm:$0xff]
    %v655 = vld [vmem:[#allocation7 + $0x98] sm:$0xff]
    %v656 = vld [vmem:[#allocation7 + $0xa0] sm:$0xff]
    %v657 = vld [vmem:[#allocation7 + $0xa8] sm:$0xff]
    %v658 = vld [vmem:[#allocation7 + $0xb0] sm:$0xff]
    %v659 = vld [vmem:[#allocation7 + $0xb8] sm:$0xff]
    %v660 = vld [vmem:[#allocation7 + $0xc0] sm:$0xff]
    %v661 = vld [vmem:[#allocation7 + $0xc8] sm:$0xff]
    %v662 = vld [vmem:[#allocation7 + $0xd0] sm:$0xff]
    %v663 = vld [vmem:[#allocation7 + $0xd8] sm:$0xff]
    %v664 = vld [vmem:[#allocation7 + $0xe0] sm:$0xff]
    %v665 = vld [vmem:[#allocation7 + $0xe8] sm:$0xff]
    %v666 = vld [vmem:[#allocation7 + $0xf0] sm:$0xff]
    %v667 = vld [vmem:[#allocation7 + $0xf8] sm:$0xff]
    %v668 = vld [vmem:[#allocation7 + $0x100] sm:$0xff]
    %v669 = vld [vmem:[#allocation7 + $0x108] sm:$0xff]
    %v670 = vld [vmem:[#allocation7 + $0x110] sm:$0xff]
    %v671 = vld [vmem:[#allocation7 + $0x118] sm:$0xff]
    %v672 = vld [vmem:[#allocation7 + $0x120] sm:$0xff]
    %v673 = vld [vmem:[#allocation7 + $0x128] sm:$0xff]
    %v674 = vld [vmem:[#allocation7 + $0x130] sm:$0xff]
    %v675 = vld [vmem:[#allocation7 + $0x138] sm:$0xff]
    %v676 = vld [vmem:[#allocation7 + $0x140] sm:$0xff]
    %v677 = vld [vmem:[#allocation7 + $0x148] sm:$0xff]
    %v678 = vld [vmem:[#allocation7 + $0x150] sm:$0xff]
    %v679 = vld [vmem:[#allocation7 + $0x158] sm:$0xff]
    %v680 = vld [vmem:[#allocation7 + $0x160] sm:$0xff]
    %v681 = vld [vmem:[#allocation7 + $0x168] sm:$0xff]
    %v682 = vld [vmem:[#allocation7 + $0x170] sm:$0xff]
    %v683 = vld [vmem:[#allocation7 + $0x178] sm:$0xff]
    %v684 = vld [vmem:[#allocation7 + $0x180] sm:$0xff]
    %v685 = vld [vmem:[#allocation7 + $0x188] sm:$0xff]
    %v686 = vld [vmem:[#allocation7 + $0x190] sm:$0xff]
    %v687 = vld [vmem:[#allocation7 + $0x198] sm:$0xff]
    %v688 = vld [vmem:[#allocation7 + $0x1a0] sm:$0xff]
    %v689 = vld [vmem:[#allocation7 + $0x1a8] sm:$0xff]
    %v690 = vld [vmem:[#allocation7 + $0x1b0] sm:$0xff]
    %v691 = vld [vmem:[#allocation7 + $0x1b8] sm:$0xff]
    %v692 = vld [vmem:[#allocation7 + $0x1c0] sm:$0xff]
    %v693 = vld [vmem:[#allocation7 + $0x1c8] sm:$0xff]
    %v694 = vld [vmem:[#allocation7 + $0x1d0] sm:$0xff]
    %v695 = vld [vmem:[#allocation7 + $0x1d8] sm:$0xff]
    %v696 = vld [vmem:[#allocation7 + $0x1e0] sm:$0xff]
    %v697 = vld [vmem:[#allocation7 + $0x1e8] sm:$0xff]
    %v698 = vld [vmem:[#allocation7 + $0x1f0] sm:$0xff]
    %v699 = vld [vmem:[#allocation7 + $0x1f8] sm:$0xff]
    %v700 = vld [vmem:[#allocation7 + $0x200] sm:$0xff]
    %v701 = vld [vmem:[#allocation7 + $0x208] sm:$0xff]
    %v702 = vld [vmem:[#allocation7 + $0x210] sm:$0xff]
    %v703 = vld [vmem:[#allocation7 + $0x218] sm:$0xff]
    %v704 = vld [vmem:[#allocation7 + $0x220] sm:$0xff]
    %v705 = vld [vmem:[#allocation7 + $0x228] sm:$0xff]
    %v706 = vld [vmem:[#allocation7 + $0x230] sm:$0xff]
    %v707 = vld [vmem:[#allocation7 + $0x238] sm:$0xff]
    %v708 = vld [vmem:[#allocation7 + $0x240] sm:$0xff]
    %v709 = vld [vmem:[#allocation7 + $0x248] sm:$0xff]
    %v710 = vld [vmem:[#allocation7 + $0x250] sm:$0xff]
    %v711 = vld [vmem:[#allocation7 + $0x258] sm:$0xff]
    %v712 = vld [vmem:[#allocation7 + $0x260] sm:$0xff]
    %v713 = vld [vmem:[#allocation7 + $0x268] sm:$0xff]
    %v714 = vld [vmem:[#allocation7 + $0x270] sm:$0xff]
    %v715 = vld [vmem:[#allocation7 + $0x278] sm:$0xff]
    %v716 = vld [vmem:[#allocation7 + $0x280] sm:$0xff]
    %v717 = vld [vmem:[#allocation7 + $0x288] sm:$0xff]
    %v718 = vld [vmem:[#allocation7 + $0x290] sm:$0xff]
    %v719 = vld [vmem:[#allocation7 + $0x298] sm:$0xff]
    %v720 = vld [vmem:[#allocation7 + $0x2a0] sm:$0xff]
    %v721 = vld [vmem:[#allocation7 + $0x2a8] sm:$0xff]
    %v722 = vld [vmem:[#allocation7 + $0x2b0] sm:$0xff]
    %v723 = vld [vmem:[#allocation7 + $0x2b8] sm:$0xff]
    %v724 = vld [vmem:[#allocation7 + $0x2c0] sm:$0xff]
    %v725 = vld [vmem:[#allocation7 + $0x2c8] sm:$0xff]
    %v726 = vld [vmem:[#allocation7 + $0x2d0] sm:$0xff]
    %v727 = vld [vmem:[#allocation7 + $0x2d8] sm:$0xff]
    %v728 = vld [vmem:[#allocation7 + $0x2e0] sm:$0xff]
    %v729 = vld [vmem:[#allocation7 + $0x2e8] sm:$0xff]
    %v730 = vld [vmem:[#allocation7 + $0x2f0] sm:$0xff]
    %v731 = vld [vmem:[#allocation7 + $0x2f8] sm:$0xff]
    %v732 = vld [vmem:[#allocation7 + $0x300] sm:$0xff]
    %v733 = vld [vmem:[#allocation7 + $0x308] sm:$0xff]
    %v734 = vld [vmem:[#allocation7 + $0x310] sm:$0xff]
    %v735 = vld [vmem:[#allocation7 + $0x318] sm:$0xff]
    %v736 = vld [vmem:[#allocation7 + $0x320] sm:$0xff]
    %v737 = vld [vmem:[#allocation7 + $0x328] sm:$0xff]
    %v738 = vld [vmem:[#allocation7 + $0x330] sm:$0xff]
    %v739 = vld [vmem:[#allocation7 + $0x338] sm:$0xff]
    %v740 = vld [vmem:[#allocation7 + $0x340] sm:$0xff]
    %v741 = vld [vmem:[#allocation7 + $0x348] sm:$0xff]
    %v742 = vld [vmem:[#allocation7 + $0x350] sm:$0xff]
    %v743 = vld [vmem:[#allocation7 + $0x358] sm:$0xff]
    %v744 = vld [vmem:[#allocation7 + $0x360] sm:$0xff]
    %v745 = vld [vmem:[#allocation7 + $0x368] sm:$0xff]
    %v746 = vld [vmem:[#allocation7 + $0x370] sm:$0xff]
    %v747 = vld [vmem:[#allocation7 + $0x378] sm:$0xff]
    %v748 = vld [vmem:[#allocation7 + $0x380] sm:$0xff]
    %v749 = vld [vmem:[#allocation7 + $0x388] sm:$0xff]
    %v750 = vld [vmem:[#allocation7 + $0x390] sm:$0xff]
    %v751 = vld [vmem:[#allocation7 + $0x398] sm:$0xff]
    %v752 = vld [vmem:[#allocation7 + $0x3a0] sm:$0xff]
    %v753 = vld [vmem:[#allocation7 + $0x3a8] sm:$0xff]
    %v754 = vld [vmem:[#allocation7 + $0x3b0] sm:$0xff]
    %v755 = vld [vmem:[#allocation7 + $0x3b8] sm:$0xff]
    %v756 = vld [vmem:[#allocation7 + $0x3c0] sm:$0xff]
    %v757 = vld [vmem:[#allocation7 + $0x3c8] sm:$0xff]
    %v758 = vld [vmem:[#allocation7 + $0x3d0] sm:$0xff]
    %v759 = vld [vmem:[#allocation7 + $0x3d8] sm:$0xff]
    %v760 = vld [vmem:[#allocation7 + $0x3e0] sm:$0xff]
    %v761 = vld [vmem:[#allocation7 + $0x3e8] sm:$0xff]
    %v762 = vld [vmem:[#allocation7 + $0x3f0] sm:$0xff]
    %v763 = vld [vmem:[#allocation7 + $0x3f8] sm:$0xff]
    %v764 = vld [vmem:[#allocation7 + $0x400] sm:$0xff]
    %v765 = vld [vmem:[#allocation7 + $0x408] sm:$0xff]
    %v766 = vld [vmem:[#allocation7 + $0x410] sm:$0xff]
    %v767 = vld [vmem:[#allocation7 + $0x418] sm:$0xff]
    %v768 = vld [vmem:[#allocation7 + $0x420] sm:$0xff]
    %v769 = vld [vmem:[#allocation7 + $0x428] sm:$0xff]
    %v770 = vld [vmem:[#allocation7 + $0x430] sm:$0xff]
    %v771 = vld [vmem:[#allocation7 + $0x438] sm:$0xff]
    %v772 = vld [vmem:[#allocation7 + $0x440] sm:$0xff]
    %v773 = vld [vmem:[#allocation7 + $0x448] sm:$0xff]
    %v774 = vld [vmem:[#allocation7 + $0x450] sm:$0xff]
    %v775 = vld [vmem:[#allocation7 + $0x458] sm:$0xff]
    %v776 = vld [vmem:[#allocation7 + $0x460] sm:$0xff]
    %v777 = vld [vmem:[#allocation7 + $0x468] sm:$0xff]
    %v778 = vld [vmem:[#allocation7 + $0x470] sm:$0xff]
    %v779 = vld [vmem:[#allocation7 + $0x478] sm:$0xff]
    %v780 = vld [vmem:[#allocation7 + $0x480] sm:$0xff]
    %v781 = vld [vmem:[#allocation7 + $0x488] sm:$0xff]
    %v782 = vld [vmem:[#allocation7 + $0x490] sm:$0xff]
    %v783 = vld [vmem:[#allocation7 + $0x498] sm:$0xff]
    %v784 = vld [vmem:[#allocation7 + $0x4a0] sm:$0xff]
    %v785 = vld [vmem:[#allocation7 + $0x4a8] sm:$0xff]
    %v786 = vld [vmem:[#allocation7 + $0x4b0] sm:$0xff]
    %v787 = vld [vmem:[#allocation7 + $0x4b8] sm:$0xff]
    %v788 = vld [vmem:[#allocation7 + $0x4c0] sm:$0xff]
    %v789 = vld [vmem:[#allocation7 + $0x4c8] sm:$0xff]
    %v790 = vld [vmem:[#allocation7 + $0x4d0] sm:$0xff]
    %v791 = vld [vmem:[#allocation7 + $0x4d8] sm:$0xff]
    %v792 = vld [vmem:[#allocation7 + $0x4e0] sm:$0xff]
    %v793 = vld [vmem:[#allocation7 + $0x4e8] sm:$0xff]
    %v794 = vld [vmem:[#allocation7 + $0x4f0] sm:$0xff]
    %v795 = vld [vmem:[#allocation7 + $0x4f8] sm:$0xff]
    %v796 = vld [vmem:[#allocation7 + $0x500] sm:$0xff]
    %v797 = vld [vmem:[#allocation7 + $0x508] sm:$0xff]
    %v798 = vld [vmem:[#allocation7 + $0x510] sm:$0xff]
    %v799 = vld [vmem:[#allocation7 + $0x518] sm:$0xff]
    %v800 = vld [vmem:[#allocation7 + $0x520] sm:$0xff]
    %v801 = vld [vmem:[#allocation7 + $0x528] sm:$0xff]
    %v802 = vld [vmem:[#allocation7 + $0x530] sm:$0xff]
    %v803 = vld [vmem:[#allocation7 + $0x538] sm:$0xff]
    %v804 = vld [vmem:[#allocation7 + $0x540] sm:$0xff]
    %v805 = vld [vmem:[#allocation7 + $0x548] sm:$0xff]
    %v806 = vld [vmem:[#allocation7 + $0x550] sm:$0xff]
    %v807 = vld [vmem:[#allocation7 + $0x558] sm:$0xff]
    %v808 = vld [vmem:[#allocation7 + $0x560] sm:$0xff]
    %v809 = vld [vmem:[#allocation7 + $0x568] sm:$0xff]
    %v810 = vld [vmem:[#allocation7 + $0x570] sm:$0xff]
    %v811 = vld [vmem:[#allocation7 + $0x578] sm:$0xff]
    %v812 = vld [vmem:[#allocation7 + $0x580] sm:$0xff]
    %v813 = vld [vmem:[#allocation7 + $0x588] sm:$0xff]
    %v814 = vld [vmem:[#allocation7 + $0x590] sm:$0xff]
    %v815 = vld [vmem:[#allocation7 + $0x598] sm:$0xff]
    %v816 = vld [vmem:[#allocation7 + $0x5a0] sm:$0xff]
    %v817 = vld [vmem:[#allocation7 + $0x5a8] sm:$0xff]
    %v818 = vld [vmem:[#allocation7 + $0x5b0] sm:$0xff]
    %v819 = vld [vmem:[#allocation7 + $0x5b8] sm:$0xff]
    %v820 = vld [vmem:[#allocation7 + $0x5c0] sm:$0xff]
    %v821 = vld [vmem:[#allocation7 + $0x5c8] sm:$0xff]
    %v822 = vld [vmem:[#allocation7 + $0x5d0] sm:$0xff]
    %v823 = vld [vmem:[#allocation7 + $0x5d8] sm:$0xff]
    %v824 = vld [vmem:[#allocation7 + $0x5e0] sm:$0xff]
    %v825 = vld [vmem:[#allocation7 + $0x5e8] sm:$0xff]
    %v826 = vld [vmem:[#allocation7 + $0x5f0] sm:$0xff]
    %v827 = vld [vmem:[#allocation7 + $0x5f8] sm:$0xff]
    %v828 = vld [vmem:[#allocation7 + $0x600] sm:$0xff]
    %v829 = vld [vmem:[#allocation7 + $0x608] sm:$0xff]
    %v830 = vld [vmem:[#allocation7 + $0x610] sm:$0xff]
    %v831 = vld [vmem:[#allocation7 + $0x618] sm:$0xff]
    %v832 = vld [vmem:[#allocation7 + $0x620] sm:$0xff]
    %v833 = vld [vmem:[#allocation7 + $0x628] sm:$0xff]
    %v834 = vld [vmem:[#allocation7 + $0x630] sm:$0xff]
    %v835 = vld [vmem:[#allocation7 + $0x638] sm:$0xff]
    %v836 = vld [vmem:[#allocation7 + $0x640] sm:$0xff]
    %v837 = vld [vmem:[#allocation7 + $0x648] sm:$0xff]
    %v838 = vld [vmem:[#allocation7 + $0x650] sm:$0xff]
    %v839 = vld [vmem:[#allocation7 + $0x658] sm:$0xff]
    %v840 = vld [vmem:[#allocation7 + $0x660] sm:$0xff]
    %v841 = vld [vmem:[#allocation7 + $0x668] sm:$0xff]
    %v842 = vld [vmem:[#allocation7 + $0x670] sm:$0xff]
    %v843 = vld [vmem:[#allocation7 + $0x678] sm:$0xff]
    %v844 = vld [vmem:[#allocation7 + $0x680] sm:$0xff]
    %v845 = vld [vmem:[#allocation7 + $0x688] sm:$0xff]
    %v846 = vld [vmem:[#allocation7 + $0x690] sm:$0xff]
    %v847 = vld [vmem:[#allocation7 + $0x698] sm:$0xff]
    %v848 = vld [vmem:[#allocation7 + $0x6a0] sm:$0xff]
    %v849 = vld [vmem:[#allocation7 + $0x6a8] sm:$0xff]
    %v850 = vld [vmem:[#allocation7 + $0x6b0] sm:$0xff]
    %v851 = vld [vmem:[#allocation7 + $0x6b8] sm:$0xff]
    %v852 = vld [vmem:[#allocation7 + $0x6c0] sm:$0xff]
    %v853 = vld [vmem:[#allocation7 + $0x6c8] sm:$0xff]
    %v854 = vld [vmem:[#allocation7 + $0x6d0] sm:$0xff]
    %v855 = vld [vmem:[#allocation7 + $0x6d8] sm:$0xff]
    %v856 = vld [vmem:[#allocation7 + $0x6e0] sm:$0xff]
    %v857 = vld [vmem:[#allocation7 + $0x6e8] sm:$0xff]
    %v858 = vld [vmem:[#allocation7 + $0x6f0] sm:$0xff]
    %v859 = vld [vmem:[#allocation7 + $0x6f8] sm:$0xff]
    %v860 = vld [vmem:[#allocation7 + $0x700] sm:$0xff]
    %v861 = vld [vmem:[#allocation7 + $0x708] sm:$0xff]
    %v862 = vld [vmem:[#allocation7 + $0x710] sm:$0xff]
    %v863 = vld [vmem:[#allocation7 + $0x718] sm:$0xff]
    %v864 = vld [vmem:[#allocation7 + $0x720] sm:$0xff]
    %v865 = vld [vmem:[#allocation7 + $0x728] sm:$0xff]
    %v866 = vld [vmem:[#allocation7 + $0x730] sm:$0xff]
    %v867 = vld [vmem:[#allocation7 + $0x738] sm:$0xff]
    %v868 = vld [vmem:[#allocation7 + $0x740] sm:$0xff]
    %v869 = vld [vmem:[#allocation7 + $0x748] sm:$0xff]
    %v870 = vld [vmem:[#allocation7 + $0x750] sm:$0xff]
    %v871 = vld [vmem:[#allocation7 + $0x758] sm:$0xff]
    %v872 = vld [vmem:[#allocation7 + $0x760] sm:$0xff]
    %v873 = vld [vmem:[#allocation7 + $0x768] sm:$0xff]
    %v874 = vld [vmem:[#allocation7 + $0x770] sm:$0xff]
    %v875 = vld [vmem:[#allocation7 + $0x778] sm:$0xff]
    %v876 = vld [vmem:[#allocation7 + $0x780] sm:$0xff]
    %v877 = vld [vmem:[#allocation7 + $0x788] sm:$0xff]
    %v878 = vld [vmem:[#allocation7 + $0x790] sm:$0xff]
    %v879 = vld [vmem:[#allocation7 + $0x798] sm:$0xff]
    %v880 = vld [vmem:[#allocation7 + $0x7a0] sm:$0xff]
    %v881 = vld [vmem:[#allocation7 + $0x7a8] sm:$0xff]
    %v882 = vld [vmem:[#allocation7 + $0x7b0] sm:$0xff]
    %v883 = vld [vmem:[#allocation7 + $0x7b8] sm:$0xff]
    %v884 = vld [vmem:[#allocation7 + $0x7c0] sm:$0xff]
    %v885 = vld [vmem:[#allocation7 + $0x7c8] sm:$0xff]
    %v886 = vld [vmem:[#allocation7 + $0x7d0] sm:$0xff]
    %v887 = vld [vmem:[#allocation7 + $0x7d8] sm:$0xff]
    %v888 = vld [vmem:[#allocation7 + $0x7e0] sm:$0xff]
    %v889 = vld [vmem:[#allocation7 + $0x7e8] sm:$0xff]
    %v890 = vld [vmem:[#allocation7 + $0x7f0] sm:$0xff]
    %v891 = vld [vmem:[#allocation7 + $0x7f8] sm:$0xff]
    %v892 = vld [vmem:[#allocation7 + $0x800] sm:$0xff]
    %v893 = vld [vmem:[#allocation7 + $0x808] sm:$0xff]
    %v894 = vld [vmem:[#allocation7 + $0x810] sm:$0xff]
    %v895 = vld [vmem:[#allocation7 + $0x818] sm:$0xff]
    %v896 = vld [vmem:[#allocation7 + $0x820] sm:$0xff]
    %v897 = vld [vmem:[#allocation7 + $0x828] sm:$0xff]
    %v898 = vld [vmem:[#allocation7 + $0x830] sm:$0xff]
    %v899 = vld [vmem:[#allocation7 + $0x838] sm:$0xff]
    %v900 = vld [vmem:[#allocation7 + $0x840] sm:$0xff]
    %v901 = vld [vmem:[#allocation7 + $0x848] sm:$0xff]
    %v902 = vld [vmem:[#allocation7 + $0x850] sm:$0xff]
    %v903 = vld [vmem:[#allocation7 + $0x858] sm:$0xff]
    %v904 = vld [vmem:[#allocation7 + $0x860] sm:$0xff]
    %v905 = vld [vmem:[#allocation7 + $0x868] sm:$0xff]
    %v906 = vld [vmem:[#allocation7 + $0x870] sm:$0xff]
    %v907 = vld [vmem:[#allocation7 + $0x878] sm:$0xff]
    %v908 = vld [vmem:[#allocation7 + $0x880] sm:$0xff]
    %v909 = vld [vmem:[#allocation7 + $0x888] sm:$0xff]
    %v910 = vld [vmem:[#allocation7 + $0x890] sm:$0xff]
    %v911 = vld [vmem:[#allocation7 + $0x898] sm:$0xff]
    %v912 = vld [vmem:[#allocation7 + $0x8a0] sm:$0xff]
    %v913 = vld [vmem:[#allocation7 + $0x8a8] sm:$0xff]
    %v914 = vld [vmem:[#allocation7 + $0x8b0] sm:$0xff]
    %v915 = vld [vmem:[#allocation7 + $0x8b8] sm:$0xff]
    %v916 = vld [vmem:[#allocation7 + $0x8c0] sm:$0xff]
    %v917 = vld [vmem:[#allocation7 + $0x8c8] sm:$0xff]
    %v918 = vld [vmem:[#allocation7 + $0x8d0] sm:$0xff]
    %v919 = vld [vmem:[#allocation7 + $0x8d8] sm:$0xff]
    %v920 = vld [vmem:[#allocation7 + $0x8e0] sm:$0xff]
    %v921 = vld [vmem:[#allocation7 + $0x8e8] sm:$0xff]
    %v922 = vld [vmem:[#allocation7 + $0x8f0] sm:$0xff]
    %v923 = vld [vmem:[#allocation7 + $0x8f8] sm:$0xff]
    %v924 = vld [vmem:[#allocation8] sm:$0x3f]
    %v926 = vlaneseq
    %v927 = vshrl.u32 %v926, 7
    %v928 = vsub.s32 0, %v927
    %v929 = vrot.slane %v924, %v928
    %v930 = vlaneseq
    %v931 = vshrl.u32 %v930, 7
    %v932 = vsub.s32 1, %v931
    %v933 = vrot.slane %v924, %v932
    %v934 = vlaneseq
    %v935 = vshrl.u32 %v934, 7
    %v936 = vsub.s32 2, %v935
    %v937 = vrot.slane %v924, %v936
    %v938 = vlaneseq
    %v939 = vshrl.u32 %v938, 7
    %v940 = vsub.s32 3, %v939
    %v941 = vrot.slane %v924, %v940
    %v942 = vlaneseq
    %v943 = vshrl.u32 %v942, 7
    %v944 = vsub.s32 4, %v943
    %v945 = vrot.slane %v924, %v944
    %v946 = vlaneseq
    %v947 = vshrl.u32 %v946, 7
    %v948 = vsub.s32 5, %v947
    %v949 = vrot.slane %v924, %v948
    %v1244 = vunpack.c.l.b16 %v636
    %v1245 = vunpack.c.h.b16 %v636
    %v1246 = vunpack.c.l.b16 %v637
    %v1247 = vunpack.c.h.b16 %v637
    %v1248 = vunpack.c.l.b16 %v638
    %v1249 = vunpack.c.h.b16 %v638
    %v1250 = vunpack.c.l.b16 %v639
    %v1251 = vunpack.c.h.b16 %v639
    %v1252 = vunpack.c.l.b16 %v640
    %v1253 = vunpack.c.h.b16 %v640
    %v1254 = vunpack.c.l.b16 %v641
    %v1255 = vunpack.c.h.b16 %v641
    %v1256 = vunpack.c.l.b16 %v642
    %v1257 = vunpack.c.h.b16 %v642
    %v1258 = vunpack.c.l.b16 %v643
    %v1259 = vunpack.c.h.b16 %v643
    %v1260 = vunpack.c.l.b16 %v644
    %v1261 = vunpack.c.h.b16 %v644
    %v1262 = vunpack.c.l.b16 %v645
    %v1263 = vunpack.c.h.b16 %v645
    %v1264 = vunpack.c.l.b16 %v646
    %v1265 = vunpack.c.h.b16 %v646
    %v1266 = vunpack.c.l.b16 %v647
    %v1267 = vunpack.c.h.b16 %v647
    %v1268 = vunpack.c.l.b16 %v648
    %v1269 = vunpack.c.h.b16 %v648
    %v1270 = vunpack.c.l.b16 %v649
    %v1271 = vunpack.c.h.b16 %v649
    %v1272 = vunpack.c.l.b16 %v650
    %v1273 = vunpack.c.h.b16 %v650
    %v1274 = vunpack.c.l.b16 %v651
    %v1275 = vunpack.c.h.b16 %v651
    %v1276 = vunpack.c.l.b16 %v652
    %v1277 = vunpack.c.h.b16 %v652
    %v1278 = vunpack.c.l.b16 %v653
    %v1279 = vunpack.c.h.b16 %v653
    %v1280 = vunpack.c.l.b16 %v654
    %v1281 = vunpack.c.h.b16 %v654
    %v1282 = vunpack.c.l.b16 %v655
    %v1283 = vunpack.c.h.b16 %v655
    %v1284 = vunpack.c.l.b16 %v656
    %v1285 = vunpack.c.h.b16 %v656
    %v1286 = vunpack.c.l.b16 %v657
    %v1287 = vunpack.c.h.b16 %v657
    %v1288 = vunpack.c.l.b16 %v658
    %v1289 = vunpack.c.h.b16 %v658
    %v1290 = vunpack.c.l.b16 %v659
    %v1291 = vunpack.c.h.b16 %v659
    %v1292 = vunpack.c.l.b16 %v660
    %v1293 = vunpack.c.h.b16 %v660
    %v1294 = vunpack.c.l.b16 %v661
    %v1295 = vunpack.c.h.b16 %v661
    %v1296 = vunpack.c.l.b16 %v662
    %v1297 = vunpack.c.h.b16 %v662
    %v1298 = vunpack.c.l.b16 %v663
    %v1299 = vunpack.c.h.b16 %v663
    %v1300 = vunpack.c.l.b16 %v664
    %v1301 = vunpack.c.h.b16 %v664
    %v1302 = vunpack.c.l.b16 %v665
    %v1303 = vunpack.c.h.b16 %v665
    %v1304 = vunpack.c.l.b16 %v666
    %v1305 = vunpack.c.h.b16 %v666
    %v1306 = vunpack.c.l.b16 %v667
    %v1307 = vunpack.c.h.b16 %v667
    %v1308 = vunpack.c.l.b16 %v668
    %v1309 = vunpack.c.h.b16 %v668
    %v1310 = vunpack.c.l.b16 %v669
    %v1311 = vunpack.c.h.b16 %v669
    %v1312 = vunpack.c.l.b16 %v670
    %v1313 = vunpack.c.h.b16 %v670
    %v1314 = vunpack.c.l.b16 %v671
    %v1315 = vunpack.c.h.b16 %v671
    %v1316 = vunpack.c.l.b16 %v672
    %v1317 = vunpack.c.h.b16 %v672
    %v1318 = vunpack.c.l.b16 %v673
    %v1319 = vunpack.c.h.b16 %v673
    %v1320 = vunpack.c.l.b16 %v674
    %v1321 = vunpack.c.h.b16 %v674
    %v1322 = vunpack.c.l.b16 %v675
    %v1323 = vunpack.c.h.b16 %v675
    %v1324 = vunpack.c.l.b16 %v676
    %v1325 = vunpack.c.h.b16 %v676
    %v1326 = vunpack.c.l.b16 %v677
    %v1327 = vunpack.c.h.b16 %v677
    %v1328 = vunpack.c.l.b16 %v678
    %v1329 = vunpack.c.h.b16 %v678
    %v1330 = vunpack.c.l.b16 %v679
    %v1331 = vunpack.c.h.b16 %v679
    %v1332 = vunpack.c.l.b16 %v680
    %v1333 = vunpack.c.h.b16 %v680
    %v1334 = vunpack.c.l.b16 %v681
    %v1335 = vunpack.c.h.b16 %v681
    %v1336 = vunpack.c.l.b16 %v682
    %v1337 = vunpack.c.h.b16 %v682
    %v1338 = vunpack.c.l.b16 %v683
    %v1339 = vunpack.c.h.b16 %v683
    %v1340 = vunpack.c.l.b16 %v684
    %v1341 = vunpack.c.h.b16 %v684
    %v1342 = vunpack.c.l.b16 %v685
    %v1343 = vunpack.c.h.b16 %v685
    %v1344 = vunpack.c.l.b16 %v686
    %v1345 = vunpack.c.h.b16 %v686
    %v1346 = vunpack.c.l.b16 %v687
    %v1347 = vunpack.c.h.b16 %v687
    %v1348 = vunpack.c.l.b16 %v688
    %v1349 = vunpack.c.h.b16 %v688
    %v1350 = vunpack.c.l.b16 %v689
    %v1351 = vunpack.c.h.b16 %v689
    %v1352 = vunpack.c.l.b16 %v690
    %v1353 = vunpack.c.h.b16 %v690
    %v1354 = vunpack.c.l.b16 %v691
    %v1355 = vunpack.c.h.b16 %v691
    %v1356 = vunpack.c.l.b16 %v692
    %v1357 = vunpack.c.h.b16 %v692
    %v1358 = vunpack.c.l.b16 %v693
    %v1359 = vunpack.c.h.b16 %v693
    %v1360 = vunpack.c.l.b16 %v694
    %v1361 = vunpack.c.h.b16 %v694
    %v1362 = vunpack.c.l.b16 %v695
    %v1363 = vunpack.c.h.b16 %v695
    %v1364 = vunpack.c.l.b16 %v696
    %v1365 = vunpack.c.h.b16 %v696
    %v1366 = vunpack.c.l.b16 %v697
    %v1367 = vunpack.c.h.b16 %v697
    %v1368 = vunpack.c.l.b16 %v698
    %v1369 = vunpack.c.h.b16 %v698
    %v1370 = vunpack.c.l.b16 %v699
    %v1371 = vunpack.c.h.b16 %v699
    %v1372 = vunpack.c.l.b16 %v700
    %v1373 = vunpack.c.h.b16 %v700
    %v1374 = vunpack.c.l.b16 %v701
    %v1375 = vunpack.c.h.b16 %v701
    %v1376 = vunpack.c.l.b16 %v702
    %v1377 = vunpack.c.h.b16 %v702
    %v1378 = vunpack.c.l.b16 %v703
    %v1379 = vunpack.c.h.b16 %v703
    %v1380 = vunpack.c.l.b16 %v704
    %v1381 = vunpack.c.h.b16 %v704
    %v1382 = vunpack.c.l.b16 %v705
    %v1383 = vunpack.c.h.b16 %v705
    %v1384 = vunpack.c.l.b16 %v706
    %v1385 = vunpack.c.h.b16 %v706
    %v1386 = vunpack.c.l.b16 %v707
    %v1387 = vunpack.c.h.b16 %v707
    %v1388 = vunpack.c.l.b16 %v708
    %v1389 = vunpack.c.h.b16 %v708
    %v1390 = vunpack.c.l.b16 %v709
    %v1391 = vunpack.c.h.b16 %v709
    %v1392 = vunpack.c.l.b16 %v710
    %v1393 = vunpack.c.h.b16 %v710
    %v1394 = vunpack.c.l.b16 %v711
    %v1395 = vunpack.c.h.b16 %v711
    %v1396 = vunpack.c.l.b16 %v712
    %v1397 = vunpack.c.h.b16 %v712
    %v1398 = vunpack.c.l.b16 %v713
    %v1399 = vunpack.c.h.b16 %v713
    %v1400 = vunpack.c.l.b16 %v714
    %v1401 = vunpack.c.h.b16 %v714
    %v1402 = vunpack.c.l.b16 %v715
    %v1403 = vunpack.c.h.b16 %v715
    %v1404 = vunpack.c.l.b16 %v716
    %v1405 = vunpack.c.h.b16 %v716
    %v1406 = vunpack.c.l.b16 %v717
    %v1407 = vunpack.c.h.b16 %v717
    %v1408 = vunpack.c.l.b16 %v718
    %v1409 = vunpack.c.h.b16 %v718
    %v1410 = vunpack.c.l.b16 %v719
    %v1411 = vunpack.c.h.b16 %v719
    %v1412 = vunpack.c.l.b16 %v720
    %v1413 = vunpack.c.h.b16 %v720
    %v1414 = vunpack.c.l.b16 %v721
    %v1415 = vunpack.c.h.b16 %v721
    %v1416 = vunpack.c.l.b16 %v722
    %v1417 = vunpack.c.h.b16 %v722
    %v1418 = vunpack.c.l.b16 %v723
    %v1419 = vunpack.c.h.b16 %v723
    %v1420 = vunpack.c.l.b16 %v724
    %v1421 = vunpack.c.h.b16 %v724
    %v1422 = vunpack.c.l.b16 %v725
    %v1423 = vunpack.c.h.b16 %v725
    %v1424 = vunpack.c.l.b16 %v726
    %v1425 = vunpack.c.h.b16 %v726
    %v1426 = vunpack.c.l.b16 %v727
    %v1427 = vunpack.c.h.b16 %v727
    %v1428 = vunpack.c.l.b16 %v728
    %v1429 = vunpack.c.h.b16 %v728
    %v1430 = vunpack.c.l.b16 %v729
    %v1431 = vunpack.c.h.b16 %v729
    %v1432 = vunpack.c.l.b16 %v730
    %v1433 = vunpack.c.h.b16 %v730
    %v1434 = vunpack.c.l.b16 %v731
    %v1435 = vunpack.c.h.b16 %v731
    %v1436 = vunpack.c.l.b16 %v732
    %v1437 = vunpack.c.h.b16 %v732
    %v1438 = vunpack.c.l.b16 %v733
    %v1439 = vunpack.c.h.b16 %v733
    %v1440 = vunpack.c.l.b16 %v734
    %v1441 = vunpack.c.h.b16 %v734
    %v1442 = vunpack.c.l.b16 %v735
    %v1443 = vunpack.c.h.b16 %v735
    %v1444 = vunpack.c.l.b16 %v736
    %v1445 = vunpack.c.h.b16 %v736
    %v1446 = vunpack.c.l.b16 %v737
    %v1447 = vunpack.c.h.b16 %v737
    %v1448 = vunpack.c.l.b16 %v738
    %v1449 = vunpack.c.h.b16 %v738
    %v1450 = vunpack.c.l.b16 %v739
    %v1451 = vunpack.c.h.b16 %v739
    %v1452 = vunpack.c.l.b16 %v740
    %v1453 = vunpack.c.h.b16 %v740
    %v1454 = vunpack.c.l.b16 %v741
    %v1455 = vunpack.c.h.b16 %v741
    %v1456 = vunpack.c.l.b16 %v742
    %v1457 = vunpack.c.h.b16 %v742
    %v1458 = vunpack.c.l.b16 %v743
    %v1459 = vunpack.c.h.b16 %v743
    %v1460 = vunpack.c.l.b16 %v744
    %v1461 = vunpack.c.h.b16 %v744
    %v1462 = vunpack.c.l.b16 %v745
    %v1463 = vunpack.c.h.b16 %v745
    %v1464 = vunpack.c.l.b16 %v746
    %v1465 = vunpack.c.h.b16 %v746
    %v1466 = vunpack.c.l.b16 %v747
    %v1467 = vunpack.c.h.b16 %v747
    %v1468 = vunpack.c.l.b16 %v748
    %v1469 = vunpack.c.h.b16 %v748
    %v1470 = vunpack.c.l.b16 %v749
    %v1471 = vunpack.c.h.b16 %v749
    %v1472 = vunpack.c.l.b16 %v750
    %v1473 = vunpack.c.h.b16 %v750
    %v1474 = vunpack.c.l.b16 %v751
    %v1475 = vunpack.c.h.b16 %v751
    %v1476 = vunpack.c.l.b16 %v752
    %v1477 = vunpack.c.h.b16 %v752
    %v1478 = vunpack.c.l.b16 %v753
    %v1479 = vunpack.c.h.b16 %v753
    %v1480 = vunpack.c.l.b16 %v754
    %v1481 = vunpack.c.h.b16 %v754
    %v1482 = vunpack.c.l.b16 %v755
    %v1483 = vunpack.c.h.b16 %v755
    %v1484 = vunpack.c.l.b16 %v756
    %v1485 = vunpack.c.h.b16 %v756
    %v1486 = vunpack.c.l.b16 %v757
    %v1487 = vunpack.c.h.b16 %v757
    %v1488 = vunpack.c.l.b16 %v758
    %v1489 = vunpack.c.h.b16 %v758
    %v1490 = vunpack.c.l.b16 %v759
    %v1491 = vunpack.c.h.b16 %v759
    %v1492 = vunpack.c.l.b16 %v760
    %v1493 = vunpack.c.h.b16 %v760
    %v1494 = vunpack.c.l.b16 %v761
    %v1495 = vunpack.c.h.b16 %v761
    %v1496 = vunpack.c.l.b16 %v762
    %v1497 = vunpack.c.h.b16 %v762
    %v1498 = vunpack.c.l.b16 %v763
    %v1499 = vunpack.c.h.b16 %v763
    %v1500 = vunpack.c.l.b16 %v764
    %v1501 = vunpack.c.h.b16 %v764
    %v1502 = vunpack.c.l.b16 %v765
    %v1503 = vunpack.c.h.b16 %v765
    %v1504 = vunpack.c.l.b16 %v766
    %v1505 = vunpack.c.h.b16 %v766
    %v1506 = vunpack.c.l.b16 %v767
    %v1507 = vunpack.c.h.b16 %v767
    %v1508 = vunpack.c.l.b16 %v768
    %v1509 = vunpack.c.h.b16 %v768
    %v1510 = vunpack.c.l.b16 %v769
    %v1511 = vunpack.c.h.b16 %v769
    %v1512 = vunpack.c.l.b16 %v770
    %v1513 = vunpack.c.h.b16 %v770
    %v1514 = vunpack.c.l.b16 %v771
    %v1515 = vunpack.c.h.b16 %v771
    %v1516 = vunpack.c.l.b16 %v772
    %v1517 = vunpack.c.h.b16 %v772
    %v1518 = vunpack.c.l.b16 %v773
    %v1519 = vunpack.c.h.b16 %v773
    %v1520 = vunpack.c.l.b16 %v774
    %v1521 = vunpack.c.h.b16 %v774
    %v1522 = vunpack.c.l.b16 %v775
    %v1523 = vunpack.c.h.b16 %v775
    %v1524 = vunpack.c.l.b16 %v776
    %v1525 = vunpack.c.h.b16 %v776
    %v1526 = vunpack.c.l.b16 %v777
    %v1527 = vunpack.c.h.b16 %v777
    %v1528 = vunpack.c.l.b16 %v778
    %v1529 = vunpack.c.h.b16 %v778
    %v1530 = vunpack.c.l.b16 %v779
    %v1531 = vunpack.c.h.b16 %v779
    %v1532 = vunpack.c.l.b16 %v780
    %v1533 = vunpack.c.h.b16 %v780
    %v1534 = vunpack.c.l.b16 %v781
    %v1535 = vunpack.c.h.b16 %v781
    %v1536 = vunpack.c.l.b16 %v782
    %v1537 = vunpack.c.h.b16 %v782
    %v1538 = vunpack.c.l.b16 %v783
    %v1539 = vunpack.c.h.b16 %v783
    %v1540 = vunpack.c.l.b16 %v784
    %v1541 = vunpack.c.h.b16 %v784
    %v1542 = vunpack.c.l.b16 %v785
    %v1543 = vunpack.c.h.b16 %v785
    %v1544 = vunpack.c.l.b16 %v786
    %v1545 = vunpack.c.h.b16 %v786
    %v1546 = vunpack.c.l.b16 %v787
    %v1547 = vunpack.c.h.b16 %v787
    %v1548 = vunpack.c.l.b16 %v788
    %v1549 = vunpack.c.h.b16 %v788
    %v1550 = vunpack.c.l.b16 %v789
    %v1551 = vunpack.c.h.b16 %v789
    %v1552 = vunpack.c.l.b16 %v790
    %v1553 = vunpack.c.h.b16 %v790
    %v1554 = vunpack.c.l.b16 %v791
    %v1555 = vunpack.c.h.b16 %v791
    %v1556 = vunpack.c.l.b16 %v792
    %v1557 = vunpack.c.h.b16 %v792
    %v1558 = vunpack.c.l.b16 %v793
    %v1559 = vunpack.c.h.b16 %v793
    %v1560 = vunpack.c.l.b16 %v794
    %v1561 = vunpack.c.h.b16 %v794
    %v1562 = vunpack.c.l.b16 %v795
    %v1563 = vunpack.c.h.b16 %v795
    %v1564 = vunpack.c.l.b16 %v796
    %v1565 = vunpack.c.h.b16 %v796
    %v1566 = vunpack.c.l.b16 %v797
    %v1567 = vunpack.c.h.b16 %v797
    %v1568 = vunpack.c.l.b16 %v798
    %v1569 = vunpack.c.h.b16 %v798
    %v1570 = vunpack.c.l.b16 %v799
    %v1571 = vunpack.c.h.b16 %v799
    %v1572 = vunpack.c.l.b16 %v800
    %v1573 = vunpack.c.h.b16 %v800
    %v1574 = vunpack.c.l.b16 %v801
    %v1575 = vunpack.c.h.b16 %v801
    %v1576 = vunpack.c.l.b16 %v802
    %v1577 = vunpack.c.h.b16 %v802
    %v1578 = vunpack.c.l.b16 %v803
    %v1579 = vunpack.c.h.b16 %v803
    %v1580 = vunpack.c.l.b16 %v804
    %v1581 = vunpack.c.h.b16 %v804
    %v1582 = vunpack.c.l.b16 %v805
    %v1583 = vunpack.c.h.b16 %v805
    %v1584 = vunpack.c.l.b16 %v806
    %v1585 = vunpack.c.h.b16 %v806
    %v1586 = vunpack.c.l.b16 %v807
    %v1587 = vunpack.c.h.b16 %v807
    %v1588 = vunpack.c.l.b16 %v808
    %v1589 = vunpack.c.h.b16 %v808
    %v1590 = vunpack.c.l.b16 %v809
    %v1591 = vunpack.c.h.b16 %v809
    %v1592 = vunpack.c.l.b16 %v810
    %v1593 = vunpack.c.h.b16 %v810
    %v1594 = vunpack.c.l.b16 %v811
    %v1595 = vunpack.c.h.b16 %v811
    %v1596 = vunpack.c.l.b16 %v812
    %v1597 = vunpack.c.h.b16 %v812
    %v1598 = vunpack.c.l.b16 %v813
    %v1599 = vunpack.c.h.b16 %v813
    %v1600 = vunpack.c.l.b16 %v814
    %v1601 = vunpack.c.h.b16 %v814
    %v1602 = vunpack.c.l.b16 %v815
    %v1603 = vunpack.c.h.b16 %v815
    %v1604 = vunpack.c.l.b16 %v816
    %v1605 = vunpack.c.h.b16 %v816
    %v1606 = vunpack.c.l.b16 %v817
    %v1607 = vunpack.c.h.b16 %v817
    %v1608 = vunpack.c.l.b16 %v818
    %v1609 = vunpack.c.h.b16 %v818
    %v1610 = vunpack.c.l.b16 %v819
    %v1611 = vunpack.c.h.b16 %v819
    %v1612 = vunpack.c.l.b16 %v820
    %v1613 = vunpack.c.h.b16 %v820
    %v1614 = vunpack.c.l.b16 %v821
    %v1615 = vunpack.c.h.b16 %v821
    %v1616 = vunpack.c.l.b16 %v822
    %v1617 = vunpack.c.h.b16 %v822
    %v1618 = vunpack.c.l.b16 %v823
    %v1619 = vunpack.c.h.b16 %v823
    %v1620 = vunpack.c.l.b16 %v824
    %v1621 = vunpack.c.h.b16 %v824
    %v1622 = vunpack.c.l.b16 %v825
    %v1623 = vunpack.c.h.b16 %v825
    %v1624 = vunpack.c.l.b16 %v826
    %v1625 = vunpack.c.h.b16 %v826
    %v1626 = vunpack.c.l.b16 %v827
    %v1627 = vunpack.c.h.b16 %v827
    %v1628 = vunpack.c.l.b16 %v828
    %v1629 = vunpack.c.h.b16 %v828
    %v1630 = vunpack.c.l.b16 %v829
    %v1631 = vunpack.c.h.b16 %v829
    %v1632 = vunpack.c.l.b16 %v830
    %v1633 = vunpack.c.h.b16 %v830
    %v1634 = vunpack.c.l.b16 %v831
    %v1635 = vunpack.c.h.b16 %v831
    %v1636 = vunpack.c.l.b16 %v832
    %v1637 = vunpack.c.h.b16 %v832
    %v1638 = vunpack.c.l.b16 %v833
    %v1639 = vunpack.c.h.b16 %v833
    %v1640 = vunpack.c.l.b16 %v834
    %v1641 = vunpack.c.h.b16 %v834
    %v1642 = vunpack.c.l.b16 %v835
    %v1643 = vunpack.c.h.b16 %v835
    %v1644 = vunpack.c.l.b16 %v836
    %v1645 = vunpack.c.h.b16 %v836
    %v1646 = vunpack.c.l.b16 %v837
    %v1647 = vunpack.c.h.b16 %v837
    %v1648 = vunpack.c.l.b16 %v838
    %v1649 = vunpack.c.h.b16 %v838
    %v1650 = vunpack.c.l.b16 %v839
    %v1651 = vunpack.c.h.b16 %v839
    %v1652 = vunpack.c.l.b16 %v840
    %v1653 = vunpack.c.h.b16 %v840
    %v1654 = vunpack.c.l.b16 %v841
    %v1655 = vunpack.c.h.b16 %v841
    %v1656 = vunpack.c.l.b16 %v842
    %v1657 = vunpack.c.h.b16 %v842
    %v1658 = vunpack.c.l.b16 %v843
    %v1659 = vunpack.c.h.b16 %v843
    %v1660 = vunpack.c.l.b16 %v844
    %v1661 = vunpack.c.h.b16 %v844
    %v1662 = vunpack.c.l.b16 %v845
    %v1663 = vunpack.c.h.b16 %v845
    %v1664 = vunpack.c.l.b16 %v846
    %v1665 = vunpack.c.h.b16 %v846
    %v1666 = vunpack.c.l.b16 %v847
    %v1667 = vunpack.c.h.b16 %v847
    %v1668 = vunpack.c.l.b16 %v848
    %v1669 = vunpack.c.h.b16 %v848
    %v1670 = vunpack.c.l.b16 %v849
    %v1671 = vunpack.c.h.b16 %v849
    %v1672 = vunpack.c.l.b16 %v850
    %v1673 = vunpack.c.h.b16 %v850
    %v1674 = vunpack.c.l.b16 %v851
    %v1675 = vunpack.c.h.b16 %v851
    %v1676 = vunpack.c.l.b16 %v852
    %v1677 = vunpack.c.h.b16 %v852
    %v1678 = vunpack.c.l.b16 %v853
    %v1679 = vunpack.c.h.b16 %v853
    %v1680 = vunpack.c.l.b16 %v854
    %v1681 = vunpack.c.h.b16 %v854
    %v1682 = vunpack.c.l.b16 %v855
    %v1683 = vunpack.c.h.b16 %v855
    %v1684 = vunpack.c.l.b16 %v856
    %v1685 = vunpack.c.h.b16 %v856
    %v1686 = vunpack.c.l.b16 %v857
    %v1687 = vunpack.c.h.b16 %v857
    %v1688 = vunpack.c.l.b16 %v858
    %v1689 = vunpack.c.h.b16 %v858
    %v1690 = vunpack.c.l.b16 %v859
    %v1691 = vunpack.c.h.b16 %v859
    %v1692 = vunpack.c.l.b16 %v860
    %v1693 = vunpack.c.h.b16 %v860
    %v1694 = vunpack.c.l.b16 %v861
    %v1695 = vunpack.c.h.b16 %v861
    %v1696 = vunpack.c.l.b16 %v862
    %v1697 = vunpack.c.h.b16 %v862
    %v1698 = vunpack.c.l.b16 %v863
    %v1699 = vunpack.c.h.b16 %v863
    %v1700 = vunpack.c.l.b16 %v864
    %v1701 = vunpack.c.h.b16 %v864
    %v1702 = vunpack.c.l.b16 %v865
    %v1703 = vunpack.c.h.b16 %v865
    %v1704 = vunpack.c.l.b16 %v866
    %v1705 = vunpack.c.h.b16 %v866
    %v1706 = vunpack.c.l.b16 %v867
    %v1707 = vunpack.c.h.b16 %v867
    %v1708 = vunpack.c.l.b16 %v868
    %v1709 = vunpack.c.h.b16 %v868
    %v1710 = vunpack.c.l.b16 %v869
    %v1711 = vunpack.c.h.b16 %v869
    %v1712 = vunpack.c.l.b16 %v870
    %v1713 = vunpack.c.h.b16 %v870
    %v1714 = vunpack.c.l.b16 %v871
    %v1715 = vunpack.c.h.b16 %v871
    %v1716 = vunpack.c.l.b16 %v872
    %v1717 = vunpack.c.h.b16 %v872
    %v1718 = vunpack.c.l.b16 %v873
    %v1719 = vunpack.c.h.b16 %v873
    %v1720 = vunpack.c.l.b16 %v874
    %v1721 = vunpack.c.h.b16 %v874
    %v1722 = vunpack.c.l.b16 %v875
    %v1723 = vunpack.c.h.b16 %v875
    %v1724 = vunpack.c.l.b16 %v876
    %v1725 = vunpack.c.h.b16 %v876
    %v1726 = vunpack.c.l.b16 %v877
    %v1727 = vunpack.c.h.b16 %v877
    %v1728 = vunpack.c.l.b16 %v878
    %v1729 = vunpack.c.h.b16 %v878
    %v1730 = vunpack.c.l.b16 %v879
    %v1731 = vunpack.c.h.b16 %v879
    %v1732 = vunpack.c.l.b16 %v880
    %v1733 = vunpack.c.h.b16 %v880
    %v1734 = vunpack.c.l.b16 %v881
    %v1735 = vunpack.c.h.b16 %v881
    %v1736 = vunpack.c.l.b16 %v882
    %v1737 = vunpack.c.h.b16 %v882
    %v1738 = vunpack.c.l.b16 %v883
    %v1739 = vunpack.c.h.b16 %v883
    %v1740 = vunpack.c.l.b16 %v884
    %v1741 = vunpack.c.h.b16 %v884
    %v1742 = vunpack.c.l.b16 %v885
    %v1743 = vunpack.c.h.b16 %v885
    %v1744 = vunpack.c.l.b16 %v886
    %v1745 = vunpack.c.h.b16 %v886
    %v1746 = vunpack.c.l.b16 %v887
    %v1747 = vunpack.c.h.b16 %v887
    %v1748 = vunpack.c.l.b16 %v888
    %v1749 = vunpack.c.h.b16 %v888
    %v1750 = vunpack.c.l.b16 %v889
    %v1751 = vunpack.c.h.b16 %v889
    %v1752 = vunpack.c.l.b16 %v890
    %v1753 = vunpack.c.h.b16 %v890
    %v1754 = vunpack.c.l.b16 %v891
    %v1755 = vunpack.c.h.b16 %v891
    %v1756 = vunpack.c.l.b16 %v892
    %v1757 = vunpack.c.h.b16 %v892
    %v1758 = vunpack.c.l.b16 %v893
    %v1759 = vunpack.c.h.b16 %v893
    %v1760 = vunpack.c.l.b16 %v894
    %v1761 = vunpack.c.h.b16 %v894
    %v1762 = vunpack.c.l.b16 %v895
    %v1763 = vunpack.c.h.b16 %v895
    %v1764 = vunpack.c.l.b16 %v896
    %v1765 = vunpack.c.h.b16 %v896
    %v1766 = vunpack.c.l.b16 %v897
    %v1767 = vunpack.c.h.b16 %v897
    %v1768 = vunpack.c.l.b16 %v898
    %v1769 = vunpack.c.h.b16 %v898
    %v1770 = vunpack.c.l.b16 %v899
    %v1771 = vunpack.c.h.b16 %v899
    %v1772 = vunpack.c.l.b16 %v900
    %v1773 = vunpack.c.h.b16 %v900
    %v1774 = vunpack.c.l.b16 %v901
    %v1775 = vunpack.c.h.b16 %v901
    %v1776 = vunpack.c.l.b16 %v902
    %v1777 = vunpack.c.h.b16 %v902
    %v1778 = vunpack.c.l.b16 %v903
    %v1779 = vunpack.c.h.b16 %v903
    %v1780 = vunpack.c.l.b16 %v904
    %v1781 = vunpack.c.h.b16 %v904
    %v1782 = vunpack.c.l.b16 %v905
    %v1783 = vunpack.c.h.b16 %v905
    %v1784 = vunpack.c.l.b16 %v906
    %v1785 = vunpack.c.h.b16 %v906
    %v1786 = vunpack.c.l.b16 %v907
    %v1787 = vunpack.c.h.b16 %v907
    %v1788 = vunpack.c.l.b16 %v908
    %v1789 = vunpack.c.h.b16 %v908
    %v1790 = vunpack.c.l.b16 %v909
    %v1791 = vunpack.c.h.b16 %v909
    %v1792 = vunpack.c.l.b16 %v910
    %v1793 = vunpack.c.h.b16 %v910
    %v1794 = vunpack.c.l.b16 %v911
    %v1795 = vunpack.c.h.b16 %v911
    %v1796 = vunpack.c.l.b16 %v912
    %v1797 = vunpack.c.h.b16 %v912
    %v1798 = vunpack.c.l.b16 %v913
    %v1799 = vunpack.c.h.b16 %v913
    %v1800 = vunpack.c.l.b16 %v914
    %v1801 = vunpack.c.h.b16 %v914
    %v1802 = vunpack.c.l.b16 %v915
    %v1803 = vunpack.c.h.b16 %v915
    %v1804 = vunpack.c.l.b16 %v916
    %v1805 = vunpack.c.h.b16 %v916
    %v1806 = vunpack.c.l.b16 %v917
    %v1807 = vunpack.c.h.b16 %v917
    %v1808 = vunpack.c.l.b16 %v918
    %v1809 = vunpack.c.h.b16 %v918
    %v1810 = vunpack.c.l.b16 %v919
    %v1811 = vunpack.c.h.b16 %v919
    %v1812 = vunpack.c.l.b16 %v920
    %v1813 = vunpack.c.h.b16 %v920
    %v1814 = vunpack.c.l.b16 %v921
    %v1815 = vunpack.c.h.b16 %v921
    %v1816 = vunpack.c.l.b16 %v922
    %v1817 = vunpack.c.h.b16 %v922
    %v1818 = vunpack.c.l.b16 %v923
    %v1819 = vunpack.c.h.b16 %v923
    %v1820 = vpack.c.b16 %v1250, %v1244
    %v1821 = vpack.c.b16 %v1251, %v1245
    %v1822 = vpack.c.b16 %v1252, %v1246
    %v1823 = vpack.c.b16 %v1253, %v1247
    %v1824 = vpack.c.b16 %v1254, %v1248
    %v1825 = vpack.c.b16 %v1255, %v1249
    %v1826 = vpack.c.b16 %v1262, %v1256
    %v1827 = vpack.c.b16 %v1263, %v1257
    %v1828 = vpack.c.b16 %v1264, %v1258
    %v1829 = vpack.c.b16 %v1265, %v1259
    %v1830 = vpack.c.b16 %v1266, %v1260
    %v1831 = vpack.c.b16 %v1267, %v1261
    %v1832 = vpack.c.b16 %v1274, %v1268
    %v1833 = vpack.c.b16 %v1275, %v1269
    %v1834 = vpack.c.b16 %v1276, %v1270
    %v1835 = vpack.c.b16 %v1277, %v1271
    %v1836 = vpack.c.b16 %v1278, %v1272
    %v1837 = vpack.c.b16 %v1279, %v1273
    %v1838 = vpack.c.b16 %v1286, %v1280
    %v1839 = vpack.c.b16 %v1287, %v1281
    %v1840 = vpack.c.b16 %v1288, %v1282
    %v1841 = vpack.c.b16 %v1289, %v1283
    %v1842 = vpack.c.b16 %v1290, %v1284
    %v1843 = vpack.c.b16 %v1291, %v1285
    %v1844 = vpack.c.b16 %v1298, %v1292
    %v1845 = vpack.c.b16 %v1299, %v1293
    %v1846 = vpack.c.b16 %v1300, %v1294
    %v1847 = vpack.c.b16 %v1301, %v1295
    %v1848 = vpack.c.b16 %v1302, %v1296
    %v1849 = vpack.c.b16 %v1303, %v1297
    %v1850 = vpack.c.b16 %v1310, %v1304
    %v1851 = vpack.c.b16 %v1311, %v1305
    %v1852 = vpack.c.b16 %v1312, %v1306
    %v1853 = vpack.c.b16 %v1313, %v1307
    %v1854 = vpack.c.b16 %v1314, %v1308
    %v1855 = vpack.c.b16 %v1315, %v1309
    %v1856 = vpack.c.b16 %v1322, %v1316
    %v1857 = vpack.c.b16 %v1323, %v1317
    %v1858 = vpack.c.b16 %v1324, %v1318
    %v1859 = vpack.c.b16 %v1325, %v1319
    %v1860 = vpack.c.b16 %v1326, %v1320
    %v1861 = vpack.c.b16 %v1327, %v1321
    %v1862 = vpack.c.b16 %v1334, %v1328
    %v1863 = vpack.c.b16 %v1335, %v1329
    %v1864 = vpack.c.b16 %v1336, %v1330
    %v1865 = vpack.c.b16 %v1337, %v1331
    %v1866 = vpack.c.b16 %v1338, %v1332
    %v1867 = vpack.c.b16 %v1339, %v1333
    %v1868 = vpack.c.b16 %v1346, %v1340
    %v1869 = vpack.c.b16 %v1347, %v1341
    %v1870 = vpack.c.b16 %v1348, %v1342
    %v1871 = vpack.c.b16 %v1349, %v1343
    %v1872 = vpack.c.b16 %v1350, %v1344
    %v1873 = vpack.c.b16 %v1351, %v1345
    %v1874 = vpack.c.b16 %v1358, %v1352
    %v1875 = vpack.c.b16 %v1359, %v1353
    %v1876 = vpack.c.b16 %v1360, %v1354
    %v1877 = vpack.c.b16 %v1361, %v1355
    %v1878 = vpack.c.b16 %v1362, %v1356
    %v1879 = vpack.c.b16 %v1363, %v1357
    %v1880 = vpack.c.b16 %v1370, %v1364
    %v1881 = vpack.c.b16 %v1371, %v1365
    %v1882 = vpack.c.b16 %v1372, %v1366
    %v1883 = vpack.c.b16 %v1373, %v1367
    %v1884 = vpack.c.b16 %v1374, %v1368
    %v1885 = vpack.c.b16 %v1375, %v1369
    %v1886 = vpack.c.b16 %v1382, %v1376
    %v1887 = vpack.c.b16 %v1383, %v1377
    %v1888 = vpack.c.b16 %v1384, %v1378
    %v1889 = vpack.c.b16 %v1385, %v1379
    %v1890 = vpack.c.b16 %v1386, %v1380
    %v1891 = vpack.c.b16 %v1387, %v1381
    %v1892 = vpack.c.b16 %v1394, %v1388
    %v1893 = vpack.c.b16 %v1395, %v1389
    %v1894 = vpack.c.b16 %v1396, %v1390
    %v1895 = vpack.c.b16 %v1397, %v1391
    %v1896 = vpack.c.b16 %v1398, %v1392
    %v1897 = vpack.c.b16 %v1399, %v1393
    %v1898 = vpack.c.b16 %v1406, %v1400
    %v1899 = vpack.c.b16 %v1407, %v1401
    %v1900 = vpack.c.b16 %v1408, %v1402
    %v1901 = vpack.c.b16 %v1409, %v1403
    %v1902 = vpack.c.b16 %v1410, %v1404
    %v1903 = vpack.c.b16 %v1411, %v1405
    %v1904 = vpack.c.b16 %v1418, %v1412
    %v1905 = vpack.c.b16 %v1419, %v1413
    %v1906 = vpack.c.b16 %v1420, %v1414
    %v1907 = vpack.c.b16 %v1421, %v1415
    %v1908 = vpack.c.b16 %v1422, %v1416
    %v1909 = vpack.c.b16 %v1423, %v1417
    %v1910 = vpack.c.b16 %v1430, %v1424
    %v1911 = vpack.c.b16 %v1431, %v1425
    %v1912 = vpack.c.b16 %v1432, %v1426
    %v1913 = vpack.c.b16 %v1433, %v1427
    %v1914 = vpack.c.b16 %v1434, %v1428
    %v1915 = vpack.c.b16 %v1435, %v1429
    %v1916 = vpack.c.b16 %v1442, %v1436
    %v1917 = vpack.c.b16 %v1443, %v1437
    %v1918 = vpack.c.b16 %v1444, %v1438
    %v1919 = vpack.c.b16 %v1445, %v1439
    %v1920 = vpack.c.b16 %v1446, %v1440
    %v1921 = vpack.c.b16 %v1447, %v1441
    %v1922 = vpack.c.b16 %v1454, %v1448
    %v1923 = vpack.c.b16 %v1455, %v1449
    %v1924 = vpack.c.b16 %v1456, %v1450
    %v1925 = vpack.c.b16 %v1457, %v1451
    %v1926 = vpack.c.b16 %v1458, %v1452
    %v1927 = vpack.c.b16 %v1459, %v1453
    %v1928 = vpack.c.b16 %v1466, %v1460
    %v1929 = vpack.c.b16 %v1467, %v1461
    %v1930 = vpack.c.b16 %v1468, %v1462
    %v1931 = vpack.c.b16 %v1469, %v1463
    %v1932 = vpack.c.b16 %v1470, %v1464
    %v1933 = vpack.c.b16 %v1471, %v1465
    %v1934 = vpack.c.b16 %v1478, %v1472
    %v1935 = vpack.c.b16 %v1479, %v1473
    %v1936 = vpack.c.b16 %v1480, %v1474
    %v1937 = vpack.c.b16 %v1481, %v1475
    %v1938 = vpack.c.b16 %v1482, %v1476
    %v1939 = vpack.c.b16 %v1483, %v1477
    %v1940 = vpack.c.b16 %v1490, %v1484
    %v1941 = vpack.c.b16 %v1491, %v1485
    %v1942 = vpack.c.b16 %v1492, %v1486
    %v1943 = vpack.c.b16 %v1493, %v1487
    %v1944 = vpack.c.b16 %v1494, %v1488
    %v1945 = vpack.c.b16 %v1495, %v1489
    %v1946 = vpack.c.b16 %v1502, %v1496
    %v1947 = vpack.c.b16 %v1503, %v1497
    %v1948 = vpack.c.b16 %v1504, %v1498
    %v1949 = vpack.c.b16 %v1505, %v1499
    %v1950 = vpack.c.b16 %v1506, %v1500
    %v1951 = vpack.c.b16 %v1507, %v1501
    %v1952 = vpack.c.b16 %v1514, %v1508
    %v1953 = vpack.c.b16 %v1515, %v1509
    %v1954 = vpack.c.b16 %v1516, %v1510
    %v1955 = vpack.c.b16 %v1517, %v1511
    %v1956 = vpack.c.b16 %v1518, %v1512
    %v1957 = vpack.c.b16 %v1519, %v1513
    %v1958 = vpack.c.b16 %v1526, %v1520
    %v1959 = vpack.c.b16 %v1527, %v1521
    %v1960 = vpack.c.b16 %v1528, %v1522
    %v1961 = vpack.c.b16 %v1529, %v1523
    %v1962 = vpack.c.b16 %v1530, %v1524
    %v1963 = vpack.c.b16 %v1531, %v1525
    %v1964 = vpack.c.b16 %v1538, %v1532
    %v1965 = vpack.c.b16 %v1539, %v1533
    %v1966 = vpack.c.b16 %v1540, %v1534
    %v1967 = vpack.c.b16 %v1541, %v1535
    %v1968 = vpack.c.b16 %v1542, %v1536
    %v1969 = vpack.c.b16 %v1543, %v1537
    %v1970 = vpack.c.b16 %v1550, %v1544
    %v1971 = vpack.c.b16 %v1551, %v1545
    %v1972 = vpack.c.b16 %v1552, %v1546
    %v1973 = vpack.c.b16 %v1553, %v1547
    %v1974 = vpack.c.b16 %v1554, %v1548
    %v1975 = vpack.c.b16 %v1555, %v1549
    %v1976 = vpack.c.b16 %v1562, %v1556
    %v1977 = vpack.c.b16 %v1563, %v1557
    %v1978 = vpack.c.b16 %v1564, %v1558
    %v1979 = vpack.c.b16 %v1565, %v1559
    %v1980 = vpack.c.b16 %v1566, %v1560
    %v1981 = vpack.c.b16 %v1567, %v1561
    %v1982 = vpack.c.b16 %v1574, %v1568
    %v1983 = vpack.c.b16 %v1575, %v1569
    %v1984 = vpack.c.b16 %v1576, %v1570
    %v1985 = vpack.c.b16 %v1577, %v1571
    %v1986 = vpack.c.b16 %v1578, %v1572
    %v1987 = vpack.c.b16 %v1579, %v1573
    %v1988 = vpack.c.b16 %v1586, %v1580
    %v1989 = vpack.c.b16 %v1587, %v1581
    %v1990 = vpack.c.b16 %v1588, %v1582
    %v1991 = vpack.c.b16 %v1589, %v1583
    %v1992 = vpack.c.b16 %v1590, %v1584
    %v1993 = vpack.c.b16 %v1591, %v1585
    %v1994 = vpack.c.b16 %v1598, %v1592
    %v1995 = vpack.c.b16 %v1599, %v1593
    %v1996 = vpack.c.b16 %v1600, %v1594
    %v1997 = vpack.c.b16 %v1601, %v1595
    %v1998 = vpack.c.b16 %v1602, %v1596
    %v1999 = vpack.c.b16 %v1603, %v1597
    %v2000 = vpack.c.b16 %v1610, %v1604
    %v2001 = vpack.c.b16 %v1611, %v1605
    %v2002 = vpack.c.b16 %v1612, %v1606
    %v2003 = vpack.c.b16 %v1613, %v1607
    %v2004 = vpack.c.b16 %v1614, %v1608
    %v2005 = vpack.c.b16 %v1615, %v1609
    %v2006 = vpack.c.b16 %v1622, %v1616
    %v2007 = vpack.c.b16 %v1623, %v1617
    %v2008 = vpack.c.b16 %v1624, %v1618
    %v2009 = vpack.c.b16 %v1625, %v1619
    %v2010 = vpack.c.b16 %v1626, %v1620
    %v2011 = vpack.c.b16 %v1627, %v1621
    %v2012 = vpack.c.b16 %v1634, %v1628
    %v2013 = vpack.c.b16 %v1635, %v1629
    %v2014 = vpack.c.b16 %v1636, %v1630
    %v2015 = vpack.c.b16 %v1637, %v1631
    %v2016 = vpack.c.b16 %v1638, %v1632
    %v2017 = vpack.c.b16 %v1639, %v1633
    %v2018 = vpack.c.b16 %v1646, %v1640
    %v2019 = vpack.c.b16 %v1647, %v1641
    %v2020 = vpack.c.b16 %v1648, %v1642
    %v2021 = vpack.c.b16 %v1649, %v1643
    %v2022 = vpack.c.b16 %v1650, %v1644
    %v2023 = vpack.c.b16 %v1651, %v1645
    %v2024 = vpack.c.b16 %v1658, %v1652
    %v2025 = vpack.c.b16 %v1659, %v1653
    %v2026 = vpack.c.b16 %v1660, %v1654
    %v2027 = vpack.c.b16 %v1661, %v1655
    %v2028 = vpack.c.b16 %v1662, %v1656
    %v2029 = vpack.c.b16 %v1663, %v1657
    %v2030 = vpack.c.b16 %v1670, %v1664
    %v2031 = vpack.c.b16 %v1671, %v1665
    %v2032 = vpack.c.b16 %v1672, %v1666
    %v2033 = vpack.c.b16 %v1673, %v1667
    %v2034 = vpack.c.b16 %v1674, %v1668
    %v2035 = vpack.c.b16 %v1675, %v1669
    %v2036 = vpack.c.b16 %v1682, %v1676
    %v2037 = vpack.c.b16 %v1683, %v1677
    %v2038 = vpack.c.b16 %v1684, %v1678
    %v2039 = vpack.c.b16 %v1685, %v1679
    %v2040 = vpack.c.b16 %v1686, %v1680
    %v2041 = vpack.c.b16 %v1687, %v1681
    %v2042 = vpack.c.b16 %v1694, %v1688
    %v2043 = vpack.c.b16 %v1695, %v1689
    %v2044 = vpack.c.b16 %v1696, %v1690
    %v2045 = vpack.c.b16 %v1697, %v1691
    %v2046 = vpack.c.b16 %v1698, %v1692
    %v2047 = vpack.c.b16 %v1699, %v1693
    %v2048 = vpack.c.b16 %v1706, %v1700
    %v2049 = vpack.c.b16 %v1707, %v1701
    %v2050 = vpack.c.b16 %v1708, %v1702
    %v2051 = vpack.c.b16 %v1709, %v1703
    %v2052 = vpack.c.b16 %v1710, %v1704
    %v2053 = vpack.c.b16 %v1711, %v1705
    %v2054 = vpack.c.b16 %v1718, %v1712
    %v2055 = vpack.c.b16 %v1719, %v1713
    %v2056 = vpack.c.b16 %v1720, %v1714
    %v2057 = vpack.c.b16 %v1721, %v1715
    %v2058 = vpack.c.b16 %v1722, %v1716
    %v2059 = vpack.c.b16 %v1723, %v1717
    %v2060 = vpack.c.b16 %v1730, %v1724
    %v2061 = vpack.c.b16 %v1731, %v1725
    %v2062 = vpack.c.b16 %v1732, %v1726
    %v2063 = vpack.c.b16 %v1733, %v1727
    %v2064 = vpack.c.b16 %v1734, %v1728
    %v2065 = vpack.c.b16 %v1735, %v1729
    %v2066 = vpack.c.b16 %v1742, %v1736
    %v2067 = vpack.c.b16 %v1743, %v1737
    %v2068 = vpack.c.b16 %v1744, %v1738
    %v2069 = vpack.c.b16 %v1745, %v1739
    %v2070 = vpack.c.b16 %v1746, %v1740
    %v2071 = vpack.c.b16 %v1747, %v1741
    %v2072 = vpack.c.b16 %v1754, %v1748
    %v2073 = vpack.c.b16 %v1755, %v1749
    %v2074 = vpack.c.b16 %v1756, %v1750
    %v2075 = vpack.c.b16 %v1757, %v1751
    %v2076 = vpack.c.b16 %v1758, %v1752
    %v2077 = vpack.c.b16 %v1759, %v1753
    %v2078 = vpack.c.b16 %v1766, %v1760
    %v2079 = vpack.c.b16 %v1767, %v1761
    %v2080 = vpack.c.b16 %v1768, %v1762
    %v2081 = vpack.c.b16 %v1769, %v1763
    %v2082 = vpack.c.b16 %v1770, %v1764
    %v2083 = vpack.c.b16 %v1771, %v1765
    %v2084 = vpack.c.b16 %v1778, %v1772
    %v2085 = vpack.c.b16 %v1779, %v1773
    %v2086 = vpack.c.b16 %v1780, %v1774
    %v2087 = vpack.c.b16 %v1781, %v1775
    %v2088 = vpack.c.b16 %v1782, %v1776
    %v2089 = vpack.c.b16 %v1783, %v1777
    %v2090 = vpack.c.b16 %v1790, %v1784
    %v2091 = vpack.c.b16 %v1791, %v1785
    %v2092 = vpack.c.b16 %v1792, %v1786
    %v2093 = vpack.c.b16 %v1793, %v1787
    %v2094 = vpack.c.b16 %v1794, %v1788
    %v2095 = vpack.c.b16 %v1795, %v1789
    %v2096 = vpack.c.b16 %v1802, %v1796
    %v2097 = vpack.c.b16 %v1803, %v1797
    %v2098 = vpack.c.b16 %v1804, %v1798
    %v2099 = vpack.c.b16 %v1805, %v1799
    %v2100 = vpack.c.b16 %v1806, %v1800
    %v2101 = vpack.c.b16 %v1807, %v1801
    %v2102 = vpack.c.b16 %v1814, %v1808
    %v2103 = vpack.c.b16 %v1815, %v1809
    %v2104 = vpack.c.b16 %v1816, %v1810
    %v2105 = vpack.c.b16 %v1817, %v1811
    %v2106 = vpack.c.b16 %v1818, %v1812
    %v2107 = vpack.c.b16 %v1819, %v1813
    %2396 = vmatprep.subr.bf16.mxu0 %v1863
    %2397 = vmatpush1.bf16.msra.mxu0 %v1862
    %2398 = vmatprep.subr.bf16.mxu0 %v1857
    %2399 = vmatpush1.bf16.msra.mxu0 %v1856
    %2400 = vmatprep.subr.bf16.mxu0 %v1851
    %2401 = vmatpush1.bf16.msra.mxu0 %v1850
    %2402 = vmatprep.subr.bf16.mxu0 %v1845
    %2403 = vmatpush1.bf16.msra.mxu0 %v1844
    %2404 = vmatprep.subr.bf16.mxu0 %v1839
    %2405 = vmatpush1.bf16.msra.mxu0 %v1838
    %2406 = vmatprep.subr.bf16.mxu0 %v1833
    %2407 = vmatpush1.bf16.msra.mxu0 %v1832
    %2408 = vmatprep.subr.bf16.mxu0 %v1827
    %2409 = vmatpush1.bf16.msra.mxu0 %v1826
    %2410 = vmatprep.subr.bf16.mxu0 %v1821
    %2411 = vmatpush1.bf16.msra.mxu0 %v1820
    %2412 = vmatprep.subr.bf16.mxu0 %v1911
    %2413 = vmatpush2.bf16.msra.mxu0 %v1910
    %2414 = vmatprep.subr.bf16.mxu0 %v1905
    %2415 = vmatpush2.bf16.msra.mxu0 %v1904
    %2416 = vmatprep.subr.bf16.mxu0 %v1899
    %2417 = vmatpush2.bf16.msra.mxu0 %v1898
    %2418 = vmatprep.subr.bf16.mxu0 %v1893
    %2419 = vmatpush2.bf16.msra.mxu0 %v1892
    %2420 = vmatprep.subr.bf16.mxu0 %v1887
    %2421 = vmatpush2.bf16.msra.mxu0 %v1886
    %2422 = vmatprep.subr.bf16.mxu0 %v1881
    %2423 = vmatpush2.bf16.msra.mxu0 %v1880
    %2424 = vmatprep.subr.bf16.mxu0 %v1875
    %2425 = vmatpush2.bf16.msra.mxu0 %v1874
    %2426 = vmatprep.subr.bf16.mxu0 %v1869
    %2427 = vmatpush2.bf16.msra.mxu0 %v1868
    %2428 = vmatprep.mubr.bf16.mxu0 %v613
    %2429 = vmatmul.mubr.bf16.gmra.mxu0 %v612
    %v2430 = vpop.f32.mrf.mxu0
    %v2431 = vadd.f32 %v929, %v2430
    %v2432 = vpop.f32.mrf.mxu0
    %v2433 = vadd.f32 %v933, %v2432
    %v2434 = vpop.f32.mrf.mxu0
    %v2435 = vadd.f32 %v929, %v2434
    %v2436 = vpop.f32.mrf.mxu0
    %v2437 = vadd.f32 %v933, %v2436
    %2438 = vmatprep.mubr.bf16.mxu0 %v619
    %2439 = vmatmul.mubr.bf16.gmra.mxu0 %v618
    %v2440 = vpop.f32.mrf.mxu0
    %v2441 = vadd.f32 %v929, %v2440
    %v2442 = vpop.f32.mrf.mxu0
    %v2443 = vadd.f32 %v933, %v2442
    %v2444 = vpop.f32.mrf.mxu0
    %v2445 = vadd.f32 %v929, %v2444
    %v2446 = vpop.f32.mrf.mxu0
    %v2447 = vadd.f32 %v933, %v2446
    %2448 = vmatprep.mubr.bf16.mxu0 %v625
    %2449 = vmatmul.mubr.bf16.gmra.mxu0 %v624
    %v2450 = vpop.f32.mrf.mxu0
    %v2451 = vadd.f32 %v929, %v2450
    %v2452 = vpop.f32.mrf.mxu0
    %v2453 = vadd.f32 %v933, %v2452
    %v2454 = vpop.f32.mrf.mxu0
    %v2455 = vadd.f32 %v929, %v2454
    %v2456 = vpop.f32.mrf.mxu0
    %v2457 = vadd.f32 %v933, %v2456
    %2458 = vmatprep.mubr.bf16.mxu0 %v631
    %2459 = vmatmul.mubr.bf16.gmra.mxu0 %v630
    %v2460 = vpop.f32.mrf.mxu0
    %v2461 = vadd.f32 %v929, %v2460
    %v2462 = vpop.f32.mrf.mxu0
    %v2463 = vadd.f32 %v933, %v2462
    %v2464 = vpop.f32.mrf.mxu0
    %v2465 = vadd.f32 %v929, %v2464
    %v2466 = vpop.f32.mrf.mxu0
    %v2467 = vadd.f32 %v933, %v2466
    %2468 = vdwg.mxu0
    %2469 = vmatprep.subr.bf16.mxu0 %v1959
    %2470 = vmatpush1.bf16.msra.mxu0 %v1958
    %2471 = vmatprep.subr.bf16.mxu0 %v1953
    %2472 = vmatpush1.bf16.msra.mxu0 %v1952
    %2473 = vmatprep.subr.bf16.mxu0 %v1947
    %2474 = vmatpush1.bf16.msra.mxu0 %v1946
    %2475 = vmatprep.subr.bf16.mxu0 %v1941
    %2476 = vmatpush1.bf16.msra.mxu0 %v1940
    %2477 = vmatprep.subr.bf16.mxu0 %v1935
    %2478 = vmatpush1.bf16.msra.mxu0 %v1934
    %2479 = vmatprep.subr.bf16.mxu0 %v1929
    %2480 = vmatpush1.bf16.msra.mxu0 %v1928
    %2481 = vmatprep.subr.bf16.mxu0 %v1923
    %2482 = vmatpush1.bf16.msra.mxu0 %v1922
    %2483 = vmatprep.subr.bf16.mxu0 %v1917
    %2484 = vmatpush1.bf16.msra.mxu0 %v1916
    %2485 = vmatprep.subr.bf16.mxu0 %v2007
    %2486 = vmatpush2.bf16.msra.mxu0 %v2006
    %2487 = vmatprep.subr.bf16.mxu0 %v2001
    %2488 = vmatpush2.bf16.msra.mxu0 %v2000
    %2489 = vmatprep.subr.bf16.mxu0 %v1995
    %2490 = vmatpush2.bf16.msra.mxu0 %v1994
    %2491 = vmatprep.subr.bf16.mxu0 %v1989
    %2492 = vmatpush2.bf16.msra.mxu0 %v1988
    %2493 = vmatprep.subr.bf16.mxu0 %v1983
    %2494 = vmatpush2.bf16.msra.mxu0 %v1982
    %2495 = vmatprep.subr.bf16.mxu0 %v1977
    %2496 = vmatpush2.bf16.msra.mxu0 %v1976
    %2497 = vmatprep.subr.bf16.mxu0 %v1971
    %2498 = vmatpush2.bf16.msra.mxu0 %v1970
    %2499 = vmatprep.subr.bf16.mxu0 %v1965
    %2500 = vmatpush2.bf16.msra.mxu0 %v1964
    %2501 = vmatprep.mubr.bf16.mxu0 %v615
    %2502 = vmatmul.mubr.bf16.gmra.mxu0 %v614
    %v2503 = vpop.f32.mrf.mxu0
    %v2504 = vadd.f32 %v2431, %v2503
    %v2505 = vpop.f32.mrf.mxu0
    %v2506 = vadd.f32 %v2433, %v2505
    %v2507 = vpop.f32.mrf.mxu0
    %v2508 = vadd.f32 %v2435, %v2507
    %v2509 = vpop.f32.mrf.mxu0
    %v2510 = vadd.f32 %v2437, %v2509
    %2511 = vmatprep.mubr.bf16.mxu0 %v621
    %2512 = vmatmul.mubr.bf16.gmra.mxu0 %v620
    %v2513 = vpop.f32.mrf.mxu0
    %v2514 = vadd.f32 %v2441, %v2513
    %v2515 = vpop.f32.mrf.mxu0
    %v2516 = vadd.f32 %v2443, %v2515
    %v2517 = vpop.f32.mrf.mxu0
    %v2518 = vadd.f32 %v2445, %v2517
    %v2519 = vpop.f32.mrf.mxu0
    %v2520 = vadd.f32 %v2447, %v2519
    %2521 = vmatprep.mubr.bf16.mxu0 %v627
    %2522 = vmatmul.mubr.bf16.gmra.mxu0 %v626
    %v2523 = vpop.f32.mrf.mxu0
    %v2524 = vadd.f32 %v2451, %v2523
    %v2525 = vpop.f32.mrf.mxu0
    %v2526 = vadd.f32 %v2453, %v2525
    %v2527 = vpop.f32.mrf.mxu0
    %v2528 = vadd.f32 %v2455, %v2527
    %v2529 = vpop.f32.mrf.mxu0
    %v2530 = vadd.f32 %v2457, %v2529
    %2531 = vmatprep.mubr.bf16.mxu0 %v633
    %2532 = vmatmul.mubr.bf16.gmra.mxu0 %v632
    %v2533 = vpop.f32.mrf.mxu0
    %v2534 = vadd.f32 %v2461, %v2533
    %v2535 = vpop.f32.mrf.mxu0
    %v2536 = vadd.f32 %v2463, %v2535
    %v2537 = vpop.f32.mrf.mxu0
    %v2538 = vadd.f32 %v2465, %v2537
    %v2539 = vpop.f32.mrf.mxu0
    %v2540 = vadd.f32 %v2467, %v2539
    %2541 = vdwg.mxu0
    %2542 = vmatprep.subr.bf16.mxu0 %v2055
    %2543 = vmatpush1.bf16.msra.mxu0 %v2054
    %2544 = vmatprep.subr.bf16.mxu0 %v2049
    %2545 = vmatpush1.bf16.msra.mxu0 %v2048
    %2546 = vmatprep.subr.bf16.mxu0 %v2043
    %2547 = vmatpush1.bf16.msra.mxu0 %v2042
    %2548 = vmatprep.subr.bf16.mxu0 %v2037
    %2549 = vmatpush1.bf16.msra.mxu0 %v2036
    %2550 = vmatprep.subr.bf16.mxu0 %v2031
    %2551 = vmatpush1.bf16.msra.mxu0 %v2030
    %2552 = vmatprep.subr.bf16.mxu0 %v2025
    %2553 = vmatpush1.bf16.msra.mxu0 %v2024
    %2554 = vmatprep.subr.bf16.mxu0 %v2019
    %2555 = vmatpush1.bf16.msra.mxu0 %v2018
    %2556 = vmatprep.subr.bf16.mxu0 %v2013
    %2557 = vmatpush1.bf16.msra.mxu0 %v2012
    %2558 = vmatprep.subr.bf16.mxu0 %v2103
    %2559 = vmatpush2.bf16.msra.mxu0 %v2102
    %2560 = vmatprep.subr.bf16.mxu0 %v2097
    %2561 = vmatpush2.bf16.msra.mxu0 %v2096
    %2562 = vmatprep.subr.bf16.mxu0 %v2091
    %2563 = vmatpush2.bf16.msra.mxu0 %v2090
    %2564 = vmatprep.subr.bf16.mxu0 %v2085
    %2565 = vmatpush2.bf16.msra.mxu0 %v2084
    %2566 = vmatprep.subr.bf16.mxu0 %v2079
    %2567 = vmatpush2.bf16.msra.mxu0 %v2078
    %2568 = vmatprep.subr.bf16.mxu0 %v2073
    %2569 = vmatpush2.bf16.msra.mxu0 %v2072
    %2570 = vmatprep.subr.bf16.mxu0 %v2067
    %2571 = vmatpush2.bf16.msra.mxu0 %v2066
    %2572 = vmatprep.subr.bf16.mxu0 %v2061
    %2573 = vmatpush2.bf16.msra.mxu0 %v2060
    %2574 = vmatprep.mubr.bf16.mxu0 %v617
    %2575 = vmatmul.mubr.bf16.gmra.mxu0 %v616
    %v2576 = vpop.f32.mrf.mxu0
    %v2577 = vadd.f32 %v2504, %v2576
    %v2578 = vpop.f32.mrf.mxu0
    %v2579 = vadd.f32 %v2506, %v2578
    %v2580 = vpop.f32.mrf.mxu0
    %v2581 = vadd.f32 %v2508, %v2580
    %v2582 = vpop.f32.mrf.mxu0
    %v2583 = vadd.f32 %v2510, %v2582
    %2584 = vmatprep.mubr.bf16.mxu0 %v623
    %2585 = vmatmul.mubr.bf16.gmra.mxu0 %v622
    %v2586 = vpop.f32.mrf.mxu0
    %v2587 = vadd.f32 %v2514, %v2586
    %v2588 = vpop.f32.mrf.mxu0
    %v2589 = vadd.f32 %v2516, %v2588
    %v2590 = vpop.f32.mrf.mxu0
    %v2591 = vadd.f32 %v2518, %v2590
    %v2592 = vpop.f32.mrf.mxu0
    %v2593 = vadd.f32 %v2520, %v2592
    %2594 = vmatprep.mubr.bf16.mxu0 %v629
    %2595 = vmatmul.mubr.bf16.gmra.mxu0 %v628
    %v2596 = vpop.f32.mrf.mxu0
    %v2597 = vadd.f32 %v2524, %v2596
    %v2598 = vpop.f32.mrf.mxu0
    %v2599 = vadd.f32 %v2526, %v2598
    %v2600 = vpop.f32.mrf.mxu0
    %v2601 = vadd.f32 %v2528, %v2600
    %v2602 = vpop.f32.mrf.mxu0
    %v2603 = vadd.f32 %v2530, %v2602
    %2604 = vmatprep.mubr.bf16.mxu0 %v635
    %2605 = vmatmul.mubr.bf16.gmra.mxu0 %v634
    %v2606 = vpop.f32.mrf.mxu0
    %v2607 = vadd.f32 %v2534, %v2606
    %v2608 = vpop.f32.mrf.mxu0
    %v2609 = vadd.f32 %v2536, %v2608
    %v2610 = vpop.f32.mrf.mxu0
    %v2611 = vadd.f32 %v2538, %v2610
    %v2612 = vpop.f32.mrf.mxu0
    %v2613 = vadd.f32 %v2540, %v2612
    %2614 = vdwg.mxu0
    %2615 = vmatprep.subr.bf16.mxu0 %v1865
    %2616 = vmatpush1.bf16.msra.mxu0 %v1864
    %2617 = vmatprep.subr.bf16.mxu0 %v1859
    %2618 = vmatpush1.bf16.msra.mxu0 %v1858
    %2619 = vmatprep.subr.bf16.mxu0 %v1853
    %2620 = vmatpush1.bf16.msra.mxu0 %v1852
    %2621 = vmatprep.subr.bf16.mxu0 %v1847
    %2622 = vmatpush1.bf16.msra.mxu0 %v1846
    %2623 = vmatprep.subr.bf16.mxu0 %v1841
    %2624 = vmatpush1.bf16.msra.mxu0 %v1840
    %2625 = vmatprep.subr.bf16.mxu0 %v1835
    %2626 = vmatpush1.bf16.msra.mxu0 %v1834
    %2627 = vmatprep.subr.bf16.mxu0 %v1829
    %2628 = vmatpush1.bf16.msra.mxu0 %v1828
    %2629 = vmatprep.subr.bf16.mxu0 %v1823
    %2630 = vmatpush1.bf16.msra.mxu0 %v1822
    %2631 = vmatprep.subr.bf16.mxu0 %v1913
    %2632 = vmatpush2.bf16.msra.mxu0 %v1912
    %2633 = vmatprep.subr.bf16.mxu0 %v1907
    %2634 = vmatpush2.bf16.msra.mxu0 %v1906
    %2635 = vmatprep.subr.bf16.mxu0 %v1901
    %2636 = vmatpush2.bf16.msra.mxu0 %v1900
    %2637 = vmatprep.subr.bf16.mxu0 %v1895
    %2638 = vmatpush2.bf16.msra.mxu0 %v1894
    %2639 = vmatprep.subr.bf16.mxu0 %v1889
    %2640 = vmatpush2.bf16.msra.mxu0 %v1888
    %2641 = vmatprep.subr.bf16.mxu0 %v1883
    %2642 = vmatpush2.bf16.msra.mxu0 %v1882
    %2643 = vmatprep.subr.bf16.mxu0 %v1877
    %2644 = vmatpush2.bf16.msra.mxu0 %v1876
    %2645 = vmatprep.subr.bf16.mxu0 %v1871
    %2646 = vmatpush2.bf16.msra.mxu0 %v1870
    %2647 = vmatprep.mubr.bf16.mxu0 %v613
    %2648 = vmatmul.mubr.bf16.gmra.mxu0 %v612
    %v2649 = vpop.f32.mrf.mxu0
    %v2650 = vadd.f32 %v937, %v2649
    %v2651 = vpop.f32.mrf.mxu0
    %v2652 = vadd.f32 %v941, %v2651
    %v2653 = vpop.f32.mrf.mxu0
    %v2654 = vadd.f32 %v937, %v2653
    %v2655 = vpop.f32.mrf.mxu0
    %v2656 = vadd.f32 %v941, %v2655
    %2657 = vmatprep.mubr.bf16.mxu0 %v619
    %2658 = vmatmul.mubr.bf16.gmra.mxu0 %v618
    %v2659 = vpop.f32.mrf.mxu0
    %v2660 = vadd.f32 %v937, %v2659
    %v2661 = vpop.f32.mrf.mxu0
    %v2662 = vadd.f32 %v941, %v2661
    %v2663 = vpop.f32.mrf.mxu0
    %v2664 = vadd.f32 %v937, %v2663
    %v2665 = vpop.f32.mrf.mxu0
    %v2666 = vadd.f32 %v941, %v2665
    %2667 = vmatprep.mubr.bf16.mxu0 %v625
    %2668 = vmatmul.mubr.bf16.gmra.mxu0 %v624
    %v2669 = vpop.f32.mrf.mxu0
    %v2670 = vadd.f32 %v937, %v2669
    %v2671 = vpop.f32.mrf.mxu0
    %v2672 = vadd.f32 %v941, %v2671
    %v2673 = vpop.f32.mrf.mxu0
    %v2674 = vadd.f32 %v937, %v2673
    %v2675 = vpop.f32.mrf.mxu0
    %v2676 = vadd.f32 %v941, %v2675
    %2677 = vmatprep.mubr.bf16.mxu0 %v631
    %2678 = vmatmul.mubr.bf16.gmra.mxu0 %v630
    %v2679 = vpop.f32.mrf.mxu0
    %v2680 = vadd.f32 %v937, %v2679
    %v2681 = vpop.f32.mrf.mxu0
    %v2682 = vadd.f32 %v941, %v2681
    %v2683 = vpop.f32.mrf.mxu0
    %v2684 = vadd.f32 %v937, %v2683
    %v2685 = vpop.f32.mrf.mxu0
    %v2686 = vadd.f32 %v941, %v2685
    %2687 = vdwg.mxu0
    %2688 = vmatprep.subr.bf16.mxu0 %v1961
    %2689 = vmatpush1.bf16.msra.mxu0 %v1960
    %2690 = vmatprep.subr.bf16.mxu0 %v1955
    %2691 = vmatpush1.bf16.msra.mxu0 %v1954
    %2692 = vmatprep.subr.bf16.mxu0 %v1949
    %2693 = vmatpush1.bf16.msra.mxu0 %v1948
    %2694 = vmatprep.subr.bf16.mxu0 %v1943
    %2695 = vmatpush1.bf16.msra.mxu0 %v1942
    %2696 = vmatprep.subr.bf16.mxu0 %v1937
    %2697 = vmatpush1.bf16.msra.mxu0 %v1936
    %2698 = vmatprep.subr.bf16.mxu0 %v1931
    %2699 = vmatpush1.bf16.msra.mxu0 %v1930
    %2700 = vmatprep.subr.bf16.mxu0 %v1925
    %2701 = vmatpush1.bf16.msra.mxu0 %v1924
    %2702 = vmatprep.subr.bf16.mxu0 %v1919
    %2703 = vmatpush1.bf16.msra.mxu0 %v1918
    %2704 = vmatprep.subr.bf16.mxu0 %v2009
    %2705 = vmatpush2.bf16.msra.mxu0 %v2008
    %2706 = vmatprep.subr.bf16.mxu0 %v2003
    %2707 = vmatpush2.bf16.msra.mxu0 %v2002
    %2708 = vmatprep.subr.bf16.mxu0 %v1997
    %2709 = vmatpush2.bf16.msra.mxu0 %v1996
    %2710 = vmatprep.subr.bf16.mxu0 %v1991
    %2711 = vmatpush2.bf16.msra.mxu0 %v1990
    %2712 = vmatprep.subr.bf16.mxu0 %v1985
    %2713 = vmatpush2.bf16.msra.mxu0 %v1984
    %2714 = vmatprep.subr.bf16.mxu0 %v1979
    %2715 = vmatpush2.bf16.msra.mxu0 %v1978
    %2716 = vmatprep.subr.bf16.mxu0 %v1973
    %2717 = vmatpush2.bf16.msra.mxu0 %v1972
    %2718 = vmatprep.subr.bf16.mxu0 %v1967
    %2719 = vmatpush2.bf16.msra.mxu0 %v1966
    %2720 = vmatprep.mubr.bf16.mxu0 %v615
    %2721 = vmatmul.mubr.bf16.gmra.mxu0 %v614
    %v2722 = vpop.f32.mrf.mxu0
    %v2723 = vadd.f32 %v2650, %v2722
    %v2724 = vpop.f32.mrf.mxu0
    %v2725 = vadd.f32 %v2652, %v2724
    %v2726 = vpop.f32.mrf.mxu0
    %v2727 = vadd.f32 %v2654, %v2726
    %v2728 = vpop.f32.mrf.mxu0
    %v2729 = vadd.f32 %v2656, %v2728
    %2730 = vmatprep.mubr.bf16.mxu0 %v621
    %2731 = vmatmul.mubr.bf16.gmra.mxu0 %v620
    %v2732 = vpop.f32.mrf.mxu0
    %v2733 = vadd.f32 %v2660, %v2732
    %v2734 = vpop.f32.mrf.mxu0
    %v2735 = vadd.f32 %v2662, %v2734
    %v2736 = vpop.f32.mrf.mxu0
    %v2737 = vadd.f32 %v2664, %v2736
    %v2738 = vpop.f32.mrf.mxu0
    %v2739 = vadd.f32 %v2666, %v2738
    %2740 = vmatprep.mubr.bf16.mxu0 %v627
    %2741 = vmatmul.mubr.bf16.gmra.mxu0 %v626
    %v2742 = vpop.f32.mrf.mxu0
    %v2743 = vadd.f32 %v2670, %v2742
    %v2744 = vpop.f32.mrf.mxu0
    %v2745 = vadd.f32 %v2672, %v2744
    %v2746 = vpop.f32.mrf.mxu0
    %v2747 = vadd.f32 %v2674, %v2746
    %v2748 = vpop.f32.mrf.mxu0
    %v2749 = vadd.f32 %v2676, %v2748
    %2750 = vmatprep.mubr.bf16.mxu0 %v633
    %2751 = vmatmul.mubr.bf16.gmra.mxu0 %v632
    %v2752 = vpop.f32.mrf.mxu0
    %v2753 = vadd.f32 %v2680, %v2752
    %v2754 = vpop.f32.mrf.mxu0
    %v2755 = vadd.f32 %v2682, %v2754
    %v2756 = vpop.f32.mrf.mxu0
    %v2757 = vadd.f32 %v2684, %v2756
    %v2758 = vpop.f32.mrf.mxu0
    %v2759 = vadd.f32 %v2686, %v2758
    %2760 = vdwg.mxu0
    %2761 = vmatprep.subr.bf16.mxu0 %v2057
    %2762 = vmatpush1.bf16.msra.mxu0 %v2056
    %2763 = vmatprep.subr.bf16.mxu0 %v2051
    %2764 = vmatpush1.bf16.msra.mxu0 %v2050
    %2765 = vmatprep.subr.bf16.mxu0 %v2045
    %2766 = vmatpush1.bf16.msra.mxu0 %v2044
    %2767 = vmatprep.subr.bf16.mxu0 %v2039
    %2768 = vmatpush1.bf16.msra.mxu0 %v2038
    %2769 = vmatprep.subr.bf16.mxu0 %v2033
    %2770 = vmatpush1.bf16.msra.mxu0 %v2032
    %2771 = vmatprep.subr.bf16.mxu0 %v2027
    %2772 = vmatpush1.bf16.msra.mxu0 %v2026
    %2773 = vmatprep.subr.bf16.mxu0 %v2021
    %2774 = vmatpush1.bf16.msra.mxu0 %v2020
    %2775 = vmatprep.subr.bf16.mxu0 %v2015
    %2776 = vmatpush1.bf16.msra.mxu0 %v2014
    %2777 = vmatprep.subr.bf16.mxu0 %v2105
    %2778 = vmatpush2.bf16.msra.mxu0 %v2104
    %2779 = vmatprep.subr.bf16.mxu0 %v2099
    %2780 = vmatpush2.bf16.msra.mxu0 %v2098
    %2781 = vmatprep.subr.bf16.mxu0 %v2093
    %2782 = vmatpush2.bf16.msra.mxu0 %v2092
    %2783 = vmatprep.subr.bf16.mxu0 %v2087
    %2784 = vmatpush2.bf16.msra.mxu0 %v2086
    %2785 = vmatprep.subr.bf16.mxu0 %v2081
    %2786 = vmatpush2.bf16.msra.mxu0 %v2080
    %2787 = vmatprep.subr.bf16.mxu0 %v2075
    %2788 = vmatpush2.bf16.msra.mxu0 %v2074
    %2789 = vmatprep.subr.bf16.mxu0 %v2069
    %2790 = vmatpush2.bf16.msra.mxu0 %v2068
    %2791 = vmatprep.subr.bf16.mxu0 %v2063
    %2792 = vmatpush2.bf16.msra.mxu0 %v2062
    %2793 = vmatprep.mubr.bf16.mxu0 %v617
    %2794 = vmatmul.mubr.bf16.gmra.mxu0 %v616
    %v2795 = vpop.f32.mrf.mxu0
    %v2796 = vadd.f32 %v2723, %v2795
    %v2797 = vpop.f32.mrf.mxu0
    %v2798 = vadd.f32 %v2725, %v2797
    %v2799 = vpop.f32.mrf.mxu0
    %v2800 = vadd.f32 %v2727, %v2799
    %v2801 = vpop.f32.mrf.mxu0
    %v2802 = vadd.f32 %v2729, %v2801
    %2803 = vmatprep.mubr.bf16.mxu0 %v623
    %2804 = vmatmul.mubr.bf16.gmra.mxu0 %v622
    %v2805 = vpop.f32.mrf.mxu0
    %v2806 = vadd.f32 %v2733, %v2805
    %v2807 = vpop.f32.mrf.mxu0
    %v2808 = vadd.f32 %v2735, %v2807
    %v2809 = vpop.f32.mrf.mxu0
    %v2810 = vadd.f32 %v2737, %v2809
    %v2811 = vpop.f32.mrf.mxu0
    %v2812 = vadd.f32 %v2739, %v2811
    %2813 = vmatprep.mubr.bf16.mxu0 %v629
    %2814 = vmatmul.mubr.bf16.gmra.mxu0 %v628
    %v2815 = vpop.f32.mrf.mxu0
    %v2816 = vadd.f32 %v2743, %v2815
    %v2817 = vpop.f32.mrf.mxu0
    %v2818 = vadd.f32 %v2745, %v2817
    %v2819 = vpop.f32.mrf.mxu0
    %v2820 = vadd.f32 %v2747, %v2819
    %v2821 = vpop.f32.mrf.mxu0
    %v2822 = vadd.f32 %v2749, %v2821
    %2823 = vmatprep.mubr.bf16.mxu0 %v635
    %2824 = vmatmul.mubr.bf16.gmra.mxu0 %v634
    %v2825 = vpop.f32.mrf.mxu0
    %v2826 = vadd.f32 %v2753, %v2825
    %v2827 = vpop.f32.mrf.mxu0
    %v2828 = vadd.f32 %v2755, %v2827
    %v2829 = vpop.f32.mrf.mxu0
    %v2830 = vadd.f32 %v2757, %v2829
    %v2831 = vpop.f32.mrf.mxu0
    %v2832 = vadd.f32 %v2759, %v2831
    %2833 = vdwg.mxu0
    %2834 = vmatprep.subr.bf16.mxu0 %v1867
    %2835 = vmatpush1.bf16.msra.mxu0 %v1866
    %2836 = vmatprep.subr.bf16.mxu0 %v1861
    %2837 = vmatpush1.bf16.msra.mxu0 %v1860
    %2838 = vmatprep.subr.bf16.mxu0 %v1855
    %2839 = vmatpush1.bf16.msra.mxu0 %v1854
    %2840 = vmatprep.subr.bf16.mxu0 %v1849
    %2841 = vmatpush1.bf16.msra.mxu0 %v1848
    %2842 = vmatprep.subr.bf16.mxu0 %v1843
    %2843 = vmatpush1.bf16.msra.mxu0 %v1842
    %2844 = vmatprep.subr.bf16.mxu0 %v1837
    %2845 = vmatpush1.bf16.msra.mxu0 %v1836
    %2846 = vmatprep.subr.bf16.mxu0 %v1831
    %2847 = vmatpush1.bf16.msra.mxu0 %v1830
    %2848 = vmatprep.subr.bf16.mxu0 %v1825
    %2849 = vmatpush1.bf16.msra.mxu0 %v1824
    %2850 = vmatprep.subr.bf16.mxu0 %v1915
    %2851 = vmatpush2.bf16.msra.mxu0 %v1914
    %2852 = vmatprep.subr.bf16.mxu0 %v1909
    %2853 = vmatpush2.bf16.msra.mxu0 %v1908
    %2854 = vmatprep.subr.bf16.mxu0 %v1903
    %2855 = vmatpush2.bf16.msra.mxu0 %v1902
    %2856 = vmatprep.subr.bf16.mxu0 %v1897
    %2857 = vmatpush2.bf16.msra.mxu0 %v1896
    %2858 = vmatprep.subr.bf16.mxu0 %v1891
    %2859 = vmatpush2.bf16.msra.mxu0 %v1890
    %2860 = vmatprep.subr.bf16.mxu0 %v1885
    %2861 = vmatpush2.bf16.msra.mxu0 %v1884
    %2862 = vmatprep.subr.bf16.mxu0 %v1879
    %2863 = vmatpush2.bf16.msra.mxu0 %v1878
    %2864 = vmatprep.subr.bf16.mxu0 %v1873
    %2865 = vmatpush2.bf16.msra.mxu0 %v1872
    %2866 = vmatprep.mubr.bf16.mxu0 %v613
    %2867 = vmatmul.mubr.bf16.gmra.mxu0 %v612
    %v2868 = vpop.f32.mrf.mxu0
    %v2869 = vadd.f32 %v945, %v2868
    %v2870 = vpop.f32.mrf.mxu0
    %v2871 = vadd.f32 %v949, %v2870
    %v2872 = vpop.f32.mrf.mxu0
    %v2873 = vadd.f32 %v945, %v2872
    %v2874 = vpop.f32.mrf.mxu0
    %v2875 = vadd.f32 %v949, %v2874
    %2876 = vmatprep.mubr.bf16.mxu0 %v619
    %2877 = vmatmul.mubr.bf16.gmra.mxu0 %v618
    %v2878 = vpop.f32.mrf.mxu0
    %v2879 = vadd.f32 %v945, %v2878
    %v2880 = vpop.f32.mrf.mxu0
    %v2881 = vadd.f32 %v949, %v2880
    %v2882 = vpop.f32.mrf.mxu0
    %v2883 = vadd.f32 %v945, %v2882
    %v2884 = vpop.f32.mrf.mxu0
    %v2885 = vadd.f32 %v949, %v2884
    %2886 = vmatprep.mubr.bf16.mxu0 %v625
    %2887 = vmatmul.mubr.bf16.gmra.mxu0 %v624
    %v2888 = vpop.f32.mrf.mxu0
    %v2889 = vadd.f32 %v945, %v2888
    %v2890 = vpop.f32.mrf.mxu0
    %v2891 = vadd.f32 %v949, %v2890
    %v2892 = vpop.f32.mrf.mxu0
    %v2893 = vadd.f32 %v945, %v2892
    %v2894 = vpop.f32.mrf.mxu0
    %v2895 = vadd.f32 %v949, %v2894
    %2896 = vmatprep.mubr.bf16.mxu0 %v631
    %2897 = vmatmul.mubr.bf16.gmra.mxu0 %v630
    %v2898 = vpop.f32.mrf.mxu0
    %v2899 = vadd.f32 %v945, %v2898
    %v2900 = vpop.f32.mrf.mxu0
    %v2901 = vadd.f32 %v949, %v2900
    %v2902 = vpop.f32.mrf.mxu0
    %v2903 = vadd.f32 %v945, %v2902
    %v2904 = vpop.f32.mrf.mxu0
    %v2905 = vadd.f32 %v949, %v2904
    %2906 = vdwg.mxu0
    %2907 = vmatprep.subr.bf16.mxu0 %v1963
    %2908 = vmatpush1.bf16.msra.mxu0 %v1962
    %2909 = vmatprep.subr.bf16.mxu0 %v1957
    %2910 = vmatpush1.bf16.msra.mxu0 %v1956
    %2911 = vmatprep.subr.bf16.mxu0 %v1951
    %2912 = vmatpush1.bf16.msra.mxu0 %v1950
    %2913 = vmatprep.subr.bf16.mxu0 %v1945
    %2914 = vmatpush1.bf16.msra.mxu0 %v1944
    %2915 = vmatprep.subr.bf16.mxu0 %v1939
    %2916 = vmatpush1.bf16.msra.mxu0 %v1938
    %2917 = vmatprep.subr.bf16.mxu0 %v1933
    %2918 = vmatpush1.bf16.msra.mxu0 %v1932
    %2919 = vmatprep.subr.bf16.mxu0 %v1927
    %2920 = vmatpush1.bf16.msra.mxu0 %v1926
    %2921 = vmatprep.subr.bf16.mxu0 %v1921
    %2922 = vmatpush1.bf16.msra.mxu0 %v1920
    %2923 = vmatprep.subr.bf16.mxu0 %v2011
    %2924 = vmatpush2.bf16.msra.mxu0 %v2010
    %2925 = vmatprep.subr.bf16.mxu0 %v2005
    %2926 = vmatpush2.bf16.msra.mxu0 %v2004
    %2927 = vmatprep.subr.bf16.mxu0 %v1999
    %2928 = vmatpush2.bf16.msra.mxu0 %v1998
    %2929 = vmatprep.subr.bf16.mxu0 %v1993
    %2930 = vmatpush2.bf16.msra.mxu0 %v1992
    %2931 = vmatprep.subr.bf16.mxu0 %v1987
    %2932 = vmatpush2.bf16.msra.mxu0 %v1986
    %2933 = vmatprep.subr.bf16.mxu0 %v1981
    %2934 = vmatpush2.bf16.msra.mxu0 %v1980
    %2935 = vmatprep.subr.bf16.mxu0 %v1975
    %2936 = vmatpush2.bf16.msra.mxu0 %v1974
    %2937 = vmatprep.subr.bf16.mxu0 %v1969
    %2938 = vmatpush2.bf16.msra.mxu0 %v1968
    %2939 = vmatprep.mubr.bf16.mxu0 %v615
    %2940 = vmatmul.mubr.bf16.gmra.mxu0 %v614
    %v2941 = vpop.f32.mrf.mxu0
    %v2942 = vadd.f32 %v2869, %v2941
    %v2943 = vpop.f32.mrf.mxu0
    %v2944 = vadd.f32 %v2871, %v2943
    %v2945 = vpop.f32.mrf.mxu0
    %v2946 = vadd.f32 %v2873, %v2945
    %v2947 = vpop.f32.mrf.mxu0
    %v2948 = vadd.f32 %v2875, %v2947
    %2949 = vmatprep.mubr.bf16.mxu0 %v621
    %2950 = vmatmul.mubr.bf16.gmra.mxu0 %v620
    %v2951 = vpop.f32.mrf.mxu0
    %v2952 = vadd.f32 %v2879, %v2951
    %v2953 = vpop.f32.mrf.mxu0
    %v2954 = vadd.f32 %v2881, %v2953
    %v2955 = vpop.f32.mrf.mxu0
    %v2956 = vadd.f32 %v2883, %v2955
    %v2957 = vpop.f32.mrf.mxu0
    %v2958 = vadd.f32 %v2885, %v2957
    %2959 = vmatprep.mubr.bf16.mxu0 %v627
    %2960 = vmatmul.mubr.bf16.gmra.mxu0 %v626
    %v2961 = vpop.f32.mrf.mxu0
    %v2962 = vadd.f32 %v2889, %v2961
    %v2963 = vpop.f32.mrf.mxu0
    %v2964 = vadd.f32 %v2891, %v2963
    %v2965 = vpop.f32.mrf.mxu0
    %v2966 = vadd.f32 %v2893, %v2965
    %v2967 = vpop.f32.mrf.mxu0
    %v2968 = vadd.f32 %v2895, %v2967
    %2969 = vmatprep.mubr.bf16.mxu0 %v633
    %2970 = vmatmul.mubr.bf16.gmra.mxu0 %v632
    %v2971 = vpop.f32.mrf.mxu0
    %v2972 = vadd.f32 %v2899, %v2971
    %v2973 = vpop.f32.mrf.mxu0
    %v2974 = vadd.f32 %v2901, %v2973
    %v2975 = vpop.f32.mrf.mxu0
    %v2976 = vadd.f32 %v2903, %v2975
    %v2977 = vpop.f32.mrf.mxu0
    %v2978 = vadd.f32 %v2905, %v2977
    %2979 = vdwg.mxu0
    %2980 = vmatprep.subr.bf16.mxu0 %v2059
    %2981 = vmatpush1.bf16.msra.mxu0 %v2058
    %2982 = vmatprep.subr.bf16.mxu0 %v2053
    %2983 = vmatpush1.bf16.msra.mxu0 %v2052
    %2984 = vmatprep.subr.bf16.mxu0 %v2047
    %2985 = vmatpush1.bf16.msra.mxu0 %v2046
    %2986 = vmatprep.subr.bf16.mxu0 %v2041
    %2987 = vmatpush1.bf16.msra.mxu0 %v2040
    %2988 = vmatprep.subr.bf16.mxu0 %v2035
    %2989 = vmatpush1.bf16.msra.mxu0 %v2034
    %2990 = vmatprep.subr.bf16.mxu0 %v2029
    %2991 = vmatpush1.bf16.msra.mxu0 %v2028
    %2992 = vmatprep.subr.bf16.mxu0 %v2023
    %2993 = vmatpush1.bf16.msra.mxu0 %v2022
    %2994 = vmatprep.subr.bf16.mxu0 %v2017
    %2995 = vmatpush1.bf16.msra.mxu0 %v2016
    %2996 = vmatprep.subr.bf16.mxu0 %v2107
    %2997 = vmatpush2.bf16.msra.mxu0 %v2106
    %2998 = vmatprep.subr.bf16.mxu0 %v2101
    %2999 = vmatpush2.bf16.msra.mxu0 %v2100
    %3000 = vmatprep.subr.bf16.mxu0 %v2095
    %3001 = vmatpush2.bf16.msra.mxu0 %v2094
    %3002 = vmatprep.subr.bf16.mxu0 %v2089
    %3003 = vmatpush2.bf16.msra.mxu0 %v2088
    %3004 = vmatprep.subr.bf16.mxu0 %v2083
    %3005 = vmatpush2.bf16.msra.mxu0 %v2082
    %3006 = vmatprep.subr.bf16.mxu0 %v2077
    %3007 = vmatpush2.bf16.msra.mxu0 %v2076
    %3008 = vmatprep.subr.bf16.mxu0 %v2071
    %3009 = vmatpush2.bf16.msra.mxu0 %v2070
    %3010 = vmatprep.subr.bf16.mxu0 %v2065
    %3011 = vmatpush2.bf16.msra.mxu0 %v2064
    %3012 = vmatprep.mubr.bf16.mxu0 %v617
    %3013 = vmatmul.mubr.bf16.gmra.mxu0 %v616
    %v3014 = vpop.f32.mrf.mxu0
    %v3015 = vadd.f32 %v2942, %v3014
    %v3016 = vpop.f32.mrf.mxu0
    %v3017 = vadd.f32 %v2944, %v3016
    %v3018 = vpop.f32.mrf.mxu0
    %v3019 = vadd.f32 %v2946, %v3018
    %v3020 = vpop.f32.mrf.mxu0
    %v3021 = vadd.f32 %v2948, %v3020
    %3022 = vmatprep.mubr.bf16.mxu0 %v623
    %3023 = vmatmul.mubr.bf16.gmra.mxu0 %v622
    %v3024 = vpop.f32.mrf.mxu0
    %v3025 = vadd.f32 %v2952, %v3024
    %v3026 = vpop.f32.mrf.mxu0
    %v3027 = vadd.f32 %v2954, %v3026
    %v3028 = vpop.f32.mrf.mxu0
    %v3029 = vadd.f32 %v2956, %v3028
    %v3030 = vpop.f32.mrf.mxu0
    %v3031 = vadd.f32 %v2958, %v3030
    %3032 = vmatprep.mubr.bf16.mxu0 %v629
    %3033 = vmatmul.mubr.bf16.gmra.mxu0 %v628
    %v3034 = vpop.f32.mrf.mxu0
    %v3035 = vadd.f32 %v2962, %v3034
    %v3036 = vpop.f32.mrf.mxu0
    %v3037 = vadd.f32 %v2964, %v3036
    %v3038 = vpop.f32.mrf.mxu0
    %v3039 = vadd.f32 %v2966, %v3038
    %v3040 = vpop.f32.mrf.mxu0
    %v3041 = vadd.f32 %v2968, %v3040
    %3042 = vmatprep.mubr.bf16.mxu0 %v635
    %3043 = vmatmul.mubr.bf16.gmra.mxu0 %v634
    %v3044 = vpop.f32.mrf.mxu0
    %v3045 = vadd.f32 %v2972, %v3044
    %v3046 = vpop.f32.mrf.mxu0
    %v3047 = vadd.f32 %v2974, %v3046
    %v3048 = vpop.f32.mrf.mxu0
    %v3049 = vadd.f32 %v2976, %v3048
    %v3050 = vpop.f32.mrf.mxu0
    %v3051 = vadd.f32 %v2978, %v3050
    %3052 = vdwg.mxu0
    %v3053 = vmax.f32 %v2577, 0.0
    %v3054 = vmax.f32 %v2579, 0.0
    %v3055 = vmax.f32 %v2796, 0.0
    %v3056 = vmax.f32 %v2798, 0.0
    %v3057 = vmax.f32 %v3015, 0.0
    %v3058 = vmax.f32 %v3017, 0.0
    %v3059 = vmax.f32 %v2581, 0.0
    %v3060 = vmax.f32 %v2583, 0.0
    %v3061 = vmax.f32 %v2800, 0.0
    %v3062 = vmax.f32 %v2802, 0.0
    %v3063 = vmax.f32 %v3019, 0.0
    %v3064 = vmax.f32 %v3021, 0.0
    %v3065 = vmax.f32 %v2587, 0.0
    %v3066 = vmax.f32 %v2589, 0.0
    %v3067 = vmax.f32 %v2806, 0.0
    %v3068 = vmax.f32 %v2808, 0.0
    %v3069 = vmax.f32 %v3025, 0.0
    %v3070 = vmax.f32 %v3027, 0.0
    %v3071 = vmax.f32 %v2591, 0.0
    %v3072 = vmax.f32 %v2593, 0.0
    %v3073 = vmax.f32 %v2810, 0.0
    %v3074 = vmax.f32 %v2812, 0.0
    %v3075 = vmax.f32 %v3029, 0.0
    %v3076 = vmax.f32 %v3031, 0.0
    %v3077 = vmax.f32 %v2597, 0.0
    %v3078 = vmax.f32 %v2599, 0.0
    %v3079 = vmax.f32 %v2816, 0.0
    %v3080 = vmax.f32 %v2818, 0.0
    %v3081 = vmax.f32 %v3035, 0.0
    %v3082 = vmax.f32 %v3037, 0.0
    %v3083 = vmax.f32 %v2601, 0.0
    %v3084 = vmax.f32 %v2603, 0.0
    %v3085 = vmax.f32 %v2820, 0.0
    %v3086 = vmax.f32 %v2822, 0.0
    %v3087 = vmax.f32 %v3039, 0.0
    %v3088 = vmax.f32 %v3041, 0.0
    %v3089 = vmax.f32 %v2607, 0.0
    %v3090 = vmax.f32 %v2609, 0.0
    %v3091 = vmax.f32 %v2826, 0.0
    %v3092 = vmax.f32 %v2828, 0.0
    %v3093 = vmax.f32 %v3045, 0.0
    %v3094 = vmax.f32 %v3047, 0.0
    %v3095 = vmax.f32 %v2611, 0.0
    %v3096 = vmax.f32 %v2613, 0.0
    %v3097 = vmax.f32 %v2830, 0.0
    %v3098 = vmax.f32 %v2832, 0.0
    %v3099 = vmax.f32 %v3049, 0.0
    %v3100 = vmax.f32 %v3051, 0.0
    %v3101 = vpack.c.bf16 %v3059, %v3053
    %v3102 = vpack.c.bf16 %v3060, %v3054
    %v3103 = vpack.c.bf16 %v3061, %v3055
    %v3104 = vpack.c.bf16 %v3062, %v3056
    %v3105 = vpack.c.bf16 %v3063, %v3057
    %v3106 = vpack.c.bf16 %v3064, %v3058
    %v3107 = vpack.c.bf16 %v3071, %v3065
    %v3108 = vpack.c.bf16 %v3072, %v3066
    %v3109 = vpack.c.bf16 %v3073, %v3067
    %v3110 = vpack.c.bf16 %v3074, %v3068
    %v3111 = vpack.c.bf16 %v3075, %v3069
    %v3112 = vpack.c.bf16 %v3076, %v3070
    %v3113 = vpack.c.bf16 %v3083, %v3077
    %v3114 = vpack.c.bf16 %v3084, %v3078
    %v3115 = vpack.c.bf16 %v3085, %v3079
    %v3116 = vpack.c.bf16 %v3086, %v3080
    %v3117 = vpack.c.bf16 %v3087, %v3081
    %v3118 = vpack.c.bf16 %v3088, %v3082
    %v3119 = vpack.c.bf16 %v3095, %v3089
    %v3120 = vpack.c.bf16 %v3096, %v3090
    %v3121 = vpack.c.bf16 %v3097, %v3091
    %v3122 = vpack.c.bf16 %v3098, %v3092
    %v3123 = vpack.c.bf16 %v3099, %v3093
    %v3124 = vpack.c.bf16 %v3100, %v3094
    %v3125 = vld [vmem:[%s7] sm:$0xf]
    %v3126 = vld [vmem:[%s7 + $0x4] sm:$0xf]
    %v3127 = vld [vmem:[%s7 + $0x8] sm:$0xf]
    %v3128 = vld [vmem:[%s7 + $0xc] sm:$0xf]
    %v3129 = vld [vmem:[%s7 + $0x10] sm:$0xf]
    %v3130 = vld [vmem:[%s7 + $0x14] sm:$0xf]
    %v3131 = vld [vmem:[%s7 + $0x18] sm:$0xf]
    %v3132 = vld [vmem:[%s7 + $0x1c] sm:$0xf]
    %v3133 = vld [vmem:[%s7 + $0x20] sm:$0xf]
    %v3134 = vld [vmem:[%s7 + $0x24] sm:$0xf]
    %v3135 = vld [vmem:[%s7 + $0x28] sm:$0xf]
    %v3136 = vld [vmem:[%s7 + $0x2c] sm:$0xf]
    %v3137 = vld [vmem:[%s7 + $0x30] sm:$0xf]
    %v3138 = vld [vmem:[%s7 + $0x34] sm:$0xf]
    %v3139 = vld [vmem:[%s7 + $0x38] sm:$0xf]
    %v3140 = vld [vmem:[%s7 + $0x3c] sm:$0xf]
    %v3141 = vld [vmem:[%s7 + $0x40] sm:$0xf]
    %v3142 = vld [vmem:[%s7 + $0x44] sm:$0xf]
    %v3143 = vld [vmem:[%s7 + $0x48] sm:$0xf]
    %v3144 = vld [vmem:[%s7 + $0x4c] sm:$0xf]
    %v3145 = vld [vmem:[%s7 + $0x50] sm:$0xf]
    %v3146 = vld [vmem:[%s7 + $0x54] sm:$0xf]
    %v3147 = vld [vmem:[%s7 + $0x58] sm:$0xf]
    %v3148 = vld [vmem:[%s7 + $0x5c] sm:$0xf]
    %v3149 = vld [vmem:[%s7 + $0x60] sm:$0xf]
    %v3150 = vld [vmem:[%s7 + $0x64] sm:$0xf]
    %v3151 = vld [vmem:[%s7 + $0x68] sm:$0xf]
    %v3152 = vld [vmem:[%s7 + $0x6c] sm:$0xf]
    %v3153 = vld [vmem:[%s7 + $0x70] sm:$0xf]
    %v3154 = vld [vmem:[%s7 + $0x74] sm:$0xf]
    %v3155 = vld [vmem:[%s7 + $0x78] sm:$0xf]
    %v3156 = vld [vmem:[%s7 + $0x7c] sm:$0xf]
    %v3157 = vld [vmem:[%s7 + $0x80] sm:$0xf]
    %v3158 = vld [vmem:[%s7 + $0x84] sm:$0xf]
    %v3159 = vld [vmem:[%s7 + $0x88] sm:$0xf]
    %v3160 = vld [vmem:[%s7 + $0x8c] sm:$0xf]
    %v3161 = vld [vmem:[%s7 + $0x90] sm:$0xf]
    %v3162 = vld [vmem:[%s7 + $0x94] sm:$0xf]
    %v3163 = vld [vmem:[%s7 + $0x98] sm:$0xf]
    %v3164 = vld [vmem:[%s7 + $0x9c] sm:$0xf]
    %v3165 = vld [vmem:[%s7 + $0xa0] sm:$0xf]
    %v3166 = vld [vmem:[%s7 + $0xa4] sm:$0xf]
    %v3167 = vld [vmem:[%s7 + $0xa8] sm:$0xf]
    %v3168 = vld [vmem:[%s7 + $0xac] sm:$0xf]
    %v3169 = vld [vmem:[%s7 + $0xb0] sm:$0xf]
    %v3170 = vld [vmem:[%s7 + $0xb4] sm:$0xf]
    %v3171 = vld [vmem:[%s7 + $0xb8] sm:$0xf]
    %v3172 = vld [vmem:[%s7 + $0xbc] sm:$0xf]
    %v3173 = vld [vmem:[%s7 + $0xc0] sm:$0xf]
    %v3174 = vld [vmem:[%s7 + $0xc4] sm:$0xf]
    %v3175 = vld [vmem:[%s7 + $0xc8] sm:$0xf]
    %v3176 = vld [vmem:[%s7 + $0xcc] sm:$0xf]
    %v3177 = vld [vmem:[%s7 + $0xd0] sm:$0xf]
    %v3178 = vld [vmem:[%s7 + $0xd4] sm:$0xf]
    %v3179 = vld [vmem:[%s7 + $0xd8] sm:$0xf]
    %v3180 = vld [vmem:[%s7 + $0xdc] sm:$0xf]
    %v3181 = vld [vmem:[%s7 + $0xe0] sm:$0xf]
    %v3182 = vld [vmem:[%s7 + $0xe4] sm:$0xf]
    %v3183 = vld [vmem:[%s7 + $0xe8] sm:$0xf]
    %v3184 = vld [vmem:[%s7 + $0xec] sm:$0xf]
    %v3185 = vld [vmem:[%s7 + $0xf0] sm:$0xf]
    %v3186 = vld [vmem:[%s7 + $0xf4] sm:$0xf]
    %v3187 = vld [vmem:[%s7 + $0xf8] sm:$0xf]
    %v3188 = vld [vmem:[%s7 + $0xfc] sm:$0xf]
    %v3189 = vld [vmem:[%s7 + $0x100] sm:$0xf]
    %v3190 = vld [vmem:[%s7 + $0x104] sm:$0xf]
    %v3191 = vld [vmem:[%s7 + $0x108] sm:$0xf]
    %v3192 = vld [vmem:[%s7 + $0x10c] sm:$0xf]
    %v3193 = vld [vmem:[%s7 + $0x110] sm:$0xf]
    %v3194 = vld [vmem:[%s7 + $0x114] sm:$0xf]
    %v3195 = vld [vmem:[%s7 + $0x118] sm:$0xf]
    %v3196 = vld [vmem:[%s7 + $0x11c] sm:$0xf]
    %v3197 = vld [vmem:[%s7 + $0x120] sm:$0xf]
    %v3198 = vld [vmem:[%s7 + $0x124] sm:$0xf]
    %v3199 = vld [vmem:[%s7 + $0x128] sm:$0xf]
    %v3200 = vld [vmem:[%s7 + $0x12c] sm:$0xf]
    %v3201 = vld [vmem:[%s7 + $0x130] sm:$0xf]
    %v3202 = vld [vmem:[%s7 + $0x134] sm:$0xf]
    %v3203 = vld [vmem:[%s7 + $0x138] sm:$0xf]
    %v3204 = vld [vmem:[%s7 + $0x13c] sm:$0xf]
    %v3205 = vld [vmem:[%s7 + $0x140] sm:$0xf]
    %v3206 = vld [vmem:[%s7 + $0x144] sm:$0xf]
    %v3207 = vld [vmem:[%s7 + $0x148] sm:$0xf]
    %v3208 = vld [vmem:[%s7 + $0x14c] sm:$0xf]
    %v3209 = vld [vmem:[%s7 + $0x150] sm:$0xf]
    %v3210 = vld [vmem:[%s7 + $0x154] sm:$0xf]
    %v3211 = vld [vmem:[%s7 + $0x158] sm:$0xf]
    %v3212 = vld [vmem:[%s7 + $0x15c] sm:$0xf]
    %v3213 = vld [vmem:[%s7 + $0x160] sm:$0xf]
    %v3214 = vld [vmem:[%s7 + $0x164] sm:$0xf]
    %v3215 = vld [vmem:[%s7 + $0x168] sm:$0xf]
    %v3216 = vld [vmem:[%s7 + $0x16c] sm:$0xf]
    %v3217 = vld [vmem:[%s7 + $0x170] sm:$0xf]
    %v3218 = vld [vmem:[%s7 + $0x174] sm:$0xf]
    %v3219 = vld [vmem:[%s7 + $0x178] sm:$0xf]
    %v3220 = vld [vmem:[%s7 + $0x17c] sm:$0xf]
    %v3221 = vld [vmem:[#allocation10] sm:$0x1]
    %v3223 = vlaneseq
    %v3224 = vshrl.u32 %v3223, 7
    %v3225 = vsub.s32 0, %v3224
    %v3226 = vrot.slane %v3221, %v3225
    %v3324 = vunpack.c.l.b16 %v3125
    %v3325 = vunpack.c.l.b16 %v3126
    %v3326 = vunpack.c.l.b16 %v3127
    %v3327 = vunpack.c.l.b16 %v3128
    %v3328 = vunpack.c.l.b16 %v3129
    %v3329 = vunpack.c.l.b16 %v3130
    %v3330 = vunpack.c.l.b16 %v3131
    %v3331 = vunpack.c.l.b16 %v3132
    %v3332 = vunpack.c.l.b16 %v3133
    %v3333 = vunpack.c.l.b16 %v3134
    %v3334 = vunpack.c.l.b16 %v3135
    %v3335 = vunpack.c.l.b16 %v3136
    %v3336 = vunpack.c.l.b16 %v3137
    %v3337 = vunpack.c.l.b16 %v3138
    %v3338 = vunpack.c.l.b16 %v3139
    %v3339 = vunpack.c.l.b16 %v3140
    %v3340 = vunpack.c.l.b16 %v3141
    %v3341 = vunpack.c.l.b16 %v3142
    %v3342 = vunpack.c.l.b16 %v3143
    %v3343 = vunpack.c.l.b16 %v3144
    %v3344 = vunpack.c.l.b16 %v3145
    %v3345 = vunpack.c.l.b16 %v3146
    %v3346 = vunpack.c.l.b16 %v3147
    %v3347 = vunpack.c.l.b16 %v3148
    %v3348 = vunpack.c.l.b16 %v3149
    %v3349 = vunpack.c.l.b16 %v3150
    %v3350 = vunpack.c.l.b16 %v3151
    %v3351 = vunpack.c.l.b16 %v3152
    %v3352 = vunpack.c.l.b16 %v3153
    %v3353 = vunpack.c.l.b16 %v3154
    %v3354 = vunpack.c.l.b16 %v3155
    %v3355 = vunpack.c.l.b16 %v3156
    %v3356 = vunpack.c.l.b16 %v3157
    %v3357 = vunpack.c.l.b16 %v3158
    %v3358 = vunpack.c.l.b16 %v3159
    %v3359 = vunpack.c.l.b16 %v3160
    %v3360 = vunpack.c.l.b16 %v3161
    %v3361 = vunpack.c.l.b16 %v3162
    %v3362 = vunpack.c.l.b16 %v3163
    %v3363 = vunpack.c.l.b16 %v3164
    %v3364 = vunpack.c.l.b16 %v3165
    %v3365 = vunpack.c.l.b16 %v3166
    %v3366 = vunpack.c.l.b16 %v3167
    %v3367 = vunpack.c.l.b16 %v3168
    %v3368 = vunpack.c.l.b16 %v3169
    %v3369 = vunpack.c.l.b16 %v3170
    %v3370 = vunpack.c.l.b16 %v3171
    %v3371 = vunpack.c.l.b16 %v3172
    %v3372 = vunpack.c.l.b16 %v3173
    %v3373 = vunpack.c.l.b16 %v3174
    %v3374 = vunpack.c.l.b16 %v3175
    %v3375 = vunpack.c.l.b16 %v3176
    %v3376 = vunpack.c.l.b16 %v3177
    %v3377 = vunpack.c.l.b16 %v3178
    %v3378 = vunpack.c.l.b16 %v3179
    %v3379 = vunpack.c.l.b16 %v3180
    %v3380 = vunpack.c.l.b16 %v3181
    %v3381 = vunpack.c.l.b16 %v3182
    %v3382 = vunpack.c.l.b16 %v3183
    %v3383 = vunpack.c.l.b16 %v3184
    %v3384 = vunpack.c.l.b16 %v3185
    %v3385 = vunpack.c.l.b16 %v3186
    %v3386 = vunpack.c.l.b16 %v3187
    %v3387 = vunpack.c.l.b16 %v3188
    %v3388 = vunpack.c.l.b16 %v3189
    %v3389 = vunpack.c.l.b16 %v3190
    %v3390 = vunpack.c.l.b16 %v3191
    %v3391 = vunpack.c.l.b16 %v3192
    %v3392 = vunpack.c.l.b16 %v3193
    %v3393 = vunpack.c.l.b16 %v3194
    %v3394 = vunpack.c.l.b16 %v3195
    %v3395 = vunpack.c.l.b16 %v3196
    %v3396 = vunpack.c.l.b16 %v3197
    %v3397 = vunpack.c.l.b16 %v3198
    %v3398 = vunpack.c.l.b16 %v3199
    %v3399 = vunpack.c.l.b16 %v3200
    %v3400 = vunpack.c.l.b16 %v3201
    %v3401 = vunpack.c.l.b16 %v3202
    %v3402 = vunpack.c.l.b16 %v3203
    %v3403 = vunpack.c.l.b16 %v3204
    %v3404 = vunpack.c.l.b16 %v3205
    %v3405 = vunpack.c.l.b16 %v3206
    %v3406 = vunpack.c.l.b16 %v3207
    %v3407 = vunpack.c.l.b16 %v3208
    %v3408 = vunpack.c.l.b16 %v3209
    %v3409 = vunpack.c.l.b16 %v3210
    %v3410 = vunpack.c.l.b16 %v3211
    %v3411 = vunpack.c.l.b16 %v3212
    %v3412 = vunpack.c.l.b16 %v3213
    %v3413 = vunpack.c.l.b16 %v3214
    %v3414 = vunpack.c.l.b16 %v3215
    %v3415 = vunpack.c.l.b16 %v3216
    %v3416 = vunpack.c.l.b16 %v3217
    %v3417 = vunpack.c.l.b16 %v3218
    %v3418 = vunpack.c.l.b16 %v3219
    %v3419 = vunpack.c.l.b16 %v3220
    %v3420 = vpack.c.b16 %v3325, %v3324
    %v3421 = vpack.c.b16 %v3327, %v3326
    %v3422 = vpack.c.b16 %v3329, %v3328
    %v3423 = vpack.c.b16 %v3331, %v3330
    %v3424 = vpack.c.b16 %v3333, %v3332
    %v3425 = vpack.c.b16 %v3335, %v3334
    %v3426 = vpack.c.b16 %v3337, %v3336
    %v3427 = vpack.c.b16 %v3339, %v3338
    %v3428 = vpack.c.b16 %v3341, %v3340
    %v3429 = vpack.c.b16 %v3343, %v3342
    %v3430 = vpack.c.b16 %v3345, %v3344
    %v3431 = vpack.c.b16 %v3347, %v3346
    %v3432 = vpack.c.b16 %v3349, %v3348
    %v3433 = vpack.c.b16 %v3351, %v3350
    %v3434 = vpack.c.b16 %v3353, %v3352
    %v3435 = vpack.c.b16 %v3355, %v3354
    %v3436 = vpack.c.b16 %v3357, %v3356
    %v3437 = vpack.c.b16 %v3359, %v3358
    %v3438 = vpack.c.b16 %v3361, %v3360
    %v3439 = vpack.c.b16 %v3363, %v3362
    %v3440 = vpack.c.b16 %v3365, %v3364
    %v3441 = vpack.c.b16 %v3367, %v3366
    %v3442 = vpack.c.b16 %v3369, %v3368
    %v3443 = vpack.c.b16 %v3371, %v3370
    %v3444 = vpack.c.b16 %v3373, %v3372
    %v3445 = vpack.c.b16 %v3375, %v3374
    %v3446 = vpack.c.b16 %v3377, %v3376
    %v3447 = vpack.c.b16 %v3379, %v3378
    %v3448 = vpack.c.b16 %v3381, %v3380
    %v3449 = vpack.c.b16 %v3383, %v3382
    %v3450 = vpack.c.b16 %v3385, %v3384
    %v3451 = vpack.c.b16 %v3387, %v3386
    %v3452 = vpack.c.b16 %v3389, %v3388
    %v3453 = vpack.c.b16 %v3391, %v3390
    %v3454 = vpack.c.b16 %v3393, %v3392
    %v3455 = vpack.c.b16 %v3395, %v3394
    %v3456 = vpack.c.b16 %v3397, %v3396
    %v3457 = vpack.c.b16 %v3399, %v3398
    %v3458 = vpack.c.b16 %v3401, %v3400
    %v3459 = vpack.c.b16 %v3403, %v3402
    %v3460 = vpack.c.b16 %v3405, %v3404
    %v3461 = vpack.c.b16 %v3407, %v3406
    %v3462 = vpack.c.b16 %v3409, %v3408
    %v3463 = vpack.c.b16 %v3411, %v3410
    %v3464 = vpack.c.b16 %v3413, %v3412
    %v3465 = vpack.c.b16 %v3415, %v3414
    %v3466 = vpack.c.b16 %v3417, %v3416
    %v3467 = vpack.c.b16 %v3419, %v3418
    %3516 = vmatprep.subr.bf16.mxu0 0
    %3517 = vmatpush1.bf16.msra.mxu0 %v3427
    %3518 = vmatprep.subr.bf16.mxu0 0
    %3519 = vmatpush1.bf16.msra.mxu0 %v3426
    %3520 = vmatprep.subr.bf16.mxu0 0
    %3521 = vmatpush1.bf16.msra.mxu0 %v3425
    %3522 = vmatprep.subr.bf16.mxu0 0
    %3523 = vmatpush1.bf16.msra.mxu0 %v3424
    %3524 = vmatprep.subr.bf16.mxu0 0
    %3525 = vmatpush1.bf16.msra.mxu0 %v3423
    %3526 = vmatprep.subr.bf16.mxu0 0
    %3527 = vmatpush1.bf16.msra.mxu0 %v3422
    %3528 = vmatprep.subr.bf16.mxu0 0
    %3529 = vmatpush1.bf16.msra.mxu0 %v3421
    %3530 = vmatprep.subr.bf16.mxu0 0
    %3531 = vmatpush1.bf16.msra.mxu0 %v3420
    %3532 = vmatprep.subr.bf16.mxu0 0
    %3533 = vmatpush2.bf16.msra.mxu0 %v3435
    %3534 = vmatprep.subr.bf16.mxu0 0
    %3535 = vmatpush2.bf16.msra.mxu0 %v3434
    %3536 = vmatprep.subr.bf16.mxu0 0
    %3537 = vmatpush2.bf16.msra.mxu0 %v3433
    %3538 = vmatprep.subr.bf16.mxu0 0
    %3539 = vmatpush2.bf16.msra.mxu0 %v3432
    %3540 = vmatprep.subr.bf16.mxu0 0
    %3541 = vmatpush2.bf16.msra.mxu0 %v3431
    %3542 = vmatprep.subr.bf16.mxu0 0
    %3543 = vmatpush2.bf16.msra.mxu0 %v3430
    %3544 = vmatprep.subr.bf16.mxu0 0
    %3545 = vmatpush2.bf16.msra.mxu0 %v3429
    %3546 = vmatprep.subr.bf16.mxu0 0
    %3547 = vmatpush2.bf16.msra.mxu0 %v3428
    %3548 = vmatprep.mubr.bf16.mxu0 %v3102
    %3549 = vmatmul.mubr.bf16.gmra.mxu0 %v3101
    %v3550 = vpop.f32.mrf.mxu0
    %v3551 = vadd.f32 %v3226, %v3550
    %v3552 = vpop.f32.mrf.mxu0
    %v3553 = vpop.f32.mrf.mxu0
    %v3554 = vadd.f32 %v3226, %v3553
    %v3555 = vpop.f32.mrf.mxu0
    %3556 = vmatprep.mubr.bf16.mxu0 %v3108
    %3557 = vmatmul.mubr.bf16.gmra.mxu0 %v3107
    %v3558 = vpop.f32.mrf.mxu0
    %v3559 = vadd.f32 %v3226, %v3558
    %v3560 = vpop.f32.mrf.mxu0
    %v3561 = vpop.f32.mrf.mxu0
    %v3562 = vadd.f32 %v3226, %v3561
    %v3563 = vpop.f32.mrf.mxu0
    %3564 = vmatprep.mubr.bf16.mxu0 %v3114
    %3565 = vmatmul.mubr.bf16.gmra.mxu0 %v3113
    %v3566 = vpop.f32.mrf.mxu0
    %v3567 = vadd.f32 %v3226, %v3566
    %v3568 = vpop.f32.mrf.mxu0
    %v3569 = vpop.f32.mrf.mxu0
    %v3570 = vadd.f32 %v3226, %v3569
    %v3571 = vpop.f32.mrf.mxu0
    %3572 = vmatprep.mubr.bf16.mxu0 %v3120
    %3573 = vmatmul.mubr.bf16.gmra.mxu0 %v3119
    %v3574 = vpop.f32.mrf.mxu0
    %v3575 = vadd.f32 %v3226, %v3574
    %v3576 = vpop.f32.mrf.mxu0
    %v3577 = vpop.f32.mrf.mxu0
    %v3578 = vadd.f32 %v3226, %v3577
    %v3579 = vpop.f32.mrf.mxu0
    %3580 = vdwg.mxu0
    %3581 = vmatprep.subr.bf16.mxu0 0
    %3582 = vmatpush1.bf16.msra.mxu0 %v3443
    %3583 = vmatprep.subr.bf16.mxu0 0
    %3584 = vmatpush1.bf16.msra.mxu0 %v3442
    %3585 = vmatprep.subr.bf16.mxu0 0
    %3586 = vmatpush1.bf16.msra.mxu0 %v3441
    %3587 = vmatprep.subr.bf16.mxu0 0
    %3588 = vmatpush1.bf16.msra.mxu0 %v3440
    %3589 = vmatprep.subr.bf16.mxu0 0
    %3590 = vmatpush1.bf16.msra.mxu0 %v3439
    %3591 = vmatprep.subr.bf16.mxu0 0
    %3592 = vmatpush1.bf16.msra.mxu0 %v3438
    %3593 = vmatprep.subr.bf16.mxu0 0
    %3594 = vmatpush1.bf16.msra.mxu0 %v3437
    %3595 = vmatprep.subr.bf16.mxu0 0
    %3596 = vmatpush1.bf16.msra.mxu0 %v3436
    %3597 = vmatprep.subr.bf16.mxu0 0
    %3598 = vmatpush2.bf16.msra.mxu0 %v3451
    %3599 = vmatprep.subr.bf16.mxu0 0
    %3600 = vmatpush2.bf16.msra.mxu0 %v3450
    %3601 = vmatprep.subr.bf16.mxu0 0
    %3602 = vmatpush2.bf16.msra.mxu0 %v3449
    %3603 = vmatprep.subr.bf16.mxu0 0
    %3604 = vmatpush2.bf16.msra.mxu0 %v3448
    %3605 = vmatprep.subr.bf16.mxu0 0
    %3606 = vmatpush2.bf16.msra.mxu0 %v3447
    %3607 = vmatprep.subr.bf16.mxu0 0
    %3608 = vmatpush2.bf16.msra.mxu0 %v3446
    %3609 = vmatprep.subr.bf16.mxu0 0
    %3610 = vmatpush2.bf16.msra.mxu0 %v3445
    %3611 = vmatprep.subr.bf16.mxu0 0
    %3612 = vmatpush2.bf16.msra.mxu0 %v3444
    %3613 = vmatprep.mubr.bf16.mxu0 %v3104
    %3614 = vmatmul.mubr.bf16.gmra.mxu0 %v3103
    %v3615 = vpop.f32.mrf.mxu0
    %v3616 = vadd.f32 %v3551, %v3615
    %v3617 = vpop.f32.mrf.mxu0
    %v3618 = vpop.f32.mrf.mxu0
    %v3619 = vadd.f32 %v3554, %v3618
    %v3620 = vpop.f32.mrf.mxu0
    %3621 = vmatprep.mubr.bf16.mxu0 %v3110
    %3622 = vmatmul.mubr.bf16.gmra.mxu0 %v3109
    %v3623 = vpop.f32.mrf.mxu0
    %v3624 = vadd.f32 %v3559, %v3623
    %v3625 = vpop.f32.mrf.mxu0
    %v3626 = vpop.f32.mrf.mxu0
    %v3627 = vadd.f32 %v3562, %v3626
    %v3628 = vpop.f32.mrf.mxu0
    %3629 = vmatprep.mubr.bf16.mxu0 %v3116
    %3630 = vmatmul.mubr.bf16.gmra.mxu0 %v3115
    %v3631 = vpop.f32.mrf.mxu0
    %v3632 = vadd.f32 %v3567, %v3631
    %v3633 = vpop.f32.mrf.mxu0
    %v3634 = vpop.f32.mrf.mxu0
    %v3635 = vadd.f32 %v3570, %v3634
    %v3636 = vpop.f32.mrf.mxu0
    %3637 = vmatprep.mubr.bf16.mxu0 %v3122
    %3638 = vmatmul.mubr.bf16.gmra.mxu0 %v3121
    %v3639 = vpop.f32.mrf.mxu0
    %v3640 = vadd.f32 %v3575, %v3639
    %v3641 = vpop.f32.mrf.mxu0
    %v3642 = vpop.f32.mrf.mxu0
    %v3643 = vadd.f32 %v3578, %v3642
    %v3644 = vpop.f32.mrf.mxu0
    %3645 = vdwg.mxu0
    %3646 = vmatprep.subr.bf16.mxu0 0
    %3647 = vmatpush1.bf16.msra.mxu0 %v3459
    %3648 = vmatprep.subr.bf16.mxu0 0
    %3649 = vmatpush1.bf16.msra.mxu0 %v3458
    %3650 = vmatprep.subr.bf16.mxu0 0
    %3651 = vmatpush1.bf16.msra.mxu0 %v3457
    %3652 = vmatprep.subr.bf16.mxu0 0
    %3653 = vmatpush1.bf16.msra.mxu0 %v3456
    %3654 = vmatprep.subr.bf16.mxu0 0
    %3655 = vmatpush1.bf16.msra.mxu0 %v3455
    %3656 = vmatprep.subr.bf16.mxu0 0
    %3657 = vmatpush1.bf16.msra.mxu0 %v3454
    %3658 = vmatprep.subr.bf16.mxu0 0
    %3659 = vmatpush1.bf16.msra.mxu0 %v3453
    %3660 = vmatprep.subr.bf16.mxu0 0
    %3661 = vmatpush1.bf16.msra.mxu0 %v3452
    %3662 = vmatprep.subr.bf16.mxu0 0
    %3663 = vmatpush2.bf16.msra.mxu0 %v3467
    %3664 = vmatprep.subr.bf16.mxu0 0
    %3665 = vmatpush2.bf16.msra.mxu0 %v3466
    %3666 = vmatprep.subr.bf16.mxu0 0
    %3667 = vmatpush2.bf16.msra.mxu0 %v3465
    %3668 = vmatprep.subr.bf16.mxu0 0
    %3669 = vmatpush2.bf16.msra.mxu0 %v3464
    %3670 = vmatprep.subr.bf16.mxu0 0
    %3671 = vmatpush2.bf16.msra.mxu0 %v3463
    %3672 = vmatprep.subr.bf16.mxu0 0
    %3673 = vmatpush2.bf16.msra.mxu0 %v3462
    %3674 = vmatprep.subr.bf16.mxu0 0
    %3675 = vmatpush2.bf16.msra.mxu0 %v3461
    %3676 = vmatprep.subr.bf16.mxu0 0
    %3677 = vmatpush2.bf16.msra.mxu0 %v3460
    %3678 = vmatprep.mubr.bf16.mxu0 %v3106
    %3679 = vmatmul.mubr.bf16.gmra.mxu0 %v3105
    %v3680 = vpop.f32.mrf.mxu0
    %v3681 = vadd.f32 %v3616, %v3680
    %v3682 = vpop.f32.mrf.mxu0
    %v3683 = vpop.f32.mrf.mxu0
    %v3684 = vadd.f32 %v3619, %v3683
    %v3685 = vpop.f32.mrf.mxu0
    %3686 = vmatprep.mubr.bf16.mxu0 %v3112
    %3687 = vmatmul.mubr.bf16.gmra.mxu0 %v3111
    %v3688 = vpop.f32.mrf.mxu0
    %v3689 = vadd.f32 %v3624, %v3688
    %v3690 = vpop.f32.mrf.mxu0
    %v3691 = vpop.f32.mrf.mxu0
    %v3692 = vadd.f32 %v3627, %v3691
    %v3693 = vpop.f32.mrf.mxu0
    %3694 = vmatprep.mubr.bf16.mxu0 %v3118
    %3695 = vmatmul.mubr.bf16.gmra.mxu0 %v3117
    %v3696 = vpop.f32.mrf.mxu0
    %v3697 = vadd.f32 %v3632, %v3696
    %v3698 = vpop.f32.mrf.mxu0
    %v3699 = vpop.f32.mrf.mxu0
    %v3700 = vadd.f32 %v3635, %v3699
    %v3701 = vpop.f32.mrf.mxu0
    %3702 = vmatprep.mubr.bf16.mxu0 %v3124
    %3703 = vmatmul.mubr.bf16.gmra.mxu0 %v3123
    %v3704 = vpop.f32.mrf.mxu0
    %v3705 = vadd.f32 %v3640, %v3704
    %v3706 = vpop.f32.mrf.mxu0
    %v3707 = vpop.f32.mrf.mxu0
    %v3708 = vadd.f32 %v3643, %v3707
    %v3709 = vpop.f32.mrf.mxu0
    %3710 = vdwg.mxu0
    %v3711 = vmax.f32 %v3681, -4.0
    %v3712 = vmax.f32 %v3684, -4.0
    %v3713 = vmax.f32 %v3689, -4.0
    %v3714 = vmax.f32 %v3692, -4.0
    %v3715 = vmax.f32 %v3697, -4.0
    %v3716 = vmax.f32 %v3700, -4.0
    %v3717 = vmax.f32 %v3705, -4.0
    %v3718 = vmax.f32 %v3708, -4.0
    %v3719 = vmin.f32 %v3711, 15.0
    %v3720 = vmin.f32 %v3712, 15.0
    %v3721 = vmin.f32 %v3713, 15.0
    %v3722 = vmin.f32 %v3714, 15.0
    %v3723 = vmin.f32 %v3715, 15.0
    %v3724 = vmin.f32 %v3716, 15.0
    %v3725 = vmin.f32 %v3717, 15.0
    %v3726 = vmin.f32 %v3718, 15.0
    %v3727 = vmul.f32 %v3719, 1.442695
    %v3728 = vpow.pop %v3727
    %v3729 = vmul.f32 %v3720, 1.442695
    %v3730 = vpow.pop %v3729
    %v3731 = vmul.f32 %v3721, 1.442695
    %v3732 = vpow.pop %v3731
    %v3733 = vmul.f32 %v3722, 1.442695
    %v3734 = vpow.pop %v3733
    %v3735 = vmul.f32 %v3723, 1.442695
    %v3736 = vpow.pop %v3735
    %v3737 = vmul.f32 %v3724, 1.442695
    %v3738 = vpow.pop %v3737
    %v3739 = vmul.f32 %v3725, 1.442695
    %v3740 = vpow.pop %v3739
    %v3741 = vmul.f32 %v3726, 1.442695
    %v3742 = vpow.pop %v3741
    %3751 = vrot.lane.b32.xlu0 %v216, 12
    %v3752 = vpop.permute.xlu0 %3751
    %3753 = vrot.lane.b32.xlu0 %v217, 12
    %v3754 = vpop.permute.xlu0 %3753
    %3755 = vrot.lane.b32.xlu0 %v218, 12
    %v3756 = vpop.permute.xlu0 %3755
    %3757 = vrot.lane.b32.xlu0 %v219, 12
    %v3758 = vpop.permute.xlu0 %3757
    %3759 = vrot.lane.b32.xlu0 %v220, 12
    %v3760 = vpop.permute.xlu0 %3759
    %3761 = vrot.lane.b32.xlu0 %v221, 12
    %v3762 = vpop.permute.xlu0 %3761
    %3763 = vrot.lane.b32.xlu0 %v222, 12
    %v3764 = vpop.permute.xlu0 %3763
    %3765 = vrot.lane.b32.xlu0 %v223, 12
    %v3766 = vpop.permute.xlu0 %3765
    %v3775 = vmul.f32 %v3728, %v3752
    %v3776 = vmul.f32 %v3730, %v3754
    %v3777 = vmul.f32 %v3732, %v3756
    %v3778 = vmul.f32 %v3734, %v3758
    %v3779 = vmul.f32 %v3736, %v3760
    %v3780 = vmul.f32 %v3738, %v3762
    %v3781 = vmul.f32 %v3740, %v3764
    %v3782 = vmul.f32 %v3742, %v3766
    %3791 = vrot.lane.b32.xlu0 %v3775, 116
    %v3792 = vpop.permute.xlu0 %3791
    %3793 = vrot.lane.b32.xlu0 %v3776, 116
    %v3794 = vpop.permute.xlu0 %3793
    %3795 = vrot.lane.b32.xlu0 %v3777, 116
    %v3796 = vpop.permute.xlu0 %3795
    %3797 = vrot.lane.b32.xlu0 %v3778, 116
    %v3798 = vpop.permute.xlu0 %3797
    %3799 = vrot.lane.b32.xlu0 %v3779, 116
    %v3800 = vpop.permute.xlu0 %3799
    %3801 = vrot.lane.b32.xlu0 %v3780, 116
    %v3802 = vpop.permute.xlu0 %3801
    %3803 = vrot.lane.b32.xlu0 %v3781, 116
    %v3804 = vpop.permute.xlu0 %3803
    %3805 = vrot.lane.b32.xlu0 %v3782, 116
    %v3806 = vpop.permute.xlu0 %3805
    %v3815 = vadd.f32 %v3681, %v3792
    %v3816 = vadd.f32 %v3684, %v3794
    %v3817 = vadd.f32 %v3689, %v3796
    %v3818 = vadd.f32 %v3692, %v3798
    %v3819 = vadd.f32 %v3697, %v3800
    %v3820 = vadd.f32 %v3700, %v3802
    %v3821 = vadd.f32 %v3705, %v3804
    %v3822 = vadd.f32 %v3708, %v3806
    %v3823 = vld [vmem:[#allocation11] sm:$0xff]
    %v3824 = vld [vmem:[#allocation11 + $0x8] sm:$0xff]
    %v3825 = vld [vmem:[#allocation11 + $0x10] sm:$0xff]
    %v3826 = vld [vmem:[#allocation11 + $0x18] sm:$0xff]
    %v3827 = vld [vmem:[#allocation11 + $0x20] sm:$0xff]
    %v3828 = vld [vmem:[#allocation11 + $0x28] sm:$0xff]
    %v3829 = vld [vmem:[#allocation11 + $0x30] sm:$0x11]
    %v3830 = vld [vmem:[#allocation11 + $0x38] sm:$0x11]
    %v3831 = vld [vmem:[#allocation11 + $0x40] sm:$0x11]
    %v3832 = vpack.c.bf16 %v3816, %v3815
    %v3833 = vpack.c.bf16 %v3818, %v3817
    %v3834 = vpack.c.bf16 %v3820, %v3819
    %v3835 = vpack.c.bf16 %v3822, %v3821
    %v3836 = vld [vmem:[#allocation13] sm:$0xff]
    %v3837 = vld [vmem:[#allocation13 + $0x8] sm:$0xff]
    %v3838 = vld [vmem:[#allocation13 + $0x10] sm:$0xff]
    %v3839 = vld [vmem:[#allocation13 + $0x18] sm:$0x33]
    %v3840 = vld [vmem:[#allocation13 + $0x20] sm:$0x33]
    %v3841 = vld [vmem:[#allocation13 + $0x28] sm:$0x33]
    %v3848 = vunpack.c.l.b16 %v3836
    %v3849 = vunpack.c.h.b16 %v3836
    %v3850 = vunpack.c.l.b16 %v3837
    %v3851 = vunpack.c.h.b16 %v3837
    %v3852 = vunpack.c.l.b16 %v3838
    %v3853 = vunpack.c.h.b16 %v3838
    %v3854 = vunpack.c.l.b16 %v3839
    %v3855 = vunpack.c.h.b16 %v3839
    %v3856 = vunpack.c.l.b16 %v3840
    %v3857 = vunpack.c.h.b16 %v3840
    %v3858 = vunpack.c.l.b16 %v3841
    %v3859 = vunpack.c.h.b16 %v3841
    %v3860 = vpack.c.b16 %v3854, %v3848
    %v3861 = vpack.c.b16 %v3855, %v3849
    %v3862 = vpack.c.b16 %v3856, %v3850
    %v3863 = vpack.c.b16 %v3857, %v3851
    %v3864 = vpack.c.b16 %v3858, %v3852
    %v3865 = vpack.c.b16 %v3859, %v3853
    %vm3866 = vcmask 97280
    %v3868 = vsel %vm3866, %v3832, 0
    %v3871 = vsel %vm3866, %v3833, 0
    %v3874 = vsel %vm3866, %v3834, 0
    %v3877 = vsel %vm3866, %v3835, 0
    %vm3879 = vcmask 1045504
    %v3881 = vsel %vm3879, %v3860, 0
    %v3884 = vsel %vm3879, %v3861, 0
    %v3887 = vsel %vm3879, %v3862, 0
    %v3890 = vsel %vm3879, %v3863, 0
    %v3893 = vsel %vm3879, %v3864, 0
    %v3896 = vsel %vm3879, %v3865, 0
    %3898 = vmatprep.subr.bf16.mxu0 0
    %3899 = vmatpush1.bf16.msra.mxu0 0
    %3900 = vmatprep.subr.bf16.mxu0 0
    %3901 = vmatpush1.bf16.msra.mxu0 0
    %3902 = vmatprep.subr.bf16.mxu0 0
    %3903 = vmatpush1.bf16.msra.mxu0 0
    %3904 = vmatprep.subr.bf16.mxu0 0
    %3905 = vmatpush1.bf16.msra.mxu0 0
    %3906 = vmatprep.subr.bf16.mxu0 0
    %3907 = vmatpush1.bf16.msra.mxu0 0
    %3908 = vmatprep.subr.bf16.mxu0 0
    %3909 = vmatpush1.bf16.msra.mxu0 0
    %3910 = vmatprep.subr.bf16.mxu0 0
    %3911 = vmatpush1.bf16.msra.mxu0 0
    %3912 = vmatprep.subr.bf16.mxu0 %v3884
    %3913 = vmatpush1.bf16.msra.mxu0 %v3881
    %3914 = vmatprep.subr.bf16.mxu0 0
    %3915 = vmatpush2.bf16.msra.mxu0 0
    %3916 = vmatprep.subr.bf16.mxu0 0
    %3917 = vmatpush2.bf16.msra.mxu0 0
    %3918 = vmatprep.subr.bf16.mxu0 0
    %3919 = vmatpush2.bf16.msra.mxu0 0
    %3920 = vmatprep.subr.bf16.mxu0 0
    %3921 = vmatpush2.bf16.msra.mxu0 0
    %3922 = vmatprep.subr.bf16.mxu0 0
    %3923 = vmatpush2.bf16.msra.mxu0 0
    %3924 = vmatprep.subr.bf16.mxu0 0
    %3925 = vmatpush2.bf16.msra.mxu0 0
    %3926 = vmatprep.subr.bf16.mxu0 0
    %3927 = vmatpush2.bf16.msra.mxu0 0
    %3928 = vmatprep.subr.bf16.mxu0 0
    %3929 = vmatpush2.bf16.msra.mxu0 0
    %3930 = vmatprep.mubr.bf16.mxu0 0
    %3931 = vmatmul.mubr.bf16.gmra.mxu0 %v3868
    %v3932 = vpop.f32.mrf.mxu0
    %v3933 = vadd.f32 0.0, %v3932
    %v3934 = vpop.f32.mrf.mxu0
    %v3935 = vadd.f32 0.0, %v3934
    %v3936 = vpop.f32.mrf.mxu0
    %v3937 = vadd.f32 0.0, %v3936
    %v3938 = vpop.f32.mrf.mxu0
    %v3939 = vadd.f32 0.0, %v3938
    %3940 = vmatprep.mubr.bf16.mxu0 0
    %3941 = vmatmul.mubr.bf16.gmra.mxu0 %v3871
    %v3942 = vpop.f32.mrf.mxu0
    %v3943 = vadd.f32 0.0, %v3942
    %v3944 = vpop.f32.mrf.mxu0
    %v3945 = vadd.f32 0.0, %v3944
    %v3946 = vpop.f32.mrf.mxu0
    %v3947 = vadd.f32 0.0, %v3946
    %v3948 = vpop.f32.mrf.mxu0
    %v3949 = vadd.f32 0.0, %v3948
    %3950 = vmatprep.mubr.bf16.mxu0 0
    %3951 = vmatmul.mubr.bf16.gmra.mxu0 %v3874
    %v3952 = vpop.f32.mrf.mxu0
    %v3953 = vadd.f32 0.0, %v3952
    %v3954 = vpop.f32.mrf.mxu0
    %v3955 = vadd.f32 0.0, %v3954
    %v3956 = vpop.f32.mrf.mxu0
    %v3957 = vadd.f32 0.0, %v3956
    %v3958 = vpop.f32.mrf.mxu0
    %v3959 = vadd.f32 0.0, %v3958
    %3960 = vmatprep.mubr.bf16.mxu0 0
    %3961 = vmatmul.mubr.bf16.gmra.mxu0 %v3877
    %v3962 = vpop.f32.mrf.mxu0
    %v3963 = vadd.f32 0.0, %v3962
    %v3964 = vpop.f32.mrf.mxu0
    %v3965 = vadd.f32 0.0, %v3964
    %v3966 = vpop.f32.mrf.mxu0
    %v3967 = vadd.f32 0.0, %v3966
    %v3968 = vpop.f32.mrf.mxu0
    %v3969 = vadd.f32 0.0, %v3968
    %3970 = vdwg.mxu0
    %3971 = vmatprep.subr.bf16.mxu0 0
    %3972 = vmatpush1.bf16.msra.mxu0 0
    %3973 = vmatprep.subr.bf16.mxu0 0
    %3974 = vmatpush1.bf16.msra.mxu0 0
    %3975 = vmatprep.subr.bf16.mxu0 0
    %3976 = vmatpush1.bf16.msra.mxu0 0
    %3977 = vmatprep.subr.bf16.mxu0 0
    %3978 = vmatpush1.bf16.msra.mxu0 0
    %3979 = vmatprep.subr.bf16.mxu0 0
    %3980 = vmatpush1.bf16.msra.mxu0 0
    %3981 = vmatprep.subr.bf16.mxu0 0
    %3982 = vmatpush1.bf16.msra.mxu0 0
    %3983 = vmatprep.subr.bf16.mxu0 0
    %3984 = vmatpush1.bf16.msra.mxu0 0
    %3985 = vmatprep.subr.bf16.mxu0 %v3890
    %3986 = vmatpush1.bf16.msra.mxu0 %v3887
    %3987 = vmatprep.subr.bf16.mxu0 0
    %3988 = vmatpush2.bf16.msra.mxu0 0
    %3989 = vmatprep.subr.bf16.mxu0 0
    %3990 = vmatpush2.bf16.msra.mxu0 0
    %3991 = vmatprep.subr.bf16.mxu0 0
    %3992 = vmatpush2.bf16.msra.mxu0 0
    %3993 = vmatprep.subr.bf16.mxu0 0
    %3994 = vmatpush2.bf16.msra.mxu0 0
    %3995 = vmatprep.subr.bf16.mxu0 0
    %3996 = vmatpush2.bf16.msra.mxu0 0
    %3997 = vmatprep.subr.bf16.mxu0 0
    %3998 = vmatpush2.bf16.msra.mxu0 0
    %3999 = vmatprep.subr.bf16.mxu0 0
    %4000 = vmatpush2.bf16.msra.mxu0 0
    %4001 = vmatprep.subr.bf16.mxu0 0
    %4002 = vmatpush2.bf16.msra.mxu0 0
    %4003 = vmatprep.mubr.bf16.mxu0 0
    %4004 = vmatmul.mubr.bf16.gmra.mxu0 %v3868
    %v4005 = vpop.f32.mrf.mxu0
    %v4006 = vadd.f32 0.0, %v4005
    %v4007 = vpop.f32.mrf.mxu0
    %v4008 = vadd.f32 0.0, %v4007
    %v4009 = vpop.f32.mrf.mxu0
    %v4010 = vadd.f32 0.0, %v4009
    %v4011 = vpop.f32.mrf.mxu0
    %v4012 = vadd.f32 0.0, %v4011
    %4013 = vmatprep.mubr.bf16.mxu0 0
    %4014 = vmatmul.mubr.bf16.gmra.mxu0 %v3871
    %v4015 = vpop.f32.mrf.mxu0
    %v4016 = vadd.f32 0.0, %v4015
    %v4017 = vpop.f32.mrf.mxu0
    %v4018 = vadd.f32 0.0, %v4017
    %v4019 = vpop.f32.mrf.mxu0
    %v4020 = vadd.f32 0.0, %v4019
    %v4021 = vpop.f32.mrf.mxu0
    %v4022 = vadd.f32 0.0, %v4021
    %4023 = vmatprep.mubr.bf16.mxu0 0
    %4024 = vmatmul.mubr.bf16.gmra.mxu0 %v3874
    %v4025 = vpop.f32.mrf.mxu0
    %v4026 = vadd.f32 0.0, %v4025
    %v4027 = vpop.f32.mrf.mxu0
    %v4028 = vadd.f32 0.0, %v4027
    %v4029 = vpop.f32.mrf.mxu0
    %v4030 = vadd.f32 0.0, %v4029
    %v4031 = vpop.f32.mrf.mxu0
    %v4032 = vadd.f32 0.0, %v4031
    %4033 = vmatprep.mubr.bf16.mxu0 0
    %4034 = vmatmul.mubr.bf16.gmra.mxu0 %v3877
    %v4035 = vpop.f32.mrf.mxu0
    %v4036 = vadd.f32 0.0, %v4035
    %v4037 = vpop.f32.mrf.mxu0
    %v4038 = vadd.f32 0.0, %v4037
    %v4039 = vpop.f32.mrf.mxu0
    %v4040 = vadd.f32 0.0, %v4039
    %v4041 = vpop.f32.mrf.mxu0
    %v4042 = vadd.f32 0.0, %v4041
    %4043 = vdwg.mxu0
    %4044 = vmatprep.subr.bf16.mxu0 0
    %4045 = vmatpush1.bf16.msra.mxu0 0
    %4046 = vmatprep.subr.bf16.mxu0 0
    %4047 = vmatpush1.bf16.msra.mxu0 0
    %4048 = vmatprep.subr.bf16.mxu0 0
    %4049 = vmatpush1.bf16.msra.mxu0 0
    %4050 = vmatprep.subr.bf16.mxu0 0
    %4051 = vmatpush1.bf16.msra.mxu0 0
    %4052 = vmatprep.subr.bf16.mxu0 0
    %4053 = vmatpush1.bf16.msra.mxu0 0
    %4054 = vmatprep.subr.bf16.mxu0 0
    %4055 = vmatpush1.bf16.msra.mxu0 0
    %4056 = vmatprep.subr.bf16.mxu0 0
    %4057 = vmatpush1.bf16.msra.mxu0 0
    %4058 = vmatprep.subr.bf16.mxu0 %v3896
    %4059 = vmatpush1.bf16.msra.mxu0 %v3893
    %4060 = vmatprep.subr.bf16.mxu0 0
    %4061 = vmatpush2.bf16.msra.mxu0 0
    %4062 = vmatprep.subr.bf16.mxu0 0
    %4063 = vmatpush2.bf16.msra.mxu0 0
    %4064 = vmatprep.subr.bf16.mxu0 0
    %4065 = vmatpush2.bf16.msra.mxu0 0
    %4066 = vmatprep.subr.bf16.mxu0 0
    %4067 = vmatpush2.bf16.msra.mxu0 0
    %4068 = vmatprep.subr.bf16.mxu0 0
    %4069 = vmatpush2.bf16.msra.mxu0 0
    %4070 = vmatprep.subr.bf16.mxu0 0
    %4071 = vmatpush2.bf16.msra.mxu0 0
    %4072 = vmatprep.subr.bf16.mxu0 0
    %4073 = vmatpush2.bf16.msra.mxu0 0
    %4074 = vmatprep.subr.bf16.mxu0 0
    %4075 = vmatpush2.bf16.msra.mxu0 0
    %4076 = vmatprep.mubr.bf16.mxu0 0
    %4077 = vmatmul.mubr.bf16.gmra.mxu0 %v3868
    %v4078 = vpop.f32.mrf.mxu0
    %v4079 = vadd.f32 0.0, %v4078
    %v4080 = vpop.f32.mrf.mxu0
    %v4081 = vadd.f32 0.0, %v4080
    %v4082 = vpop.f32.mrf.mxu0
    %v4083 = vadd.f32 0.0, %v4082
    %v4084 = vpop.f32.mrf.mxu0
    %v4085 = vadd.f32 0.0, %v4084
    %4086 = vmatprep.mubr.bf16.mxu0 0
    %4087 = vmatmul.mubr.bf16.gmra.mxu0 %v3871
    %v4088 = vpop.f32.mrf.mxu0
    %v4089 = vadd.f32 0.0, %v4088
    %v4090 = vpop.f32.mrf.mxu0
    %v4091 = vadd.f32 0.0, %v4090
    %v4092 = vpop.f32.mrf.mxu0
    %v4093 = vadd.f32 0.0, %v4092
    %v4094 = vpop.f32.mrf.mxu0
    %v4095 = vadd.f32 0.0, %v4094
    %4096 = vmatprep.mubr.bf16.mxu0 0
    %4097 = vmatmul.mubr.bf16.gmra.mxu0 %v3874
    %v4098 = vpop.f32.mrf.mxu0
    %v4099 = vadd.f32 0.0, %v4098
    %v4100 = vpop.f32.mrf.mxu0
    %v4101 = vadd.f32 0.0, %v4100
    %v4102 = vpop.f32.mrf.mxu0
    %v4103 = vadd.f32 0.0, %v4102
    %v4104 = vpop.f32.mrf.mxu0
    %v4105 = vadd.f32 0.0, %v4104
    %4106 = vmatprep.mubr.bf16.mxu0 0
    %4107 = vmatmul.mubr.bf16.gmra.mxu0 %v3877
    %v4108 = vpop.f32.mrf.mxu0
    %v4109 = vadd.f32 0.0, %v4108
    %v4110 = vpop.f32.mrf.mxu0
    %v4111 = vadd.f32 0.0, %v4110
    %v4112 = vpop.f32.mrf.mxu0
    %v4113 = vadd.f32 0.0, %v4112
    %v4114 = vpop.f32.mrf.mxu0
    %v4115 = vadd.f32 0.0, %v4114
    %4116 = vdwg.mxu0
    %v4126 = vunpack.c.l.b16 %v3823
    %v4127 = vunpack.c.h.b16 %v3823
    %v4128 = vunpack.c.l.b16 %v3824
    %v4129 = vunpack.c.h.b16 %v3824
    %v4130 = vunpack.c.l.b16 %v3825
    %v4131 = vunpack.c.h.b16 %v3825
    %v4132 = vunpack.c.l.b16 %v3826
    %v4133 = vunpack.c.h.b16 %v3826
    %v4134 = vunpack.c.l.b16 %v3827
    %v4135 = vunpack.c.h.b16 %v3827
    %v4136 = vunpack.c.l.b16 %v3828
    %v4137 = vunpack.c.h.b16 %v3828
    %v4138 = vunpack.c.l.b16 %v3829
    %v4139 = vunpack.c.h.b16 %v3829
    %v4140 = vunpack.c.l.b16 %v3830
    %v4141 = vunpack.c.h.b16 %v3830
    %v4142 = vunpack.c.l.b16 %v3831
    %v4143 = vunpack.c.h.b16 %v3831
    %v4144 = vpack.c.b16 %v4132, %v4126
    %v4145 = vpack.c.b16 %v4133, %v4127
    %v4146 = vpack.c.b16 %v4134, %v4128
    %v4147 = vpack.c.b16 %v4135, %v4129
    %v4148 = vpack.c.b16 %v4136, %v4130
    %v4149 = vpack.c.b16 %v4137, %v4131
    %v4150 = vpack.c.b16 %v4138, %v4138
    %v4151 = vpack.c.b16 %v4139, %v4139
    %v4152 = vpack.c.b16 %v4140, %v4140
    %v4153 = vpack.c.b16 %v4141, %v4141
    %v4154 = vpack.c.b16 %v4142, %v4142
    %v4155 = vpack.c.b16 %v4143, %v4143
    %vm4162 = vcmask 138240
    %v4164 = vsel %vm4162, %v212, 0
    %v4167 = vsel %vm4162, %v213, 0
    %v4170 = vsel %vm4162, %v214, 0
    %v4173 = vsel %vm4162, %v215, 0
    %vm4175 = vcmask 1040384
    %v4176 = vsel 0, 4294967295, 65535
    %v4177 = vsel %vm4175, %v4176, 0
    %v4179 = vand.u32 %v4150, %v4177
    %v4182 = vand.u32 %v4151, %v4177
    %v4185 = vand.u32 %v4152, %v4177
    %v4188 = vand.u32 %v4153, %v4177
    %v4191 = vand.u32 %v4154, %v4177
    %v4194 = vand.u32 %v4155, %v4177
    %4196 = vmatprep.subr.bf16.mxu0 0
    %4197 = vmatpush1.bf16.msra.mxu0 0
    %4198 = vmatprep.subr.bf16.mxu0 0
    %4199 = vmatpush1.bf16.msra.mxu0 0
    %4200 = vmatprep.subr.bf16.mxu0 0
    %4201 = vmatpush1.bf16.msra.mxu0 0
    %4202 = vmatprep.subr.bf16.mxu0 0
    %4203 = vmatpush1.bf16.msra.mxu0 0
    %4204 = vmatprep.subr.bf16.mxu0 0
    %4205 = vmatpush1.bf16.msra.mxu0 0
    %4206 = vmatprep.subr.bf16.mxu0 0
    %4207 = vmatpush1.bf16.msra.mxu0 0
    %4208 = vmatprep.subr.bf16.mxu0 %v4182
    %4209 = vmatpush1.bf16.msra.mxu0 %v4179
    %4210 = vmatprep.subr.bf16.mxu0 %v4145
    %4211 = vmatpush1.bf16.msra.mxu0 %v4144
    %4212 = vmatprep.subr.bf16.mxu0 0
    %4213 = vmatpush2.bf16.msra.mxu0 0
    %4214 = vmatprep.subr.bf16.mxu0 0
    %4215 = vmatpush2.bf16.msra.mxu0 0
    %4216 = vmatprep.subr.bf16.mxu0 0
    %4217 = vmatpush2.bf16.msra.mxu0 0
    %4218 = vmatprep.subr.bf16.mxu0 0
    %4219 = vmatpush2.bf16.msra.mxu0 0
    %4220 = vmatprep.subr.bf16.mxu0 0
    %4221 = vmatpush2.bf16.msra.mxu0 0
    %4222 = vmatprep.subr.bf16.mxu0 0
    %4223 = vmatpush2.bf16.msra.mxu0 0
    %4224 = vmatprep.subr.bf16.mxu0 0
    %4225 = vmatpush2.bf16.msra.mxu0 0
    %4226 = vmatprep.subr.bf16.mxu0 0
    %4227 = vmatpush2.bf16.msra.mxu0 0
    %4228 = vmatprep.mubr.bf16.mxu0 0
    %4229 = vmatmul.mubr.bf16.gmra.mxu0 %v4164
    %v4230 = vpop.f32.mrf.mxu0
    %v4231 = vadd.f32 %v3933, %v4230
    %v4232 = vpop.f32.mrf.mxu0
    %v4233 = vadd.f32 %v3935, %v4232
    %v4234 = vpop.f32.mrf.mxu0
    %v4235 = vadd.f32 %v3937, %v4234
    %v4236 = vpop.f32.mrf.mxu0
    %v4237 = vadd.f32 %v3939, %v4236
    %4238 = vmatprep.mubr.bf16.mxu0 0
    %4239 = vmatmul.mubr.bf16.gmra.mxu0 %v4167
    %v4240 = vpop.f32.mrf.mxu0
    %v4241 = vadd.f32 %v3943, %v4240
    %v4242 = vpop.f32.mrf.mxu0
    %v4243 = vadd.f32 %v3945, %v4242
    %v4244 = vpop.f32.mrf.mxu0
    %v4245 = vadd.f32 %v3947, %v4244
    %v4246 = vpop.f32.mrf.mxu0
    %v4247 = vadd.f32 %v3949, %v4246
    %4248 = vmatprep.mubr.bf16.mxu0 0
    %4249 = vmatmul.mubr.bf16.gmra.mxu0 %v4170
    %v4250 = vpop.f32.mrf.mxu0
    %v4251 = vadd.f32 %v3953, %v4250
    %v4252 = vpop.f32.mrf.mxu0
    %v4253 = vadd.f32 %v3955, %v4252
    %v4254 = vpop.f32.mrf.mxu0
    %v4255 = vadd.f32 %v3957, %v4254
    %v4256 = vpop.f32.mrf.mxu0
    %v4257 = vadd.f32 %v3959, %v4256
    %4258 = vmatprep.mubr.bf16.mxu0 0
    %4259 = vmatmul.mubr.bf16.gmra.mxu0 %v4173
    %v4260 = vpop.f32.mrf.mxu0
    %v4261 = vadd.f32 %v3963, %v4260
    %v4262 = vpop.f32.mrf.mxu0
    %v4263 = vadd.f32 %v3965, %v4262
    %v4264 = vpop.f32.mrf.mxu0
    %v4265 = vadd.f32 %v3967, %v4264
    %v4266 = vpop.f32.mrf.mxu0
    %v4267 = vadd.f32 %v3969, %v4266
    %4268 = vdwg.mxu0
    %4269 = vmatprep.subr.bf16.mxu0 0
    %4270 = vmatpush1.bf16.msra.mxu0 0
    %4271 = vmatprep.subr.bf16.mxu0 0
    %4272 = vmatpush1.bf16.msra.mxu0 0
    %4273 = vmatprep.subr.bf16.mxu0 0
    %4274 = vmatpush1.bf16.msra.mxu0 0
    %4275 = vmatprep.subr.bf16.mxu0 0
    %4276 = vmatpush1.bf16.msra.mxu0 0
    %4277 = vmatprep.subr.bf16.mxu0 0
    %4278 = vmatpush1.bf16.msra.mxu0 0
    %4279 = vmatprep.subr.bf16.mxu0 0
    %4280 = vmatpush1.bf16.msra.mxu0 0
    %4281 = vmatprep.subr.bf16.mxu0 %v4188
    %4282 = vmatpush1.bf16.msra.mxu0 %v4185
    %4283 = vmatprep.subr.bf16.mxu0 %v4147
    %4284 = vmatpush1.bf16.msra.mxu0 %v4146
    %4285 = vmatprep.subr.bf16.mxu0 0
    %4286 = vmatpush2.bf16.msra.mxu0 0
    %4287 = vmatprep.subr.bf16.mxu0 0
    %4288 = vmatpush2.bf16.msra.mxu0 0
    %4289 = vmatprep.subr.bf16.mxu0 0
    %4290 = vmatpush2.bf16.msra.mxu0 0
    %4291 = vmatprep.subr.bf16.mxu0 0
    %4292 = vmatpush2.bf16.msra.mxu0 0
    %4293 = vmatprep.subr.bf16.mxu0 0
    %4294 = vmatpush2.bf16.msra.mxu0 0
    %4295 = vmatprep.subr.bf16.mxu0 0
    %4296 = vmatpush2.bf16.msra.mxu0 0
    %4297 = vmatprep.subr.bf16.mxu0 0
    %4298 = vmatpush2.bf16.msra.mxu0 0
    %4299 = vmatprep.subr.bf16.mxu0 0
    %4300 = vmatpush2.bf16.msra.mxu0 0
    %4301 = vmatprep.mubr.bf16.mxu0 0
    %4302 = vmatmul.mubr.bf16.gmra.mxu0 %v4164
    %v4303 = vpop.f32.mrf.mxu0
    %v4304 = vadd.f32 %v4006, %v4303
    %v4305 = vpop.f32.mrf.mxu0
    %v4306 = vadd.f32 %v4008, %v4305
    %v4307 = vpop.f32.mrf.mxu0
    %v4308 = vadd.f32 %v4010, %v4307
    %v4309 = vpop.f32.mrf.mxu0
    %v4310 = vadd.f32 %v4012, %v4309
    %4311 = vmatprep.mubr.bf16.mxu0 0
    %4312 = vmatmul.mubr.bf16.gmra.mxu0 %v4167
    %v4313 = vpop.f32.mrf.mxu0
    %v4314 = vadd.f32 %v4016, %v4313
    %v4315 = vpop.f32.mrf.mxu0
    %v4316 = vadd.f32 %v4018, %v4315
    %v4317 = vpop.f32.mrf.mxu0
    %v4318 = vadd.f32 %v4020, %v4317
    %v4319 = vpop.f32.mrf.mxu0
    %v4320 = vadd.f32 %v4022, %v4319
    %4321 = vmatprep.mubr.bf16.mxu0 0
    %4322 = vmatmul.mubr.bf16.gmra.mxu0 %v4170
    %v4323 = vpop.f32.mrf.mxu0
    %v4324 = vadd.f32 %v4026, %v4323
    %v4325 = vpop.f32.mrf.mxu0
    %v4326 = vadd.f32 %v4028, %v4325
    %v4327 = vpop.f32.mrf.mxu0
    %v4328 = vadd.f32 %v4030, %v4327
    %v4329 = vpop.f32.mrf.mxu0
    %v4330 = vadd.f32 %v4032, %v4329
    %4331 = vmatprep.mubr.bf16.mxu0 0
    %4332 = vmatmul.mubr.bf16.gmra.mxu0 %v4173
    %v4333 = vpop.f32.mrf.mxu0
    %v4334 = vadd.f32 %v4036, %v4333
    %v4335 = vpop.f32.mrf.mxu0
    %v4336 = vadd.f32 %v4038, %v4335
    %v4337 = vpop.f32.mrf.mxu0
    %v4338 = vadd.f32 %v4040, %v4337
    %v4339 = vpop.f32.mrf.mxu0
    %v4340 = vadd.f32 %v4042, %v4339
    %4341 = vdwg.mxu0
    %4342 = vmatprep.subr.bf16.mxu0 0
    %4343 = vmatpush1.bf16.msra.mxu0 0
    %4344 = vmatprep.subr.bf16.mxu0 0
    %4345 = vmatpush1.bf16.msra.mxu0 0
    %4346 = vmatprep.subr.bf16.mxu0 0
    %4347 = vmatpush1.bf16.msra.mxu0 0
    %4348 = vmatprep.subr.bf16.mxu0 0
    %4349 = vmatpush1.bf16.msra.mxu0 0
    %4350 = vmatprep.subr.bf16.mxu0 0
    %4351 = vmatpush1.bf16.msra.mxu0 0
    %4352 = vmatprep.subr.bf16.mxu0 0
    %4353 = vmatpush1.bf16.msra.mxu0 0
    %4354 = vmatprep.subr.bf16.mxu0 %v4194
    %4355 = vmatpush1.bf16.msra.mxu0 %v4191
    %4356 = vmatprep.subr.bf16.mxu0 %v4149
    %4357 = vmatpush1.bf16.msra.mxu0 %v4148
    %4358 = vmatprep.subr.bf16.mxu0 0
    %4359 = vmatpush2.bf16.msra.mxu0 0
    %4360 = vmatprep.subr.bf16.mxu0 0
    %4361 = vmatpush2.bf16.msra.mxu0 0
    %4362 = vmatprep.subr.bf16.mxu0 0
    %4363 = vmatpush2.bf16.msra.mxu0 0
    %4364 = vmatprep.subr.bf16.mxu0 0
    %4365 = vmatpush2.bf16.msra.mxu0 0
    %4366 = vmatprep.subr.bf16.mxu0 0
    %4367 = vmatpush2.bf16.msra.mxu0 0
    %4368 = vmatprep.subr.bf16.mxu0 0
    %4369 = vmatpush2.bf16.msra.mxu0 0
    %4370 = vmatprep.subr.bf16.mxu0 0
    %4371 = vmatpush2.bf16.msra.mxu0 0
    %4372 = vmatprep.subr.bf16.mxu0 0
    %4373 = vmatpush2.bf16.msra.mxu0 0
    %4374 = vmatprep.mubr.bf16.mxu0 0
    %4375 = vmatmul.mubr.bf16.gmra.mxu0 %v4164
    %v4376 = vpop.f32.mrf.mxu0
    %v4377 = vadd.f32 %v4079, %v4376
    %v4378 = vpop.f32.mrf.mxu0
    %v4379 = vadd.f32 %v4081, %v4378
    %v4380 = vpop.f32.mrf.mxu0
    %v4381 = vadd.f32 %v4083, %v4380
    %v4382 = vpop.f32.mrf.mxu0
    %v4383 = vadd.f32 %v4085, %v4382
    %4384 = vmatprep.mubr.bf16.mxu0 0
    %4385 = vmatmul.mubr.bf16.gmra.mxu0 %v4167
    %v4386 = vpop.f32.mrf.mxu0
    %v4387 = vadd.f32 %v4089, %v4386
    %v4388 = vpop.f32.mrf.mxu0
    %v4389 = vadd.f32 %v4091, %v4388
    %v4390 = vpop.f32.mrf.mxu0
    %v4391 = vadd.f32 %v4093, %v4390
    %v4392 = vpop.f32.mrf.mxu0
    %v4393 = vadd.f32 %v4095, %v4392
    %4394 = vmatprep.mubr.bf16.mxu0 0
    %4395 = vmatmul.mubr.bf16.gmra.mxu0 %v4170
    %v4396 = vpop.f32.mrf.mxu0
    %v4397 = vadd.f32 %v4099, %v4396
    %v4398 = vpop.f32.mrf.mxu0
    %v4399 = vadd.f32 %v4101, %v4398
    %v4400 = vpop.f32.mrf.mxu0
    %v4401 = vadd.f32 %v4103, %v4400
    %v4402 = vpop.f32.mrf.mxu0
    %v4403 = vadd.f32 %v4105, %v4402
    %4404 = vmatprep.mubr.bf16.mxu0 0
    %4405 = vmatmul.mubr.bf16.gmra.mxu0 %v4173
    %v4406 = vpop.f32.mrf.mxu0
    %v4407 = vadd.f32 %v4109, %v4406
    %v4408 = vpop.f32.mrf.mxu0
    %v4409 = vadd.f32 %v4111, %v4408
    %v4410 = vpop.f32.mrf.mxu0
    %v4411 = vadd.f32 %v4113, %v4410
    %v4412 = vpop.f32.mrf.mxu0
    %v4413 = vadd.f32 %v4115, %v4412
    %4414 = vdwg.mxu0
    %v4415 = vld [vmem:[#allocation14] sm:$0x3f]
    %v4417 = vlaneseq
    %v4418 = vshrl.u32 %v4417, 7
    %v4419 = vsub.s32 0, %v4418
    %v4420 = vrot.slane %v4415, %v4419
    %v4421 = vlaneseq
    %v4422 = vshrl.u32 %v4421, 7
    %v4423 = vsub.s32 1, %v4422
    %v4424 = vrot.slane %v4415, %v4423
    %v4425 = vlaneseq
    %v4426 = vshrl.u32 %v4425, 7
    %v4427 = vsub.s32 2, %v4426
    %v4428 = vrot.slane %v4415, %v4427
    %v4429 = vlaneseq
    %v4430 = vshrl.u32 %v4429, 7
    %v4431 = vsub.s32 3, %v4430
    %v4432 = vrot.slane %v4415, %v4431
    %v4433 = vlaneseq
    %v4434 = vshrl.u32 %v4433, 7
    %v4435 = vsub.s32 4, %v4434
    %v4436 = vrot.slane %v4415, %v4435
    %v4437 = vlaneseq
    %v4438 = vshrl.u32 %v4437, 7
    %v4439 = vsub.s32 5, %v4438
    %v4440 = vrot.slane %v4415, %v4439
    %v4447 = vadd.f32 %v4231, %v4420
    %v4448 = vadd.f32 %v4233, %v4424
    %v4449 = vadd.f32 %v4304, %v4428
    %v4450 = vadd.f32 %v4306, %v4432
    %v4451 = vadd.f32 %v4377, %v4436
    %v4452 = vadd.f32 %v4379, %v4440
    %v4453 = vadd.f32 %v4235, %v4420
    %v4454 = vadd.f32 %v4237, %v4424
    %v4455 = vadd.f32 %v4308, %v4428
    %v4456 = vadd.f32 %v4310, %v4432
    %v4457 = vadd.f32 %v4381, %v4436
    %v4458 = vadd.f32 %v4383, %v4440
    %v4459 = vadd.f32 %v4241, %v4420
    %v4460 = vadd.f32 %v4243, %v4424
    %v4461 = vadd.f32 %v4314, %v4428
    %v4462 = vadd.f32 %v4316, %v4432
    %v4463 = vadd.f32 %v4387, %v4436
    %v4464 = vadd.f32 %v4389, %v4440
    %v4465 = vadd.f32 %v4245, %v4420
    %v4466 = vadd.f32 %v4247, %v4424
    %v4467 = vadd.f32 %v4318, %v4428
    %v4468 = vadd.f32 %v4320, %v4432
    %v4469 = vadd.f32 %v4391, %v4436
    %v4470 = vadd.f32 %v4393, %v4440
    %v4471 = vadd.f32 %v4251, %v4420
    %v4472 = vadd.f32 %v4253, %v4424
    %v4473 = vadd.f32 %v4324, %v4428
    %v4474 = vadd.f32 %v4326, %v4432
    %v4475 = vadd.f32 %v4397, %v4436
    %v4476 = vadd.f32 %v4399, %v4440
    %v4477 = vadd.f32 %v4255, %v4420
    %v4478 = vadd.f32 %v4257, %v4424
    %v4479 = vadd.f32 %v4328, %v4428
    %v4480 = vadd.f32 %v4330, %v4432
    %v4481 = vadd.f32 %v4401, %v4436
    %v4482 = vadd.f32 %v4403, %v4440
    %v4483 = vadd.f32 %v4261, %v4420
    %v4484 = vadd.f32 %v4263, %v4424
    %v4485 = vadd.f32 %v4334, %v4428
    %v4486 = vadd.f32 %v4336, %v4432
    %v4487 = vadd.f32 %v4407, %v4436
    %v4488 = vadd.f32 %v4409, %v4440
    %v4489 = vadd.f32 %v4265, %v4420
    %v4490 = vadd.f32 %v4267, %v4424
    %v4491 = vadd.f32 %v4338, %v4428
    %v4492 = vadd.f32 %v4340, %v4432
    %v4493 = vadd.f32 %v4411, %v4436
    %v4494 = vadd.f32 %v4413, %v4440
    %v4495 = vmax.f32 %v4447, 0.0
    %v4496 = vmax.f32 %v4448, 0.0
    %v4497 = vmax.f32 %v4449, 0.0
    %v4498 = vmax.f32 %v4450, 0.0
    %v4499 = vmax.f32 %v4451, 0.0
    %v4500 = vmax.f32 %v4452, 0.0
    %v4501 = vmax.f32 %v4453, 0.0
    %v4502 = vmax.f32 %v4454, 0.0
    %v4503 = vmax.f32 %v4455, 0.0
    %v4504 = vmax.f32 %v4456, 0.0
    %v4505 = vmax.f32 %v4457, 0.0
    %v4506 = vmax.f32 %v4458, 0.0
    %v4507 = vmax.f32 %v4459, 0.0
    %v4508 = vmax.f32 %v4460, 0.0
    %v4509 = vmax.f32 %v4461, 0.0
    %v4510 = vmax.f32 %v4462, 0.0
    %v4511 = vmax.f32 %v4463, 0.0
    %v4512 = vmax.f32 %v4464, 0.0
    %v4513 = vmax.f32 %v4465, 0.0
    %v4514 = vmax.f32 %v4466, 0.0
    %v4515 = vmax.f32 %v4467, 0.0
    %v4516 = vmax.f32 %v4468, 0.0
    %v4517 = vmax.f32 %v4469, 0.0
    %v4518 = vmax.f32 %v4470, 0.0
    %v4519 = vmax.f32 %v4471, 0.0
    %v4520 = vmax.f32 %v4472, 0.0
    %v4521 = vmax.f32 %v4473, 0.0
    %v4522 = vmax.f32 %v4474, 0.0
    %v4523 = vmax.f32 %v4475, 0.0
    %v4524 = vmax.f32 %v4476, 0.0
    %v4525 = vmax.f32 %v4477, 0.0
    %v4526 = vmax.f32 %v4478, 0.0
    %v4527 = vmax.f32 %v4479, 0.0
    %v4528 = vmax.f32 %v4480, 0.0
    %v4529 = vmax.f32 %v4481, 0.0
    %v4530 = vmax.f32 %v4482, 0.0
    %v4531 = vmax.f32 %v4483, 0.0
    %v4532 = vmax.f32 %v4484, 0.0
    %v4533 = vmax.f32 %v4485, 0.0
    %v4534 = vmax.f32 %v4486, 0.0
    %v4535 = vmax.f32 %v4487, 0.0
    %v4536 = vmax.f32 %v4488, 0.0
    %v4537 = vmax.f32 %v4489, 0.0
    %v4538 = vmax.f32 %v4490, 0.0
    %v4539 = vmax.f32 %v4491, 0.0
    %v4540 = vmax.f32 %v4492, 0.0
    %v4541 = vmax.f32 %v4493, 0.0
    %v4542 = vmax.f32 %v4494, 0.0
    %v4543 = vpack.c.bf16 %v4501, %v4495
    %v4544 = vpack.c.bf16 %v4502, %v4496
    %v4545 = vpack.c.bf16 %v4503, %v4497
    %v4546 = vpack.c.bf16 %v4504, %v4498
    %v4547 = vpack.c.bf16 %v4505, %v4499
    %v4548 = vpack.c.bf16 %v4506, %v4500
    %v4549 = vpack.c.bf16 %v4513, %v4507
    %v4550 = vpack.c.bf16 %v4514, %v4508
    %v4551 = vpack.c.bf16 %v4515, %v4509
    %v4552 = vpack.c.bf16 %v4516, %v4510
    %v4553 = vpack.c.bf16 %v4517, %v4511
    %v4554 = vpack.c.bf16 %v4518, %v4512
    %v4555 = vpack.c.bf16 %v4525, %v4519
    %v4556 = vpack.c.bf16 %v4526, %v4520
    %v4557 = vpack.c.bf16 %v4527, %v4521
    %v4558 = vpack.c.bf16 %v4528, %v4522
    %v4559 = vpack.c.bf16 %v4529, %v4523
    %v4560 = vpack.c.bf16 %v4530, %v4524
    %v4561 = vpack.c.bf16 %v4537, %v4531
    %v4562 = vpack.c.bf16 %v4538, %v4532
    %v4563 = vpack.c.bf16 %v4539, %v4533
    %v4564 = vpack.c.bf16 %v4540, %v4534
    %v4565 = vpack.c.bf16 %v4541, %v4535
    %v4566 = vpack.c.bf16 %v4542, %v4536
    %v4567 = vld [vmem:[#allocation16] sm:$0xff]
    %v4568 = vld [vmem:[#allocation16 + $0x8] sm:$0xff]
    %v4569 = vld [vmem:[#allocation16 + $0x10] sm:$0xff]
    %v4570 = vld [vmem:[#allocation16 + $0x18] sm:$0xff]
    %v4571 = vld [vmem:[#allocation16 + $0x20] sm:$0xff]
    %v4572 = vld [vmem:[#allocation16 + $0x28] sm:$0xff]
    %v4573 = vld [vmem:[#allocation16 + $0x30] sm:$0xff]
    %v4574 = vld [vmem:[#allocation16 + $0x38] sm:$0xff]
    %v4575 = vld [vmem:[#allocation16 + $0x40] sm:$0xff]
    %v4576 = vld [vmem:[#allocation16 + $0x48] sm:$0xff]
    %v4577 = vld [vmem:[#allocation16 + $0x50] sm:$0xff]
    %v4578 = vld [vmem:[#allocation16 + $0x58] sm:$0xff]
    %v4579 = vld [vmem:[#allocation16 + $0x60] sm:$0xff]
    %v4580 = vld [vmem:[#allocation16 + $0x68] sm:$0xff]
    %v4581 = vld [vmem:[#allocation16 + $0x70] sm:$0xff]
    %v4582 = vld [vmem:[#allocation16 + $0x78] sm:$0xff]
    %v4583 = vld [vmem:[#allocation16 + $0x80] sm:$0xff]
    %v4584 = vld [vmem:[#allocation16 + $0x88] sm:$0xff]
    %v4585 = vld [vmem:[#allocation16 + $0x90] sm:$0xff]
    %v4586 = vld [vmem:[#allocation16 + $0x98] sm:$0xff]
    %v4587 = vld [vmem:[#allocation16 + $0xa0] sm:$0xff]
    %v4588 = vld [vmem:[#allocation16 + $0xa8] sm:$0xff]
    %v4589 = vld [vmem:[#allocation16 + $0xb0] sm:$0xff]
    %v4590 = vld [vmem:[#allocation16 + $0xb8] sm:$0xff]
    %v4591 = vld [vmem:[#allocation16 + $0xc0] sm:$0xff]
    %v4592 = vld [vmem:[#allocation16 + $0xc8] sm:$0xff]
    %v4593 = vld [vmem:[#allocation16 + $0xd0] sm:$0xff]
    %v4594 = vld [vmem:[#allocation16 + $0xd8] sm:$0xff]
    %v4595 = vld [vmem:[#allocation16 + $0xe0] sm:$0xff]
    %v4596 = vld [vmem:[#allocation16 + $0xe8] sm:$0xff]
    %v4597 = vld [vmem:[#allocation16 + $0xf0] sm:$0xff]
    %v4598 = vld [vmem:[#allocation16 + $0xf8] sm:$0xff]
    %v4599 = vld [vmem:[#allocation16 + $0x100] sm:$0xff]
    %v4600 = vld [vmem:[#allocation16 + $0x108] sm:$0xff]
    %v4601 = vld [vmem:[#allocation16 + $0x110] sm:$0xff]
    %v4602 = vld [vmem:[#allocation16 + $0x118] sm:$0xff]
    %v4603 = vld [vmem:[#allocation16 + $0x120] sm:$0xff]
    %v4604 = vld [vmem:[#allocation16 + $0x128] sm:$0xff]
    %v4605 = vld [vmem:[#allocation16 + $0x130] sm:$0xff]
    %v4606 = vld [vmem:[#allocation16 + $0x138] sm:$0xff]
    %v4607 = vld [vmem:[#allocation16 + $0x140] sm:$0xff]
    %v4608 = vld [vmem:[#allocation16 + $0x148] sm:$0xff]
    %v4609 = vld [vmem:[#allocation16 + $0x150] sm:$0xff]
    %v4610 = vld [vmem:[#allocation16 + $0x158] sm:$0xff]
    %v4611 = vld [vmem:[#allocation16 + $0x160] sm:$0xff]
    %v4612 = vld [vmem:[#allocation16 + $0x168] sm:$0xff]
    %v4613 = vld [vmem:[#allocation16 + $0x170] sm:$0xff]
    %v4614 = vld [vmem:[#allocation16 + $0x178] sm:$0xff]
    %v4615 = vld [vmem:[#allocation16 + $0x180] sm:$0xff]
    %v4616 = vld [vmem:[#allocation16 + $0x188] sm:$0xff]
    %v4617 = vld [vmem:[#allocation16 + $0x190] sm:$0xff]
    %v4618 = vld [vmem:[#allocation16 + $0x198] sm:$0xff]
    %v4619 = vld [vmem:[#allocation16 + $0x1a0] sm:$0xff]
    %v4620 = vld [vmem:[#allocation16 + $0x1a8] sm:$0xff]
    %v4621 = vld [vmem:[#allocation16 + $0x1b0] sm:$0xff]
    %v4622 = vld [vmem:[#allocation16 + $0x1b8] sm:$0xff]
    %v4623 = vld [vmem:[#allocation16 + $0x1c0] sm:$0xff]
    %v4624 = vld [vmem:[#allocation16 + $0x1c8] sm:$0xff]
    %v4625 = vld [vmem:[#allocation16 + $0x1d0] sm:$0xff]
    %v4626 = vld [vmem:[#allocation16 + $0x1d8] sm:$0xff]
    %v4627 = vld [vmem:[#allocation16 + $0x1e0] sm:$0xff]
    %v4628 = vld [vmem:[#allocation16 + $0x1e8] sm:$0xff]
    %v4629 = vld [vmem:[#allocation16 + $0x1f0] sm:$0xff]
    %v4630 = vld [vmem:[#allocation16 + $0x1f8] sm:$0xff]
    %v4631 = vld [vmem:[#allocation16 + $0x200] sm:$0xff]
    %v4632 = vld [vmem:[#allocation16 + $0x208] sm:$0xff]
    %v4633 = vld [vmem:[#allocation16 + $0x210] sm:$0xff]
    %v4634 = vld [vmem:[#allocation16 + $0x218] sm:$0xff]
    %v4635 = vld [vmem:[#allocation16 + $0x220] sm:$0xff]
    %v4636 = vld [vmem:[#allocation16 + $0x228] sm:$0xff]
    %v4637 = vld [vmem:[#allocation16 + $0x230] sm:$0xff]
    %v4638 = vld [vmem:[#allocation16 + $0x238] sm:$0xff]
    %v4639 = vld [vmem:[#allocation16 + $0x240] sm:$0xff]
    %v4640 = vld [vmem:[#allocation16 + $0x248] sm:$0xff]
    %v4641 = vld [vmem:[#allocation16 + $0x250] sm:$0xff]
    %v4642 = vld [vmem:[#allocation16 + $0x258] sm:$0xff]
    %v4643 = vld [vmem:[#allocation16 + $0x260] sm:$0xff]
    %v4644 = vld [vmem:[#allocation16 + $0x268] sm:$0xff]
    %v4645 = vld [vmem:[#allocation16 + $0x270] sm:$0xff]
    %v4646 = vld [vmem:[#allocation16 + $0x278] sm:$0xff]
    %v4647 = vld [vmem:[#allocation16 + $0x280] sm:$0xff]
    %v4648 = vld [vmem:[#allocation16 + $0x288] sm:$0xff]
    %v4649 = vld [vmem:[#allocation16 + $0x290] sm:$0xff]
    %v4650 = vld [vmem:[#allocation16 + $0x298] sm:$0xff]
    %v4651 = vld [vmem:[#allocation16 + $0x2a0] sm:$0xff]
    %v4652 = vld [vmem:[#allocation16 + $0x2a8] sm:$0xff]
    %v4653 = vld [vmem:[#allocation16 + $0x2b0] sm:$0xff]
    %v4654 = vld [vmem:[#allocation16 + $0x2b8] sm:$0xff]
    %v4655 = vld [vmem:[#allocation16 + $0x2c0] sm:$0xff]
    %v4656 = vld [vmem:[#allocation16 + $0x2c8] sm:$0xff]
    %v4657 = vld [vmem:[#allocation16 + $0x2d0] sm:$0xff]
    %v4658 = vld [vmem:[#allocation16 + $0x2d8] sm:$0xff]
    %v4659 = vld [vmem:[#allocation16 + $0x2e0] sm:$0xff]
    %v4660 = vld [vmem:[#allocation16 + $0x2e8] sm:$0xff]
    %v4661 = vld [vmem:[#allocation16 + $0x2f0] sm:$0xff]
    %v4662 = vld [vmem:[#allocation16 + $0x2f8] sm:$0xff]
    %v4663 = vld [vmem:[#allocation16 + $0x300] sm:$0xff]
    %v4664 = vld [vmem:[#allocation16 + $0x308] sm:$0xff]
    %v4665 = vld [vmem:[#allocation16 + $0x310] sm:$0xff]
    %v4666 = vld [vmem:[#allocation16 + $0x318] sm:$0xff]
    %v4667 = vld [vmem:[#allocation16 + $0x320] sm:$0xff]
    %v4668 = vld [vmem:[#allocation16 + $0x328] sm:$0xff]
    %v4669 = vld [vmem:[#allocation16 + $0x330] sm:$0xff]
    %v4670 = vld [vmem:[#allocation16 + $0x338] sm:$0xff]
    %v4671 = vld [vmem:[#allocation16 + $0x340] sm:$0xff]
    %v4672 = vld [vmem:[#allocation16 + $0x348] sm:$0xff]
    %v4673 = vld [vmem:[#allocation16 + $0x350] sm:$0xff]
    %v4674 = vld [vmem:[#allocation16 + $0x358] sm:$0xff]
    %v4675 = vld [vmem:[#allocation16 + $0x360] sm:$0xff]
    %v4676 = vld [vmem:[#allocation16 + $0x368] sm:$0xff]
    %v4677 = vld [vmem:[#allocation16 + $0x370] sm:$0xff]
    %v4678 = vld [vmem:[#allocation16 + $0x378] sm:$0xff]
    %v4679 = vld [vmem:[#allocation16 + $0x380] sm:$0xff]
    %v4680 = vld [vmem:[#allocation16 + $0x388] sm:$0xff]
    %v4681 = vld [vmem:[#allocation16 + $0x390] sm:$0xff]
    %v4682 = vld [vmem:[#allocation16 + $0x398] sm:$0xff]
    %v4683 = vld [vmem:[#allocation16 + $0x3a0] sm:$0xff]
    %v4684 = vld [vmem:[#allocation16 + $0x3a8] sm:$0xff]
    %v4685 = vld [vmem:[#allocation16 + $0x3b0] sm:$0xff]
    %v4686 = vld [vmem:[#allocation16 + $0x3b8] sm:$0xff]
    %v4687 = vld [vmem:[#allocation16 + $0x3c0] sm:$0xff]
    %v4688 = vld [vmem:[#allocation16 + $0x3c8] sm:$0xff]
    %v4689 = vld [vmem:[#allocation16 + $0x3d0] sm:$0xff]
    %v4690 = vld [vmem:[#allocation16 + $0x3d8] sm:$0xff]
    %v4691 = vld [vmem:[#allocation16 + $0x3e0] sm:$0xff]
    %v4692 = vld [vmem:[#allocation16 + $0x3e8] sm:$0xff]
    %v4693 = vld [vmem:[#allocation16 + $0x3f0] sm:$0xff]
    %v4694 = vld [vmem:[#allocation16 + $0x3f8] sm:$0xff]
    %v4695 = vld [vmem:[#allocation16 + $0x400] sm:$0xff]
    %v4696 = vld [vmem:[#allocation16 + $0x408] sm:$0xff]
    %v4697 = vld [vmem:[#allocation16 + $0x410] sm:$0xff]
    %v4698 = vld [vmem:[#allocation16 + $0x418] sm:$0xff]
    %v4699 = vld [vmem:[#allocation16 + $0x420] sm:$0xff]
    %v4700 = vld [vmem:[#allocation16 + $0x428] sm:$0xff]
    %v4701 = vld [vmem:[#allocation16 + $0x430] sm:$0xff]
    %v4702 = vld [vmem:[#allocation16 + $0x438] sm:$0xff]
    %v4703 = vld [vmem:[#allocation16 + $0x440] sm:$0xff]
    %v4704 = vld [vmem:[#allocation16 + $0x448] sm:$0xff]
    %v4705 = vld [vmem:[#allocation16 + $0x450] sm:$0xff]
    %v4706 = vld [vmem:[#allocation16 + $0x458] sm:$0xff]
    %v4707 = vld [vmem:[#allocation16 + $0x460] sm:$0xff]
    %v4708 = vld [vmem:[#allocation16 + $0x468] sm:$0xff]
    %v4709 = vld [vmem:[#allocation16 + $0x470] sm:$0xff]
    %v4710 = vld [vmem:[#allocation16 + $0x478] sm:$0xff]
    %v4711 = vld [vmem:[#allocation16 + $0x480] sm:$0xff]
    %v4712 = vld [vmem:[#allocation16 + $0x488] sm:$0xff]
    %v4713 = vld [vmem:[#allocation16 + $0x490] sm:$0xff]
    %v4714 = vld [vmem:[#allocation16 + $0x498] sm:$0xff]
    %v4715 = vld [vmem:[#allocation16 + $0x4a0] sm:$0xff]
    %v4716 = vld [vmem:[#allocation16 + $0x4a8] sm:$0xff]
    %v4717 = vld [vmem:[#allocation16 + $0x4b0] sm:$0xff]
    %v4718 = vld [vmem:[#allocation16 + $0x4b8] sm:$0xff]
    %v4719 = vld [vmem:[#allocation16 + $0x4c0] sm:$0xff]
    %v4720 = vld [vmem:[#allocation16 + $0x4c8] sm:$0xff]
    %v4721 = vld [vmem:[#allocation16 + $0x4d0] sm:$0xff]
    %v4722 = vld [vmem:[#allocation16 + $0x4d8] sm:$0xff]
    %v4723 = vld [vmem:[#allocation16 + $0x4e0] sm:$0xff]
    %v4724 = vld [vmem:[#allocation16 + $0x4e8] sm:$0xff]
    %v4725 = vld [vmem:[#allocation16 + $0x4f0] sm:$0xff]
    %v4726 = vld [vmem:[#allocation16 + $0x4f8] sm:$0xff]
    %v4727 = vld [vmem:[#allocation16 + $0x500] sm:$0xff]
    %v4728 = vld [vmem:[#allocation16 + $0x508] sm:$0xff]
    %v4729 = vld [vmem:[#allocation16 + $0x510] sm:$0xff]
    %v4730 = vld [vmem:[#allocation16 + $0x518] sm:$0xff]
    %v4731 = vld [vmem:[#allocation16 + $0x520] sm:$0xff]
    %v4732 = vld [vmem:[#allocation16 + $0x528] sm:$0xff]
    %v4733 = vld [vmem:[#allocation16 + $0x530] sm:$0xff]
    %v4734 = vld [vmem:[#allocation16 + $0x538] sm:$0xff]
    %v4735 = vld [vmem:[#allocation16 + $0x540] sm:$0xff]
    %v4736 = vld [vmem:[#allocation16 + $0x548] sm:$0xff]
    %v4737 = vld [vmem:[#allocation16 + $0x550] sm:$0xff]
    %v4738 = vld [vmem:[#allocation16 + $0x558] sm:$0xff]
    %v4739 = vld [vmem:[#allocation16 + $0x560] sm:$0xff]
    %v4740 = vld [vmem:[#allocation16 + $0x568] sm:$0xff]
    %v4741 = vld [vmem:[#allocation16 + $0x570] sm:$0xff]
    %v4742 = vld [vmem:[#allocation16 + $0x578] sm:$0xff]
    %v4743 = vld [vmem:[#allocation16 + $0x580] sm:$0xff]
    %v4744 = vld [vmem:[#allocation16 + $0x588] sm:$0xff]
    %v4745 = vld [vmem:[#allocation16 + $0x590] sm:$0xff]
    %v4746 = vld [vmem:[#allocation16 + $0x598] sm:$0xff]
    %v4747 = vld [vmem:[#allocation16 + $0x5a0] sm:$0xff]
    %v4748 = vld [vmem:[#allocation16 + $0x5a8] sm:$0xff]
    %v4749 = vld [vmem:[#allocation16 + $0x5b0] sm:$0xff]
    %v4750 = vld [vmem:[#allocation16 + $0x5b8] sm:$0xff]
    %v4751 = vld [vmem:[#allocation16 + $0x5c0] sm:$0xff]
    %v4752 = vld [vmem:[#allocation16 + $0x5c8] sm:$0xff]
    %v4753 = vld [vmem:[#allocation16 + $0x5d0] sm:$0xff]
    %v4754 = vld [vmem:[#allocation16 + $0x5d8] sm:$0xff]
    %v4755 = vld [vmem:[#allocation16 + $0x5e0] sm:$0xff]
    %v4756 = vld [vmem:[#allocation16 + $0x5e8] sm:$0xff]
    %v4757 = vld [vmem:[#allocation16 + $0x5f0] sm:$0xff]
    %v4758 = vld [vmem:[#allocation16 + $0x5f8] sm:$0xff]
    %v4759 = vld [vmem:[#allocation16 + $0x600] sm:$0xff]
    %v4760 = vld [vmem:[#allocation16 + $0x608] sm:$0xff]
    %v4761 = vld [vmem:[#allocation16 + $0x610] sm:$0xff]
    %v4762 = vld [vmem:[#allocation16 + $0x618] sm:$0xff]
    %v4763 = vld [vmem:[#allocation16 + $0x620] sm:$0xff]
    %v4764 = vld [vmem:[#allocation16 + $0x628] sm:$0xff]
    %v4765 = vld [vmem:[#allocation16 + $0x630] sm:$0xff]
    %v4766 = vld [vmem:[#allocation16 + $0x638] sm:$0xff]
    %v4767 = vld [vmem:[#allocation16 + $0x640] sm:$0xff]
    %v4768 = vld [vmem:[#allocation16 + $0x648] sm:$0xff]
    %v4769 = vld [vmem:[#allocation16 + $0x650] sm:$0xff]
    %v4770 = vld [vmem:[#allocation16 + $0x658] sm:$0xff]
    %v4771 = vld [vmem:[#allocation16 + $0x660] sm:$0xff]
    %v4772 = vld [vmem:[#allocation16 + $0x668] sm:$0xff]
    %v4773 = vld [vmem:[#allocation16 + $0x670] sm:$0xff]
    %v4774 = vld [vmem:[#allocation16 + $0x678] sm:$0xff]
    %v4775 = vld [vmem:[#allocation16 + $0x680] sm:$0xff]
    %v4776 = vld [vmem:[#allocation16 + $0x688] sm:$0xff]
    %v4777 = vld [vmem:[#allocation16 + $0x690] sm:$0xff]
    %v4778 = vld [vmem:[#allocation16 + $0x698] sm:$0xff]
    %v4779 = vld [vmem:[#allocation16 + $0x6a0] sm:$0xff]
    %v4780 = vld [vmem:[#allocation16 + $0x6a8] sm:$0xff]
    %v4781 = vld [vmem:[#allocation16 + $0x6b0] sm:$0xff]
    %v4782 = vld [vmem:[#allocation16 + $0x6b8] sm:$0xff]
    %v4783 = vld [vmem:[#allocation16 + $0x6c0] sm:$0xff]
    %v4784 = vld [vmem:[#allocation16 + $0x6c8] sm:$0xff]
    %v4785 = vld [vmem:[#allocation16 + $0x6d0] sm:$0xff]
    %v4786 = vld [vmem:[#allocation16 + $0x6d8] sm:$0xff]
    %v4787 = vld [vmem:[#allocation16 + $0x6e0] sm:$0xff]
    %v4788 = vld [vmem:[#allocation16 + $0x6e8] sm:$0xff]
    %v4789 = vld [vmem:[#allocation16 + $0x6f0] sm:$0xff]
    %v4790 = vld [vmem:[#allocation16 + $0x6f8] sm:$0xff]
    %v4791 = vld [vmem:[#allocation16 + $0x700] sm:$0xff]
    %v4792 = vld [vmem:[#allocation16 + $0x708] sm:$0xff]
    %v4793 = vld [vmem:[#allocation16 + $0x710] sm:$0xff]
    %v4794 = vld [vmem:[#allocation16 + $0x718] sm:$0xff]
    %v4795 = vld [vmem:[#allocation16 + $0x720] sm:$0xff]
    %v4796 = vld [vmem:[#allocation16 + $0x728] sm:$0xff]
    %v4797 = vld [vmem:[#allocation16 + $0x730] sm:$0xff]
    %v4798 = vld [vmem:[#allocation16 + $0x738] sm:$0xff]
    %v4799 = vld [vmem:[#allocation16 + $0x740] sm:$0xff]
    %v4800 = vld [vmem:[#allocation16 + $0x748] sm:$0xff]
    %v4801 = vld [vmem:[#allocation16 + $0x750] sm:$0xff]
    %v4802 = vld [vmem:[#allocation16 + $0x758] sm:$0xff]
    %v4803 = vld [vmem:[#allocation16 + $0x760] sm:$0xff]
    %v4804 = vld [vmem:[#allocation16 + $0x768] sm:$0xff]
    %v4805 = vld [vmem:[#allocation16 + $0x770] sm:$0xff]
    %v4806 = vld [vmem:[#allocation16 + $0x778] sm:$0xff]
    %v4807 = vld [vmem:[#allocation16 + $0x780] sm:$0xff]
    %v4808 = vld [vmem:[#allocation16 + $0x788] sm:$0xff]
    %v4809 = vld [vmem:[#allocation16 + $0x790] sm:$0xff]
    %v4810 = vld [vmem:[#allocation16 + $0x798] sm:$0xff]
    %v4811 = vld [vmem:[#allocation16 + $0x7a0] sm:$0xff]
    %v4812 = vld [vmem:[#allocation16 + $0x7a8] sm:$0xff]
    %v4813 = vld [vmem:[#allocation16 + $0x7b0] sm:$0xff]
    %v4814 = vld [vmem:[#allocation16 + $0x7b8] sm:$0xff]
    %v4815 = vld [vmem:[#allocation16 + $0x7c0] sm:$0xff]
    %v4816 = vld [vmem:[#allocation16 + $0x7c8] sm:$0xff]
    %v4817 = vld [vmem:[#allocation16 + $0x7d0] sm:$0xff]
    %v4818 = vld [vmem:[#allocation16 + $0x7d8] sm:$0xff]
    %v4819 = vld [vmem:[#allocation16 + $0x7e0] sm:$0xff]
    %v4820 = vld [vmem:[#allocation16 + $0x7e8] sm:$0xff]
    %v4821 = vld [vmem:[#allocation16 + $0x7f0] sm:$0xff]
    %v4822 = vld [vmem:[#allocation16 + $0x7f8] sm:$0xff]
    %v4823 = vld [vmem:[#allocation16 + $0x800] sm:$0xff]
    %v4824 = vld [vmem:[#allocation16 + $0x808] sm:$0xff]
    %v4825 = vld [vmem:[#allocation16 + $0x810] sm:$0xff]
    %v4826 = vld [vmem:[#allocation16 + $0x818] sm:$0xff]
    %v4827 = vld [vmem:[#allocation16 + $0x820] sm:$0xff]
    %v4828 = vld [vmem:[#allocation16 + $0x828] sm:$0xff]
    %v4829 = vld [vmem:[#allocation16 + $0x830] sm:$0xff]
    %v4830 = vld [vmem:[#allocation16 + $0x838] sm:$0xff]
    %v4831 = vld [vmem:[#allocation16 + $0x840] sm:$0xff]
    %v4832 = vld [vmem:[#allocation16 + $0x848] sm:$0xff]
    %v4833 = vld [vmem:[#allocation16 + $0x850] sm:$0xff]
    %v4834 = vld [vmem:[#allocation16 + $0x858] sm:$0xff]
    %v4835 = vld [vmem:[#allocation16 + $0x860] sm:$0xff]
    %v4836 = vld [vmem:[#allocation16 + $0x868] sm:$0xff]
    %v4837 = vld [vmem:[#allocation16 + $0x870] sm:$0xff]
    %v4838 = vld [vmem:[#allocation16 + $0x878] sm:$0xff]
    %v4839 = vld [vmem:[#allocation16 + $0x880] sm:$0xff]
    %v4840 = vld [vmem:[#allocation16 + $0x888] sm:$0xff]
    %v4841 = vld [vmem:[#allocation16 + $0x890] sm:$0xff]
    %v4842 = vld [vmem:[#allocation16 + $0x898] sm:$0xff]
    %v4843 = vld [vmem:[#allocation16 + $0x8a0] sm:$0xff]
    %v4844 = vld [vmem:[#allocation16 + $0x8a8] sm:$0xff]
    %v4845 = vld [vmem:[#allocation16 + $0x8b0] sm:$0xff]
    %v4846 = vld [vmem:[#allocation16 + $0x8b8] sm:$0xff]
    %v4847 = vld [vmem:[#allocation16 + $0x8c0] sm:$0xff]
    %v4848 = vld [vmem:[#allocation16 + $0x8c8] sm:$0xff]
    %v4849 = vld [vmem:[#allocation16 + $0x8d0] sm:$0xff]
    %v4850 = vld [vmem:[#allocation16 + $0x8d8] sm:$0xff]
    %v4851 = vld [vmem:[#allocation16 + $0x8e0] sm:$0xff]
    %v4852 = vld [vmem:[#allocation16 + $0x8e8] sm:$0xff]
    %v4853 = vld [vmem:[#allocation16 + $0x8f0] sm:$0xff]
    %v4854 = vld [vmem:[#allocation16 + $0x8f8] sm:$0xff]
    %v4855 = vld [vmem:[#allocation17] sm:$0x3f]
    %v4857 = vlaneseq
    %v4858 = vshrl.u32 %v4857, 7
    %v4859 = vsub.s32 0, %v4858
    %v4860 = vrot.slane %v4855, %v4859
    %v4861 = vlaneseq
    %v4862 = vshrl.u32 %v4861, 7
    %v4863 = vsub.s32 1, %v4862
    %v4864 = vrot.slane %v4855, %v4863
    %v4865 = vlaneseq
    %v4866 = vshrl.u32 %v4865, 7
    %v4867 = vsub.s32 2, %v4866
    %v4868 = vrot.slane %v4855, %v4867
    %v4869 = vlaneseq
    %v4870 = vshrl.u32 %v4869, 7
    %v4871 = vsub.s32 3, %v4870
    %v4872 = vrot.slane %v4855, %v4871
    %v4873 = vlaneseq
    %v4874 = vshrl.u32 %v4873, 7
    %v4875 = vsub.s32 4, %v4874
    %v4876 = vrot.slane %v4855, %v4875
    %v4877 = vlaneseq
    %v4878 = vshrl.u32 %v4877, 7
    %v4879 = vsub.s32 5, %v4878
    %v4880 = vrot.slane %v4855, %v4879
    %v5175 = vunpack.c.l.b16 %v4567
    %v5176 = vunpack.c.h.b16 %v4567
    %v5177 = vunpack.c.l.b16 %v4568
    %v5178 = vunpack.c.h.b16 %v4568
    %v5179 = vunpack.c.l.b16 %v4569
    %v5180 = vunpack.c.h.b16 %v4569
    %v5181 = vunpack.c.l.b16 %v4570
    %v5182 = vunpack.c.h.b16 %v4570
    %v5183 = vunpack.c.l.b16 %v4571
    %v5184 = vunpack.c.h.b16 %v4571
    %v5185 = vunpack.c.l.b16 %v4572
    %v5186 = vunpack.c.h.b16 %v4572
    %v5187 = vunpack.c.l.b16 %v4573
    %v5188 = vunpack.c.h.b16 %v4573
    %v5189 = vunpack.c.l.b16 %v4574
    %v5190 = vunpack.c.h.b16 %v4574
    %v5191 = vunpack.c.l.b16 %v4575
    %v5192 = vunpack.c.h.b16 %v4575
    %v5193 = vunpack.c.l.b16 %v4576
    %v5194 = vunpack.c.h.b16 %v4576
    %v5195 = vunpack.c.l.b16 %v4577
    %v5196 = vunpack.c.h.b16 %v4577
    %v5197 = vunpack.c.l.b16 %v4578
    %v5198 = vunpack.c.h.b16 %v4578
    %v5199 = vunpack.c.l.b16 %v4579
    %v5200 = vunpack.c.h.b16 %v4579
    %v5201 = vunpack.c.l.b16 %v4580
    %v5202 = vunpack.c.h.b16 %v4580
    %v5203 = vunpack.c.l.b16 %v4581
    %v5204 = vunpack.c.h.b16 %v4581
    %v5205 = vunpack.c.l.b16 %v4582
    %v5206 = vunpack.c.h.b16 %v4582
    %v5207 = vunpack.c.l.b16 %v4583
    %v5208 = vunpack.c.h.b16 %v4583
    %v5209 = vunpack.c.l.b16 %v4584
    %v5210 = vunpack.c.h.b16 %v4584
    %v5211 = vunpack.c.l.b16 %v4585
    %v5212 = vunpack.c.h.b16 %v4585
    %v5213 = vunpack.c.l.b16 %v4586
    %v5214 = vunpack.c.h.b16 %v4586
    %v5215 = vunpack.c.l.b16 %v4587
    %v5216 = vunpack.c.h.b16 %v4587
    %v5217 = vunpack.c.l.b16 %v4588
    %v5218 = vunpack.c.h.b16 %v4588
    %v5219 = vunpack.c.l.b16 %v4589
    %v5220 = vunpack.c.h.b16 %v4589
    %v5221 = vunpack.c.l.b16 %v4590
    %v5222 = vunpack.c.h.b16 %v4590
    %v5223 = vunpack.c.l.b16 %v4591
    %v5224 = vunpack.c.h.b16 %v4591
    %v5225 = vunpack.c.l.b16 %v4592
    %v5226 = vunpack.c.h.b16 %v4592
    %v5227 = vunpack.c.l.b16 %v4593
    %v5228 = vunpack.c.h.b16 %v4593
    %v5229 = vunpack.c.l.b16 %v4594
    %v5230 = vunpack.c.h.b16 %v4594
    %v5231 = vunpack.c.l.b16 %v4595
    %v5232 = vunpack.c.h.b16 %v4595
    %v5233 = vunpack.c.l.b16 %v4596
    %v5234 = vunpack.c.h.b16 %v4596
    %v5235 = vunpack.c.l.b16 %v4597
    %v5236 = vunpack.c.h.b16 %v4597
    %v5237 = vunpack.c.l.b16 %v4598
    %v5238 = vunpack.c.h.b16 %v4598
    %v5239 = vunpack.c.l.b16 %v4599
    %v5240 = vunpack.c.h.b16 %v4599
    %v5241 = vunpack.c.l.b16 %v4600
    %v5242 = vunpack.c.h.b16 %v4600
    %v5243 = vunpack.c.l.b16 %v4601
    %v5244 = vunpack.c.h.b16 %v4601
    %v5245 = vunpack.c.l.b16 %v4602
    %v5246 = vunpack.c.h.b16 %v4602
    %v5247 = vunpack.c.l.b16 %v4603
    %v5248 = vunpack.c.h.b16 %v4603
    %v5249 = vunpack.c.l.b16 %v4604
    %v5250 = vunpack.c.h.b16 %v4604
    %v5251 = vunpack.c.l.b16 %v4605
    %v5252 = vunpack.c.h.b16 %v4605
    %v5253 = vunpack.c.l.b16 %v4606
    %v5254 = vunpack.c.h.b16 %v4606
    %v5255 = vunpack.c.l.b16 %v4607
    %v5256 = vunpack.c.h.b16 %v4607
    %v5257 = vunpack.c.l.b16 %v4608
    %v5258 = vunpack.c.h.b16 %v4608
    %v5259 = vunpack.c.l.b16 %v4609
    %v5260 = vunpack.c.h.b16 %v4609
    %v5261 = vunpack.c.l.b16 %v4610
    %v5262 = vunpack.c.h.b16 %v4610
    %v5263 = vunpack.c.l.b16 %v4611
    %v5264 = vunpack.c.h.b16 %v4611
    %v5265 = vunpack.c.l.b16 %v4612
    %v5266 = vunpack.c.h.b16 %v4612
    %v5267 = vunpack.c.l.b16 %v4613
    %v5268 = vunpack.c.h.b16 %v4613
    %v5269 = vunpack.c.l.b16 %v4614
    %v5270 = vunpack.c.h.b16 %v4614
    %v5271 = vunpack.c.l.b16 %v4615
    %v5272 = vunpack.c.h.b16 %v4615
    %v5273 = vunpack.c.l.b16 %v4616
    %v5274 = vunpack.c.h.b16 %v4616
    %v5275 = vunpack.c.l.b16 %v4617
    %v5276 = vunpack.c.h.b16 %v4617
    %v5277 = vunpack.c.l.b16 %v4618
    %v5278 = vunpack.c.h.b16 %v4618
    %v5279 = vunpack.c.l.b16 %v4619
    %v5280 = vunpack.c.h.b16 %v4619
    %v5281 = vunpack.c.l.b16 %v4620
    %v5282 = vunpack.c.h.b16 %v4620
    %v5283 = vunpack.c.l.b16 %v4621
    %v5284 = vunpack.c.h.b16 %v4621
    %v5285 = vunpack.c.l.b16 %v4622
    %v5286 = vunpack.c.h.b16 %v4622
    %v5287 = vunpack.c.l.b16 %v4623
    %v5288 = vunpack.c.h.b16 %v4623
    %v5289 = vunpack.c.l.b16 %v4624
    %v5290 = vunpack.c.h.b16 %v4624
    %v5291 = vunpack.c.l.b16 %v4625
    %v5292 = vunpack.c.h.b16 %v4625
    %v5293 = vunpack.c.l.b16 %v4626
    %v5294 = vunpack.c.h.b16 %v4626
    %v5295 = vunpack.c.l.b16 %v4627
    %v5296 = vunpack.c.h.b16 %v4627
    %v5297 = vunpack.c.l.b16 %v4628
    %v5298 = vunpack.c.h.b16 %v4628
    %v5299 = vunpack.c.l.b16 %v4629
    %v5300 = vunpack.c.h.b16 %v4629
    %v5301 = vunpack.c.l.b16 %v4630
    %v5302 = vunpack.c.h.b16 %v4630
    %v5303 = vunpack.c.l.b16 %v4631
    %v5304 = vunpack.c.h.b16 %v4631
    %v5305 = vunpack.c.l.b16 %v4632
    %v5306 = vunpack.c.h.b16 %v4632
    %v5307 = vunpack.c.l.b16 %v4633
    %v5308 = vunpack.c.h.b16 %v4633
    %v5309 = vunpack.c.l.b16 %v4634
    %v5310 = vunpack.c.h.b16 %v4634
    %v5311 = vunpack.c.l.b16 %v4635
    %v5312 = vunpack.c.h.b16 %v4635
    %v5313 = vunpack.c.l.b16 %v4636
    %v5314 = vunpack.c.h.b16 %v4636
    %v5315 = vunpack.c.l.b16 %v4637
    %v5316 = vunpack.c.h.b16 %v4637
    %v5317 = vunpack.c.l.b16 %v4638
    %v5318 = vunpack.c.h.b16 %v4638
    %v5319 = vunpack.c.l.b16 %v4639
    %v5320 = vunpack.c.h.b16 %v4639
    %v5321 = vunpack.c.l.b16 %v4640
    %v5322 = vunpack.c.h.b16 %v4640
    %v5323 = vunpack.c.l.b16 %v4641
    %v5324 = vunpack.c.h.b16 %v4641
    %v5325 = vunpack.c.l.b16 %v4642
    %v5326 = vunpack.c.h.b16 %v4642
    %v5327 = vunpack.c.l.b16 %v4643
    %v5328 = vunpack.c.h.b16 %v4643
    %v5329 = vunpack.c.l.b16 %v4644
    %v5330 = vunpack.c.h.b16 %v4644
    %v5331 = vunpack.c.l.b16 %v4645
    %v5332 = vunpack.c.h.b16 %v4645
    %v5333 = vunpack.c.l.b16 %v4646
    %v5334 = vunpack.c.h.b16 %v4646
    %v5335 = vunpack.c.l.b16 %v4647
    %v5336 = vunpack.c.h.b16 %v4647
    %v5337 = vunpack.c.l.b16 %v4648
    %v5338 = vunpack.c.h.b16 %v4648
    %v5339 = vunpack.c.l.b16 %v4649
    %v5340 = vunpack.c.h.b16 %v4649
    %v5341 = vunpack.c.l.b16 %v4650
    %v5342 = vunpack.c.h.b16 %v4650
    %v5343 = vunpack.c.l.b16 %v4651
    %v5344 = vunpack.c.h.b16 %v4651
    %v5345 = vunpack.c.l.b16 %v4652
    %v5346 = vunpack.c.h.b16 %v4652
    %v5347 = vunpack.c.l.b16 %v4653
    %v5348 = vunpack.c.h.b16 %v4653
    %v5349 = vunpack.c.l.b16 %v4654
    %v5350 = vunpack.c.h.b16 %v4654
    %v5351 = vunpack.c.l.b16 %v4655
    %v5352 = vunpack.c.h.b16 %v4655
    %v5353 = vunpack.c.l.b16 %v4656
    %v5354 = vunpack.c.h.b16 %v4656
    %v5355 = vunpack.c.l.b16 %v4657
    %v5356 = vunpack.c.h.b16 %v4657
    %v5357 = vunpack.c.l.b16 %v4658
    %v5358 = vunpack.c.h.b16 %v4658
    %v5359 = vunpack.c.l.b16 %v4659
    %v5360 = vunpack.c.h.b16 %v4659
    %v5361 = vunpack.c.l.b16 %v4660
    %v5362 = vunpack.c.h.b16 %v4660
    %v5363 = vunpack.c.l.b16 %v4661
    %v5364 = vunpack.c.h.b16 %v4661
    %v5365 = vunpack.c.l.b16 %v4662
    %v5366 = vunpack.c.h.b16 %v4662
    %v5367 = vunpack.c.l.b16 %v4663
    %v5368 = vunpack.c.h.b16 %v4663
    %v5369 = vunpack.c.l.b16 %v4664
    %v5370 = vunpack.c.h.b16 %v4664
    %v5371 = vunpack.c.l.b16 %v4665
    %v5372 = vunpack.c.h.b16 %v4665
    %v5373 = vunpack.c.l.b16 %v4666
    %v5374 = vunpack.c.h.b16 %v4666
    %v5375 = vunpack.c.l.b16 %v4667
    %v5376 = vunpack.c.h.b16 %v4667
    %v5377 = vunpack.c.l.b16 %v4668
    %v5378 = vunpack.c.h.b16 %v4668
    %v5379 = vunpack.c.l.b16 %v4669
    %v5380 = vunpack.c.h.b16 %v4669
    %v5381 = vunpack.c.l.b16 %v4670
    %v5382 = vunpack.c.h.b16 %v4670
    %v5383 = vunpack.c.l.b16 %v4671
    %v5384 = vunpack.c.h.b16 %v4671
    %v5385 = vunpack.c.l.b16 %v4672
    %v5386 = vunpack.c.h.b16 %v4672
    %v5387 = vunpack.c.l.b16 %v4673
    %v5388 = vunpack.c.h.b16 %v4673
    %v5389 = vunpack.c.l.b16 %v4674
    %v5390 = vunpack.c.h.b16 %v4674
    %v5391 = vunpack.c.l.b16 %v4675
    %v5392 = vunpack.c.h.b16 %v4675
    %v5393 = vunpack.c.l.b16 %v4676
    %v5394 = vunpack.c.h.b16 %v4676
    %v5395 = vunpack.c.l.b16 %v4677
    %v5396 = vunpack.c.h.b16 %v4677
    %v5397 = vunpack.c.l.b16 %v4678
    %v5398 = vunpack.c.h.b16 %v4678
    %v5399 = vunpack.c.l.b16 %v4679
    %v5400 = vunpack.c.h.b16 %v4679
    %v5401 = vunpack.c.l.b16 %v4680
    %v5402 = vunpack.c.h.b16 %v4680
    %v5403 = vunpack.c.l.b16 %v4681
    %v5404 = vunpack.c.h.b16 %v4681
    %v5405 = vunpack.c.l.b16 %v4682
    %v5406 = vunpack.c.h.b16 %v4682
    %v5407 = vunpack.c.l.b16 %v4683
    %v5408 = vunpack.c.h.b16 %v4683
    %v5409 = vunpack.c.l.b16 %v4684
    %v5410 = vunpack.c.h.b16 %v4684
    %v5411 = vunpack.c.l.b16 %v4685
    %v5412 = vunpack.c.h.b16 %v4685
    %v5413 = vunpack.c.l.b16 %v4686
    %v5414 = vunpack.c.h.b16 %v4686
    %v5415 = vunpack.c.l.b16 %v4687
    %v5416 = vunpack.c.h.b16 %v4687
    %v5417 = vunpack.c.l.b16 %v4688
    %v5418 = vunpack.c.h.b16 %v4688
    %v5419 = vunpack.c.l.b16 %v4689
    %v5420 = vunpack.c.h.b16 %v4689
    %v5421 = vunpack.c.l.b16 %v4690
    %v5422 = vunpack.c.h.b16 %v4690
    %v5423 = vunpack.c.l.b16 %v4691
    %v5424 = vunpack.c.h.b16 %v4691
    %v5425 = vunpack.c.l.b16 %v4692
    %v5426 = vunpack.c.h.b16 %v4692
    %v5427 = vunpack.c.l.b16 %v4693
    %v5428 = vunpack.c.h.b16 %v4693
    %v5429 = vunpack.c.l.b16 %v4694
    %v5430 = vunpack.c.h.b16 %v4694
    %v5431 = vunpack.c.l.b16 %v4695
    %v5432 = vunpack.c.h.b16 %v4695
    %v5433 = vunpack.c.l.b16 %v4696
    %v5434 = vunpack.c.h.b16 %v4696
    %v5435 = vunpack.c.l.b16 %v4697
    %v5436 = vunpack.c.h.b16 %v4697
    %v5437 = vunpack.c.l.b16 %v4698
    %v5438 = vunpack.c.h.b16 %v4698
    %v5439 = vunpack.c.l.b16 %v4699
    %v5440 = vunpack.c.h.b16 %v4699
    %v5441 = vunpack.c.l.b16 %v4700
    %v5442 = vunpack.c.h.b16 %v4700
    %v5443 = vunpack.c.l.b16 %v4701
    %v5444 = vunpack.c.h.b16 %v4701
    %v5445 = vunpack.c.l.b16 %v4702
    %v5446 = vunpack.c.h.b16 %v4702
    %v5447 = vunpack.c.l.b16 %v4703
    %v5448 = vunpack.c.h.b16 %v4703
    %v5449 = vunpack.c.l.b16 %v4704
    %v5450 = vunpack.c.h.b16 %v4704
    %v5451 = vunpack.c.l.b16 %v4705
    %v5452 = vunpack.c.h.b16 %v4705
    %v5453 = vunpack.c.l.b16 %v4706
    %v5454 = vunpack.c.h.b16 %v4706
    %v5455 = vunpack.c.l.b16 %v4707
    %v5456 = vunpack.c.h.b16 %v4707
    %v5457 = vunpack.c.l.b16 %v4708
    %v5458 = vunpack.c.h.b16 %v4708
    %v5459 = vunpack.c.l.b16 %v4709
    %v5460 = vunpack.c.h.b16 %v4709
    %v5461 = vunpack.c.l.b16 %v4710
    %v5462 = vunpack.c.h.b16 %v4710
    %v5463 = vunpack.c.l.b16 %v4711
    %v5464 = vunpack.c.h.b16 %v4711
    %v5465 = vunpack.c.l.b16 %v4712
    %v5466 = vunpack.c.h.b16 %v4712
    %v5467 = vunpack.c.l.b16 %v4713
    %v5468 = vunpack.c.h.b16 %v4713
    %v5469 = vunpack.c.l.b16 %v4714
    %v5470 = vunpack.c.h.b16 %v4714
    %v5471 = vunpack.c.l.b16 %v4715
    %v5472 = vunpack.c.h.b16 %v4715
    %v5473 = vunpack.c.l.b16 %v4716
    %v5474 = vunpack.c.h.b16 %v4716
    %v5475 = vunpack.c.l.b16 %v4717
    %v5476 = vunpack.c.h.b16 %v4717
    %v5477 = vunpack.c.l.b16 %v4718
    %v5478 = vunpack.c.h.b16 %v4718
    %v5479 = vunpack.c.l.b16 %v4719
    %v5480 = vunpack.c.h.b16 %v4719
    %v5481 = vunpack.c.l.b16 %v4720
    %v5482 = vunpack.c.h.b16 %v4720
    %v5483 = vunpack.c.l.b16 %v4721
    %v5484 = vunpack.c.h.b16 %v4721
    %v5485 = vunpack.c.l.b16 %v4722
    %v5486 = vunpack.c.h.b16 %v4722
    %v5487 = vunpack.c.l.b16 %v4723
    %v5488 = vunpack.c.h.b16 %v4723
    %v5489 = vunpack.c.l.b16 %v4724
    %v5490 = vunpack.c.h.b16 %v4724
    %v5491 = vunpack.c.l.b16 %v4725
    %v5492 = vunpack.c.h.b16 %v4725
    %v5493 = vunpack.c.l.b16 %v4726
    %v5494 = vunpack.c.h.b16 %v4726
    %v5495 = vunpack.c.l.b16 %v4727
    %v5496 = vunpack.c.h.b16 %v4727
    %v5497 = vunpack.c.l.b16 %v4728
    %v5498 = vunpack.c.h.b16 %v4728
    %v5499 = vunpack.c.l.b16 %v4729
    %v5500 = vunpack.c.h.b16 %v4729
    %v5501 = vunpack.c.l.b16 %v4730
    %v5502 = vunpack.c.h.b16 %v4730
    %v5503 = vunpack.c.l.b16 %v4731
    %v5504 = vunpack.c.h.b16 %v4731
    %v5505 = vunpack.c.l.b16 %v4732
    %v5506 = vunpack.c.h.b16 %v4732
    %v5507 = vunpack.c.l.b16 %v4733
    %v5508 = vunpack.c.h.b16 %v4733
    %v5509 = vunpack.c.l.b16 %v4734
    %v5510 = vunpack.c.h.b16 %v4734
    %v5511 = vunpack.c.l.b16 %v4735
    %v5512 = vunpack.c.h.b16 %v4735
    %v5513 = vunpack.c.l.b16 %v4736
    %v5514 = vunpack.c.h.b16 %v4736
    %v5515 = vunpack.c.l.b16 %v4737
    %v5516 = vunpack.c.h.b16 %v4737
    %v5517 = vunpack.c.l.b16 %v4738
    %v5518 = vunpack.c.h.b16 %v4738
    %v5519 = vunpack.c.l.b16 %v4739
    %v5520 = vunpack.c.h.b16 %v4739
    %v5521 = vunpack.c.l.b16 %v4740
    %v5522 = vunpack.c.h.b16 %v4740
    %v5523 = vunpack.c.l.b16 %v4741
    %v5524 = vunpack.c.h.b16 %v4741
    %v5525 = vunpack.c.l.b16 %v4742
    %v5526 = vunpack.c.h.b16 %v4742
    %v5527 = vunpack.c.l.b16 %v4743
    %v5528 = vunpack.c.h.b16 %v4743
    %v5529 = vunpack.c.l.b16 %v4744
    %v5530 = vunpack.c.h.b16 %v4744
    %v5531 = vunpack.c.l.b16 %v4745
    %v5532 = vunpack.c.h.b16 %v4745
    %v5533 = vunpack.c.l.b16 %v4746
    %v5534 = vunpack.c.h.b16 %v4746
    %v5535 = vunpack.c.l.b16 %v4747
    %v5536 = vunpack.c.h.b16 %v4747
    %v5537 = vunpack.c.l.b16 %v4748
    %v5538 = vunpack.c.h.b16 %v4748
    %v5539 = vunpack.c.l.b16 %v4749
    %v5540 = vunpack.c.h.b16 %v4749
    %v5541 = vunpack.c.l.b16 %v4750
    %v5542 = vunpack.c.h.b16 %v4750
    %v5543 = vunpack.c.l.b16 %v4751
    %v5544 = vunpack.c.h.b16 %v4751
    %v5545 = vunpack.c.l.b16 %v4752
    %v5546 = vunpack.c.h.b16 %v4752
    %v5547 = vunpack.c.l.b16 %v4753
    %v5548 = vunpack.c.h.b16 %v4753
    %v5549 = vunpack.c.l.b16 %v4754
    %v5550 = vunpack.c.h.b16 %v4754
    %v5551 = vunpack.c.l.b16 %v4755
    %v5552 = vunpack.c.h.b16 %v4755
    %v5553 = vunpack.c.l.b16 %v4756
    %v5554 = vunpack.c.h.b16 %v4756
    %v5555 = vunpack.c.l.b16 %v4757
    %v5556 = vunpack.c.h.b16 %v4757
    %v5557 = vunpack.c.l.b16 %v4758
    %v5558 = vunpack.c.h.b16 %v4758
    %v5559 = vunpack.c.l.b16 %v4759
    %v5560 = vunpack.c.h.b16 %v4759
    %v5561 = vunpack.c.l.b16 %v4760
    %v5562 = vunpack.c.h.b16 %v4760
    %v5563 = vunpack.c.l.b16 %v4761
    %v5564 = vunpack.c.h.b16 %v4761
    %v5565 = vunpack.c.l.b16 %v4762
    %v5566 = vunpack.c.h.b16 %v4762
    %v5567 = vunpack.c.l.b16 %v4763
    %v5568 = vunpack.c.h.b16 %v4763
    %v5569 = vunpack.c.l.b16 %v4764
    %v5570 = vunpack.c.h.b16 %v4764
    %v5571 = vunpack.c.l.b16 %v4765
    %v5572 = vunpack.c.h.b16 %v4765
    %v5573 = vunpack.c.l.b16 %v4766
    %v5574 = vunpack.c.h.b16 %v4766
    %v5575 = vunpack.c.l.b16 %v4767
    %v5576 = vunpack.c.h.b16 %v4767
    %v5577 = vunpack.c.l.b16 %v4768
    %v5578 = vunpack.c.h.b16 %v4768
    %v5579 = vunpack.c.l.b16 %v4769
    %v5580 = vunpack.c.h.b16 %v4769
    %v5581 = vunpack.c.l.b16 %v4770
    %v5582 = vunpack.c.h.b16 %v4770
    %v5583 = vunpack.c.l.b16 %v4771
    %v5584 = vunpack.c.h.b16 %v4771
    %v5585 = vunpack.c.l.b16 %v4772
    %v5586 = vunpack.c.h.b16 %v4772
    %v5587 = vunpack.c.l.b16 %v4773
    %v5588 = vunpack.c.h.b16 %v4773
    %v5589 = vunpack.c.l.b16 %v4774
    %v5590 = vunpack.c.h.b16 %v4774
    %v5591 = vunpack.c.l.b16 %v4775
    %v5592 = vunpack.c.h.b16 %v4775
    %v5593 = vunpack.c.l.b16 %v4776
    %v5594 = vunpack.c.h.b16 %v4776
    %v5595 = vunpack.c.l.b16 %v4777
    %v5596 = vunpack.c.h.b16 %v4777
    %v5597 = vunpack.c.l.b16 %v4778
    %v5598 = vunpack.c.h.b16 %v4778
    %v5599 = vunpack.c.l.b16 %v4779
    %v5600 = vunpack.c.h.b16 %v4779
    %v5601 = vunpack.c.l.b16 %v4780
    %v5602 = vunpack.c.h.b16 %v4780
    %v5603 = vunpack.c.l.b16 %v4781
    %v5604 = vunpack.c.h.b16 %v4781
    %v5605 = vunpack.c.l.b16 %v4782
    %v5606 = vunpack.c.h.b16 %v4782
    %v5607 = vunpack.c.l.b16 %v4783
    %v5608 = vunpack.c.h.b16 %v4783
    %v5609 = vunpack.c.l.b16 %v4784
    %v5610 = vunpack.c.h.b16 %v4784
    %v5611 = vunpack.c.l.b16 %v4785
    %v5612 = vunpack.c.h.b16 %v4785
    %v5613 = vunpack.c.l.b16 %v4786
    %v5614 = vunpack.c.h.b16 %v4786
    %v5615 = vunpack.c.l.b16 %v4787
    %v5616 = vunpack.c.h.b16 %v4787
    %v5617 = vunpack.c.l.b16 %v4788
    %v5618 = vunpack.c.h.b16 %v4788
    %v5619 = vunpack.c.l.b16 %v4789
    %v5620 = vunpack.c.h.b16 %v4789
    %v5621 = vunpack.c.l.b16 %v4790
    %v5622 = vunpack.c.h.b16 %v4790
    %v5623 = vunpack.c.l.b16 %v4791
    %v5624 = vunpack.c.h.b16 %v4791
    %v5625 = vunpack.c.l.b16 %v4792
    %v5626 = vunpack.c.h.b16 %v4792
    %v5627 = vunpack.c.l.b16 %v4793
    %v5628 = vunpack.c.h.b16 %v4793
    %v5629 = vunpack.c.l.b16 %v4794
    %v5630 = vunpack.c.h.b16 %v4794
    %v5631 = vunpack.c.l.b16 %v4795
    %v5632 = vunpack.c.h.b16 %v4795
    %v5633 = vunpack.c.l.b16 %v4796
    %v5634 = vunpack.c.h.b16 %v4796
    %v5635 = vunpack.c.l.b16 %v4797
    %v5636 = vunpack.c.h.b16 %v4797
    %v5637 = vunpack.c.l.b16 %v4798
    %v5638 = vunpack.c.h.b16 %v4798
    %v5639 = vunpack.c.l.b16 %v4799
    %v5640 = vunpack.c.h.b16 %v4799
    %v5641 = vunpack.c.l.b16 %v4800
    %v5642 = vunpack.c.h.b16 %v4800
    %v5643 = vunpack.c.l.b16 %v4801
    %v5644 = vunpack.c.h.b16 %v4801
    %v5645 = vunpack.c.l.b16 %v4802
    %v5646 = vunpack.c.h.b16 %v4802
    %v5647 = vunpack.c.l.b16 %v4803
    %v5648 = vunpack.c.h.b16 %v4803
    %v5649 = vunpack.c.l.b16 %v4804
    %v5650 = vunpack.c.h.b16 %v4804
    %v5651 = vunpack.c.l.b16 %v4805
    %v5652 = vunpack.c.h.b16 %v4805
    %v5653 = vunpack.c.l.b16 %v4806
    %v5654 = vunpack.c.h.b16 %v4806
    %v5655 = vunpack.c.l.b16 %v4807
    %v5656 = vunpack.c.h.b16 %v4807
    %v5657 = vunpack.c.l.b16 %v4808
    %v5658 = vunpack.c.h.b16 %v4808
    %v5659 = vunpack.c.l.b16 %v4809
    %v5660 = vunpack.c.h.b16 %v4809
    %v5661 = vunpack.c.l.b16 %v4810
    %v5662 = vunpack.c.h.b16 %v4810
    %v5663 = vunpack.c.l.b16 %v4811
    %v5664 = vunpack.c.h.b16 %v4811
    %v5665 = vunpack.c.l.b16 %v4812
    %v5666 = vunpack.c.h.b16 %v4812
    %v5667 = vunpack.c.l.b16 %v4813
    %v5668 = vunpack.c.h.b16 %v4813
    %v5669 = vunpack.c.l.b16 %v4814
    %v5670 = vunpack.c.h.b16 %v4814
    %v5671 = vunpack.c.l.b16 %v4815
    %v5672 = vunpack.c.h.b16 %v4815
    %v5673 = vunpack.c.l.b16 %v4816
    %v5674 = vunpack.c.h.b16 %v4816
    %v5675 = vunpack.c.l.b16 %v4817
    %v5676 = vunpack.c.h.b16 %v4817
    %v5677 = vunpack.c.l.b16 %v4818
    %v5678 = vunpack.c.h.b16 %v4818
    %v5679 = vunpack.c.l.b16 %v4819
    %v5680 = vunpack.c.h.b16 %v4819
    %v5681 = vunpack.c.l.b16 %v4820
    %v5682 = vunpack.c.h.b16 %v4820
    %v5683 = vunpack.c.l.b16 %v4821
    %v5684 = vunpack.c.h.b16 %v4821
    %v5685 = vunpack.c.l.b16 %v4822
    %v5686 = vunpack.c.h.b16 %v4822
    %v5687 = vunpack.c.l.b16 %v4823
    %v5688 = vunpack.c.h.b16 %v4823
    %v5689 = vunpack.c.l.b16 %v4824
    %v5690 = vunpack.c.h.b16 %v4824
    %v5691 = vunpack.c.l.b16 %v4825
    %v5692 = vunpack.c.h.b16 %v4825
    %v5693 = vunpack.c.l.b16 %v4826
    %v5694 = vunpack.c.h.b16 %v4826
    %v5695 = vunpack.c.l.b16 %v4827
    %v5696 = vunpack.c.h.b16 %v4827
    %v5697 = vunpack.c.l.b16 %v4828
    %v5698 = vunpack.c.h.b16 %v4828
    %v5699 = vunpack.c.l.b16 %v4829
    %v5700 = vunpack.c.h.b16 %v4829
    %v5701 = vunpack.c.l.b16 %v4830
    %v5702 = vunpack.c.h.b16 %v4830
    %v5703 = vunpack.c.l.b16 %v4831
    %v5704 = vunpack.c.h.b16 %v4831
    %v5705 = vunpack.c.l.b16 %v4832
    %v5706 = vunpack.c.h.b16 %v4832
    %v5707 = vunpack.c.l.b16 %v4833
    %v5708 = vunpack.c.h.b16 %v4833
    %v5709 = vunpack.c.l.b16 %v4834
    %v5710 = vunpack.c.h.b16 %v4834
    %v5711 = vunpack.c.l.b16 %v4835
    %v5712 = vunpack.c.h.b16 %v4835
    %v5713 = vunpack.c.l.b16 %v4836
    %v5714 = vunpack.c.h.b16 %v4836
    %v5715 = vunpack.c.l.b16 %v4837
    %v5716 = vunpack.c.h.b16 %v4837
    %v5717 = vunpack.c.l.b16 %v4838
    %v5718 = vunpack.c.h.b16 %v4838
    %v5719 = vunpack.c.l.b16 %v4839
    %v5720 = vunpack.c.h.b16 %v4839
    %v5721 = vunpack.c.l.b16 %v4840
    %v5722 = vunpack.c.h.b16 %v4840
    %v5723 = vunpack.c.l.b16 %v4841
    %v5724 = vunpack.c.h.b16 %v4841
    %v5725 = vunpack.c.l.b16 %v4842
    %v5726 = vunpack.c.h.b16 %v4842
    %v5727 = vunpack.c.l.b16 %v4843
    %v5728 = vunpack.c.h.b16 %v4843
    %v5729 = vunpack.c.l.b16 %v4844
    %v5730 = vunpack.c.h.b16 %v4844
    %v5731 = vunpack.c.l.b16 %v4845
    %v5732 = vunpack.c.h.b16 %v4845
    %v5733 = vunpack.c.l.b16 %v4846
    %v5734 = vunpack.c.h.b16 %v4846
    %v5735 = vunpack.c.l.b16 %v4847
    %v5736 = vunpack.c.h.b16 %v4847
    %v5737 = vunpack.c.l.b16 %v4848
    %v5738 = vunpack.c.h.b16 %v4848
    %v5739 = vunpack.c.l.b16 %v4849
    %v5740 = vunpack.c.h.b16 %v4849
    %v5741 = vunpack.c.l.b16 %v4850
    %v5742 = vunpack.c.h.b16 %v4850
    %v5743 = vunpack.c.l.b16 %v4851
    %v5744 = vunpack.c.h.b16 %v4851
    %v5745 = vunpack.c.l.b16 %v4852
    %v5746 = vunpack.c.h.b16 %v4852
    %v5747 = vunpack.c.l.b16 %v4853
    %v5748 = vunpack.c.h.b16 %v4853
    %v5749 = vunpack.c.l.b16 %v4854
    %v5750 = vunpack.c.h.b16 %v4854
    %v5751 = vpack.c.b16 %v5181, %v5175
    %v5752 = vpack.c.b16 %v5182, %v5176
    %v5753 = vpack.c.b16 %v5183, %v5177
    %v5754 = vpack.c.b16 %v5184, %v5178
    %v5755 = vpack.c.b16 %v5185, %v5179
    %v5756 = vpack.c.b16 %v5186, %v5180
    %v5757 = vpack.c.b16 %v5193, %v5187
    %v5758 = vpack.c.b16 %v5194, %v5188
    %v5759 = vpack.c.b16 %v5195, %v5189
    %v5760 = vpack.c.b16 %v5196, %v5190
    %v5761 = vpack.c.b16 %v5197, %v5191
    %v5762 = vpack.c.b16 %v5198, %v5192
    %v5763 = vpack.c.b16 %v5205, %v5199
    %v5764 = vpack.c.b16 %v5206, %v5200
    %v5765 = vpack.c.b16 %v5207, %v5201
    %v5766 = vpack.c.b16 %v5208, %v5202
    %v5767 = vpack.c.b16 %v5209, %v5203
    %v5768 = vpack.c.b16 %v5210, %v5204
    %v5769 = vpack.c.b16 %v5217, %v5211
    %v5770 = vpack.c.b16 %v5218, %v5212
    %v5771 = vpack.c.b16 %v5219, %v5213
    %v5772 = vpack.c.b16 %v5220, %v5214
    %v5773 = vpack.c.b16 %v5221, %v5215
    %v5774 = vpack.c.b16 %v5222, %v5216
    %v5775 = vpack.c.b16 %v5229, %v5223
    %v5776 = vpack.c.b16 %v5230, %v5224
    %v5777 = vpack.c.b16 %v5231, %v5225
    %v5778 = vpack.c.b16 %v5232, %v5226
    %v5779 = vpack.c.b16 %v5233, %v5227
    %v5780 = vpack.c.b16 %v5234, %v5228
    %v5781 = vpack.c.b16 %v5241, %v5235
    %v5782 = vpack.c.b16 %v5242, %v5236
    %v5783 = vpack.c.b16 %v5243, %v5237
    %v5784 = vpack.c.b16 %v5244, %v5238
    %v5785 = vpack.c.b16 %v5245, %v5239
    %v5786 = vpack.c.b16 %v5246, %v5240
    %v5787 = vpack.c.b16 %v5253, %v5247
    %v5788 = vpack.c.b16 %v5254, %v5248
    %v5789 = vpack.c.b16 %v5255, %v5249
    %v5790 = vpack.c.b16 %v5256, %v5250
    %v5791 = vpack.c.b16 %v5257, %v5251
    %v5792 = vpack.c.b16 %v5258, %v5252
    %v5793 = vpack.c.b16 %v5265, %v5259
    %v5794 = vpack.c.b16 %v5266, %v5260
    %v5795 = vpack.c.b16 %v5267, %v5261
    %v5796 = vpack.c.b16 %v5268, %v5262
    %v5797 = vpack.c.b16 %v5269, %v5263
    %v5798 = vpack.c.b16 %v5270, %v5264
    %v5799 = vpack.c.b16 %v5277, %v5271
    %v5800 = vpack.c.b16 %v5278, %v5272
    %v5801 = vpack.c.b16 %v5279, %v5273
    %v5802 = vpack.c.b16 %v5280, %v5274
    %v5803 = vpack.c.b16 %v5281, %v5275
    %v5804 = vpack.c.b16 %v5282, %v5276
    %v5805 = vpack.c.b16 %v5289, %v5283
    %v5806 = vpack.c.b16 %v5290, %v5284
    %v5807 = vpack.c.b16 %v5291, %v5285
    %v5808 = vpack.c.b16 %v5292, %v5286
    %v5809 = vpack.c.b16 %v5293, %v5287
    %v5810 = vpack.c.b16 %v5294, %v5288
    %v5811 = vpack.c.b16 %v5301, %v5295
    %v5812 = vpack.c.b16 %v5302, %v5296
    %v5813 = vpack.c.b16 %v5303, %v5297
    %v5814 = vpack.c.b16 %v5304, %v5298
    %v5815 = vpack.c.b16 %v5305, %v5299
    %v5816 = vpack.c.b16 %v5306, %v5300
    %v5817 = vpack.c.b16 %v5313, %v5307
    %v5818 = vpack.c.b16 %v5314, %v5308
    %v5819 = vpack.c.b16 %v5315, %v5309
    %v5820 = vpack.c.b16 %v5316, %v5310
    %v5821 = vpack.c.b16 %v5317, %v5311
    %v5822 = vpack.c.b16 %v5318, %v5312
    %v5823 = vpack.c.b16 %v5325, %v5319
    %v5824 = vpack.c.b16 %v5326, %v5320
    %v5825 = vpack.c.b16 %v5327, %v5321
    %v5826 = vpack.c.b16 %v5328, %v5322
    %v5827 = vpack.c.b16 %v5329, %v5323
    %v5828 = vpack.c.b16 %v5330, %v5324
    %v5829 = vpack.c.b16 %v5337, %v5331
    %v5830 = vpack.c.b16 %v5338, %v5332
    %v5831 = vpack.c.b16 %v5339, %v5333
    %v5832 = vpack.c.b16 %v5340, %v5334
    %v5833 = vpack.c.b16 %v5341, %v5335
    %v5834 = vpack.c.b16 %v5342, %v5336
    %v5835 = vpack.c.b16 %v5349, %v5343
    %v5836 = vpack.c.b16 %v5350, %v5344
    %v5837 = vpack.c.b16 %v5351, %v5345
    %v5838 = vpack.c.b16 %v5352, %v5346
    %v5839 = vpack.c.b16 %v5353, %v5347
    %v5840 = vpack.c.b16 %v5354, %v5348
    %v5841 = vpack.c.b16 %v5361, %v5355
    %v5842 = vpack.c.b16 %v5362, %v5356
    %v5843 = vpack.c.b16 %v5363, %v5357
    %v5844 = vpack.c.b16 %v5364, %v5358
    %v5845 = vpack.c.b16 %v5365, %v5359
    %v5846 = vpack.c.b16 %v5366, %v5360
    %v5847 = vpack.c.b16 %v5373, %v5367
    %v5848 = vpack.c.b16 %v5374, %v5368
    %v5849 = vpack.c.b16 %v5375, %v5369
    %v5850 = vpack.c.b16 %v5376, %v5370
    %v5851 = vpack.c.b16 %v5377, %v5371
    %v5852 = vpack.c.b16 %v5378, %v5372
    %v5853 = vpack.c.b16 %v5385, %v5379
    %v5854 = vpack.c.b16 %v5386, %v5380
    %v5855 = vpack.c.b16 %v5387, %v5381
    %v5856 = vpack.c.b16 %v5388, %v5382
    %v5857 = vpack.c.b16 %v5389, %v5383
    %v5858 = vpack.c.b16 %v5390, %v5384
    %v5859 = vpack.c.b16 %v5397, %v5391
    %v5860 = vpack.c.b16 %v5398, %v5392
    %v5861 = vpack.c.b16 %v5399, %v5393
    %v5862 = vpack.c.b16 %v5400, %v5394
    %v5863 = vpack.c.b16 %v5401, %v5395
    %v5864 = vpack.c.b16 %v5402, %v5396
    %v5865 = vpack.c.b16 %v5409, %v5403
    %v5866 = vpack.c.b16 %v5410, %v5404
    %v5867 = vpack.c.b16 %v5411, %v5405
    %v5868 = vpack.c.b16 %v5412, %v5406
    %v5869 = vpack.c.b16 %v5413, %v5407
    %v5870 = vpack.c.b16 %v5414, %v5408
    %v5871 = vpack.c.b16 %v5421, %v5415
    %v5872 = vpack.c.b16 %v5422, %v5416
    %v5873 = vpack.c.b16 %v5423, %v5417
    %v5874 = vpack.c.b16 %v5424, %v5418
    %v5875 = vpack.c.b16 %v5425, %v5419
    %v5876 = vpack.c.b16 %v5426, %v5420
    %v5877 = vpack.c.b16 %v5433, %v5427
    %v5878 = vpack.c.b16 %v5434, %v5428
    %v5879 = vpack.c.b16 %v5435, %v5429
    %v5880 = vpack.c.b16 %v5436, %v5430
    %v5881 = vpack.c.b16 %v5437, %v5431
    %v5882 = vpack.c.b16 %v5438, %v5432
    %v5883 = vpack.c.b16 %v5445, %v5439
    %v5884 = vpack.c.b16 %v5446, %v5440
    %v5885 = vpack.c.b16 %v5447, %v5441
    %v5886 = vpack.c.b16 %v5448, %v5442
    %v5887 = vpack.c.b16 %v5449, %v5443
    %v5888 = vpack.c.b16 %v5450, %v5444
    %v5889 = vpack.c.b16 %v5457, %v5451
    %v5890 = vpack.c.b16 %v5458, %v5452
    %v5891 = vpack.c.b16 %v5459, %v5453
    %v5892 = vpack.c.b16 %v5460, %v5454
    %v5893 = vpack.c.b16 %v5461, %v5455
    %v5894 = vpack.c.b16 %v5462, %v5456
    %v5895 = vpack.c.b16 %v5469, %v5463
    %v5896 = vpack.c.b16 %v5470, %v5464
    %v5897 = vpack.c.b16 %v5471, %v5465
    %v5898 = vpack.c.b16 %v5472, %v5466
    %v5899 = vpack.c.b16 %v5473, %v5467
    %v5900 = vpack.c.b16 %v5474, %v5468
    %v5901 = vpack.c.b16 %v5481, %v5475
    %v5902 = vpack.c.b16 %v5482, %v5476
    %v5903 = vpack.c.b16 %v5483, %v5477
    %v5904 = vpack.c.b16 %v5484, %v5478
    %v5905 = vpack.c.b16 %v5485, %v5479
    %v5906 = vpack.c.b16 %v5486, %v5480
    %v5907 = vpack.c.b16 %v5493, %v5487
    %v5908 = vpack.c.b16 %v5494, %v5488
    %v5909 = vpack.c.b16 %v5495, %v5489
    %v5910 = vpack.c.b16 %v5496, %v5490
    %v5911 = vpack.c.b16 %v5497, %v5491
    %v5912 = vpack.c.b16 %v5498, %v5492
    %v5913 = vpack.c.b16 %v5505, %v5499
    %v5914 = vpack.c.b16 %v5506, %v5500
    %v5915 = vpack.c.b16 %v5507, %v5501
    %v5916 = vpack.c.b16 %v5508, %v5502
    %v5917 = vpack.c.b16 %v5509, %v5503
    %v5918 = vpack.c.b16 %v5510, %v5504
    %v5919 = vpack.c.b16 %v5517, %v5511
    %v5920 = vpack.c.b16 %v5518, %v5512
    %v5921 = vpack.c.b16 %v5519, %v5513
    %v5922 = vpack.c.b16 %v5520, %v5514
    %v5923 = vpack.c.b16 %v5521, %v5515
    %v5924 = vpack.c.b16 %v5522, %v5516
    %v5925 = vpack.c.b16 %v5529, %v5523
    %v5926 = vpack.c.b16 %v5530, %v5524
    %v5927 = vpack.c.b16 %v5531, %v5525
    %v5928 = vpack.c.b16 %v5532, %v5526
    %v5929 = vpack.c.b16 %v5533, %v5527
    %v5930 = vpack.c.b16 %v5534, %v5528
    %v5931 = vpack.c.b16 %v5541, %v5535
    %v5932 = vpack.c.b16 %v5542, %v5536
    %v5933 = vpack.c.b16 %v5543, %v5537
    %v5934 = vpack.c.b16 %v5544, %v5538
    %v5935 = vpack.c.b16 %v5545, %v5539
    %v5936 = vpack.c.b16 %v5546, %v5540
    %v5937 = vpack.c.b16 %v5553, %v5547
    %v5938 = vpack.c.b16 %v5554, %v5548
    %v5939 = vpack.c.b16 %v5555, %v5549
    %v5940 = vpack.c.b16 %v5556, %v5550
    %v5941 = vpack.c.b16 %v5557, %v5551
    %v5942 = vpack.c.b16 %v5558, %v5552
    %v5943 = vpack.c.b16 %v5565, %v5559
    %v5944 = vpack.c.b16 %v5566, %v5560
    %v5945 = vpack.c.b16 %v5567, %v5561
    %v5946 = vpack.c.b16 %v5568, %v5562
    %v5947 = vpack.c.b16 %v5569, %v5563
    %v5948 = vpack.c.b16 %v5570, %v5564
    %v5949 = vpack.c.b16 %v5577, %v5571
    %v5950 = vpack.c.b16 %v5578, %v5572
    %v5951 = vpack.c.b16 %v5579, %v5573
    %v5952 = vpack.c.b16 %v5580, %v5574
    %v5953 = vpack.c.b16 %v5581, %v5575
    %v5954 = vpack.c.b16 %v5582, %v5576
    %v5955 = vpack.c.b16 %v5589, %v5583
    %v5956 = vpack.c.b16 %v5590, %v5584
    %v5957 = vpack.c.b16 %v5591, %v5585
    %v5958 = vpack.c.b16 %v5592, %v5586
    %v5959 = vpack.c.b16 %v5593, %v5587
    %v5960 = vpack.c.b16 %v5594, %v5588
    %v5961 = vpack.c.b16 %v5601, %v5595
    %v5962 = vpack.c.b16 %v5602, %v5596
    %v5963 = vpack.c.b16 %v5603, %v5597
    %v5964 = vpack.c.b16 %v5604, %v5598
    %v5965 = vpack.c.b16 %v5605, %v5599
    %v5966 = vpack.c.b16 %v5606, %v5600
    %v5967 = vpack.c.b16 %v5613, %v5607
    %v5968 = vpack.c.b16 %v5614, %v5608
    %v5969 = vpack.c.b16 %v5615, %v5609
    %v5970 = vpack.c.b16 %v5616, %v5610
    %v5971 = vpack.c.b16 %v5617, %v5611
    %v5972 = vpack.c.b16 %v5618, %v5612
    %v5973 = vpack.c.b16 %v5625, %v5619
    %v5974 = vpack.c.b16 %v5626, %v5620
    %v5975 = vpack.c.b16 %v5627, %v5621
    %v5976 = vpack.c.b16 %v5628, %v5622
    %v5977 = vpack.c.b16 %v5629, %v5623
    %v5978 = vpack.c.b16 %v5630, %v5624
    %v5979 = vpack.c.b16 %v5637, %v5631
    %v5980 = vpack.c.b16 %v5638, %v5632
    %v5981 = vpack.c.b16 %v5639, %v5633
    %v5982 = vpack.c.b16 %v5640, %v5634
    %v5983 = vpack.c.b16 %v5641, %v5635
    %v5984 = vpack.c.b16 %v5642, %v5636
    %v5985 = vpack.c.b16 %v5649, %v5643
    %v5986 = vpack.c.b16 %v5650, %v5644
    %v5987 = vpack.c.b16 %v5651, %v5645
    %v5988 = vpack.c.b16 %v5652, %v5646
    %v5989 = vpack.c.b16 %v5653, %v5647
    %v5990 = vpack.c.b16 %v5654, %v5648
    %v5991 = vpack.c.b16 %v5661, %v5655
    %v5992 = vpack.c.b16 %v5662, %v5656
    %v5993 = vpack.c.b16 %v5663, %v5657
    %v5994 = vpack.c.b16 %v5664, %v5658
    %v5995 = vpack.c.b16 %v5665, %v5659
    %v5996 = vpack.c.b16 %v5666, %v5660
    %v5997 = vpack.c.b16 %v5673, %v5667
    %v5998 = vpack.c.b16 %v5674, %v5668
    %v5999 = vpack.c.b16 %v5675, %v5669
    %v6000 = vpack.c.b16 %v5676, %v5670
    %v6001 = vpack.c.b16 %v5677, %v5671
    %v6002 = vpack.c.b16 %v5678, %v5672
    %v6003 = vpack.c.b16 %v5685, %v5679
    %v6004 = vpack.c.b16 %v5686, %v5680
    %v6005 = vpack.c.b16 %v5687, %v5681
    %v6006 = vpack.c.b16 %v5688, %v5682
    %v6007 = vpack.c.b16 %v5689, %v5683
    %v6008 = vpack.c.b16 %v5690, %v5684
    %v6009 = vpack.c.b16 %v5697, %v5691
    %v6010 = vpack.c.b16 %v5698, %v5692
    %v6011 = vpack.c.b16 %v5699, %v5693
    %v6012 = vpack.c.b16 %v5700, %v5694
    %v6013 = vpack.c.b16 %v5701, %v5695
    %v6014 = vpack.c.b16 %v5702, %v5696
    %v6015 = vpack.c.b16 %v5709, %v5703
    %v6016 = vpack.c.b16 %v5710, %v5704
    %v6017 = vpack.c.b16 %v5711, %v5705
    %v6018 = vpack.c.b16 %v5712, %v5706
    %v6019 = vpack.c.b16 %v5713, %v5707
    %v6020 = vpack.c.b16 %v5714, %v5708
    %v6021 = vpack.c.b16 %v5721, %v5715
    %v6022 = vpack.c.b16 %v5722, %v5716
    %v6023 = vpack.c.b16 %v5723, %v5717
    %v6024 = vpack.c.b16 %v5724, %v5718
    %v6025 = vpack.c.b16 %v5725, %v5719
    %v6026 = vpack.c.b16 %v5726, %v5720
    %v6027 = vpack.c.b16 %v5733, %v5727
    %v6028 = vpack.c.b16 %v5734, %v5728
    %v6029 = vpack.c.b16 %v5735, %v5729
    %v6030 = vpack.c.b16 %v5736, %v5730
    %v6031 = vpack.c.b16 %v5737, %v5731
    %v6032 = vpack.c.b16 %v5738, %v5732
    %v6033 = vpack.c.b16 %v5745, %v5739
    %v6034 = vpack.c.b16 %v5746, %v5740
    %v6035 = vpack.c.b16 %v5747, %v5741
    %v6036 = vpack.c.b16 %v5748, %v5742
    %v6037 = vpack.c.b16 %v5749, %v5743
    %v6038 = vpack.c.b16 %v5750, %v5744
    %6327 = vmatprep.subr.bf16.mxu0 %v5794
    %6328 = vmatpush1.bf16.msra.mxu0 %v5793
    %6329 = vmatprep.subr.bf16.mxu0 %v5788
    %6330 = vmatpush1.bf16.msra.mxu0 %v5787
    %6331 = vmatprep.subr.bf16.mxu0 %v5782
    %6332 = vmatpush1.bf16.msra.mxu0 %v5781
    %6333 = vmatprep.subr.bf16.mxu0 %v5776
    %6334 = vmatpush1.bf16.msra.mxu0 %v5775
    %6335 = vmatprep.subr.bf16.mxu0 %v5770
    %6336 = vmatpush1.bf16.msra.mxu0 %v5769
    %6337 = vmatprep.subr.bf16.mxu0 %v5764
    %6338 = vmatpush1.bf16.msra.mxu0 %v5763
    %6339 = vmatprep.subr.bf16.mxu0 %v5758
    %6340 = vmatpush1.bf16.msra.mxu0 %v5757
    %6341 = vmatprep.subr.bf16.mxu0 %v5752
    %6342 = vmatpush1.bf16.msra.mxu0 %v5751
    %6343 = vmatprep.subr.bf16.mxu0 %v5842
    %6344 = vmatpush2.bf16.msra.mxu0 %v5841
    %6345 = vmatprep.subr.bf16.mxu0 %v5836
    %6346 = vmatpush2.bf16.msra.mxu0 %v5835
    %6347 = vmatprep.subr.bf16.mxu0 %v5830
    %6348 = vmatpush2.bf16.msra.mxu0 %v5829
    %6349 = vmatprep.subr.bf16.mxu0 %v5824
    %6350 = vmatpush2.bf16.msra.mxu0 %v5823
    %6351 = vmatprep.subr.bf16.mxu0 %v5818
    %6352 = vmatpush2.bf16.msra.mxu0 %v5817
    %6353 = vmatprep.subr.bf16.mxu0 %v5812
    %6354 = vmatpush2.bf16.msra.mxu0 %v5811
    %6355 = vmatprep.subr.bf16.mxu0 %v5806
    %6356 = vmatpush2.bf16.msra.mxu0 %v5805
    %6357 = vmatprep.subr.bf16.mxu0 %v5800
    %6358 = vmatpush2.bf16.msra.mxu0 %v5799
    %6359 = vmatprep.mubr.bf16.mxu0 %v4544
    %6360 = vmatmul.mubr.bf16.gmra.mxu0 %v4543
    %v6361 = vpop.f32.mrf.mxu0
    %v6362 = vadd.f32 %v4860, %v6361
    %v6363 = vpop.f32.mrf.mxu0
    %v6364 = vadd.f32 %v4864, %v6363
    %v6365 = vpop.f32.mrf.mxu0
    %v6366 = vadd.f32 %v4860, %v6365
    %v6367 = vpop.f32.mrf.mxu0
    %v6368 = vadd.f32 %v4864, %v6367
    %6369 = vmatprep.mubr.bf16.mxu0 %v4550
    %6370 = vmatmul.mubr.bf16.gmra.mxu0 %v4549
    %v6371 = vpop.f32.mrf.mxu0
    %v6372 = vadd.f32 %v4860, %v6371
    %v6373 = vpop.f32.mrf.mxu0
    %v6374 = vadd.f32 %v4864, %v6373
    %v6375 = vpop.f32.mrf.mxu0
    %v6376 = vadd.f32 %v4860, %v6375
    %v6377 = vpop.f32.mrf.mxu0
    %v6378 = vadd.f32 %v4864, %v6377
    %6379 = vmatprep.mubr.bf16.mxu0 %v4556
    %6380 = vmatmul.mubr.bf16.gmra.mxu0 %v4555
    %v6381 = vpop.f32.mrf.mxu0
    %v6382 = vadd.f32 %v4860, %v6381
    %v6383 = vpop.f32.mrf.mxu0
    %v6384 = vadd.f32 %v4864, %v6383
    %v6385 = vpop.f32.mrf.mxu0
    %v6386 = vadd.f32 %v4860, %v6385
    %v6387 = vpop.f32.mrf.mxu0
    %v6388 = vadd.f32 %v4864, %v6387
    %6389 = vmatprep.mubr.bf16.mxu0 %v4562
    %6390 = vmatmul.mubr.bf16.gmra.mxu0 %v4561
    %v6391 = vpop.f32.mrf.mxu0
    %v6392 = vadd.f32 %v4860, %v6391
    %v6393 = vpop.f32.mrf.mxu0
    %v6394 = vadd.f32 %v4864, %v6393
    %v6395 = vpop.f32.mrf.mxu0
    %v6396 = vadd.f32 %v4860, %v6395
    %v6397 = vpop.f32.mrf.mxu0
    %v6398 = vadd.f32 %v4864, %v6397
    %6399 = vdwg.mxu0
    %6400 = vmatprep.subr.bf16.mxu0 %v5890
    %6401 = vmatpush1.bf16.msra.mxu0 %v5889
    %6402 = vmatprep.subr.bf16.mxu0 %v5884
    %6403 = vmatpush1.bf16.msra.mxu0 %v5883
    %6404 = vmatprep.subr.bf16.mxu0 %v5878
    %6405 = vmatpush1.bf16.msra.mxu0 %v5877
    %6406 = vmatprep.subr.bf16.mxu0 %v5872
    %6407 = vmatpush1.bf16.msra.mxu0 %v5871
    %6408 = vmatprep.subr.bf16.mxu0 %v5866
    %6409 = vmatpush1.bf16.msra.mxu0 %v5865
    %6410 = vmatprep.subr.bf16.mxu0 %v5860
    %6411 = vmatpush1.bf16.msra.mxu0 %v5859
    %6412 = vmatprep.subr.bf16.mxu0 %v5854
    %6413 = vmatpush1.bf16.msra.mxu0 %v5853
    %6414 = vmatprep.subr.bf16.mxu0 %v5848
    %6415 = vmatpush1.bf16.msra.mxu0 %v5847
    %6416 = vmatprep.subr.bf16.mxu0 %v5938
    %6417 = vmatpush2.bf16.msra.mxu0 %v5937
    %6418 = vmatprep.subr.bf16.mxu0 %v5932
    %6419 = vmatpush2.bf16.msra.mxu0 %v5931
    %6420 = vmatprep.subr.bf16.mxu0 %v5926
    %6421 = vmatpush2.bf16.msra.mxu0 %v5925
    %6422 = vmatprep.subr.bf16.mxu0 %v5920
    %6423 = vmatpush2.bf16.msra.mxu0 %v5919
    %6424 = vmatprep.subr.bf16.mxu0 %v5914
    %6425 = vmatpush2.bf16.msra.mxu0 %v5913
    %6426 = vmatprep.subr.bf16.mxu0 %v5908
    %6427 = vmatpush2.bf16.msra.mxu0 %v5907
    %6428 = vmatprep.subr.bf16.mxu0 %v5902
    %6429 = vmatpush2.bf16.msra.mxu0 %v5901
    %6430 = vmatprep.subr.bf16.mxu0 %v5896
    %6431 = vmatpush2.bf16.msra.mxu0 %v5895
    %6432 = vmatprep.mubr.bf16.mxu0 %v4546
    %6433 = vmatmul.mubr.bf16.gmra.mxu0 %v4545
    %v6434 = vpop.f32.mrf.mxu0
    %v6435 = vadd.f32 %v6362, %v6434
    %v6436 = vpop.f32.mrf.mxu0
    %v6437 = vadd.f32 %v6364, %v6436
    %v6438 = vpop.f32.mrf.mxu0
    %v6439 = vadd.f32 %v6366, %v6438
    %v6440 = vpop.f32.mrf.mxu0
    %v6441 = vadd.f32 %v6368, %v6440
    %6442 = vmatprep.mubr.bf16.mxu0 %v4552
    %6443 = vmatmul.mubr.bf16.gmra.mxu0 %v4551
    %v6444 = vpop.f32.mrf.mxu0
    %v6445 = vadd.f32 %v6372, %v6444
    %v6446 = vpop.f32.mrf.mxu0
    %v6447 = vadd.f32 %v6374, %v6446
    %v6448 = vpop.f32.mrf.mxu0
    %v6449 = vadd.f32 %v6376, %v6448
    %v6450 = vpop.f32.mrf.mxu0
    %v6451 = vadd.f32 %v6378, %v6450
    %6452 = vmatprep.mubr.bf16.mxu0 %v4558
    %6453 = vmatmul.mubr.bf16.gmra.mxu0 %v4557
    %v6454 = vpop.f32.mrf.mxu0
    %v6455 = vadd.f32 %v6382, %v6454
    %v6456 = vpop.f32.mrf.mxu0
    %v6457 = vadd.f32 %v6384, %v6456
    %v6458 = vpop.f32.mrf.mxu0
    %v6459 = vadd.f32 %v6386, %v6458
    %v6460 = vpop.f32.mrf.mxu0
    %v6461 = vadd.f32 %v6388, %v6460
    %6462 = vmatprep.mubr.bf16.mxu0 %v4564
    %6463 = vmatmul.mubr.bf16.gmra.mxu0 %v4563
    %v6464 = vpop.f32.mrf.mxu0
    %v6465 = vadd.f32 %v6392, %v6464
    %v6466 = vpop.f32.mrf.mxu0
    %v6467 = vadd.f32 %v6394, %v6466
    %v6468 = vpop.f32.mrf.mxu0
    %v6469 = vadd.f32 %v6396, %v6468
    %v6470 = vpop.f32.mrf.mxu0
    %v6471 = vadd.f32 %v6398, %v6470
    %6472 = vdwg.mxu0
    %6473 = vmatprep.subr.bf16.mxu0 %v5986
    %6474 = vmatpush1.bf16.msra.mxu0 %v5985
    %6475 = vmatprep.subr.bf16.mxu0 %v5980
    %6476 = vmatpush1.bf16.msra.mxu0 %v5979
    %6477 = vmatprep.subr.bf16.mxu0 %v5974
    %6478 = vmatpush1.bf16.msra.mxu0 %v5973
    %6479 = vmatprep.subr.bf16.mxu0 %v5968
    %6480 = vmatpush1.bf16.msra.mxu0 %v5967
    %6481 = vmatprep.subr.bf16.mxu0 %v5962
    %6482 = vmatpush1.bf16.msra.mxu0 %v5961
    %6483 = vmatprep.subr.bf16.mxu0 %v5956
    %6484 = vmatpush1.bf16.msra.mxu0 %v5955
    %6485 = vmatprep.subr.bf16.mxu0 %v5950
    %6486 = vmatpush1.bf16.msra.mxu0 %v5949
    %6487 = vmatprep.subr.bf16.mxu0 %v5944
    %6488 = vmatpush1.bf16.msra.mxu0 %v5943
    %6489 = vmatprep.subr.bf16.mxu0 %v6034
    %6490 = vmatpush2.bf16.msra.mxu0 %v6033
    %6491 = vmatprep.subr.bf16.mxu0 %v6028
    %6492 = vmatpush2.bf16.msra.mxu0 %v6027
    %6493 = vmatprep.subr.bf16.mxu0 %v6022
    %6494 = vmatpush2.bf16.msra.mxu0 %v6021
    %6495 = vmatprep.subr.bf16.mxu0 %v6016
    %6496 = vmatpush2.bf16.msra.mxu0 %v6015
    %6497 = vmatprep.subr.bf16.mxu0 %v6010
    %6498 = vmatpush2.bf16.msra.mxu0 %v6009
    %6499 = vmatprep.subr.bf16.mxu0 %v6004
    %6500 = vmatpush2.bf16.msra.mxu0 %v6003
    %6501 = vmatprep.subr.bf16.mxu0 %v5998
    %6502 = vmatpush2.bf16.msra.mxu0 %v5997
    %6503 = vmatprep.subr.bf16.mxu0 %v5992
    %6504 = vmatpush2.bf16.msra.mxu0 %v5991
    %6505 = vmatprep.mubr.bf16.mxu0 %v4548
    %6506 = vmatmul.mubr.bf16.gmra.mxu0 %v4547
    %v6507 = vpop.f32.mrf.mxu0
    %v6508 = vadd.f32 %v6435, %v6507
    %v6509 = vpop.f32.mrf.mxu0
    %v6510 = vadd.f32 %v6437, %v6509
    %v6511 = vpop.f32.mrf.mxu0
    %v6512 = vadd.f32 %v6439, %v6511
    %v6513 = vpop.f32.mrf.mxu0
    %v6514 = vadd.f32 %v6441, %v6513
    %6515 = vmatprep.mubr.bf16.mxu0 %v4554
    %6516 = vmatmul.mubr.bf16.gmra.mxu0 %v4553
    %v6517 = vpop.f32.mrf.mxu0
    %v6518 = vadd.f32 %v6445, %v6517
    %v6519 = vpop.f32.mrf.mxu0
    %v6520 = vadd.f32 %v6447, %v6519
    %v6521 = vpop.f32.mrf.mxu0
    %v6522 = vadd.f32 %v6449, %v6521
    %v6523 = vpop.f32.mrf.mxu0
    %v6524 = vadd.f32 %v6451, %v6523
    %6525 = vmatprep.mubr.bf16.mxu0 %v4560
    %6526 = vmatmul.mubr.bf16.gmra.mxu0 %v4559
    %v6527 = vpop.f32.mrf.mxu0
    %v6528 = vadd.f32 %v6455, %v6527
    %v6529 = vpop.f32.mrf.mxu0
    %v6530 = vadd.f32 %v6457, %v6529
    %v6531 = vpop.f32.mrf.mxu0
    %v6532 = vadd.f32 %v6459, %v6531
    %v6533 = vpop.f32.mrf.mxu0
    %v6534 = vadd.f32 %v6461, %v6533
    %6535 = vmatprep.mubr.bf16.mxu0 %v4566
    %6536 = vmatmul.mubr.bf16.gmra.mxu0 %v4565
    %v6537 = vpop.f32.mrf.mxu0
    %v6538 = vadd.f32 %v6465, %v6537
    %v6539 = vpop.f32.mrf.mxu0
    %v6540 = vadd.f32 %v6467, %v6539
    %v6541 = vpop.f32.mrf.mxu0
    %v6542 = vadd.f32 %v6469, %v6541
    %v6543 = vpop.f32.mrf.mxu0
    %v6544 = vadd.f32 %v6471, %v6543
    %6545 = vdwg.mxu0
    %6546 = vmatprep.subr.bf16.mxu0 %v5796
    %6547 = vmatpush1.bf16.msra.mxu0 %v5795
    %6548 = vmatprep.subr.bf16.mxu0 %v5790
    %6549 = vmatpush1.bf16.msra.mxu0 %v5789
    %6550 = vmatprep.subr.bf16.mxu0 %v5784
    %6551 = vmatpush1.bf16.msra.mxu0 %v5783
    %6552 = vmatprep.subr.bf16.mxu0 %v5778
    %6553 = vmatpush1.bf16.msra.mxu0 %v5777
    %6554 = vmatprep.subr.bf16.mxu0 %v5772
    %6555 = vmatpush1.bf16.msra.mxu0 %v5771
    %6556 = vmatprep.subr.bf16.mxu0 %v5766
    %6557 = vmatpush1.bf16.msra.mxu0 %v5765
    %6558 = vmatprep.subr.bf16.mxu0 %v5760
    %6559 = vmatpush1.bf16.msra.mxu0 %v5759
    %6560 = vmatprep.subr.bf16.mxu0 %v5754
    %6561 = vmatpush1.bf16.msra.mxu0 %v5753
    %6562 = vmatprep.subr.bf16.mxu0 %v5844
    %6563 = vmatpush2.bf16.msra.mxu0 %v5843
    %6564 = vmatprep.subr.bf16.mxu0 %v5838
    %6565 = vmatpush2.bf16.msra.mxu0 %v5837
    %6566 = vmatprep.subr.bf16.mxu0 %v5832
    %6567 = vmatpush2.bf16.msra.mxu0 %v5831
    %6568 = vmatprep.subr.bf16.mxu0 %v5826
    %6569 = vmatpush2.bf16.msra.mxu0 %v5825
    %6570 = vmatprep.subr.bf16.mxu0 %v5820
    %6571 = vmatpush2.bf16.msra.mxu0 %v5819
    %6572 = vmatprep.subr.bf16.mxu0 %v5814
    %6573 = vmatpush2.bf16.msra.mxu0 %v5813
    %6574 = vmatprep.subr.bf16.mxu0 %v5808
    %6575 = vmatpush2.bf16.msra.mxu0 %v5807
    %6576 = vmatprep.subr.bf16.mxu0 %v5802
    %6577 = vmatpush2.bf16.msra.mxu0 %v5801
    %6578 = vmatprep.mubr.bf16.mxu0 %v4544
    %6579 = vmatmul.mubr.bf16.gmra.mxu0 %v4543
    %v6580 = vpop.f32.mrf.mxu0
    %v6581 = vadd.f32 %v4868, %v6580
    %v6582 = vpop.f32.mrf.mxu0
    %v6583 = vadd.f32 %v4872, %v6582
    %v6584 = vpop.f32.mrf.mxu0
    %v6585 = vadd.f32 %v4868, %v6584
    %v6586 = vpop.f32.mrf.mxu0
    %v6587 = vadd.f32 %v4872, %v6586
    %6588 = vmatprep.mubr.bf16.mxu0 %v4550
    %6589 = vmatmul.mubr.bf16.gmra.mxu0 %v4549
    %v6590 = vpop.f32.mrf.mxu0
    %v6591 = vadd.f32 %v4868, %v6590
    %v6592 = vpop.f32.mrf.mxu0
    %v6593 = vadd.f32 %v4872, %v6592
    %v6594 = vpop.f32.mrf.mxu0
    %v6595 = vadd.f32 %v4868, %v6594
    %v6596 = vpop.f32.mrf.mxu0
    %v6597 = vadd.f32 %v4872, %v6596
    %6598 = vmatprep.mubr.bf16.mxu0 %v4556
    %6599 = vmatmul.mubr.bf16.gmra.mxu0 %v4555
    %v6600 = vpop.f32.mrf.mxu0
    %v6601 = vadd.f32 %v4868, %v6600
    %v6602 = vpop.f32.mrf.mxu0
    %v6603 = vadd.f32 %v4872, %v6602
    %v6604 = vpop.f32.mrf.mxu0
    %v6605 = vadd.f32 %v4868, %v6604
    %v6606 = vpop.f32.mrf.mxu0
    %v6607 = vadd.f32 %v4872, %v6606
    %6608 = vmatprep.mubr.bf16.mxu0 %v4562
    %6609 = vmatmul.mubr.bf16.gmra.mxu0 %v4561
    %v6610 = vpop.f32.mrf.mxu0
    %v6611 = vadd.f32 %v4868, %v6610
    %v6612 = vpop.f32.mrf.mxu0
    %v6613 = vadd.f32 %v4872, %v6612
    %v6614 = vpop.f32.mrf.mxu0
    %v6615 = vadd.f32 %v4868, %v6614
    %v6616 = vpop.f32.mrf.mxu0
    %v6617 = vadd.f32 %v4872, %v6616
    %6618 = vdwg.mxu0
    %6619 = vmatprep.subr.bf16.mxu0 %v5892
    %6620 = vmatpush1.bf16.msra.mxu0 %v5891
    %6621 = vmatprep.subr.bf16.mxu0 %v5886
    %6622 = vmatpush1.bf16.msra.mxu0 %v5885
    %6623 = vmatprep.subr.bf16.mxu0 %v5880
    %6624 = vmatpush1.bf16.msra.mxu0 %v5879
    %6625 = vmatprep.subr.bf16.mxu0 %v5874
    %6626 = vmatpush1.bf16.msra.mxu0 %v5873
    %6627 = vmatprep.subr.bf16.mxu0 %v5868
    %6628 = vmatpush1.bf16.msra.mxu0 %v5867
    %6629 = vmatprep.subr.bf16.mxu0 %v5862
    %6630 = vmatpush1.bf16.msra.mxu0 %v5861
    %6631 = vmatprep.subr.bf16.mxu0 %v5856
    %6632 = vmatpush1.bf16.msra.mxu0 %v5855
    %6633 = vmatprep.subr.bf16.mxu0 %v5850
    %6634 = vmatpush1.bf16.msra.mxu0 %v5849
    %6635 = vmatprep.subr.bf16.mxu0 %v5940
    %6636 = vmatpush2.bf16.msra.mxu0 %v5939
    %6637 = vmatprep.subr.bf16.mxu0 %v5934
    %6638 = vmatpush2.bf16.msra.mxu0 %v5933
    %6639 = vmatprep.subr.bf16.mxu0 %v5928
    %6640 = vmatpush2.bf16.msra.mxu0 %v5927
    %6641 = vmatprep.subr.bf16.mxu0 %v5922
    %6642 = vmatpush2.bf16.msra.mxu0 %v5921
    %6643 = vmatprep.subr.bf16.mxu0 %v5916
    %6644 = vmatpush2.bf16.msra.mxu0 %v5915
    %6645 = vmatprep.subr.bf16.mxu0 %v5910
    %6646 = vmatpush2.bf16.msra.mxu0 %v5909
    %6647 = vmatprep.subr.bf16.mxu0 %v5904
    %6648 = vmatpush2.bf16.msra.mxu0 %v5903
    %6649 = vmatprep.subr.bf16.mxu0 %v5898
    %6650 = vmatpush2.bf16.msra.mxu0 %v5897
    %6651 = vmatprep.mubr.bf16.mxu0 %v4546
    %6652 = vmatmul.mubr.bf16.gmra.mxu0 %v4545
    %v6653 = vpop.f32.mrf.mxu0
    %v6654 = vadd.f32 %v6581, %v6653
    %v6655 = vpop.f32.mrf.mxu0
    %v6656 = vadd.f32 %v6583, %v6655
    %v6657 = vpop.f32.mrf.mxu0
    %v6658 = vadd.f32 %v6585, %v6657
    %v6659 = vpop.f32.mrf.mxu0
    %v6660 = vadd.f32 %v6587, %v6659
    %6661 = vmatprep.mubr.bf16.mxu0 %v4552
    %6662 = vmatmul.mubr.bf16.gmra.mxu0 %v4551
    %v6663 = vpop.f32.mrf.mxu0
    %v6664 = vadd.f32 %v6591, %v6663
    %v6665 = vpop.f32.mrf.mxu0
    %v6666 = vadd.f32 %v6593, %v6665
    %v6667 = vpop.f32.mrf.mxu0
    %v6668 = vadd.f32 %v6595, %v6667
    %v6669 = vpop.f32.mrf.mxu0
    %v6670 = vadd.f32 %v6597, %v6669
    %6671 = vmatprep.mubr.bf16.mxu0 %v4558
    %6672 = vmatmul.mubr.bf16.gmra.mxu0 %v4557
    %v6673 = vpop.f32.mrf.mxu0
    %v6674 = vadd.f32 %v6601, %v6673
    %v6675 = vpop.f32.mrf.mxu0
    %v6676 = vadd.f32 %v6603, %v6675
    %v6677 = vpop.f32.mrf.mxu0
    %v6678 = vadd.f32 %v6605, %v6677
    %v6679 = vpop.f32.mrf.mxu0
    %v6680 = vadd.f32 %v6607, %v6679
    %6681 = vmatprep.mubr.bf16.mxu0 %v4564
    %6682 = vmatmul.mubr.bf16.gmra.mxu0 %v4563
    %v6683 = vpop.f32.mrf.mxu0
    %v6684 = vadd.f32 %v6611, %v6683
    %v6685 = vpop.f32.mrf.mxu0
    %v6686 = vadd.f32 %v6613, %v6685
    %v6687 = vpop.f32.mrf.mxu0
    %v6688 = vadd.f32 %v6615, %v6687
    %v6689 = vpop.f32.mrf.mxu0
    %v6690 = vadd.f32 %v6617, %v6689
    %6691 = vdwg.mxu0
    %6692 = vmatprep.subr.bf16.mxu0 %v5988
    %6693 = vmatpush1.bf16.msra.mxu0 %v5987
    %6694 = vmatprep.subr.bf16.mxu0 %v5982
    %6695 = vmatpush1.bf16.msra.mxu0 %v5981
    %6696 = vmatprep.subr.bf16.mxu0 %v5976
    %6697 = vmatpush1.bf16.msra.mxu0 %v5975
    %6698 = vmatprep.subr.bf16.mxu0 %v5970
    %6699 = vmatpush1.bf16.msra.mxu0 %v5969
    %6700 = vmatprep.subr.bf16.mxu0 %v5964
    %6701 = vmatpush1.bf16.msra.mxu0 %v5963
    %6702 = vmatprep.subr.bf16.mxu0 %v5958
    %6703 = vmatpush1.bf16.msra.mxu0 %v5957
    %6704 = vmatprep.subr.bf16.mxu0 %v5952
    %6705 = vmatpush1.bf16.msra.mxu0 %v5951
    %6706 = vmatprep.subr.bf16.mxu0 %v5946
    %6707 = vmatpush1.bf16.msra.mxu0 %v5945
    %6708 = vmatprep.subr.bf16.mxu0 %v6036
    %6709 = vmatpush2.bf16.msra.mxu0 %v6035
    %6710 = vmatprep.subr.bf16.mxu0 %v6030
    %6711 = vmatpush2.bf16.msra.mxu0 %v6029
    %6712 = vmatprep.subr.bf16.mxu0 %v6024
    %6713 = vmatpush2.bf16.msra.mxu0 %v6023
    %6714 = vmatprep.subr.bf16.mxu0 %v6018
    %6715 = vmatpush2.bf16.msra.mxu0 %v6017
    %6716 = vmatprep.subr.bf16.mxu0 %v6012
    %6717 = vmatpush2.bf16.msra.mxu0 %v6011
    %6718 = vmatprep.subr.bf16.mxu0 %v6006
    %6719 = vmatpush2.bf16.msra.mxu0 %v6005
    %6720 = vmatprep.subr.bf16.mxu0 %v6000
    %6721 = vmatpush2.bf16.msra.mxu0 %v5999
    %6722 = vmatprep.subr.bf16.mxu0 %v5994
    %6723 = vmatpush2.bf16.msra.mxu0 %v5993
    %6724 = vmatprep.mubr.bf16.mxu0 %v4548
    %6725 = vmatmul.mubr.bf16.gmra.mxu0 %v4547
    %v6726 = vpop.f32.mrf.mxu0
    %v6727 = vadd.f32 %v6654, %v6726
    %v6728 = vpop.f32.mrf.mxu0
    %v6729 = vadd.f32 %v6656, %v6728
    %v6730 = vpop.f32.mrf.mxu0
    %v6731 = vadd.f32 %v6658, %v6730
    %v6732 = vpop.f32.mrf.mxu0
    %v6733 = vadd.f32 %v6660, %v6732
    %6734 = vmatprep.mubr.bf16.mxu0 %v4554
    %6735 = vmatmul.mubr.bf16.gmra.mxu0 %v4553
    %v6736 = vpop.f32.mrf.mxu0
    %v6737 = vadd.f32 %v6664, %v6736
    %v6738 = vpop.f32.mrf.mxu0
    %v6739 = vadd.f32 %v6666, %v6738
    %v6740 = vpop.f32.mrf.mxu0
    %v6741 = vadd.f32 %v6668, %v6740
    %v6742 = vpop.f32.mrf.mxu0
    %v6743 = vadd.f32 %v6670, %v6742
    %6744 = vmatprep.mubr.bf16.mxu0 %v4560
    %6745 = vmatmul.mubr.bf16.gmra.mxu0 %v4559
    %v6746 = vpop.f32.mrf.mxu0
    %v6747 = vadd.f32 %v6674, %v6746
    %v6748 = vpop.f32.mrf.mxu0
    %v6749 = vadd.f32 %v6676, %v6748
    %v6750 = vpop.f32.mrf.mxu0
    %v6751 = vadd.f32 %v6678, %v6750
    %v6752 = vpop.f32.mrf.mxu0
    %v6753 = vadd.f32 %v6680, %v6752
    %6754 = vmatprep.mubr.bf16.mxu0 %v4566
    %6755 = vmatmul.mubr.bf16.gmra.mxu0 %v4565
    %v6756 = vpop.f32.mrf.mxu0
    %v6757 = vadd.f32 %v6684, %v6756
    %v6758 = vpop.f32.mrf.mxu0
    %v6759 = vadd.f32 %v6686, %v6758
    %v6760 = vpop.f32.mrf.mxu0
    %v6761 = vadd.f32 %v6688, %v6760
    %v6762 = vpop.f32.mrf.mxu0
    %v6763 = vadd.f32 %v6690, %v6762
    %6764 = vdwg.mxu0
    %6765 = vmatprep.subr.bf16.mxu0 %v5798
    %6766 = vmatpush1.bf16.msra.mxu0 %v5797
    %6767 = vmatprep.subr.bf16.mxu0 %v5792
    %6768 = vmatpush1.bf16.msra.mxu0 %v5791
    %6769 = vmatprep.subr.bf16.mxu0 %v5786
    %6770 = vmatpush1.bf16.msra.mxu0 %v5785
    %6771 = vmatprep.subr.bf16.mxu0 %v5780
    %6772 = vmatpush1.bf16.msra.mxu0 %v5779
    %6773 = vmatprep.subr.bf16.mxu0 %v5774
    %6774 = vmatpush1.bf16.msra.mxu0 %v5773
    %6775 = vmatprep.subr.bf16.mxu0 %v5768
    %6776 = vmatpush1.bf16.msra.mxu0 %v5767
    %6777 = vmatprep.subr.bf16.mxu0 %v5762
    %6778 = vmatpush1.bf16.msra.mxu0 %v5761
    %6779 = vmatprep.subr.bf16.mxu0 %v5756
    %6780 = vmatpush1.bf16.msra.mxu0 %v5755
    %6781 = vmatprep.subr.bf16.mxu0 %v5846
    %6782 = vmatpush2.bf16.msra.mxu0 %v5845
    %6783 = vmatprep.subr.bf16.mxu0 %v5840
    %6784 = vmatpush2.bf16.msra.mxu0 %v5839
    %6785 = vmatprep.subr.bf16.mxu0 %v5834
    %6786 = vmatpush2.bf16.msra.mxu0 %v5833
    %6787 = vmatprep.subr.bf16.mxu0 %v5828
    %6788 = vmatpush2.bf16.msra.mxu0 %v5827
    %6789 = vmatprep.subr.bf16.mxu0 %v5822
    %6790 = vmatpush2.bf16.msra.mxu0 %v5821
    %6791 = vmatprep.subr.bf16.mxu0 %v5816
    %6792 = vmatpush2.bf16.msra.mxu0 %v5815
    %6793 = vmatprep.subr.bf16.mxu0 %v5810
    %6794 = vmatpush2.bf16.msra.mxu0 %v5809
    %6795 = vmatprep.subr.bf16.mxu0 %v5804
    %6796 = vmatpush2.bf16.msra.mxu0 %v5803
    %6797 = vmatprep.mubr.bf16.mxu0 %v4544
    %6798 = vmatmul.mubr.bf16.gmra.mxu0 %v4543
    %v6799 = vpop.f32.mrf.mxu0
    %v6800 = vadd.f32 %v4876, %v6799
    %v6801 = vpop.f32.mrf.mxu0
    %v6802 = vadd.f32 %v4880, %v6801
    %v6803 = vpop.f32.mrf.mxu0
    %v6804 = vadd.f32 %v4876, %v6803
    %v6805 = vpop.f32.mrf.mxu0
    %v6806 = vadd.f32 %v4880, %v6805
    %6807 = vmatprep.mubr.bf16.mxu0 %v4550
    %6808 = vmatmul.mubr.bf16.gmra.mxu0 %v4549
    %v6809 = vpop.f32.mrf.mxu0
    %v6810 = vadd.f32 %v4876, %v6809
    %v6811 = vpop.f32.mrf.mxu0
    %v6812 = vadd.f32 %v4880, %v6811
    %v6813 = vpop.f32.mrf.mxu0
    %v6814 = vadd.f32 %v4876, %v6813
    %v6815 = vpop.f32.mrf.mxu0
    %v6816 = vadd.f32 %v4880, %v6815
    %6817 = vmatprep.mubr.bf16.mxu0 %v4556
    %6818 = vmatmul.mubr.bf16.gmra.mxu0 %v4555
    %v6819 = vpop.f32.mrf.mxu0
    %v6820 = vadd.f32 %v4876, %v6819
    %v6821 = vpop.f32.mrf.mxu0
    %v6822 = vadd.f32 %v4880, %v6821
    %v6823 = vpop.f32.mrf.mxu0
    %v6824 = vadd.f32 %v4876, %v6823
    %v6825 = vpop.f32.mrf.mxu0
    %v6826 = vadd.f32 %v4880, %v6825
    %6827 = vmatprep.mubr.bf16.mxu0 %v4562
    %6828 = vmatmul.mubr.bf16.gmra.mxu0 %v4561
    %v6829 = vpop.f32.mrf.mxu0
    %v6830 = vadd.f32 %v4876, %v6829
    %v6831 = vpop.f32.mrf.mxu0
    %v6832 = vadd.f32 %v4880, %v6831
    %v6833 = vpop.f32.mrf.mxu0
    %v6834 = vadd.f32 %v4876, %v6833
    %v6835 = vpop.f32.mrf.mxu0
    %v6836 = vadd.f32 %v4880, %v6835
    %6837 = vdwg.mxu0
    %6838 = vmatprep.subr.bf16.mxu0 %v5894
    %6839 = vmatpush1.bf16.msra.mxu0 %v5893
    %6840 = vmatprep.subr.bf16.mxu0 %v5888
    %6841 = vmatpush1.bf16.msra.mxu0 %v5887
    %6842 = vmatprep.subr.bf16.mxu0 %v5882
    %6843 = vmatpush1.bf16.msra.mxu0 %v5881
    %6844 = vmatprep.subr.bf16.mxu0 %v5876
    %6845 = vmatpush1.bf16.msra.mxu0 %v5875
    %6846 = vmatprep.subr.bf16.mxu0 %v5870
    %6847 = vmatpush1.bf16.msra.mxu0 %v5869
    %6848 = vmatprep.subr.bf16.mxu0 %v5864
    %6849 = vmatpush1.bf16.msra.mxu0 %v5863
    %6850 = vmatprep.subr.bf16.mxu0 %v5858
    %6851 = vmatpush1.bf16.msra.mxu0 %v5857
    %6852 = vmatprep.subr.bf16.mxu0 %v5852
    %6853 = vmatpush1.bf16.msra.mxu0 %v5851
    %6854 = vmatprep.subr.bf16.mxu0 %v5942
    %6855 = vmatpush2.bf16.msra.mxu0 %v5941
    %6856 = vmatprep.subr.bf16.mxu0 %v5936
    %6857 = vmatpush2.bf16.msra.mxu0 %v5935
    %6858 = vmatprep.subr.bf16.mxu0 %v5930
    %6859 = vmatpush2.bf16.msra.mxu0 %v5929
    %6860 = vmatprep.subr.bf16.mxu0 %v5924
    %6861 = vmatpush2.bf16.msra.mxu0 %v5923
    %6862 = vmatprep.subr.bf16.mxu0 %v5918
    %6863 = vmatpush2.bf16.msra.mxu0 %v5917
    %6864 = vmatprep.subr.bf16.mxu0 %v5912
    %6865 = vmatpush2.bf16.msra.mxu0 %v5911
    %6866 = vmatprep.subr.bf16.mxu0 %v5906
    %6867 = vmatpush2.bf16.msra.mxu0 %v5905
    %6868 = vmatprep.subr.bf16.mxu0 %v5900
    %6869 = vmatpush2.bf16.msra.mxu0 %v5899
    %6870 = vmatprep.mubr.bf16.mxu0 %v4546
    %6871 = vmatmul.mubr.bf16.gmra.mxu0 %v4545
    %v6872 = vpop.f32.mrf.mxu0
    %v6873 = vadd.f32 %v6800, %v6872
    %v6874 = vpop.f32.mrf.mxu0
    %v6875 = vadd.f32 %v6802, %v6874
    %v6876 = vpop.f32.mrf.mxu0
    %v6877 = vadd.f32 %v6804, %v6876
    %v6878 = vpop.f32.mrf.mxu0
    %v6879 = vadd.f32 %v6806, %v6878
    %6880 = vmatprep.mubr.bf16.mxu0 %v4552
    %6881 = vmatmul.mubr.bf16.gmra.mxu0 %v4551
    %v6882 = vpop.f32.mrf.mxu0
    %v6883 = vadd.f32 %v6810, %v6882
    %v6884 = vpop.f32.mrf.mxu0
    %v6885 = vadd.f32 %v6812, %v6884
    %v6886 = vpop.f32.mrf.mxu0
    %v6887 = vadd.f32 %v6814, %v6886
    %v6888 = vpop.f32.mrf.mxu0
    %v6889 = vadd.f32 %v6816, %v6888
    %6890 = vmatprep.mubr.bf16.mxu0 %v4558
    %6891 = vmatmul.mubr.bf16.gmra.mxu0 %v4557
    %v6892 = vpop.f32.mrf.mxu0
    %v6893 = vadd.f32 %v6820, %v6892
    %v6894 = vpop.f32.mrf.mxu0
    %v6895 = vadd.f32 %v6822, %v6894
    %v6896 = vpop.f32.mrf.mxu0
    %v6897 = vadd.f32 %v6824, %v6896
    %v6898 = vpop.f32.mrf.mxu0
    %v6899 = vadd.f32 %v6826, %v6898
    %6900 = vmatprep.mubr.bf16.mxu0 %v4564
    %6901 = vmatmul.mubr.bf16.gmra.mxu0 %v4563
    %v6902 = vpop.f32.mrf.mxu0
    %v6903 = vadd.f32 %v6830, %v6902
    %v6904 = vpop.f32.mrf.mxu0
    %v6905 = vadd.f32 %v6832, %v6904
    %v6906 = vpop.f32.mrf.mxu0
    %v6907 = vadd.f32 %v6834, %v6906
    %v6908 = vpop.f32.mrf.mxu0
    %v6909 = vadd.f32 %v6836, %v6908
    %6910 = vdwg.mxu0
    %6911 = vmatprep.subr.bf16.mxu0 %v5990
    %6912 = vmatpush1.bf16.msra.mxu0 %v5989
    %6913 = vmatprep.subr.bf16.mxu0 %v5984
    %6914 = vmatpush1.bf16.msra.mxu0 %v5983
    %6915 = vmatprep.subr.bf16.mxu0 %v5978
    %6916 = vmatpush1.bf16.msra.mxu0 %v5977
    %6917 = vmatprep.subr.bf16.mxu0 %v5972
    %6918 = vmatpush1.bf16.msra.mxu0 %v5971
    %6919 = vmatprep.subr.bf16.mxu0 %v5966
    %6920 = vmatpush1.bf16.msra.mxu0 %v5965
    %6921 = vmatprep.subr.bf16.mxu0 %v5960
    %6922 = vmatpush1.bf16.msra.mxu0 %v5959
    %6923 = vmatprep.subr.bf16.mxu0 %v5954
    %6924 = vmatpush1.bf16.msra.mxu0 %v5953
    %6925 = vmatprep.subr.bf16.mxu0 %v5948
    %6926 = vmatpush1.bf16.msra.mxu0 %v5947
    %6927 = vmatprep.subr.bf16.mxu0 %v6038
    %6928 = vmatpush2.bf16.msra.mxu0 %v6037
    %6929 = vmatprep.subr.bf16.mxu0 %v6032
    %6930 = vmatpush2.bf16.msra.mxu0 %v6031
    %6931 = vmatprep.subr.bf16.mxu0 %v6026
    %6932 = vmatpush2.bf16.msra.mxu0 %v6025
    %6933 = vmatprep.subr.bf16.mxu0 %v6020
    %6934 = vmatpush2.bf16.msra.mxu0 %v6019
    %6935 = vmatprep.subr.bf16.mxu0 %v6014
    %6936 = vmatpush2.bf16.msra.mxu0 %v6013
    %6937 = vmatprep.subr.bf16.mxu0 %v6008
    %6938 = vmatpush2.bf16.msra.mxu0 %v6007
    %6939 = vmatprep.subr.bf16.mxu0 %v6002
    %6940 = vmatpush2.bf16.msra.mxu0 %v6001
    %6941 = vmatprep.subr.bf16.mxu0 %v5996
    %6942 = vmatpush2.bf16.msra.mxu0 %v5995
    %6943 = vmatprep.mubr.bf16.mxu0 %v4548
    %6944 = vmatmul.mubr.bf16.gmra.mxu0 %v4547
    %v6945 = vpop.f32.mrf.mxu0
    %v6946 = vadd.f32 %v6873, %v6945
    %v6947 = vpop.f32.mrf.mxu0
    %v6948 = vadd.f32 %v6875, %v6947
    %v6949 = vpop.f32.mrf.mxu0
    %v6950 = vadd.f32 %v6877, %v6949
    %v6951 = vpop.f32.mrf.mxu0
    %v6952 = vadd.f32 %v6879, %v6951
    %6953 = vmatprep.mubr.bf16.mxu0 %v4554
    %6954 = vmatmul.mubr.bf16.gmra.mxu0 %v4553
    %v6955 = vpop.f32.mrf.mxu0
    %v6956 = vadd.f32 %v6883, %v6955
    %v6957 = vpop.f32.mrf.mxu0
    %v6958 = vadd.f32 %v6885, %v6957
    %v6959 = vpop.f32.mrf.mxu0
    %v6960 = vadd.f32 %v6887, %v6959
    %v6961 = vpop.f32.mrf.mxu0
    %v6962 = vadd.f32 %v6889, %v6961
    %6963 = vmatprep.mubr.bf16.mxu0 %v4560
    %6964 = vmatmul.mubr.bf16.gmra.mxu0 %v4559
    %v6965 = vpop.f32.mrf.mxu0
    %v6966 = vadd.f32 %v6893, %v6965
    %v6967 = vpop.f32.mrf.mxu0
    %v6968 = vadd.f32 %v6895, %v6967
    %v6969 = vpop.f32.mrf.mxu0
    %v6970 = vadd.f32 %v6897, %v6969
    %v6971 = vpop.f32.mrf.mxu0
    %v6972 = vadd.f32 %v6899, %v6971
    %6973 = vmatprep.mubr.bf16.mxu0 %v4566
    %6974 = vmatmul.mubr.bf16.gmra.mxu0 %v4565
    %v6975 = vpop.f32.mrf.mxu0
    %v6976 = vadd.f32 %v6903, %v6975
    %v6977 = vpop.f32.mrf.mxu0
    %v6978 = vadd.f32 %v6905, %v6977
    %v6979 = vpop.f32.mrf.mxu0
    %v6980 = vadd.f32 %v6907, %v6979
    %v6981 = vpop.f32.mrf.mxu0
    %v6982 = vadd.f32 %v6909, %v6981
    %6983 = vdwg.mxu0
    %v6984 = vmax.f32 %v6508, 0.0
    %v6985 = vmax.f32 %v6510, 0.0
    %v6986 = vmax.f32 %v6727, 0.0
    %v6987 = vmax.f32 %v6729, 0.0
    %v6988 = vmax.f32 %v6946, 0.0
    %v6989 = vmax.f32 %v6948, 0.0
    %v6990 = vmax.f32 %v6512, 0.0
    %v6991 = vmax.f32 %v6514, 0.0
    %v6992 = vmax.f32 %v6731, 0.0
    %v6993 = vmax.f32 %v6733, 0.0
    %v6994 = vmax.f32 %v6950, 0.0
    %v6995 = vmax.f32 %v6952, 0.0
    %v6996 = vmax.f32 %v6518, 0.0
    %v6997 = vmax.f32 %v6520, 0.0
    %v6998 = vmax.f32 %v6737, 0.0
    %v6999 = vmax.f32 %v6739, 0.0
    %v7000 = vmax.f32 %v6956, 0.0
    %v7001 = vmax.f32 %v6958, 0.0
    %v7002 = vmax.f32 %v6522, 0.0
    %v7003 = vmax.f32 %v6524, 0.0
    %v7004 = vmax.f32 %v6741, 0.0
    %v7005 = vmax.f32 %v6743, 0.0
    %v7006 = vmax.f32 %v6960, 0.0
    %v7007 = vmax.f32 %v6962, 0.0
    %v7008 = vmax.f32 %v6528, 0.0
    %v7009 = vmax.f32 %v6530, 0.0
    %v7010 = vmax.f32 %v6747, 0.0
    %v7011 = vmax.f32 %v6749, 0.0
    %v7012 = vmax.f32 %v6966, 0.0
    %v7013 = vmax.f32 %v6968, 0.0
    %v7014 = vmax.f32 %v6532, 0.0
    %v7015 = vmax.f32 %v6534, 0.0
    %v7016 = vmax.f32 %v6751, 0.0
    %v7017 = vmax.f32 %v6753, 0.0
    %v7018 = vmax.f32 %v6970, 0.0
    %v7019 = vmax.f32 %v6972, 0.0
    %v7020 = vmax.f32 %v6538, 0.0
    %v7021 = vmax.f32 %v6540, 0.0
    %v7022 = vmax.f32 %v6757, 0.0
    %v7023 = vmax.f32 %v6759, 0.0
    %v7024 = vmax.f32 %v6976, 0.0
    %v7025 = vmax.f32 %v6978, 0.0
    %v7026 = vmax.f32 %v6542, 0.0
    %v7027 = vmax.f32 %v6544, 0.0
    %v7028 = vmax.f32 %v6761, 0.0
    %v7029 = vmax.f32 %v6763, 0.0
    %v7030 = vmax.f32 %v6980, 0.0
    %v7031 = vmax.f32 %v6982, 0.0
    %v7032 = vpack.c.bf16 %v6990, %v6984
    %v7033 = vpack.c.bf16 %v6991, %v6985
    %v7034 = vpack.c.bf16 %v6992, %v6986
    %v7035 = vpack.c.bf16 %v6993, %v6987
    %v7036 = vpack.c.bf16 %v6994, %v6988
    %v7037 = vpack.c.bf16 %v6995, %v6989
    %v7038 = vpack.c.bf16 %v7002, %v6996
    %v7039 = vpack.c.bf16 %v7003, %v6997
    %v7040 = vpack.c.bf16 %v7004, %v6998
    %v7041 = vpack.c.bf16 %v7005, %v6999
    %v7042 = vpack.c.bf16 %v7006, %v7000
    %v7043 = vpack.c.bf16 %v7007, %v7001
    %v7044 = vpack.c.bf16 %v7014, %v7008
    %v7045 = vpack.c.bf16 %v7015, %v7009
    %v7046 = vpack.c.bf16 %v7016, %v7010
    %v7047 = vpack.c.bf16 %v7017, %v7011
    %v7048 = vpack.c.bf16 %v7018, %v7012
    %v7049 = vpack.c.bf16 %v7019, %v7013
    %v7050 = vpack.c.bf16 %v7026, %v7020
    %v7051 = vpack.c.bf16 %v7027, %v7021
    %v7052 = vpack.c.bf16 %v7028, %v7022
    %v7053 = vpack.c.bf16 %v7029, %v7023
    %v7054 = vpack.c.bf16 %v7030, %v7024
    %v7055 = vpack.c.bf16 %v7031, %v7025
    %v7056 = vld [vmem:[%s14] sm:$0xf]
    %v7057 = vld [vmem:[%s14 + $0x4] sm:$0xf]
    %v7058 = vld [vmem:[%s14 + $0x8] sm:$0xf]
    %v7059 = vld [vmem:[%s14 + $0xc] sm:$0xf]
    %v7060 = vld [vmem:[%s14 + $0x10] sm:$0xf]
    %v7061 = vld [vmem:[%s14 + $0x14] sm:$0xf]
    %v7062 = vld [vmem:[%s14 + $0x18] sm:$0xf]
    %v7063 = vld [vmem:[%s14 + $0x1c] sm:$0xf]
    %v7064 = vld [vmem:[%s14 + $0x20] sm:$0xf]
    %v7065 = vld [vmem:[%s14 + $0x24] sm:$0xf]
    %v7066 = vld [vmem:[%s14 + $0x28] sm:$0xf]
    %v7067 = vld [vmem:[%s14 + $0x2c] sm:$0xf]
    %v7068 = vld [vmem:[%s14 + $0x30] sm:$0xf]
    %v7069 = vld [vmem:[%s14 + $0x34] sm:$0xf]
    %v7070 = vld [vmem:[%s14 + $0x38] sm:$0xf]
    %v7071 = vld [vmem:[%s14 + $0x3c] sm:$0xf]
    %v7072 = vld [vmem:[%s14 + $0x40] sm:$0xf]
    %v7073 = vld [vmem:[%s14 + $0x44] sm:$0xf]
    %v7074 = vld [vmem:[%s14 + $0x48] sm:$0xf]
    %v7075 = vld [vmem:[%s14 + $0x4c] sm:$0xf]
    %v7076 = vld [vmem:[%s14 + $0x50] sm:$0xf]
    %v7077 = vld [vmem:[%s14 + $0x54] sm:$0xf]
    %v7078 = vld [vmem:[%s14 + $0x58] sm:$0xf]
    %v7079 = vld [vmem:[%s14 + $0x5c] sm:$0xf]
    %v7080 = vld [vmem:[%s14 + $0x60] sm:$0xf]
    %v7081 = vld [vmem:[%s14 + $0x64] sm:$0xf]
    %v7082 = vld [vmem:[%s14 + $0x68] sm:$0xf]
    %v7083 = vld [vmem:[%s14 + $0x6c] sm:$0xf]
    %v7084 = vld [vmem:[%s14 + $0x70] sm:$0xf]
    %v7085 = vld [vmem:[%s14 + $0x74] sm:$0xf]
    %v7086 = vld [vmem:[%s14 + $0x78] sm:$0xf]
    %v7087 = vld [vmem:[%s14 + $0x7c] sm:$0xf]
    %v7088 = vld [vmem:[%s14 + $0x80] sm:$0xf]
    %v7089 = vld [vmem:[%s14 + $0x84] sm:$0xf]
    %v7090 = vld [vmem:[%s14 + $0x88] sm:$0xf]
    %v7091 = vld [vmem:[%s14 + $0x8c] sm:$0xf]
    %v7092 = vld [vmem:[%s14 + $0x90] sm:$0xf]
    %v7093 = vld [vmem:[%s14 + $0x94] sm:$0xf]
    %v7094 = vld [vmem:[%s14 + $0x98] sm:$0xf]
    %v7095 = vld [vmem:[%s14 + $0x9c] sm:$0xf]
    %v7096 = vld [vmem:[%s14 + $0xa0] sm:$0xf]
    %v7097 = vld [vmem:[%s14 + $0xa4] sm:$0xf]
    %v7098 = vld [vmem:[%s14 + $0xa8] sm:$0xf]
    %v7099 = vld [vmem:[%s14 + $0xac] sm:$0xf]
    %v7100 = vld [vmem:[%s14 + $0xb0] sm:$0xf]
    %v7101 = vld [vmem:[%s14 + $0xb4] sm:$0xf]
    %v7102 = vld [vmem:[%s14 + $0xb8] sm:$0xf]
    %v7103 = vld [vmem:[%s14 + $0xbc] sm:$0xf]
    %v7104 = vld [vmem:[%s14 + $0xc0] sm:$0xf]
    %v7105 = vld [vmem:[%s14 + $0xc4] sm:$0xf]
    %v7106 = vld [vmem:[%s14 + $0xc8] sm:$0xf]
    %v7107 = vld [vmem:[%s14 + $0xcc] sm:$0xf]
    %v7108 = vld [vmem:[%s14 + $0xd0] sm:$0xf]
    %v7109 = vld [vmem:[%s14 + $0xd4] sm:$0xf]
    %v7110 = vld [vmem:[%s14 + $0xd8] sm:$0xf]
    %v7111 = vld [vmem:[%s14 + $0xdc] sm:$0xf]
    %v7112 = vld [vmem:[%s14 + $0xe0] sm:$0xf]
    %v7113 = vld [vmem:[%s14 + $0xe4] sm:$0xf]
    %v7114 = vld [vmem:[%s14 + $0xe8] sm:$0xf]
    %v7115 = vld [vmem:[%s14 + $0xec] sm:$0xf]
    %v7116 = vld [vmem:[%s14 + $0xf0] sm:$0xf]
    %v7117 = vld [vmem:[%s14 + $0xf4] sm:$0xf]
    %v7118 = vld [vmem:[%s14 + $0xf8] sm:$0xf]
    %v7119 = vld [vmem:[%s14 + $0xfc] sm:$0xf]
    %v7120 = vld [vmem:[%s14 + $0x100] sm:$0xf]
    %v7121 = vld [vmem:[%s14 + $0x104] sm:$0xf]
    %v7122 = vld [vmem:[%s14 + $0x108] sm:$0xf]
    %v7123 = vld [vmem:[%s14 + $0x10c] sm:$0xf]
    %v7124 = vld [vmem:[%s14 + $0x110] sm:$0xf]
    %v7125 = vld [vmem:[%s14 + $0x114] sm:$0xf]
    %v7126 = vld [vmem:[%s14 + $0x118] sm:$0xf]
    %v7127 = vld [vmem:[%s14 + $0x11c] sm:$0xf]
    %v7128 = vld [vmem:[%s14 + $0x120] sm:$0xf]
    %v7129 = vld [vmem:[%s14 + $0x124] sm:$0xf]
    %v7130 = vld [vmem:[%s14 + $0x128] sm:$0xf]
    %v7131 = vld [vmem:[%s14 + $0x12c] sm:$0xf]
    %v7132 = vld [vmem:[%s14 + $0x130] sm:$0xf]
    %v7133 = vld [vmem:[%s14 + $0x134] sm:$0xf]
    %v7134 = vld [vmem:[%s14 + $0x138] sm:$0xf]
    %v7135 = vld [vmem:[%s14 + $0x13c] sm:$0xf]
    %v7136 = vld [vmem:[%s14 + $0x140] sm:$0xf]
    %v7137 = vld [vmem:[%s14 + $0x144] sm:$0xf]
    %v7138 = vld [vmem:[%s14 + $0x148] sm:$0xf]
    %v7139 = vld [vmem:[%s14 + $0x14c] sm:$0xf]
    %v7140 = vld [vmem:[%s14 + $0x150] sm:$0xf]
    %v7141 = vld [vmem:[%s14 + $0x154] sm:$0xf]
    %v7142 = vld [vmem:[%s14 + $0x158] sm:$0xf]
    %v7143 = vld [vmem:[%s14 + $0x15c] sm:$0xf]
    %v7144 = vld [vmem:[%s14 + $0x160] sm:$0xf]
    %v7145 = vld [vmem:[%s14 + $0x164] sm:$0xf]
    %v7146 = vld [vmem:[%s14 + $0x168] sm:$0xf]
    %v7147 = vld [vmem:[%s14 + $0x16c] sm:$0xf]
    %v7148 = vld [vmem:[%s14 + $0x170] sm:$0xf]
    %v7149 = vld [vmem:[%s14 + $0x174] sm:$0xf]
    %v7150 = vld [vmem:[%s14 + $0x178] sm:$0xf]
    %v7151 = vld [vmem:[%s14 + $0x17c] sm:$0xf]
    %v7152 = vld [vmem:[#allocation19] sm:$0x1]
    %v7154 = vlaneseq
    %v7155 = vshrl.u32 %v7154, 7
    %v7156 = vsub.s32 0, %v7155
    %v7157 = vrot.slane %v7152, %v7156
    %v7255 = vunpack.c.l.b16 %v7056
    %v7256 = vunpack.c.l.b16 %v7057
    %v7257 = vunpack.c.l.b16 %v7058
    %v7258 = vunpack.c.l.b16 %v7059
    %v7259 = vunpack.c.l.b16 %v7060
    %v7260 = vunpack.c.l.b16 %v7061
    %v7261 = vunpack.c.l.b16 %v7062
    %v7262 = vunpack.c.l.b16 %v7063
    %v7263 = vunpack.c.l.b16 %v7064
    %v7264 = vunpack.c.l.b16 %v7065
    %v7265 = vunpack.c.l.b16 %v7066
    %v7266 = vunpack.c.l.b16 %v7067
    %v7267 = vunpack.c.l.b16 %v7068
    %v7268 = vunpack.c.l.b16 %v7069
    %v7269 = vunpack.c.l.b16 %v7070
    %v7270 = vunpack.c.l.b16 %v7071
    %v7271 = vunpack.c.l.b16 %v7072
    %v7272 = vunpack.c.l.b16 %v7073
    %v7273 = vunpack.c.l.b16 %v7074
    %v7274 = vunpack.c.l.b16 %v7075
    %v7275 = vunpack.c.l.b16 %v7076
    %v7276 = vunpack.c.l.b16 %v7077
    %v7277 = vunpack.c.l.b16 %v7078
    %v7278 = vunpack.c.l.b16 %v7079
    %v7279 = vunpack.c.l.b16 %v7080
    %v7280 = vunpack.c.l.b16 %v7081
    %v7281 = vunpack.c.l.b16 %v7082
    %v7282 = vunpack.c.l.b16 %v7083
    %v7283 = vunpack.c.l.b16 %v7084
    %v7284 = vunpack.c.l.b16 %v7085
    %v7285 = vunpack.c.l.b16 %v7086
    %v7286 = vunpack.c.l.b16 %v7087
    %v7287 = vunpack.c.l.b16 %v7088
    %v7288 = vunpack.c.l.b16 %v7089
    %v7289 = vunpack.c.l.b16 %v7090
    %v7290 = vunpack.c.l.b16 %v7091
    %v7291 = vunpack.c.l.b16 %v7092
    %v7292 = vunpack.c.l.b16 %v7093
    %v7293 = vunpack.c.l.b16 %v7094
    %v7294 = vunpack.c.l.b16 %v7095
    %v7295 = vunpack.c.l.b16 %v7096
    %v7296 = vunpack.c.l.b16 %v7097
    %v7297 = vunpack.c.l.b16 %v7098
    %v7298 = vunpack.c.l.b16 %v7099
    %v7299 = vunpack.c.l.b16 %v7100
    %v7300 = vunpack.c.l.b16 %v7101
    %v7301 = vunpack.c.l.b16 %v7102
    %v7302 = vunpack.c.l.b16 %v7103
    %v7303 = vunpack.c.l.b16 %v7104
    %v7304 = vunpack.c.l.b16 %v7105
    %v7305 = vunpack.c.l.b16 %v7106
    %v7306 = vunpack.c.l.b16 %v7107
    %v7307 = vunpack.c.l.b16 %v7108
    %v7308 = vunpack.c.l.b16 %v7109
    %v7309 = vunpack.c.l.b16 %v7110
    %v7310 = vunpack.c.l.b16 %v7111
    %v7311 = vunpack.c.l.b16 %v7112
    %v7312 = vunpack.c.l.b16 %v7113
    %v7313 = vunpack.c.l.b16 %v7114
    %v7314 = vunpack.c.l.b16 %v7115
    %v7315 = vunpack.c.l.b16 %v7116
    %v7316 = vunpack.c.l.b16 %v7117
    %v7317 = vunpack.c.l.b16 %v7118
    %v7318 = vunpack.c.l.b16 %v7119
    %v7319 = vunpack.c.l.b16 %v7120
    %v7320 = vunpack.c.l.b16 %v7121
    %v7321 = vunpack.c.l.b16 %v7122
    %v7322 = vunpack.c.l.b16 %v7123
    %v7323 = vunpack.c.l.b16 %v7124
    %v7324 = vunpack.c.l.b16 %v7125
    %v7325 = vunpack.c.l.b16 %v7126
    %v7326 = vunpack.c.l.b16 %v7127
    %v7327 = vunpack.c.l.b16 %v7128
    %v7328 = vunpack.c.l.b16 %v7129
    %v7329 = vunpack.c.l.b16 %v7130
    %v7330 = vunpack.c.l.b16 %v7131
    %v7331 = vunpack.c.l.b16 %v7132
    %v7332 = vunpack.c.l.b16 %v7133
    %v7333 = vunpack.c.l.b16 %v7134
    %v7334 = vunpack.c.l.b16 %v7135
    %v7335 = vunpack.c.l.b16 %v7136
    %v7336 = vunpack.c.l.b16 %v7137
    %v7337 = vunpack.c.l.b16 %v7138
    %v7338 = vunpack.c.l.b16 %v7139
    %v7339 = vunpack.c.l.b16 %v7140
    %v7340 = vunpack.c.l.b16 %v7141
    %v7341 = vunpack.c.l.b16 %v7142
    %v7342 = vunpack.c.l.b16 %v7143
    %v7343 = vunpack.c.l.b16 %v7144
    %v7344 = vunpack.c.l.b16 %v7145
    %v7345 = vunpack.c.l.b16 %v7146
    %v7346 = vunpack.c.l.b16 %v7147
    %v7347 = vunpack.c.l.b16 %v7148
    %v7348 = vunpack.c.l.b16 %v7149
    %v7349 = vunpack.c.l.b16 %v7150
    %v7350 = vunpack.c.l.b16 %v7151
    %v7351 = vpack.c.b16 %v7256, %v7255
    %v7352 = vpack.c.b16 %v7258, %v7257
    %v7353 = vpack.c.b16 %v7260, %v7259
    %v7354 = vpack.c.b16 %v7262, %v7261
    %v7355 = vpack.c.b16 %v7264, %v7263
    %v7356 = vpack.c.b16 %v7266, %v7265
    %v7357 = vpack.c.b16 %v7268, %v7267
    %v7358 = vpack.c.b16 %v7270, %v7269
    %v7359 = vpack.c.b16 %v7272, %v7271
    %v7360 = vpack.c.b16 %v7274, %v7273
    %v7361 = vpack.c.b16 %v7276, %v7275
    %v7362 = vpack.c.b16 %v7278, %v7277
    %v7363 = vpack.c.b16 %v7280, %v7279
    %v7364 = vpack.c.b16 %v7282, %v7281
    %v7365 = vpack.c.b16 %v7284, %v7283
    %v7366 = vpack.c.b16 %v7286, %v7285
    %v7367 = vpack.c.b16 %v7288, %v7287
    %v7368 = vpack.c.b16 %v7290, %v7289
    %v7369 = vpack.c.b16 %v7292, %v7291
    %v7370 = vpack.c.b16 %v7294, %v7293
    %v7371 = vpack.c.b16 %v7296, %v7295
    %v7372 = vpack.c.b16 %v7298, %v7297
    %v7373 = vpack.c.b16 %v7300, %v7299
    %v7374 = vpack.c.b16 %v7302, %v7301
    %v7375 = vpack.c.b16 %v7304, %v7303
    %v7376 = vpack.c.b16 %v7306, %v7305
    %v7377 = vpack.c.b16 %v7308, %v7307
    %v7378 = vpack.c.b16 %v7310, %v7309
    %v7379 = vpack.c.b16 %v7312, %v7311
    %v7380 = vpack.c.b16 %v7314, %v7313
    %v7381 = vpack.c.b16 %v7316, %v7315
    %v7382 = vpack.c.b16 %v7318, %v7317
    %v7383 = vpack.c.b16 %v7320, %v7319
    %v7384 = vpack.c.b16 %v7322, %v7321
    %v7385 = vpack.c.b16 %v7324, %v7323
    %v7386 = vpack.c.b16 %v7326, %v7325
    %v7387 = vpack.c.b16 %v7328, %v7327
    %v7388 = vpack.c.b16 %v7330, %v7329
    %v7389 = vpack.c.b16 %v7332, %v7331
    %v7390 = vpack.c.b16 %v7334, %v7333
    %v7391 = vpack.c.b16 %v7336, %v7335
    %v7392 = vpack.c.b16 %v7338, %v7337
    %v7393 = vpack.c.b16 %v7340, %v7339
    %v7394 = vpack.c.b16 %v7342, %v7341
    %v7395 = vpack.c.b16 %v7344, %v7343
    %v7396 = vpack.c.b16 %v7346, %v7345
    %v7397 = vpack.c.b16 %v7348, %v7347
    %v7398 = vpack.c.b16 %v7350, %v7349
    %7447 = vmatprep.subr.bf16.mxu0 0
    %7448 = vmatpush1.bf16.msra.mxu0 %v7358
    %7449 = vmatprep.subr.bf16.mxu0 0
    %7450 = vmatpush1.bf16.msra.mxu0 %v7357
    %7451 = vmatprep.subr.bf16.mxu0 0
    %7452 = vmatpush1.bf16.msra.mxu0 %v7356
    %7453 = vmatprep.subr.bf16.mxu0 0
    %7454 = vmatpush1.bf16.msra.mxu0 %v7355
    %7455 = vmatprep.subr.bf16.mxu0 0
    %7456 = vmatpush1.bf16.msra.mxu0 %v7354
    %7457 = vmatprep.subr.bf16.mxu0 0
    %7458 = vmatpush1.bf16.msra.mxu0 %v7353
    %7459 = vmatprep.subr.bf16.mxu0 0
    %7460 = vmatpush1.bf16.msra.mxu0 %v7352
    %7461 = vmatprep.subr.bf16.mxu0 0
    %7462 = vmatpush1.bf16.msra.mxu0 %v7351
    %7463 = vmatprep.subr.bf16.mxu0 0
    %7464 = vmatpush2.bf16.msra.mxu0 %v7366
    %7465 = vmatprep.subr.bf16.mxu0 0
    %7466 = vmatpush2.bf16.msra.mxu0 %v7365
    %7467 = vmatprep.subr.bf16.mxu0 0
    %7468 = vmatpush2.bf16.msra.mxu0 %v7364
    %7469 = vmatprep.subr.bf16.mxu0 0
    %7470 = vmatpush2.bf16.msra.mxu0 %v7363
    %7471 = vmatprep.subr.bf16.mxu0 0
    %7472 = vmatpush2.bf16.msra.mxu0 %v7362
    %7473 = vmatprep.subr.bf16.mxu0 0
    %7474 = vmatpush2.bf16.msra.mxu0 %v7361
    %7475 = vmatprep.subr.bf16.mxu0 0
    %7476 = vmatpush2.bf16.msra.mxu0 %v7360
    %7477 = vmatprep.subr.bf16.mxu0 0
    %7478 = vmatpush2.bf16.msra.mxu0 %v7359
    %7479 = vmatprep.mubr.bf16.mxu0 %v7033
    %7480 = vmatmul.mubr.bf16.gmra.mxu0 %v7032
    %v7481 = vpop.f32.mrf.mxu0
    %v7482 = vadd.f32 %v7157, %v7481
    %v7483 = vpop.f32.mrf.mxu0
    %v7484 = vpop.f32.mrf.mxu0
    %v7485 = vadd.f32 %v7157, %v7484
    %v7486 = vpop.f32.mrf.mxu0
    %7487 = vmatprep.mubr.bf16.mxu0 %v7039
    %7488 = vmatmul.mubr.bf16.gmra.mxu0 %v7038
    %v7489 = vpop.f32.mrf.mxu0
    %v7490 = vadd.f32 %v7157, %v7489
    %v7491 = vpop.f32.mrf.mxu0
    %v7492 = vpop.f32.mrf.mxu0
    %v7493 = vadd.f32 %v7157, %v7492
    %v7494 = vpop.f32.mrf.mxu0
    %7495 = vmatprep.mubr.bf16.mxu0 %v7045
    %7496 = vmatmul.mubr.bf16.gmra.mxu0 %v7044
    %v7497 = vpop.f32.mrf.mxu0
    %v7498 = vadd.f32 %v7157, %v7497
    %v7499 = vpop.f32.mrf.mxu0
    %v7500 = vpop.f32.mrf.mxu0
    %v7501 = vadd.f32 %v7157, %v7500
    %v7502 = vpop.f32.mrf.mxu0
    %7503 = vmatprep.mubr.bf16.mxu0 %v7051
    %7504 = vmatmul.mubr.bf16.gmra.mxu0 %v7050
    %v7505 = vpop.f32.mrf.mxu0
    %v7506 = vadd.f32 %v7157, %v7505
    %v7507 = vpop.f32.mrf.mxu0
    %v7508 = vpop.f32.mrf.mxu0
    %v7509 = vadd.f32 %v7157, %v7508
    %v7510 = vpop.f32.mrf.mxu0
    %7511 = vdwg.mxu0
    %7512 = vmatprep.subr.bf16.mxu0 0
    %7513 = vmatpush1.bf16.msra.mxu0 %v7374
    %7514 = vmatprep.subr.bf16.mxu0 0
    %7515 = vmatpush1.bf16.msra.mxu0 %v7373
    %7516 = vmatprep.subr.bf16.mxu0 0
    %7517 = vmatpush1.bf16.msra.mxu0 %v7372
    %7518 = vmatprep.subr.bf16.mxu0 0
    %7519 = vmatpush1.bf16.msra.mxu0 %v7371
    %7520 = vmatprep.subr.bf16.mxu0 0
    %7521 = vmatpush1.bf16.msra.mxu0 %v7370
    %7522 = vmatprep.subr.bf16.mxu0 0
    %7523 = vmatpush1.bf16.msra.mxu0 %v7369
    %7524 = vmatprep.subr.bf16.mxu0 0
    %7525 = vmatpush1.bf16.msra.mxu0 %v7368
    %7526 = vmatprep.subr.bf16.mxu0 0
    %7527 = vmatpush1.bf16.msra.mxu0 %v7367
    %7528 = vmatprep.subr.bf16.mxu0 0
    %7529 = vmatpush2.bf16.msra.mxu0 %v7382
    %7530 = vmatprep.subr.bf16.mxu0 0
    %7531 = vmatpush2.bf16.msra.mxu0 %v7381
    %7532 = vmatprep.subr.bf16.mxu0 0
    %7533 = vmatpush2.bf16.msra.mxu0 %v7380
    %7534 = vmatprep.subr.bf16.mxu0 0
    %7535 = vmatpush2.bf16.msra.mxu0 %v7379
    %7536 = vmatprep.subr.bf16.mxu0 0
    %7537 = vmatpush2.bf16.msra.mxu0 %v7378
    %7538 = vmatprep.subr.bf16.mxu0 0
    %7539 = vmatpush2.bf16.msra.mxu0 %v7377
    %7540 = vmatprep.subr.bf16.mxu0 0
    %7541 = vmatpush2.bf16.msra.mxu0 %v7376
    %7542 = vmatprep.subr.bf16.mxu0 0
    %7543 = vmatpush2.bf16.msra.mxu0 %v7375
    %7544 = vmatprep.mubr.bf16.mxu0 %v7035
    %7545 = vmatmul.mubr.bf16.gmra.mxu0 %v7034
    %v7546 = vpop.f32.mrf.mxu0
    %v7547 = vadd.f32 %v7482, %v7546
    %v7548 = vpop.f32.mrf.mxu0
    %v7549 = vpop.f32.mrf.mxu0
    %v7550 = vadd.f32 %v7485, %v7549
    %v7551 = vpop.f32.mrf.mxu0
    %7552 = vmatprep.mubr.bf16.mxu0 %v7041
    %7553 = vmatmul.mubr.bf16.gmra.mxu0 %v7040
    %v7554 = vpop.f32.mrf.mxu0
    %v7555 = vadd.f32 %v7490, %v7554
    %v7556 = vpop.f32.mrf.mxu0
    %v7557 = vpop.f32.mrf.mxu0
    %v7558 = vadd.f32 %v7493, %v7557
    %v7559 = vpop.f32.mrf.mxu0
    %7560 = vmatprep.mubr.bf16.mxu0 %v7047
    %7561 = vmatmul.mubr.bf16.gmra.mxu0 %v7046
    %v7562 = vpop.f32.mrf.mxu0
    %v7563 = vadd.f32 %v7498, %v7562
    %v7564 = vpop.f32.mrf.mxu0
    %v7565 = vpop.f32.mrf.mxu0
    %v7566 = vadd.f32 %v7501, %v7565
    %v7567 = vpop.f32.mrf.mxu0
    %7568 = vmatprep.mubr.bf16.mxu0 %v7053
    %7569 = vmatmul.mubr.bf16.gmra.mxu0 %v7052
    %v7570 = vpop.f32.mrf.mxu0
    %v7571 = vadd.f32 %v7506, %v7570
    %v7572 = vpop.f32.mrf.mxu0
    %v7573 = vpop.f32.mrf.mxu0
    %v7574 = vadd.f32 %v7509, %v7573
    %v7575 = vpop.f32.mrf.mxu0
    %7576 = vdwg.mxu0
    %7577 = vmatprep.subr.bf16.mxu0 0
    %7578 = vmatpush1.bf16.msra.mxu0 %v7390
    %7579 = vmatprep.subr.bf16.mxu0 0
    %7580 = vmatpush1.bf16.msra.mxu0 %v7389
    %7581 = vmatprep.subr.bf16.mxu0 0
    %7582 = vmatpush1.bf16.msra.mxu0 %v7388
    %7583 = vmatprep.subr.bf16.mxu0 0
    %7584 = vmatpush1.bf16.msra.mxu0 %v7387
    %7585 = vmatprep.subr.bf16.mxu0 0
    %7586 = vmatpush1.bf16.msra.mxu0 %v7386
    %7587 = vmatprep.subr.bf16.mxu0 0
    %7588 = vmatpush1.bf16.msra.mxu0 %v7385
    %7589 = vmatprep.subr.bf16.mxu0 0
    %7590 = vmatpush1.bf16.msra.mxu0 %v7384
    %7591 = vmatprep.subr.bf16.mxu0 0
    %7592 = vmatpush1.bf16.msra.mxu0 %v7383
    %7593 = vmatprep.subr.bf16.mxu0 0
    %7594 = vmatpush2.bf16.msra.mxu0 %v7398
    %7595 = vmatprep.subr.bf16.mxu0 0
    %7596 = vmatpush2.bf16.msra.mxu0 %v7397
    %7597 = vmatprep.subr.bf16.mxu0 0
    %7598 = vmatpush2.bf16.msra.mxu0 %v7396
    %7599 = vmatprep.subr.bf16.mxu0 0
    %7600 = vmatpush2.bf16.msra.mxu0 %v7395
    %7601 = vmatprep.subr.bf16.mxu0 0
    %7602 = vmatpush2.bf16.msra.mxu0 %v7394
    %7603 = vmatprep.subr.bf16.mxu0 0
    %7604 = vmatpush2.bf16.msra.mxu0 %v7393
    %7605 = vmatprep.subr.bf16.mxu0 0
    %7606 = vmatpush2.bf16.msra.mxu0 %v7392
    %7607 = vmatprep.subr.bf16.mxu0 0
    %7608 = vmatpush2.bf16.msra.mxu0 %v7391
    %7609 = vmatprep.mubr.bf16.mxu0 %v7037
    %7610 = vmatmul.mubr.bf16.gmra.mxu0 %v7036
    %v7611 = vpop.f32.mrf.mxu0
    %v7612 = vadd.f32 %v7547, %v7611
    %v7613 = vpop.f32.mrf.mxu0
    %v7614 = vpop.f32.mrf.mxu0
    %v7615 = vadd.f32 %v7550, %v7614
    %v7616 = vpop.f32.mrf.mxu0
    %7617 = vmatprep.mubr.bf16.mxu0 %v7043
    %7618 = vmatmul.mubr.bf16.gmra.mxu0 %v7042
    %v7619 = vpop.f32.mrf.mxu0
    %v7620 = vadd.f32 %v7555, %v7619
    %v7621 = vpop.f32.mrf.mxu0
    %v7622 = vpop.f32.mrf.mxu0
    %v7623 = vadd.f32 %v7558, %v7622
    %v7624 = vpop.f32.mrf.mxu0
    %7625 = vmatprep.mubr.bf16.mxu0 %v7049
    %7626 = vmatmul.mubr.bf16.gmra.mxu0 %v7048
    %v7627 = vpop.f32.mrf.mxu0
    %v7628 = vadd.f32 %v7563, %v7627
    %v7629 = vpop.f32.mrf.mxu0
    %v7630 = vpop.f32.mrf.mxu0
    %v7631 = vadd.f32 %v7566, %v7630
    %v7632 = vpop.f32.mrf.mxu0
    %7633 = vmatprep.mubr.bf16.mxu0 %v7055
    %7634 = vmatmul.mubr.bf16.gmra.mxu0 %v7054
    %v7635 = vpop.f32.mrf.mxu0
    %v7636 = vadd.f32 %v7571, %v7635
    %v7637 = vpop.f32.mrf.mxu0
    %v7638 = vpop.f32.mrf.mxu0
    %v7639 = vadd.f32 %v7574, %v7638
    %v7640 = vpop.f32.mrf.mxu0
    %7641 = vdwg.mxu0
    %v7642 = vtanh.pop %v7612
    %v7643 = vtanh.pop %v7615
    %v7644 = vtanh.pop %v7620
    %v7645 = vtanh.pop %v7623
    %v7646 = vtanh.pop %v7628
    %v7647 = vtanh.pop %v7631
    %v7648 = vtanh.pop %v7636
    %v7649 = vtanh.pop %v7639
    %7658 = vrot.lane.b32.xlu0 %v3681, 6
    %v7659 = vpop.permute.xlu0 %7658
    %7660 = vrot.lane.b32.xlu0 %v3684, 6
    %v7661 = vpop.permute.xlu0 %7660
    %7662 = vrot.lane.b32.xlu0 %v3689, 6
    %v7663 = vpop.permute.xlu0 %7662
    %7664 = vrot.lane.b32.xlu0 %v3692, 6
    %v7665 = vpop.permute.xlu0 %7664
    %7666 = vrot.lane.b32.xlu0 %v3697, 6
    %v7667 = vpop.permute.xlu0 %7666
    %7668 = vrot.lane.b32.xlu0 %v3700, 6
    %v7669 = vpop.permute.xlu0 %7668
    %7670 = vrot.lane.b32.xlu0 %v3705, 6
    %v7671 = vpop.permute.xlu0 %7670
    %7672 = vrot.lane.b32.xlu0 %v3708, 6
    %v7673 = vpop.permute.xlu0 %7672
    %7690 = vrot.lane.b32.xlu0 %v3728, 6
    %v7691 = vpop.permute.xlu0 %7690
    %7692 = vrot.lane.b32.xlu0 %v3730, 6
    %v7693 = vpop.permute.xlu0 %7692
    %7694 = vrot.lane.b32.xlu0 %v3732, 6
    %v7695 = vpop.permute.xlu0 %7694
    %7696 = vrot.lane.b32.xlu0 %v3734, 6
    %v7697 = vpop.permute.xlu0 %7696
    %7698 = vrot.lane.b32.xlu0 %v3736, 6
    %v7699 = vpop.permute.xlu0 %7698
    %7700 = vrot.lane.b32.xlu0 %v3738, 6
    %v7701 = vpop.permute.xlu0 %7700
    %7702 = vrot.lane.b32.xlu0 %v3740, 6
    %v7703 = vpop.permute.xlu0 %7702
    %7704 = vrot.lane.b32.xlu0 %v3742, 6
    %v7705 = vpop.permute.xlu0 %7704
    %vm7714 = vcmask 48128
    %v7715 = vsel %vm7714, %v7642, %v7659
    %v7716 = vsel %vm7714, %v7643, %v7661
    %v7717 = vsel %vm7714, %v7644, %v7663
    %v7718 = vsel %vm7714, %v7645, %v7665
    %v7719 = vsel %vm7714, %v7646, %v7667
    %v7720 = vsel %vm7714, %v7647, %v7669
    %v7721 = vsel %vm7714, %v7648, %v7671
    %v7722 = vsel %vm7714, %v7649, %v7673
    %vm7723 = vcmask 146432
    %v7724 = vsel %vm7723, %v7715, %v7691
    %v7725 = vsel %vm7723, %v7716, %v7693
    %v7726 = vsel %vm7723, %v7717, %v7695
    %v7727 = vsel %vm7723, %v7718, %v7697
    %v7728 = vsel %vm7723, %v7719, %v7699
    %v7729 = vsel %vm7723, %v7720, %v7701
    %v7730 = vsel %vm7723, %v7721, %v7703
    %v7731 = vsel %vm7723, %v7722, %v7705
    %vm7732 = vcmask 244736
    %v7733 = vsel %vm7732, %v7724, 0.0
    %v7734 = vsel %vm7732, %v7725, 0.0
    %v7735 = vsel %vm7732, %v7726, 0.0
    %v7736 = vsel %vm7732, %v7727, 0.0
    %v7737 = vsel %vm7732, %v7728, 0.0
    %v7738 = vsel %vm7732, %v7729, 0.0
    %v7739 = vsel %vm7732, %v7730, 0.0
    %v7740 = vsel %vm7732, %v7731, 0.0
    %7741 = vst [vmem:[#allocation20] sm:$0xff] %v7733
    %7742 = vst [vmem:[#allocation20 + $0x8] sm:$0xff] %v7734
    %7743 = vst [vmem:[#allocation20 + $0x10] sm:$0xff] %v7735
    %7744 = vst [vmem:[#allocation20 + $0x18] sm:$0xff] %v7736
    %7745 = vst [vmem:[#allocation20 + $0x20] sm:$0xff] %v7737
    %7746 = vst [vmem:[#allocation20 + $0x28] sm:$0xff] %v7738
    %7747 = vst [vmem:[#allocation20 + $0x30] sm:$0xff] %v7739
    %7748 = vst [vmem:[#allocation20 + $0x38] sm:$0xff] %v7740
    // Predicated region
    $region110: #{tpu_custom_call.1} parent=1 // pred_check
      _
    $region111: #{tpu_custom_call.1} parent=1 // pred_check_branch
      %7750 = sbr.rel (0) target = $region113
    $region112: #{tpu_custom_call.1} parent=1 // pred_region
      %s7752 = ssub.s32 1024, 1024
      %7753 = vsyncadd [#allocation4], %s7752
      %s7754 = sshll.u32 [#allocation20], 4
      %s7755 = int_to_ptr.vmem [resolvable:$true] %s7754
      %7760 = dma.vmem_to_hbm [thread:$0]  %s7755, 1024, %s16, [#allocation4], 128, 128, 8
    $region113: #{tpu_custom_call.1} parent=1 // pred_fallthru
      _
    // Predicated region
    $region114: #{tpu_custom_call.1} parent=1 // pred_check
      _
    $region115: #{tpu_custom_call.1} parent=1 // pred_check_branch
      %7762 = sbr.rel (0) target = $region117
    $region116: #{tpu_custom_call.1} parent=1 // pred_region
      %7763 = dma.done [#allocation4], 1024
    $region117: #{tpu_custom_call.1} parent=1 // pred_fallthru
      _
    %7764 = vsyncpa [#allocation3], 1
    %7765 = vsyncpa [#allocation6], 1
    %7766 = vsyncpa [#allocation9], 1
    %7767 = vsyncpa [#allocation12], 1
    %7768 = vsyncpa [#allocation15], 1
    %7769 = vsyncpa [#allocation18], 1
    %7770 = vsyncpa [#allocation4], 1

</llo_original>
